<compile_context>
chip_gen: v7x
topology: tpu7x:2x2x1
jax: 0.10.0
libtpu: 0.0.40
codegen_flags: <defaults>
</compile_context>

<pallas_src>
import functools

import numpy as np
import jax
import jax.numpy as jnp
from jax.experimental import pallas as pl
from jax.experimental.pallas import tpu as pltpu

COL = 8  # column offset of the padded conv-buffer interior


def _dau_kernel(H, W, C,
                x_ref, w1_ref, a_ref, w2_ref, wsa_ref, wca1_ref, wca2_ref,
                w11_ref, o_ref, p1, pmm):
    f32 = jnp.float32
    bf16 = jnp.bfloat16
    O = W + 4                     # lane offset of the mean map inside pmm
    TAPW = O + W                  # width of one combined (max|mean) tap slice
    x = x_ref[0]                  # [H, W, C] float32

    # ---- zero only the halo of the padded 3x3 conv buffer (bf16).
    #      Read region: rows 0..H+1, cols COL-1..COL+W; interior is fully
    #      rewritten each step, so only the 1-wide border must be zero. ----
    p1[0:1, :, :] = jnp.zeros((1, W + 16, C), bf16)
    p1[H + 1:H + 2, :, :] = jnp.zeros((1, W + 16, C), bf16)
    p1[:, COL - 1:COL, :] = jnp.zeros((H + 2, 1, C), bf16)
    p1[:, COL + W:COL + W + 1, :] = jnp.zeros((H + 2, 1, C), bf16)

    def conv3x3(w_ref):
        # 9 accumulating MXU matmuls straight from the bf16 padded buffer
        # (no im2col staging buffer -> no masked-store round trip).
        parts = []
        for ky in range(3):
            accp = None
            for kx in range(3):
                j = ky * 3 + kx
                cs = COL - 1 + kx
                patch = p1[ky:ky + H, cs:cs + W, :].reshape(H * W, C)
                d = jnp.dot(patch, w_ref[j * C:(j + 1) * C, :],
                            preferred_element_type=f32)
                accp = d if accp is None else accp + d
            parts.append(accp)
        return (parts[0] + parts[1]) + parts[2]          # [H*W, C] f32

    # ---- body: conv3x3 -> PReLU -> conv3x3 (padding=1, bias=False) ----
    p1[1:1 + H, COL:COL + W, :] = x.astype(bf16)         # cast once
    acc1 = conv3x3(w1_ref)                               # [H*W, C] f32
    a = a_ref[0]
    y = jnp.where(acc1 > 0, acc1, a * acc1)              # PReLU (f32, shared slope)

    p1[1:1 + H, COL:COL + W, :] = y.reshape(H, W, C).astype(bf16)   # cast once
    acc2 = conv3x3(w2_ref)                               # [H*W, C] f32  ("res")
    res = acc2.reshape(H, W, C)

    # ---- spatial attention: channel max/mean -> 5x5 conv (pad=2) -> sigmoid --
    # max and mean maps live side-by-side in one padded 2-D buffer; each 5x5
    # tap is a single (H, TAPW) slice times a precomputed per-tap lane-weight
    # row (wmax over cols [0,W), wmean over cols [O,O+W), zeros elsewhere).
    pmm[...] = jnp.zeros((H + 4, 2 * (W + 4)), f32)
    pmm[2:2 + H, 2:2 + W] = jnp.max(res, axis=-1)
    pmm[2:2 + H, O + 2:O + 2 + W] = jnp.mean(res, axis=-1)
    partial = [jnp.zeros((H, TAPW), f32) for _ in range(5)]
    for ky in range(5):
        for kx in range(5):
            j = ky * 5 + kx
            wrow = wsa_ref[j:j + 1, :]                               # (1, TAPW)
            partial[kx] = partial[kx] + pmm[ky:ky + H, kx:kx + TAPW] * wrow
    tot = ((partial[0] + partial[1]) + (partial[2] + partial[3])) + partial[4]
    sa = tot[:, 0:W] + tot[:, O:O + W]                               # (H, W)
    sa_b = (res * jax.nn.sigmoid(sa)[:, :, None]).reshape(H * W, C).astype(bf16)
    out = jnp.dot(sa_b, w11_ref[0:C, :], preferred_element_type=f32)

    # ---- channel attention: GAP -> 1x1 -> ReLU -> 1x1 -> sigmoid (VPU/XLU) --
    gap = jnp.mean(acc2, axis=0, keepdims=True)                      # (1, C)
    z = jnp.maximum(
        jnp.sum(gap * wca1_ref[...], axis=1, keepdims=True), 0.0)    # (C//r, 1)
    s = jax.nn.sigmoid(
        jnp.sum(z * wca2_ref[...], axis=0, keepdims=True))           # (1, C)
    ca_b = (acc2 * s).astype(bf16)
    out = out + jnp.dot(ca_b, w11_ref[C:2 * C, :], preferred_element_type=f32)

    # ---- residual add ----
    o_ref[0] = (out.reshape(H, W, C) + x).astype(o_ref.dtype)


def dau_forward(x_nchw, params):
    w1, a, w2, wsa, wca1, wca2, w11 = params
    N, C, H, W = x_nchw.shape
    # TODO(synk): production callers should stay NHWC; these transposes are
    # only here to match the PyTorch NCHW interface.
    x = jnp.transpose(x_nchw, (0, 2, 3, 1)).astype(jnp.float32)  # NHWC

    # MXU operands pre-cast to bf16 (accumulation stays f32 inside the kernel).
    # (ky, kx, ci) row-major flatten matches the in-kernel tap ordering.
    w1f = w1.reshape(9 * C, C).astype(jnp.bfloat16)
    w2f = w2.reshape(9 * C, C).astype(jnp.bfloat16)
    w11b = w11.astype(jnp.bfloat16)

    # CA weights: squeeze weight transposed so both 1x1s are broadcast+reduce.
    wca1t = jnp.transpose(wca1).astype(jnp.float32)        # (C//r, C)
    wca2f = wca2.astype(jnp.float32)                       # (C//r, C)

    # SA per-tap lane-weight rows: wmax over cols [0, W), wmean over [O, O+W).
    O = W + 4
    TAPW = O + W
    wsa_hw = wsa.reshape(5, 5, 2)
    wvec = jnp.zeros((25, TAPW), jnp.float32)
    wvec = wvec.at[:, 0:W].set(
        jnp.broadcast_to(wsa_hw[:, :, 0].reshape(25, 1), (25, W)))
    wvec = wvec.at[:, O:O + W].set(
        jnp.broadcast_to(wsa_hw[:, :, 1].reshape(25, 1), (25, W)))

    kernel = functools.partial(_dau_kernel, H, W, C)
    out = pl.pallas_call(
        kernel,
        out_shape=jax.ShapeDtypeStruct((N, H, W, C), jnp.float32),
        grid=(N,),
        in_specs=[
            pl.BlockSpec((1, H, W, C), lambda b: (b, 0, 0, 0)),      # x
            pl.BlockSpec((9 * C, C), lambda b: (0, 0)),              # body conv1 (bf16)
            pl.BlockSpec(memory_space=pltpu.MemorySpace.SMEM),       # PReLU slope
            pl.BlockSpec((9 * C, C), lambda b: (0, 0)),              # body conv2 (bf16)
            pl.BlockSpec((25, TAPW), lambda b: (0, 0)),              # SA tap weight rows
            pl.BlockSpec((C // 8, C), lambda b: (0, 0)),             # CA squeeze (transposed)
            pl.BlockSpec((C // 8, C), lambda b: (0, 0)),             # CA excite
            pl.BlockSpec((2 * C, C), lambda b: (0, 0)),              # final 1x1 conv (bf16)
        ],
        out_specs=pl.BlockSpec((1, H, W, C), lambda b: (b, 0, 0, 0)),
        scratch_shapes=[
            pltpu.VMEM((H + 2, W + 16, C), jnp.bfloat16),   # padded 3x3 conv buffer
            pltpu.VMEM((H + 4, 2 * (W + 4)), jnp.float32),  # combined max|mean map
        ],
        compiler_params=pltpu.CompilerParams(
            dimension_semantics=("parallel",)),  # batch elements are independent
    )(x, w1f, a, w2f, wvec, wca1t, wca2f, w11b)
    return jnp.transpose(out, (0, 3, 1, 2))  # back to NCHW


def dau_reference(x_nchw, params):
    """Pure-JAX reference with identical semantics (NHWC, HWIO weights)."""
    w1, a, w2, wsa, wca1, wca2, w11 = params
    x = jnp.transpose(x_nchw, (0, 2, 3, 1)).astype(jnp.float32)

    def conv2d(v, w):
        return jax.lax.conv_general_dilated(
            v, w, window_strides=(1, 1), padding="SAME",
            dimension_numbers=("NHWC", "HWIO", "NHWC"))

    y = conv2d(x, w1)
    y = jnp.where(y > 0, y, a[0] * y)
    res = conv2d(y, w2)

    cp = jnp.concatenate([jnp.max(res, -1, keepdims=True),
                          jnp.mean(res, -1, keepdims=True)], axis=-1)
    sa_branch = res * jax.nn.sigmoid(conv2d(cp, wsa.reshape(5, 5, 2, 1)))

    gap = jnp.mean(res, axis=(1, 2), keepdims=True)
    z = jnp.maximum(jnp.einsum("nijc,cd->nijd", gap, wca1), 0.0)
    s = jax.nn.sigmoid(jnp.einsum("nijd,dc->nijc", z, wca2))
    ca_branch = res * s

    cat = jnp.concatenate([sa_branch, ca_branch], axis=-1)
    out = jnp.einsum("nhwc,cf->nhwf", cat, w11) + x
    return jnp.transpose(out, (0, 3, 1, 2))


if __name__ == "__main__":
    N, C, H, W = 2, 32, 16, 16          # n_feat=32, reduction=8 -> C//8 = 4
    key = jax.random.PRNGKey(0)
    kx, k1, k2, k3, k4, k5, k6 = jax.random.split(key, 7)
    x = jax.random.normal(kx, (N, C, H, W), jnp.float32)
    params = (
        jax.random.normal(k1, (3, 3, C, C), jnp.float32) * 0.05,   # body conv1, HWIO
        jnp.array([0.25], jnp.float32),                            # PReLU slope (torch init)
        jax.random.normal(k2, (3, 3, C, C), jnp.float32) * 0.05,   # body conv2, HWIO
        jax.random.normal(k3, (50,), jnp.float32) * 0.1,           # SA 5x5 conv, flat (5,5,2,1) HWIO
        jax.random.normal(k4, (C, C // 8), jnp.float32) * 0.1,     # CA conv_du[0] (no bias in DAU)
        jax.random.normal(k5, (C // 8, C), jnp.float32) * 0.1,     # CA conv_du[2]
        jax.random.normal(k6, (2 * C, C), jnp.float32) * 0.05,     # final 1x1 conv
    )

    out = jax.block_until_ready(dau_forward(x, params))
    ref = jax.block_until_ready(dau_reference(x, params))
    np.testing.assert_allclose(np.asarray(out), np.asarray(ref), rtol=2e-2, atol=2e-2)
    print("KERNEL_OK")
</pallas_src>

<mosaic_0001>
module attributes {stable_mosaic.version = 11 : i64} {
  func.func @_dau_kernel(%arg0: i32, %arg1: memref<1x16x16x32xf32, #tpu.memory_space<vmem>>, %arg2: memref<288x32xbf16, #tpu.memory_space<vmem>>, %arg3: memref<1xf32, #tpu.memory_space<smem>>, %arg4: memref<288x32xbf16, #tpu.memory_space<vmem>>, %arg5: memref<25x36xf32, #tpu.memory_space<vmem>>, %arg6: memref<4x32xf32, #tpu.memory_space<vmem>>, %arg7: memref<4x32xf32, #tpu.memory_space<vmem>>, %arg8: memref<64x32xbf16, #tpu.memory_space<vmem>>, %arg9: memref<1x16x16x32xf32, #tpu.memory_space<vmem>>, %arg10: memref<18x32x32xbf16, #tpu.memory_space<vmem>>, %arg11: memref<20x40xf32, #tpu.memory_space<vmem>>) attributes {dimension_semantics = [#tpu.dimension_semantics<parallel>], iteration_bounds = array<i64: 2>, scalar_prefetch = 0 : i64, scratch_operands = 2 : i64, tpu.core_type = #tpu.core_type<tc>, window_params = [{transform_indices = @transform_0, window_bounds = array<i64: 1, 16, 16, 32>}, {pipeline_mode = #tpu.pipeline_mode<synchronous>, transform_indices = @transform_1, window_bounds = array<i64: 288, 32>}, {transform_indices = @transform_2, window_bounds = array<i64: 1>}, {pipeline_mode = #tpu.pipeline_mode<synchronous>, transform_indices = @transform_3, window_bounds = array<i64: 288, 32>}, {pipeline_mode = #tpu.pipeline_mode<synchronous>, transform_indices = @transform_4, window_bounds = array<i64: 25, 36>}, {pipeline_mode = #tpu.pipeline_mode<synchronous>, transform_indices = @transform_5, window_bounds = array<i64: 4, 32>}, {pipeline_mode = #tpu.pipeline_mode<synchronous>, transform_indices = @transform_6, window_bounds = array<i64: 4, 32>}, {pipeline_mode = #tpu.pipeline_mode<synchronous>, transform_indices = @transform_7, window_bounds = array<i64: 64, 32>}, {transform_indices = @transform_8, window_bounds = array<i64: 1, 16, 16, 32>}]} {
    %c0 = arith.constant 0 : index
    %c0_0 = arith.constant 0 : index
    %c0_1 = arith.constant 0 : index
    %c0_2 = arith.constant 0 : index
    %0 = vector.load %arg1[%c0, %c0_0, %c0_1, %c0_2] : memref<1x16x16x32xf32, #tpu.memory_space<vmem>>, vector<1x16x16x32xf32>
    %1 = vector.shape_cast %0 : vector<1x16x16x32xf32> to vector<16x16x32xf32>
    %cst = arith.constant 0.000000e+00 : bf16
    %2 = vector.broadcast %cst : bf16 to vector<1x32x32xbf16>
    %c0_3 = arith.constant 0 : index
    %c0_4 = arith.constant 0 : index
    %c0_5 = arith.constant 0 : index
    %3 = vector.load %arg10[%c0_3, %c0_4, %c0_5] : memref<18x32x32xbf16, #tpu.memory_space<vmem>>, vector<1x32x32xbf16>
    tpu.vector_store %arg10[%c0_3, %c0_4, %c0_5], %2 {strides = array<i32>} : memref<18x32x32xbf16, #tpu.memory_space<vmem>>, vector<1x32x32xbf16>,
    %cst_6 = arith.constant 0.000000e+00 : bf16
    %4 = vector.broadcast %cst_6 : bf16 to vector<1x32x32xbf16>
    %c17 = arith.constant 17 : index
    %c0_7 = arith.constant 0 : index
    %c0_8 = arith.constant 0 : index
    %5 = vector.load %arg10[%c17, %c0_7, %c0_8] : memref<18x32x32xbf16, #tpu.memory_space<vmem>>, vector<1x32x32xbf16>
    tpu.vector_store %arg10[%c17, %c0_7, %c0_8], %4 {strides = array<i32>} : memref<18x32x32xbf16, #tpu.memory_space<vmem>>, vector<1x32x32xbf16>,
    %cst_9 = arith.constant 0.000000e+00 : bf16
    %6 = vector.broadcast %cst_9 : bf16 to vector<18x1x32xbf16>
    %c0_10 = arith.constant 0 : index
    %c7 = arith.constant 7 : index
    %c0_11 = arith.constant 0 : index
    %7 = vector.load %arg10[%c0_10, %c7, %c0_11] : memref<18x32x32xbf16, #tpu.memory_space<vmem>>, vector<18x1x32xbf16>
    tpu.vector_store %arg10[%c0_10, %c7, %c0_11], %6 {strides = array<i32>} : memref<18x32x32xbf16, #tpu.memory_space<vmem>>, vector<18x1x32xbf16>,
    %cst_12 = arith.constant 0.000000e+00 : bf16
    %8 = vector.broadcast %cst_12 : bf16 to vector<18x1x32xbf16>
    %c0_13 = arith.constant 0 : index
    %c24 = arith.constant 24 : index
    %c0_14 = arith.constant 0 : index
    %9 = vector.load %arg10[%c0_13, %c24, %c0_14] : memref<18x32x32xbf16, #tpu.memory_space<vmem>>, vector<18x1x32xbf16>
    tpu.vector_store %arg10[%c0_13, %c24, %c0_14], %8 {strides = array<i32>} : memref<18x32x32xbf16, #tpu.memory_space<vmem>>, vector<18x1x32xbf16>,
    %10 = arith.truncf %1 : vector<16x16x32xf32> to vector<16x16x32xbf16>
    %c1 = arith.constant 1 : index
    %c8 = arith.constant 8 : index
    %c0_15 = arith.constant 0 : index
    %11 = vector.load %arg10[%c1, %c8, %c0_15] : memref<18x32x32xbf16, #tpu.memory_space<vmem>>, vector<16x16x32xbf16>
    tpu.vector_store %arg10[%c1, %c8, %c0_15], %10 {strides = array<i32>} : memref<18x32x32xbf16, #tpu.memory_space<vmem>>, vector<16x16x32xbf16>,
    %c0_16 = arith.constant 0 : index
    %c7_17 = arith.constant 7 : index
    %c0_18 = arith.constant 0 : index
    %12 = vector.load %arg10[%c0_16, %c7_17, %c0_18] : memref<18x32x32xbf16, #tpu.memory_space<vmem>>, vector<16x16x32xbf16>
    %13 = vector.shape_cast %12 : vector<16x16x32xbf16> to vector<256x32xbf16>
    %c0_19 = arith.constant 0 : index
    %c0_20 = arith.constant 0 : index
    %14 = vector.load %arg2[%c0_19, %c0_20] : memref<288x32xbf16, #tpu.memory_space<vmem>>, vector<32x32xbf16>
    %cst_21 = arith.constant dense<0.000000e+00> : vector<256x32xf32>
    %15 = tpu.matmul %13, %14, %cst_21 {dimension_numbers = #tpu.dot_dimension_numbers<[1], [0], [0], [1], [0, 0, 1, 1], [], []>} : vector<256x32xbf16>, vector<32x32xbf16>, vector<256x32xf32> -> vector<256x32xf32>
    %c0_22 = arith.constant 0 : index
    %c8_23 = arith.constant 8 : index
    %c0_24 = arith.constant 0 : index
    %16 = vector.load %arg10[%c0_22, %c8_23, %c0_24] : memref<18x32x32xbf16, #tpu.memory_space<vmem>>, vector<16x16x32xbf16>
    %17 = vector.shape_cast %16 : vector<16x16x32xbf16> to vector<256x32xbf16>
    %c32 = arith.constant 32 : index
    %c0_25 = arith.constant 0 : index
    %18 = vector.load %arg2[%c32, %c0_25] : memref<288x32xbf16, #tpu.memory_space<vmem>>, vector<32x32xbf16>
    %cst_26 = arith.constant dense<0.000000e+00> : vector<256x32xf32>
    %19 = tpu.matmul %17, %18, %cst_26 {dimension_numbers = #tpu.dot_dimension_numbers<[1], [0], [0], [1], [0, 0, 1, 1], [], []>} : vector<256x32xbf16>, vector<32x32xbf16>, vector<256x32xf32> -> vector<256x32xf32>
    %20 = arith.addf %15, %19 : vector<256x32xf32>
    %c0_27 = arith.constant 0 : index
    %c9 = arith.constant 9 : index
    %c0_28 = arith.constant 0 : index
    %21 = vector.load %arg10[%c0_27, %c9, %c0_28] : memref<18x32x32xbf16, #tpu.memory_space<vmem>>, vector<16x16x32xbf16>
    %22 = vector.shape_cast %21 : vector<16x16x32xbf16> to vector<256x32xbf16>
    %c64 = arith.constant 64 : index
    %c0_29 = arith.constant 0 : index
    %23 = vector.load %arg2[%c64, %c0_29] : memref<288x32xbf16, #tpu.memory_space<vmem>>, vector<32x32xbf16>
    %cst_30 = arith.constant dense<0.000000e+00> : vector<256x32xf32>
    %24 = tpu.matmul %22, %23, %cst_30 {dimension_numbers = #tpu.dot_dimension_numbers<[1], [0], [0], [1], [0, 0, 1, 1], [], []>} : vector<256x32xbf16>, vector<32x32xbf16>, vector<256x32xf32> -> vector<256x32xf32>
    %25 = arith.addf %20, %24 : vector<256x32xf32>
    %c1_31 = arith.constant 1 : index
    %c7_32 = arith.constant 7 : index
    %c0_33 = arith.constant 0 : index
    %26 = vector.load %arg10[%c1_31, %c7_32, %c0_33] : memref<18x32x32xbf16, #tpu.memory_space<vmem>>, vector<16x16x32xbf16>
    %27 = vector.shape_cast %26 : vector<16x16x32xbf16> to vector<256x32xbf16>
    %c96 = arith.constant 96 : index
    %c0_34 = arith.constant 0 : index
    %28 = vector.load %arg2[%c96, %c0_34] : memref<288x32xbf16, #tpu.memory_space<vmem>>, vector<32x32xbf16>
    %cst_35 = arith.constant dense<0.000000e+00> : vector<256x32xf32>
    %29 = tpu.matmul %27, %28, %cst_35 {dimension_numbers = #tpu.dot_dimension_numbers<[1], [0], [0], [1], [0, 0, 1, 1], [], []>} : vector<256x32xbf16>, vector<32x32xbf16>, vector<256x32xf32> -> vector<256x32xf32>
    %c1_36 = arith.constant 1 : index
    %c8_37 = arith.constant 8 : index
    %c0_38 = arith.constant 0 : index
    %30 = vector.load %arg10[%c1_36, %c8_37, %c0_38] : memref<18x32x32xbf16, #tpu.memory_space<vmem>>, vector<16x16x32xbf16>
    %31 = vector.shape_cast %30 : vector<16x16x32xbf16> to vector<256x32xbf16>
    %c128 = arith.constant 128 : index
    %c0_39 = arith.constant 0 : index
    %32 = vector.load %arg2[%c128, %c0_39] : memref<288x32xbf16, #tpu.memory_space<vmem>>, vector<32x32xbf16>
    %cst_40 = arith.constant dense<0.000000e+00> : vector<256x32xf32>
    %33 = tpu.matmul %31, %32, %cst_40 {dimension_numbers = #tpu.dot_dimension_numbers<[1], [0], [0], [1], [0, 0, 1, 1], [], []>} : vector<256x32xbf16>, vector<32x32xbf16>, vector<256x32xf32> -> vector<256x32xf32>
    %34 = arith.addf %29, %33 : vector<256x32xf32>
    %c1_41 = arith.constant 1 : index
    %c9_42 = arith.constant 9 : index
    %c0_43 = arith.constant 0 : index
    %35 = vector.load %arg10[%c1_41, %c9_42, %c0_43] : memref<18x32x32xbf16, #tpu.memory_space<vmem>>, vector<16x16x32xbf16>
    %36 = vector.shape_cast %35 : vector<16x16x32xbf16> to vector<256x32xbf16>
    %c160 = arith.constant 160 : index
    %c0_44 = arith.constant 0 : index
    %37 = vector.load %arg2[%c160, %c0_44] : memref<288x32xbf16, #tpu.memory_space<vmem>>, vector<32x32xbf16>
    %cst_45 = arith.constant dense<0.000000e+00> : vector<256x32xf32>
    %38 = tpu.matmul %36, %37, %cst_45 {dimension_numbers = #tpu.dot_dimension_numbers<[1], [0], [0], [1], [0, 0, 1, 1], [], []>} : vector<256x32xbf16>, vector<32x32xbf16>, vector<256x32xf32> -> vector<256x32xf32>
    %39 = arith.addf %34, %38 : vector<256x32xf32>
    %c2 = arith.constant 2 : index
    %c7_46 = arith.constant 7 : index
    %c0_47 = arith.constant 0 : index
    %40 = vector.load %arg10[%c2, %c7_46, %c0_47] : memref<18x32x32xbf16, #tpu.memory_space<vmem>>, vector<16x16x32xbf16>
    %41 = vector.shape_cast %40 : vector<16x16x32xbf16> to vector<256x32xbf16>
    %c192 = arith.constant 192 : index
    %c0_48 = arith.constant 0 : index
    %42 = vector.load %arg2[%c192, %c0_48] : memref<288x32xbf16, #tpu.memory_space<vmem>>, vector<32x32xbf16>
    %cst_49 = arith.constant dense<0.000000e+00> : vector<256x32xf32>
    %43 = tpu.matmul %41, %42, %cst_49 {dimension_numbers = #tpu.dot_dimension_numbers<[1], [0], [0], [1], [0, 0, 1, 1], [], []>} : vector<256x32xbf16>, vector<32x32xbf16>, vector<256x32xf32> -> vector<256x32xf32>
    %c2_50 = arith.constant 2 : index
    %c8_51 = arith.constant 8 : index
    %c0_52 = arith.constant 0 : index
    %44 = vector.load %arg10[%c2_50, %c8_51, %c0_52] : memref<18x32x32xbf16, #tpu.memory_space<vmem>>, vector<16x16x32xbf16>
    %45 = vector.shape_cast %44 : vector<16x16x32xbf16> to vector<256x32xbf16>
    %c224 = arith.constant 224 : index
    %c0_53 = arith.constant 0 : index
    %46 = vector.load %arg2[%c224, %c0_53] : memref<288x32xbf16, #tpu.memory_space<vmem>>, vector<32x32xbf16>
    %cst_54 = arith.constant dense<0.000000e+00> : vector<256x32xf32>
    %47 = tpu.matmul %45, %46, %cst_54 {dimension_numbers = #tpu.dot_dimension_numbers<[1], [0], [0], [1], [0, 0, 1, 1], [], []>} : vector<256x32xbf16>, vector<32x32xbf16>, vector<256x32xf32> -> vector<256x32xf32>
    %48 = arith.addf %43, %47 : vector<256x32xf32>
    %c2_55 = arith.constant 2 : index
    %c9_56 = arith.constant 9 : index
    %c0_57 = arith.constant 0 : index
    %49 = vector.load %arg10[%c2_55, %c9_56, %c0_57] : memref<18x32x32xbf16, #tpu.memory_space<vmem>>, vector<16x16x32xbf16>
    %50 = vector.shape_cast %49 : vector<16x16x32xbf16> to vector<256x32xbf16>
    %c256 = arith.constant 256 : index
    %c0_58 = arith.constant 0 : index
    %51 = vector.load %arg2[%c256, %c0_58] : memref<288x32xbf16, #tpu.memory_space<vmem>>, vector<32x32xbf16>
    %cst_59 = arith.constant dense<0.000000e+00> : vector<256x32xf32>
    %52 = tpu.matmul %50, %51, %cst_59 {dimension_numbers = #tpu.dot_dimension_numbers<[1], [0], [0], [1], [0, 0, 1, 1], [], []>} : vector<256x32xbf16>, vector<32x32xbf16>, vector<256x32xf32> -> vector<256x32xf32>
    %53 = arith.addf %48, %52 : vector<256x32xf32>
    %54 = arith.addf %25, %39 : vector<256x32xf32>
    %55 = arith.addf %54, %53 : vector<256x32xf32>
    %c0_60 = arith.constant 0 : index
    %56 = memref.load %arg3[%c0_60] : memref<1xf32, #tpu.memory_space<smem>>
    %cst_61 = arith.constant 0.000000e+00 : f32
    %57 = vector.broadcast %cst_61 : f32 to vector<256x32xf32>
    %58 = arith.cmpf ogt, %55, %57 : vector<256x32xf32>
    %59 = vector.broadcast %56 : f32 to vector<256x32xf32>
    %60 = arith.mulf %59, %55 : vector<256x32xf32>
    %61 = arith.select %58, %55, %60 : vector<256x32xi1>, vector<256x32xf32>
    %62 = vector.shape_cast %61 : vector<256x32xf32> to vector<16x16x32xf32>
    %63 = arith.truncf %62 : vector<16x16x32xf32> to vector<16x16x32xbf16>
    %c1_62 = arith.constant 1 : index
    %c8_63 = arith.constant 8 : index
    %c0_64 = arith.constant 0 : index
    %64 = vector.load %arg10[%c1_62, %c8_63, %c0_64] : memref<18x32x32xbf16, #tpu.memory_space<vmem>>, vector<16x16x32xbf16>
    tpu.vector_store %arg10[%c1_62, %c8_63, %c0_64], %63 {strides = array<i32>} : memref<18x32x32xbf16, #tpu.memory_space<vmem>>, vector<16x16x32xbf16>,
    %c0_65 = arith.constant 0 : index
    %c7_66 = arith.constant 7 : index
    %c0_67 = arith.constant 0 : index
    %65 = vector.load %arg10[%c0_65, %c7_66, %c0_67] : memref<18x32x32xbf16, #tpu.memory_space<vmem>>, vector<16x16x32xbf16>
    %66 = vector.shape_cast %65 : vector<16x16x32xbf16> to vector<256x32xbf16>
    %c0_68 = arith.constant 0 : index
    %c0_69 = arith.constant 0 : index
    %67 = vector.load %arg4[%c0_68, %c0_69] : memref<288x32xbf16, #tpu.memory_space<vmem>>, vector<32x32xbf16>
    %cst_70 = arith.constant dense<0.000000e+00> : vector<256x32xf32>
    %68 = tpu.matmul %66, %67, %cst_70 {dimension_numbers = #tpu.dot_dimension_numbers<[1], [0], [0], [1], [0, 0, 1, 1], [], []>} : vector<256x32xbf16>, vector<32x32xbf16>, vector<256x32xf32> -> vector<256x32xf32>
    %c0_71 = arith.constant 0 : index
    %c8_72 = arith.constant 8 : index
    %c0_73 = arith.constant 0 : index
    %69 = vector.load %arg10[%c0_71, %c8_72, %c0_73] : memref<18x32x32xbf16, #tpu.memory_space<vmem>>, vector<16x16x32xbf16>
    %70 = vector.shape_cast %69 : vector<16x16x32xbf16> to vector<256x32xbf16>
    %c32_74 = arith.constant 32 : index
    %c0_75 = arith.constant 0 : index
    %71 = vector.load %arg4[%c32_74, %c0_75] : memref<288x32xbf16, #tpu.memory_space<vmem>>, vector<32x32xbf16>
    %cst_76 = arith.constant dense<0.000000e+00> : vector<256x32xf32>
    %72 = tpu.matmul %70, %71, %cst_76 {dimension_numbers = #tpu.dot_dimension_numbers<[1], [0], [0], [1], [0, 0, 1, 1], [], []>} : vector<256x32xbf16>, vector<32x32xbf16>, vector<256x32xf32> -> vector<256x32xf32>
    %73 = arith.addf %68, %72 : vector<256x32xf32>
    %c0_77 = arith.constant 0 : index
    %c9_78 = arith.constant 9 : index
    %c0_79 = arith.constant 0 : index
    %74 = vector.load %arg10[%c0_77, %c9_78, %c0_79] : memref<18x32x32xbf16, #tpu.memory_space<vmem>>, vector<16x16x32xbf16>
    %75 = vector.shape_cast %74 : vector<16x16x32xbf16> to vector<256x32xbf16>
    %c64_80 = arith.constant 64 : index
    %c0_81 = arith.constant 0 : index
    %76 = vector.load %arg4[%c64_80, %c0_81] : memref<288x32xbf16, #tpu.memory_space<vmem>>, vector<32x32xbf16>
    %cst_82 = arith.constant dense<0.000000e+00> : vector<256x32xf32>
    %77 = tpu.matmul %75, %76, %cst_82 {dimension_numbers = #tpu.dot_dimension_numbers<[1], [0], [0], [1], [0, 0, 1, 1], [], []>} : vector<256x32xbf16>, vector<32x32xbf16>, vector<256x32xf32> -> vector<256x32xf32>
    %78 = arith.addf %73, %77 : vector<256x32xf32>
    %c1_83 = arith.constant 1 : index
    %c7_84 = arith.constant 7 : index
    %c0_85 = arith.constant 0 : index
    %79 = vector.load %arg10[%c1_83, %c7_84, %c0_85] : memref<18x32x32xbf16, #tpu.memory_space<vmem>>, vector<16x16x32xbf16>
    %80 = vector.shape_cast %79 : vector<16x16x32xbf16> to vector<256x32xbf16>
    %c96_86 = arith.constant 96 : index
    %c0_87 = arith.constant 0 : index
    %81 = vector.load %arg4[%c96_86, %c0_87] : memref<288x32xbf16, #tpu.memory_space<vmem>>, vector<32x32xbf16>
    %cst_88 = arith.constant dense<0.000000e+00> : vector<256x32xf32>
    %82 = tpu.matmul %80, %81, %cst_88 {dimension_numbers = #tpu.dot_dimension_numbers<[1], [0], [0], [1], [0, 0, 1, 1], [], []>} : vector<256x32xbf16>, vector<32x32xbf16>, vector<256x32xf32> -> vector<256x32xf32>
    %c1_89 = arith.constant 1 : index
    %c8_90 = arith.constant 8 : index
    %c0_91 = arith.constant 0 : index
    %83 = vector.load %arg10[%c1_89, %c8_90, %c0_91] : memref<18x32x32xbf16, #tpu.memory_space<vmem>>, vector<16x16x32xbf16>
    %84 = vector.shape_cast %83 : vector<16x16x32xbf16> to vector<256x32xbf16>
    %c128_92 = arith.constant 128 : index
    %c0_93 = arith.constant 0 : index
    %85 = vector.load %arg4[%c128_92, %c0_93] : memref<288x32xbf16, #tpu.memory_space<vmem>>, vector<32x32xbf16>
    %cst_94 = arith.constant dense<0.000000e+00> : vector<256x32xf32>
    %86 = tpu.matmul %84, %85, %cst_94 {dimension_numbers = #tpu.dot_dimension_numbers<[1], [0], [0], [1], [0, 0, 1, 1], [], []>} : vector<256x32xbf16>, vector<32x32xbf16>, vector<256x32xf32> -> vector<256x32xf32>
    %87 = arith.addf %82, %86 : vector<256x32xf32>
    %c1_95 = arith.constant 1 : index
    %c9_96 = arith.constant 9 : index
    %c0_97 = arith.constant 0 : index
    %88 = vector.load %arg10[%c1_95, %c9_96, %c0_97] : memref<18x32x32xbf16, #tpu.memory_space<vmem>>, vector<16x16x32xbf16>
    %89 = vector.shape_cast %88 : vector<16x16x32xbf16> to vector<256x32xbf16>
    %c160_98 = arith.constant 160 : index
    %c0_99 = arith.constant 0 : index
    %90 = vector.load %arg4[%c160_98, %c0_99] : memref<288x32xbf16, #tpu.memory_space<vmem>>, vector<32x32xbf16>
    %cst_100 = arith.constant dense<0.000000e+00> : vector<256x32xf32>
    %91 = tpu.matmul %89, %90, %cst_100 {dimension_numbers = #tpu.dot_dimension_numbers<[1], [0], [0], [1], [0, 0, 1, 1], [], []>} : vector<256x32xbf16>, vector<32x32xbf16>, vector<256x32xf32> -> vector<256x32xf32>
    %92 = arith.addf %87, %91 : vector<256x32xf32>
    %c2_101 = arith.constant 2 : index
    %c7_102 = arith.constant 7 : index
    %c0_103 = arith.constant 0 : index
    %93 = vector.load %arg10[%c2_101, %c7_102, %c0_103] : memref<18x32x32xbf16, #tpu.memory_space<vmem>>, vector<16x16x32xbf16>
    %94 = vector.shape_cast %93 : vector<16x16x32xbf16> to vector<256x32xbf16>
    %c192_104 = arith.constant 192 : index
    %c0_105 = arith.constant 0 : index
    %95 = vector.load %arg4[%c192_104, %c0_105] : memref<288x32xbf16, #tpu.memory_space<vmem>>, vector<32x32xbf16>
    %cst_106 = arith.constant dense<0.000000e+00> : vector<256x32xf32>
    %96 = tpu.matmul %94, %95, %cst_106 {dimension_numbers = #tpu.dot_dimension_numbers<[1], [0], [0], [1], [0, 0, 1, 1], [], []>} : vector<256x32xbf16>, vector<32x32xbf16>, vector<256x32xf32> -> vector<256x32xf32>
    %c2_107 = arith.constant 2 : index
    %c8_108 = arith.constant 8 : index
    %c0_109 = arith.constant 0 : index
    %97 = vector.load %arg10[%c2_107, %c8_108, %c0_109] : memref<18x32x32xbf16, #tpu.memory_space<vmem>>, vector<16x16x32xbf16>
    %98 = vector.shape_cast %97 : vector<16x16x32xbf16> to vector<256x32xbf16>
    %c224_110 = arith.constant 224 : index
    %c0_111 = arith.constant 0 : index
    %99 = vector.load %arg4[%c224_110, %c0_111] : memref<288x32xbf16, #tpu.memory_space<vmem>>, vector<32x32xbf16>
    %cst_112 = arith.constant dense<0.000000e+00> : vector<256x32xf32>
    %100 = tpu.matmul %98, %99, %cst_112 {dimension_numbers = #tpu.dot_dimension_numbers<[1], [0], [0], [1], [0, 0, 1, 1], [], []>} : vector<256x32xbf16>, vector<32x32xbf16>, vector<256x32xf32> -> vector<256x32xf32>
    %101 = arith.addf %96, %100 : vector<256x32xf32>
    %c2_113 = arith.constant 2 : index
    %c9_114 = arith.constant 9 : index
    %c0_115 = arith.constant 0 : index
    %102 = vector.load %arg10[%c2_113, %c9_114, %c0_115] : memref<18x32x32xbf16, #tpu.memory_space<vmem>>, vector<16x16x32xbf16>
    %103 = vector.shape_cast %102 : vector<16x16x32xbf16> to vector<256x32xbf16>
    %c256_116 = arith.constant 256 : index
    %c0_117 = arith.constant 0 : index
    %104 = vector.load %arg4[%c256_116, %c0_117] : memref<288x32xbf16, #tpu.memory_space<vmem>>, vector<32x32xbf16>
    %cst_118 = arith.constant dense<0.000000e+00> : vector<256x32xf32>
    %105 = tpu.matmul %103, %104, %cst_118 {dimension_numbers = #tpu.dot_dimension_numbers<[1], [0], [0], [1], [0, 0, 1, 1], [], []>} : vector<256x32xbf16>, vector<32x32xbf16>, vector<256x32xf32> -> vector<256x32xf32>
    %106 = arith.addf %101, %105 : vector<256x32xf32>
    %107 = arith.addf %78, %92 : vector<256x32xf32>
    %108 = arith.addf %107, %106 : vector<256x32xf32>
    %109 = vector.shape_cast %108 : vector<256x32xf32> to vector<16x16x32xf32>
    %cst_119 = arith.constant 0.000000e+00 : f32
    %110 = vector.broadcast %cst_119 : f32 to vector<20x40xf32>
    %c0_120 = arith.constant 0 : index
    %c0_121 = arith.constant 0 : index
    %111 = vector.load %arg11[%c0_120, %c0_121] : memref<20x40xf32, #tpu.memory_space<vmem>>, vector<20x40xf32>
    tpu.vector_store %arg11[%c0_120, %c0_121], %110 {strides = array<i32>} : memref<20x40xf32, #tpu.memory_space<vmem>>, vector<20x40xf32>,
    %cst_122 = arith.constant dense<0xFF800000> : vector<16x16xf32>
    %112 = vector.multi_reduction <maximumf>, %109, %cst_122 [2] : vector<16x16x32xf32> to vector<16x16xf32>
    %c2_123 = arith.constant 2 : index
    %c2_124 = arith.constant 2 : index
    %113 = vector.load %arg11[%c2_123, %c2_124] : memref<20x40xf32, #tpu.memory_space<vmem>>, vector<16x16xf32>
    tpu.vector_store %arg11[%c2_123, %c2_124], %112 {strides = array<i32>} : memref<20x40xf32, #tpu.memory_space<vmem>>, vector<16x16xf32>,
    %cst_125 = arith.constant dense<0.000000e+00> : vector<16x16xf32>
    %114 = vector.multi_reduction <add>, %109, %cst_125 [2] : vector<16x16x32xf32> to vector<16x16xf32>
    %cst_126 = arith.constant 3.200000e+01 : f32
    %115 = vector.broadcast %cst_126 : f32 to vector<16x16xf32>
    %116 = arith.divf %114, %115 : vector<16x16xf32>
    %c2_127 = arith.constant 2 : index
    %c22 = arith.constant 22 : index
    %117 = vector.load %arg11[%c2_127, %c22] : memref<20x40xf32, #tpu.memory_space<vmem>>, vector<16x16xf32>
    tpu.vector_store %arg11[%c2_127, %c22], %116 {strides = array<i32>} : memref<20x40xf32, #tpu.memory_space<vmem>>, vector<16x16xf32>,
    %cst_128 = arith.constant 0.000000e+00 : f32
    %118 = vector.broadcast %cst_128 : f32 to vector<16x36xf32>
    %cst_129 = arith.constant 0.000000e+00 : f32
    %119 = vector.broadcast %cst_129 : f32 to vector<16x36xf32>
    %cst_130 = arith.constant 0.000000e+00 : f32
    %120 = vector.broadcast %cst_130 : f32 to vector<16x36xf32>
    %cst_131 = arith.constant 0.000000e+00 : f32
    %121 = vector.broadcast %cst_131 : f32 to vector<16x36xf32>
    %cst_132 = arith.constant 0.000000e+00 : f32
    %122 = vector.broadcast %cst_132 : f32 to vector<16x36xf32>
    %c0_133 = arith.constant 0 : index
    %c0_134 = arith.constant 0 : index
    %123 = vector.load %arg5[%c0_133, %c0_134] : memref<25x36xf32, #tpu.memory_space<vmem>>, vector<1x36xf32>
    %c0_135 = arith.constant 0 : index
    %c0_136 = arith.constant 0 : index
    %124 = vector.load %arg11[%c0_135, %c0_136] : memref<20x40xf32, #tpu.memory_space<vmem>>, vector<16x36xf32>
    %125 = vector.broadcast %123 : vector<1x36xf32> to vector<16x36xf32>
    %126 = arith.mulf %124, %125 : vector<16x36xf32>
    %127 = arith.addf %118, %126 : vector<16x36xf32>
    %c1_137 = arith.constant 1 : index
    %c0_138 = arith.constant 0 : index
    %128 = vector.load %arg5[%c1_137, %c0_138] : memref<25x36xf32, #tpu.memory_space<vmem>>, vector<1x36xf32>
    %c0_139 = arith.constant 0 : index
    %c1_140 = arith.constant 1 : index
    %129 = vector.load %arg11[%c0_139, %c1_140] : memref<20x40xf32, #tpu.memory_space<vmem>>, vector<16x36xf32>
    %130 = vector.broadcast %128 : vector<1x36xf32> to vector<16x36xf32>
    %131 = arith.mulf %129, %130 : vector<16x36xf32>
    %132 = arith.addf %119, %131 : vector<16x36xf32>
    %c2_141 = arith.constant 2 : index
    %c0_142 = arith.constant 0 : index
    %133 = vector.load %arg5[%c2_141, %c0_142] : memref<25x36xf32, #tpu.memory_space<vmem>>, vector<1x36xf32>
    %c0_143 = arith.constant 0 : index
    %c2_144 = arith.constant 2 : index
    %134 = vector.load %arg11[%c0_143, %c2_144] : memref<20x40xf32, #tpu.memory_space<vmem>>, vector<16x36xf32>
    %135 = vector.broadcast %133 : vector<1x36xf32> to vector<16x36xf32>
    %136 = arith.mulf %134, %135 : vector<16x36xf32>
    %137 = arith.addf %120, %136 : vector<16x36xf32>
    %c3 = arith.constant 3 : index
    %c0_145 = arith.constant 0 : index
    %138 = vector.load %arg5[%c3, %c0_145] : memref<25x36xf32, #tpu.memory_space<vmem>>, vector<1x36xf32>
    %c0_146 = arith.constant 0 : index
    %c3_147 = arith.constant 3 : index
    %139 = vector.load %arg11[%c0_146, %c3_147] : memref<20x40xf32, #tpu.memory_space<vmem>>, vector<16x36xf32>
    %140 = vector.broadcast %138 : vector<1x36xf32> to vector<16x36xf32>
    %141 = arith.mulf %139, %140 : vector<16x36xf32>
    %142 = arith.addf %121, %141 : vector<16x36xf32>
    %c4 = arith.constant 4 : index
    %c0_148 = arith.constant 0 : index
    %143 = vector.load %arg5[%c4, %c0_148] : memref<25x36xf32, #tpu.memory_space<vmem>>, vector<1x36xf32>
    %c0_149 = arith.constant 0 : index
    %c4_150 = arith.constant 4 : index
    %144 = vector.load %arg11[%c0_149, %c4_150] : memref<20x40xf32, #tpu.memory_space<vmem>>, vector<16x36xf32>
    %145 = vector.broadcast %143 : vector<1x36xf32> to vector<16x36xf32>
    %146 = arith.mulf %144, %145 : vector<16x36xf32>
    %147 = arith.addf %122, %146 : vector<16x36xf32>
    %c5 = arith.constant 5 : index
    %c0_151 = arith.constant 0 : index
    %148 = vector.load %arg5[%c5, %c0_151] : memref<25x36xf32, #tpu.memory_space<vmem>>, vector<1x36xf32>
    %c1_152 = arith.constant 1 : index
    %c0_153 = arith.constant 0 : index
    %149 = vector.load %arg11[%c1_152, %c0_153] : memref<20x40xf32, #tpu.memory_space<vmem>>, vector<16x36xf32>
    %150 = vector.broadcast %148 : vector<1x36xf32> to vector<16x36xf32>
    %151 = arith.mulf %149, %150 : vector<16x36xf32>
    %152 = arith.addf %127, %151 : vector<16x36xf32>
    %c6 = arith.constant 6 : index
    %c0_154 = arith.constant 0 : index
    %153 = vector.load %arg5[%c6, %c0_154] : memref<25x36xf32, #tpu.memory_space<vmem>>, vector<1x36xf32>
    %c1_155 = arith.constant 1 : index
    %c1_156 = arith.constant 1 : index
    %154 = vector.load %arg11[%c1_155, %c1_156] : memref<20x40xf32, #tpu.memory_space<vmem>>, vector<16x36xf32>
    %155 = vector.broadcast %153 : vector<1x36xf32> to vector<16x36xf32>
    %156 = arith.mulf %154, %155 : vector<16x36xf32>
    %157 = arith.addf %132, %156 : vector<16x36xf32>
    %c7_157 = arith.constant 7 : index
    %c0_158 = arith.constant 0 : index
    %158 = vector.load %arg5[%c7_157, %c0_158] : memref<25x36xf32, #tpu.memory_space<vmem>>, vector<1x36xf32>
    %c1_159 = arith.constant 1 : index
    %c2_160 = arith.constant 2 : index
    %159 = vector.load %arg11[%c1_159, %c2_160] : memref<20x40xf32, #tpu.memory_space<vmem>>, vector<16x36xf32>
    %160 = vector.broadcast %158 : vector<1x36xf32> to vector<16x36xf32>
    %161 = arith.mulf %159, %160 : vector<16x36xf32>
    %162 = arith.addf %137, %161 : vector<16x36xf32>
    %c8_161 = arith.constant 8 : index
    %c0_162 = arith.constant 0 : index
    %163 = vector.load %arg5[%c8_161, %c0_162] : memref<25x36xf32, #tpu.memory_space<vmem>>, vector<1x36xf32>
    %c1_163 = arith.constant 1 : index
    %c3_164 = arith.constant 3 : index
    %164 = vector.load %arg11[%c1_163, %c3_164] : memref<20x40xf32, #tpu.memory_space<vmem>>, vector<16x36xf32>
    %165 = vector.broadcast %163 : vector<1x36xf32> to vector<16x36xf32>
    %166 = arith.mulf %164, %165 : vector<16x36xf32>
    %167 = arith.addf %142, %166 : vector<16x36xf32>
    %c9_165 = arith.constant 9 : index
    %c0_166 = arith.constant 0 : index
    %168 = vector.load %arg5[%c9_165, %c0_166] : memref<25x36xf32, #tpu.memory_space<vmem>>, vector<1x36xf32>
    %c1_167 = arith.constant 1 : index
    %c4_168 = arith.constant 4 : index
    %169 = vector.load %arg11[%c1_167, %c4_168] : memref<20x40xf32, #tpu.memory_space<vmem>>, vector<16x36xf32>
    %170 = vector.broadcast %168 : vector<1x36xf32> to vector<16x36xf32>
    %171 = arith.mulf %169, %170 : vector<16x36xf32>
    %172 = arith.addf %147, %171 : vector<16x36xf32>
    %c10 = arith.constant 10 : index
    %c0_169 = arith.constant 0 : index
    %173 = vector.load %arg5[%c10, %c0_169] : memref<25x36xf32, #tpu.memory_space<vmem>>, vector<1x36xf32>
    %c2_170 = arith.constant 2 : index
    %c0_171 = arith.constant 0 : index
    %174 = vector.load %arg11[%c2_170, %c0_171] : memref<20x40xf32, #tpu.memory_space<vmem>>, vector<16x36xf32>
    %175 = vector.broadcast %173 : vector<1x36xf32> to vector<16x36xf32>
    %176 = arith.mulf %174, %175 : vector<16x36xf32>
    %177 = arith.addf %152, %176 : vector<16x36xf32>
    %c11 = arith.constant 11 : index
    %c0_172 = arith.constant 0 : index
    %178 = vector.load %arg5[%c11, %c0_172] : memref<25x36xf32, #tpu.memory_space<vmem>>, vector<1x36xf32>
    %c2_173 = arith.constant 2 : index
    %c1_174 = arith.constant 1 : index
    %179 = vector.load %arg11[%c2_173, %c1_174] : memref<20x40xf32, #tpu.memory_space<vmem>>, vector<16x36xf32>
    %180 = vector.broadcast %178 : vector<1x36xf32> to vector<16x36xf32>
    %181 = arith.mulf %179, %180 : vector<16x36xf32>
    %182 = arith.addf %157, %181 : vector<16x36xf32>
    %c12 = arith.constant 12 : index
    %c0_175 = arith.constant 0 : index
    %183 = vector.load %arg5[%c12, %c0_175] : memref<25x36xf32, #tpu.memory_space<vmem>>, vector<1x36xf32>
    %c2_176 = arith.constant 2 : index
    %c2_177 = arith.constant 2 : index
    %184 = vector.load %arg11[%c2_176, %c2_177] : memref<20x40xf32, #tpu.memory_space<vmem>>, vector<16x36xf32>
    %185 = vector.broadcast %183 : vector<1x36xf32> to vector<16x36xf32>
    %186 = arith.mulf %184, %185 : vector<16x36xf32>
    %187 = arith.addf %162, %186 : vector<16x36xf32>
    %c13 = arith.constant 13 : index
    %c0_178 = arith.constant 0 : index
    %188 = vector.load %arg5[%c13, %c0_178] : memref<25x36xf32, #tpu.memory_space<vmem>>, vector<1x36xf32>
    %c2_179 = arith.constant 2 : index
    %c3_180 = arith.constant 3 : index
    %189 = vector.load %arg11[%c2_179, %c3_180] : memref<20x40xf32, #tpu.memory_space<vmem>>, vector<16x36xf32>
    %190 = vector.broadcast %188 : vector<1x36xf32> to vector<16x36xf32>
    %191 = arith.mulf %189, %190 : vector<16x36xf32>
    %192 = arith.addf %167, %191 : vector<16x36xf32>
    %c14 = arith.constant 14 : index
    %c0_181 = arith.constant 0 : index
    %193 = vector.load %arg5[%c14, %c0_181] : memref<25x36xf32, #tpu.memory_space<vmem>>, vector<1x36xf32>
    %c2_182 = arith.constant 2 : index
    %c4_183 = arith.constant 4 : index
    %194 = vector.load %arg11[%c2_182, %c4_183] : memref<20x40xf32, #tpu.memory_space<vmem>>, vector<16x36xf32>
    %195 = vector.broadcast %193 : vector<1x36xf32> to vector<16x36xf32>
    %196 = arith.mulf %194, %195 : vector<16x36xf32>
    %197 = arith.addf %172, %196 : vector<16x36xf32>
    %c15 = arith.constant 15 : index
    %c0_184 = arith.constant 0 : index
    %198 = vector.load %arg5[%c15, %c0_184] : memref<25x36xf32, #tpu.memory_space<vmem>>, vector<1x36xf32>
    %c3_185 = arith.constant 3 : index
    %c0_186 = arith.constant 0 : index
    %199 = vector.load %arg11[%c3_185, %c0_186] : memref<20x40xf32, #tpu.memory_space<vmem>>, vector<16x36xf32>
    %200 = vector.broadcast %198 : vector<1x36xf32> to vector<16x36xf32>
    %201 = arith.mulf %199, %200 : vector<16x36xf32>
    %202 = arith.addf %177, %201 : vector<16x36xf32>
    %c16 = arith.constant 16 : index
    %c0_187 = arith.constant 0 : index
    %203 = vector.load %arg5[%c16, %c0_187] : memref<25x36xf32, #tpu.memory_space<vmem>>, vector<1x36xf32>
    %c3_188 = arith.constant 3 : index
    %c1_189 = arith.constant 1 : index
    %204 = vector.load %arg11[%c3_188, %c1_189] : memref<20x40xf32, #tpu.memory_space<vmem>>, vector<16x36xf32>
    %205 = vector.broadcast %203 : vector<1x36xf32> to vector<16x36xf32>
    %206 = arith.mulf %204, %205 : vector<16x36xf32>
    %207 = arith.addf %182, %206 : vector<16x36xf32>
    %c17_190 = arith.constant 17 : index
    %c0_191 = arith.constant 0 : index
    %208 = vector.load %arg5[%c17_190, %c0_191] : memref<25x36xf32, #tpu.memory_space<vmem>>, vector<1x36xf32>
    %c3_192 = arith.constant 3 : index
    %c2_193 = arith.constant 2 : index
    %209 = vector.load %arg11[%c3_192, %c2_193] : memref<20x40xf32, #tpu.memory_space<vmem>>, vector<16x36xf32>
    %210 = vector.broadcast %208 : vector<1x36xf32> to vector<16x36xf32>
    %211 = arith.mulf %209, %210 : vector<16x36xf32>
    %212 = arith.addf %187, %211 : vector<16x36xf32>
    %c18 = arith.constant 18 : index
    %c0_194 = arith.constant 0 : index
    %213 = vector.load %arg5[%c18, %c0_194] : memref<25x36xf32, #tpu.memory_space<vmem>>, vector<1x36xf32>
    %c3_195 = arith.constant 3 : index
    %c3_196 = arith.constant 3 : index
    %214 = vector.load %arg11[%c3_195, %c3_196] : memref<20x40xf32, #tpu.memory_space<vmem>>, vector<16x36xf32>
    %215 = vector.broadcast %213 : vector<1x36xf32> to vector<16x36xf32>
    %216 = arith.mulf %214, %215 : vector<16x36xf32>
    %217 = arith.addf %192, %216 : vector<16x36xf32>
    %c19 = arith.constant 19 : index
    %c0_197 = arith.constant 0 : index
    %218 = vector.load %arg5[%c19, %c0_197] : memref<25x36xf32, #tpu.memory_space<vmem>>, vector<1x36xf32>
    %c3_198 = arith.constant 3 : index
    %c4_199 = arith.constant 4 : index
    %219 = vector.load %arg11[%c3_198, %c4_199] : memref<20x40xf32, #tpu.memory_space<vmem>>, vector<16x36xf32>
    %220 = vector.broadcast %218 : vector<1x36xf32> to vector<16x36xf32>
    %221 = arith.mulf %219, %220 : vector<16x36xf32>
    %222 = arith.addf %197, %221 : vector<16x36xf32>
    %c20 = arith.constant 20 : index
    %c0_200 = arith.constant 0 : index
    %223 = vector.load %arg5[%c20, %c0_200] : memref<25x36xf32, #tpu.memory_space<vmem>>, vector<1x36xf32>
    %c4_201 = arith.constant 4 : index
    %c0_202 = arith.constant 0 : index
    %224 = vector.load %arg11[%c4_201, %c0_202] : memref<20x40xf32, #tpu.memory_space<vmem>>, vector<16x36xf32>
    %225 = vector.broadcast %223 : vector<1x36xf32> to vector<16x36xf32>
    %226 = arith.mulf %224, %225 : vector<16x36xf32>
    %227 = arith.addf %202, %226 : vector<16x36xf32>
    %c21 = arith.constant 21 : index
    %c0_203 = arith.constant 0 : index
    %228 = vector.load %arg5[%c21, %c0_203] : memref<25x36xf32, #tpu.memory_space<vmem>>, vector<1x36xf32>
    %c4_204 = arith.constant 4 : index
    %c1_205 = arith.constant 1 : index
    %229 = vector.load %arg11[%c4_204, %c1_205] : memref<20x40xf32, #tpu.memory_space<vmem>>, vector<16x36xf32>
    %230 = vector.broadcast %228 : vector<1x36xf32> to vector<16x36xf32>
    %231 = arith.mulf %229, %230 : vector<16x36xf32>
    %232 = arith.addf %207, %231 : vector<16x36xf32>
    %c22_206 = arith.constant 22 : index
    %c0_207 = arith.constant 0 : index
    %233 = vector.load %arg5[%c22_206, %c0_207] : memref<25x36xf32, #tpu.memory_space<vmem>>, vector<1x36xf32>
    %c4_208 = arith.constant 4 : index
    %c2_209 = arith.constant 2 : index
    %234 = vector.load %arg11[%c4_208, %c2_209] : memref<20x40xf32, #tpu.memory_space<vmem>>, vector<16x36xf32>
    %235 = vector.broadcast %233 : vector<1x36xf32> to vector<16x36xf32>
    %236 = arith.mulf %234, %235 : vector<16x36xf32>
    %237 = arith.addf %212, %236 : vector<16x36xf32>
    %c23 = arith.constant 23 : index
    %c0_210 = arith.constant 0 : index
    %238 = vector.load %arg5[%c23, %c0_210] : memref<25x36xf32, #tpu.memory_space<vmem>>, vector<1x36xf32>
    %c4_211 = arith.constant 4 : index
    %c3_212 = arith.constant 3 : index
    %239 = vector.load %arg11[%c4_211, %c3_212] : memref<20x40xf32, #tpu.memory_space<vmem>>, vector<16x36xf32>
    %240 = vector.broadcast %238 : vector<1x36xf32> to vector<16x36xf32>
    %241 = arith.mulf %239, %240 : vector<16x36xf32>
    %242 = arith.addf %217, %241 : vector<16x36xf32>
    %c24_213 = arith.constant 24 : index
    %c0_214 = arith.constant 0 : index
    %243 = vector.load %arg5[%c24_213, %c0_214] : memref<25x36xf32, #tpu.memory_space<vmem>>, vector<1x36xf32>
    %c4_215 = arith.constant 4 : index
    %c4_216 = arith.constant 4 : index
    %244 = vector.load %arg11[%c4_215, %c4_216] : memref<20x40xf32, #tpu.memory_space<vmem>>, vector<16x36xf32>
    %245 = vector.broadcast %243 : vector<1x36xf32> to vector<16x36xf32>
    %246 = arith.mulf %244, %245 : vector<16x36xf32>
    %247 = arith.addf %222, %246 : vector<16x36xf32>
    %248 = arith.addf %227, %232 : vector<16x36xf32>
    %249 = arith.addf %237, %242 : vector<16x36xf32>
    %250 = arith.addf %248, %249 : vector<16x36xf32>
    %251 = arith.addf %250, %247 : vector<16x36xf32>
    %252 = vector.extract_strided_slice %251 {offsets = [0, 0], sizes = [16, 16], strides = [1, 1]} : vector<16x36xf32> to vector<16x16xf32>
    %253 = vector.extract_strided_slice %251 {offsets = [0, 20], sizes = [16, 16], strides = [1, 1]} : vector<16x36xf32> to vector<16x16xf32>
    %254 = arith.addf %252, %253 : vector<16x16xf32>
    %255 = arith.negf %254 : vector<16x16xf32>
    %256 = math.exp %255 : vector<16x16xf32>
    %cst_217 = arith.constant 1.000000e+00 : f32
    %257 = vector.broadcast %cst_217 : f32 to vector<16x16xf32>
    %258 = arith.addf %257, %256 : vector<16x16xf32>
    %259 = arith.divf %257, %258 : vector<16x16xf32>
    %260 = vector.shape_cast %259 : vector<16x16xf32> to vector<16x16x1xf32>
    %261 = vector.broadcast %260 : vector<16x16x1xf32> to vector<16x16x32xf32>
    %262 = arith.mulf %109, %261 : vector<16x16x32xf32>
    %263 = vector.shape_cast %262 : vector<16x16x32xf32> to vector<256x32xf32>
    %264 = arith.truncf %263 : vector<256x32xf32> to vector<256x32xbf16>
    %c0_218 = arith.constant 0 : index
    %c0_219 = arith.constant 0 : index
    %265 = vector.load %arg8[%c0_218, %c0_219] : memref<64x32xbf16, #tpu.memory_space<vmem>>, vector<32x32xbf16>
    %cst_220 = arith.constant dense<0.000000e+00> : vector<256x32xf32>
    %266 = tpu.matmul %264, %265, %cst_220 {dimension_numbers = #tpu.dot_dimension_numbers<[1], [0], [0], [1], [0, 0, 1, 1], [], []>} : vector<256x32xbf16>, vector<32x32xbf16>, vector<256x32xf32> -> vector<256x32xf32>
    %cst_221 = arith.constant dense<0.000000e+00> : vector<32xf32>
    %267 = vector.multi_reduction <add>, %108, %cst_221 [0] : vector<256x32xf32> to vector<32xf32>
    %268 = vector.shape_cast %267 : vector<32xf32> to vector<1x32xf32>
    %cst_222 = arith.constant 2.560000e+02 : f32
    %269 = vector.broadcast %cst_222 : f32 to vector<1x32xf32>
    %270 = arith.divf %268, %269 : vector<1x32xf32>
    %c0_223 = arith.constant 0 : index
    %c0_224 = arith.constant 0 : index
    %271 = vector.load %arg6[%c0_223, %c0_224] : memref<4x32xf32, #tpu.memory_space<vmem>>, vector<4x32xf32>
    %272 = vector.broadcast %270 : vector<1x32xf32> to vector<4x32xf32>
    %273 = arith.mulf %272, %271 : vector<4x32xf32>
    %cst_225 = arith.constant dense<0.000000e+00> : vector<4xf32>
    %274 = vector.multi_reduction <add>, %273, %cst_225 [1] : vector<4x32xf32> to vector<4xf32>
    %275 = vector.shape_cast %274 : vector<4xf32> to vector<4x1xf32>
    %cst_226 = arith.constant 0.000000e+00 : f32
    %276 = vector.broadcast %cst_226 : f32 to vector<4x1xf32>
    %277 = arith.maximumf %275, %276 : vector<4x1xf32>
    %c0_227 = arith.constant 0 : index
    %c0_228 = arith.constant 0 : index
    %278 = vector.load %arg7[%c0_227, %c0_228] : memref<4x32xf32, #tpu.memory_space<vmem>>, vector<4x32xf32>
    %279 = vector.broadcast %277 : vector<4x1xf32> to vector<4x32xf32>
    %280 = arith.mulf %279, %278 : vector<4x32xf32>
    %cst_229 = arith.constant dense<0.000000e+00> : vector<32xf32>
    %281 = vector.multi_reduction <add>, %280, %cst_229 [0] : vector<4x32xf32> to vector<32xf32>
    %282 = vector.shape_cast %281 : vector<32xf32> to vector<1x32xf32>
    %283 = arith.negf %282 : vector<1x32xf32>
    %284 = math.exp %283 : vector<1x32xf32>
    %cst_230 = arith.constant 1.000000e+00 : f32
    %285 = vector.broadcast %cst_230 : f32 to vector<1x32xf32>
    %286 = arith.addf %285, %284 : vector<1x32xf32>
    %287 = arith.divf %285, %286 : vector<1x32xf32>
    %288 = vector.broadcast %287 : vector<1x32xf32> to vector<256x32xf32>
    %289 = arith.mulf %108, %288 : vector<256x32xf32>
    %290 = arith.truncf %289 : vector<256x32xf32> to vector<256x32xbf16>
    %c32_231 = arith.constant 32 : index
    %c0_232 = arith.constant 0 : index
    %291 = vector.load %arg8[%c32_231, %c0_232] : memref<64x32xbf16, #tpu.memory_space<vmem>>, vector<32x32xbf16>
    %cst_233 = arith.constant dense<0.000000e+00> : vector<256x32xf32>
    %292 = tpu.matmul %290, %291, %cst_233 {dimension_numbers = #tpu.dot_dimension_numbers<[1], [0], [0], [1], [0, 0, 1, 1], [], []>} : vector<256x32xbf16>, vector<32x32xbf16>, vector<256x32xf32> -> vector<256x32xf32>
    %293 = arith.addf %266, %292 : vector<256x32xf32>
    %294 = vector.shape_cast %293 : vector<256x32xf32> to vector<16x16x32xf32>
    %295 = arith.addf %294, %1 : vector<16x16x32xf32>
    %c0_234 = arith.constant 0 : index
    %c0_235 = arith.constant 0 : index
    %c0_236 = arith.constant 0 : index
    %c0_237 = arith.constant 0 : index
    %296 = vector.load %arg9[%c0_234, %c0_235, %c0_236, %c0_237] : memref<1x16x16x32xf32, #tpu.memory_space<vmem>>, vector<1x16x16x32xf32>
    %297 = vector.shape_cast %296 : vector<1x16x16x32xf32> to vector<16x16x32xf32>
    %298 = vector.shape_cast %295 : vector<16x16x32xf32> to vector<1x16x16x32xf32>
    tpu.vector_store %arg9[%c0_234, %c0_235, %c0_236, %c0_237], %298 {strides = array<i32>} : memref<1x16x16x32xf32, #tpu.memory_space<vmem>>, vector<1x16x16x32xf32>,
    return
  }
  func.func @transform_0(%arg0: i32) -> (i32, i32, i32, i32) {
    %c0_i32 = arith.constant 0 : i32
    %c0_i32_0 = arith.constant 0 : i32
    %c0_i32_1 = arith.constant 0 : i32
    %c0_i32_2 = arith.constant 0 : i32
    return %arg0, %c0_i32, %c0_i32_0, %c0_i32_1 : i32, i32, i32, i32
  }
  func.func @transform_1(%arg0: i32) -> (i32, i32) {
    %c0_i32 = arith.constant 0 : i32
    %c0_i32_0 = arith.constant 0 : i32
    %c0_i32_1 = arith.constant 0 : i32
    return %c0_i32, %c0_i32_0 : i32, i32
  }
  func.func @transform_2(%arg0: i32) -> i32 {
    %c0_i32 = arith.constant 0 : i32
    %c0_i32_0 = arith.constant 0 : i32
    return %c0_i32 : i32
  }
  func.func @transform_3(%arg0: i32) -> (i32, i32) {
    %c0_i32 = arith.constant 0 : i32
    %c0_i32_0 = arith.constant 0 : i32
    %c0_i32_1 = arith.constant 0 : i32
    return %c0_i32, %c0_i32_0 : i32, i32
  }
  func.func @transform_4(%arg0: i32) -> (i32, i32) {
    %c0_i32 = arith.constant 0 : i32
    %c0_i32_0 = arith.constant 0 : i32
    %c0_i32_1 = arith.constant 0 : i32
    return %c0_i32, %c0_i32_0 : i32, i32
  }
  func.func @transform_5(%arg0: i32) -> (i32, i32) {
    %c0_i32 = arith.constant 0 : i32
    %c0_i32_0 = arith.constant 0 : i32
    %c0_i32_1 = arith.constant 0 : i32
    return %c0_i32, %c0_i32_0 : i32, i32
  }
  func.func @transform_6(%arg0: i32) -> (i32, i32) {
    %c0_i32 = arith.constant 0 : i32
    %c0_i32_0 = arith.constant 0 : i32
    %c0_i32_1 = arith.constant 0 : i32
    return %c0_i32, %c0_i32_0 : i32, i32
  }
  func.func @transform_7(%arg0: i32) -> (i32, i32) {
    %c0_i32 = arith.constant 0 : i32
    %c0_i32_0 = arith.constant 0 : i32
    %c0_i32_1 = arith.constant 0 : i32
    return %c0_i32, %c0_i32_0 : i32, i32
  }
  func.func @transform_8(%arg0: i32) -> (i32, i32, i32, i32) {
    %c0_i32 = arith.constant 0 : i32
    %c0_i32_0 = arith.constant 0 : i32
    %c0_i32_1 = arith.constant 0 : i32
    %c0_i32_2 = arith.constant 0 : i32
    return %arg0, %c0_i32, %c0_i32_0, %c0_i32_1 : i32, i32, i32, i32
  }
}

</mosaic_0001>

<llo_original>
// kernel: tpu_custom_call.1
$region0: #{tpu_custom_call.1}
  #allocation0 [shape = 'u32[]', space=smem, size = 0x4, offset = 0x4, fixed_abs, tag = 'smem constant byte address 0x4 - core index']
  #allocation1 [shape = 'u32[144,128]{1,0:T(1,128)}', space=vmem, size = 0x12000, scoped, tag = 'internal scratch']
  #allocation2 [shape = 'bf16[18,32,32]{2,1,0:T(16,128)(2,1)}', space=vmem, size = 0x24000, scoped, tag = 'scratch operand']
  #allocation3 [shape = 'f32[20,40]{1,0:T(8,128)}', space=vmem, size = 0x3000, scoped, tag = 'scratch operand']
  #allocation4 [shape = 'f32[1]{0:T(128)S(6)}', space=smem, size = 0x200, scoped, tag = 'scoped memory for tpu_custom_call.1']
  %s0 = inlined_call_operand.hbm [shape: f32[2,16,16,32], index: 0, kind: input, shape index: {}]
  %s1 = inlined_call_operand.vmem [shape: bf16[288,32], index: 1, kind: input, shape index: {}]
  %s2 = inlined_call_operand.<no memory space> [shape: f32[1], index: 2, kind: input, shape index: {}]
  %s3 = inlined_call_operand.vmem [shape: bf16[288,32], index: 3, kind: input, shape index: {}]
  %s4 = inlined_call_operand.vmem [shape: f32[25,36], index: 4, kind: input, shape index: {}]
  %s5 = inlined_call_operand.vmem [shape: f32[4,32], index: 5, kind: input, shape index: {}]
  %s6 = inlined_call_operand.vmem [shape: f32[4,32], index: 6, kind: input, shape index: {}]
  %s7 = inlined_call_operand.vmem [shape: bf16[64,32], index: 7, kind: input, shape index: {}]
  %s8 = inlined_call_operand.hbm [shape: f32[2,16,16,32], index: 8, kind: output, shape index: {}]
  %s9 = sld [smem:[#allocation0]]
  $region69: #{tpu_custom_call.1} parent=0
    _
  %s11 = ssub.s32 1, %s9
  %s12 = scalar_select 0, %s11, %s9
  %13 = sst [smem:[#allocation4]] %s2
  $region1: #{tpu_custom_call.1} parent=0
    #allocation5 [shape = 'u8[262144]{0}', space=vmem, size = 0x40000, scoped, tag = 'input window, operand 0']
    #allocation6 [shape = 's32[2]{0}', space=sflag, size = 0x8, scoped, tag = 'scoped memory for tpu_custom_call.1']
    #allocation7 [shape = 's32[2]{0}', space=sflag, size = 0x8, scoped, tag = 'scoped memory for tpu_custom_call.1']
    #allocation8 [shape = 'u8[262144]{0}', space=vmem, size = 0x40000, scoped, tag = 'output window, operand 0']
    %14 = vsyncpa [#allocation6], 0
    %s15 = scalar_lea.sflag [#allocation6], 1
    %16 = vsyncpa %s15, 0
    %17 = vsyncpa [#allocation7], 0
    %s18 = scalar_lea.sflag [#allocation7], 1
    %19 = vsyncpa %s18, 0
    loop: start=0, step=1, limit=4
    $region2: #{tpu_custom_call.1} parent=1 // loop_pre_header
      _
    $region3: #{tpu_custom_call.1} parent=1 // loop_header
      %s21 = sphi 0, %s25
      %p22 = scmp.ge.s32.totalorder %s21, 4
      %s31 = sphi 0, %s33
      %s34 = sphi 0, %s31
      %s35 = sphi 0, %s34
      %s51 = sphi 0, %s35
      %s55 = sphi 0, %s55
      %s57 = sphi 0, %s55
      %s58 = sphi 0, %s57
      %s72 = sphi 0, %s58
      %s76 = sphi 0, %s76
      %s78 = sphi 0, %s76
      %s79 = sphi 0, %s78
      %s93 = sphi 0, %s79
      %s97 = sphi 0, %s97
      %s99 = sphi 0, %s97
      %s100 = sphi 0, %s99
      %s114 = sphi 0, %s100
      %s118 = sphi 0, %s118
      %s120 = sphi 0, %s118
      %s121 = sphi 0, %s120
      %s135 = sphi 0, %s121
      %s139 = sphi 0, %s139
      %s141 = sphi 0, %s139
      %s142 = sphi 0, %s141
      %s156 = sphi 0, %s142
      %s160 = sphi 0, %s160
      %s162 = sphi 0, %s160
      %s163 = sphi 0, %s162
      %s177 = sphi 0, %s163
      %s181 = sphi 0, %s181
      %s183 = sphi 0, %s181
      %s184 = sphi 0, %s183
      %s198 = sphi 0, %s184
      %s204 = sphi 0, %s206
      %s207 = sphi 0, %s204
      %s208 = sphi 0, %s207
      %s224 = sphi 0, %s208
    $region4: #{tpu_custom_call.1} parent=1 // loop_header_branch
      %24 = sbr.rel (%p22) target = $region8
    $region5: #{tpu_custom_call.1} parent=1 // loop_body
      %s26 = ssub.s32 %s21, 1
      %s27 = ssub.s32 %s21, 2
      %s28 = sadd.s32 %s21, 1
      %s29 = ssub.s32 %s21, %s28
      %p30 = scmp.eq.s32.totalorder %s29, 0
      %s32 = sadd.s32 %s31, 1
      %s33 = scalar_select %p30, %s31, %s32
      %p36 = pneg %p30
      %p37 = scmp.eq.s32.totalorder %s21, 1
      %p38 = por %p36, %p37
      %p39 = scmp.ne.s32.totalorder %s31, %s34
      %p40 = scmp.eq.s32.totalorder %s21, 0
      %p41 = por %p39, %p40
      %p42 = scmp.ne.s32.totalorder %s31, %s34
      %p43 = scmp.eq.s32.totalorder %s26, 1
      %p44 = por %p42, %p43
      %p45 = scmp.ne.s32.totalorder %s34, %s35
      %p46 = scmp.eq.s32.totalorder %s26, 0
      %p47 = por %p45, %p46
      %p48 = scmp.ne.s32.totalorder %s34, %s35
      %p49 = scmp.eq.s32.totalorder %s27, 1
      %p50 = por %p48, %p49
      %p52 = scmp.ne.s32.totalorder %s35, %s51
      %p53 = scmp.eq.s32.totalorder %s27, 0
      %p54 = por %p52, %p53
      %s56 = sadd.s32 %s55, 1
      %p59 = scmp.eq.s32.totalorder %s21, 1
      %p60 = scmp.ne.s32.totalorder %s55, %s57
      %p61 = scmp.eq.s32.totalorder %s21, 0
      %p62 = por %p60, %p61
      %p63 = scmp.ne.s32.totalorder %s55, %s57
      %p64 = scmp.eq.s32.totalorder %s26, 1
      %p65 = por %p63, %p64
      %p66 = scmp.ne.s32.totalorder %s57, %s58
      %p67 = scmp.eq.s32.totalorder %s26, 0
      %p68 = por %p66, %p67
      %p69 = scmp.ne.s32.totalorder %s57, %s58
      %p70 = scmp.eq.s32.totalorder %s27, 1
      %p71 = por %p69, %p70
      %p73 = scmp.ne.s32.totalorder %s58, %s72
      %p74 = scmp.eq.s32.totalorder %s27, 0
      %p75 = por %p73, %p74
      %s77 = sadd.s32 %s76, 1
      %p80 = scmp.eq.s32.totalorder %s21, 1
      %p81 = scmp.ne.s32.totalorder %s76, %s78
      %p82 = scmp.eq.s32.totalorder %s21, 0
      %p83 = por %p81, %p82
      %p84 = scmp.ne.s32.totalorder %s76, %s78
      %p85 = scmp.eq.s32.totalorder %s26, 1
      %p86 = por %p84, %p85
      %p87 = scmp.ne.s32.totalorder %s78, %s79
      %p88 = scmp.eq.s32.totalorder %s26, 0
      %p89 = por %p87, %p88
      %p90 = scmp.ne.s32.totalorder %s78, %s79
      %p91 = scmp.eq.s32.totalorder %s27, 1
      %p92 = por %p90, %p91
      %p94 = scmp.ne.s32.totalorder %s79, %s93
      %p95 = scmp.eq.s32.totalorder %s27, 0
      %p96 = por %p94, %p95
      %s98 = sadd.s32 %s97, 1
      %p101 = scmp.eq.s32.totalorder %s21, 1
      %p102 = scmp.ne.s32.totalorder %s97, %s99
      %p103 = scmp.eq.s32.totalorder %s21, 0
      %p104 = por %p102, %p103
      %p105 = scmp.ne.s32.totalorder %s97, %s99
      %p106 = scmp.eq.s32.totalorder %s26, 1
      %p107 = por %p105, %p106
      %p108 = scmp.ne.s32.totalorder %s99, %s100
      %p109 = scmp.eq.s32.totalorder %s26, 0
      %p110 = por %p108, %p109
      %p111 = scmp.ne.s32.totalorder %s99, %s100
      %p112 = scmp.eq.s32.totalorder %s27, 1
      %p113 = por %p111, %p112
      %p115 = scmp.ne.s32.totalorder %s100, %s114
      %p116 = scmp.eq.s32.totalorder %s27, 0
      %p117 = por %p115, %p116
      %s119 = sadd.s32 %s118, 1
      %p122 = scmp.eq.s32.totalorder %s21, 1
      %p123 = scmp.ne.s32.totalorder %s118, %s120
      %p124 = scmp.eq.s32.totalorder %s21, 0
      %p125 = por %p123, %p124
      %p126 = scmp.ne.s32.totalorder %s118, %s120
      %p127 = scmp.eq.s32.totalorder %s26, 1
      %p128 = por %p126, %p127
      %p129 = scmp.ne.s32.totalorder %s120, %s121
      %p130 = scmp.eq.s32.totalorder %s26, 0
      %p131 = por %p129, %p130
      %p132 = scmp.ne.s32.totalorder %s120, %s121
      %p133 = scmp.eq.s32.totalorder %s27, 1
      %p134 = por %p132, %p133
      %p136 = scmp.ne.s32.totalorder %s121, %s135
      %p137 = scmp.eq.s32.totalorder %s27, 0
      %p138 = por %p136, %p137
      %s140 = sadd.s32 %s139, 1
      %p143 = scmp.eq.s32.totalorder %s21, 1
      %p144 = scmp.ne.s32.totalorder %s139, %s141
      %p145 = scmp.eq.s32.totalorder %s21, 0
      %p146 = por %p144, %p145
      %p147 = scmp.ne.s32.totalorder %s139, %s141
      %p148 = scmp.eq.s32.totalorder %s26, 1
      %p149 = por %p147, %p148
      %p150 = scmp.ne.s32.totalorder %s141, %s142
      %p151 = scmp.eq.s32.totalorder %s26, 0
      %p152 = por %p150, %p151
      %p153 = scmp.ne.s32.totalorder %s141, %s142
      %p154 = scmp.eq.s32.totalorder %s27, 1
      %p155 = por %p153, %p154
      %p157 = scmp.ne.s32.totalorder %s142, %s156
      %p158 = scmp.eq.s32.totalorder %s27, 0
      %p159 = por %p157, %p158
      %s161 = sadd.s32 %s160, 1
      %p164 = scmp.eq.s32.totalorder %s21, 1
      %p165 = scmp.ne.s32.totalorder %s160, %s162
      %p166 = scmp.eq.s32.totalorder %s21, 0
      %p167 = por %p165, %p166
      %p168 = scmp.ne.s32.totalorder %s160, %s162
      %p169 = scmp.eq.s32.totalorder %s26, 1
      %p170 = por %p168, %p169
      %p171 = scmp.ne.s32.totalorder %s162, %s163
      %p172 = scmp.eq.s32.totalorder %s26, 0
      %p173 = por %p171, %p172
      %p174 = scmp.ne.s32.totalorder %s162, %s163
      %p175 = scmp.eq.s32.totalorder %s27, 1
      %p176 = por %p174, %p175
      %p178 = scmp.ne.s32.totalorder %s163, %s177
      %p179 = scmp.eq.s32.totalorder %s27, 0
      %p180 = por %p178, %p179
      %s182 = sadd.s32 %s181, 1
      %p185 = scmp.eq.s32.totalorder %s21, 1
      %p186 = scmp.ne.s32.totalorder %s181, %s183
      %p187 = scmp.eq.s32.totalorder %s21, 0
      %p188 = por %p186, %p187
      %p189 = scmp.ne.s32.totalorder %s181, %s183
      %p190 = scmp.eq.s32.totalorder %s26, 1
      %p191 = por %p189, %p190
      %p192 = scmp.ne.s32.totalorder %s183, %s184
      %p193 = scmp.eq.s32.totalorder %s26, 0
      %p194 = por %p192, %p193
      %p195 = scmp.ne.s32.totalorder %s183, %s184
      %p196 = scmp.eq.s32.totalorder %s27, 1
      %p197 = por %p195, %p196
      %p199 = scmp.ne.s32.totalorder %s184, %s198
      %p200 = scmp.eq.s32.totalorder %s27, 0
      %p201 = por %p199, %p200
      %s202 = ssub.s32 %s21, %s28
      %p203 = scmp.eq.s32.totalorder %s202, 0
      %s205 = sadd.s32 %s204, 1
      %s206 = scalar_select %p203, %s204, %s205
      %p209 = pneg %p203
      %p210 = scmp.eq.s32.totalorder %s21, 1
      %p211 = por %p209, %p210
      %p212 = scmp.ne.s32.totalorder %s204, %s207
      %p213 = scmp.eq.s32.totalorder %s21, 0
      %p214 = por %p212, %p213
      %p215 = scmp.ne.s32.totalorder %s204, %s207
      %p216 = scmp.eq.s32.totalorder %s26, 1
      %p217 = por %p215, %p216
      %p218 = scmp.ne.s32.totalorder %s207, %s208
      %p219 = scmp.eq.s32.totalorder %s26, 0
      %p220 = por %p218, %p219
      %p221 = scmp.ne.s32.totalorder %s207, %s208
      %p222 = scmp.eq.s32.totalorder %s27, 1
      %p223 = por %p221, %p222
      %p225 = scmp.ne.s32.totalorder %s208, %s224
      %p226 = scmp.eq.s32.totalorder %s27, 0
      %p227 = por %p225, %p226
      %p228 = scmp.le.s32.totalorder 1, %s21
      %p229 = scmp.lt.s32.totalorder %s21, 3
      %p230 = pnand %p228, %p229
      %p231 = pneg %p230
      // Predicated region
      $region9: #{tpu_custom_call.1} parent=5 // pred_check
        _
      $region10: #{tpu_custom_call.1} parent=5 // pred_check_branch
        %233 = sbr.rel (%p230) target = $region12
      $region11: #{tpu_custom_call.1} parent=5 // pred_region
        %s234 = ssub.s32 %s21, 1
        // Predicated region
        $region13: #{tpu_custom_call.1} parent=11 // pred_check
          %p235 = pneg %p68
        $region14: #{tpu_custom_call.1} parent=11 // pred_check_branch
          %237 = sbr.rel (%p235) target = $region16
        $region15: #{tpu_custom_call.1} parent=11 // pred_region
          _
        $region16: #{tpu_custom_call.1} parent=11 // pred_fallthru
          _
        // Predicated region
        $region17: #{tpu_custom_call.1} parent=11 // pred_check
          %p238 = pneg %p89
        $region18: #{tpu_custom_call.1} parent=11 // pred_check_branch
          %240 = sbr.rel (%p238) target = $region20
        $region19: #{tpu_custom_call.1} parent=11 // pred_region
          _
        $region20: #{tpu_custom_call.1} parent=11 // pred_fallthru
          _
        // Predicated region
        $region21: #{tpu_custom_call.1} parent=11 // pred_check
          %p241 = pneg %p110
        $region22: #{tpu_custom_call.1} parent=11 // pred_check_branch
          %243 = sbr.rel (%p241) target = $region24
        $region23: #{tpu_custom_call.1} parent=11 // pred_region
          _
        $region24: #{tpu_custom_call.1} parent=11 // pred_fallthru
          _
        // Predicated region
        $region25: #{tpu_custom_call.1} parent=11 // pred_check
          %p244 = pneg %p131
        $region26: #{tpu_custom_call.1} parent=11 // pred_check_branch
          %246 = sbr.rel (%p244) target = $region28
        $region27: #{tpu_custom_call.1} parent=11 // pred_region
          _
        $region28: #{tpu_custom_call.1} parent=11 // pred_fallthru
          _
        // Predicated region
        $region29: #{tpu_custom_call.1} parent=11 // pred_check
          %p247 = pneg %p152
        $region30: #{tpu_custom_call.1} parent=11 // pred_check_branch
          %249 = sbr.rel (%p247) target = $region32
        $region31: #{tpu_custom_call.1} parent=11 // pred_region
          _
        $region32: #{tpu_custom_call.1} parent=11 // pred_fallthru
          _
        // Predicated region
        $region33: #{tpu_custom_call.1} parent=11 // pred_check
          %p250 = pneg %p173
        $region34: #{tpu_custom_call.1} parent=11 // pred_check_branch
          %252 = sbr.rel (%p250) target = $region36
        $region35: #{tpu_custom_call.1} parent=11 // pred_region
          _
        $region36: #{tpu_custom_call.1} parent=11 // pred_fallthru
          _
        // Predicated region
        $region37: #{tpu_custom_call.1} parent=11 // pred_check
          %p253 = pneg %p194
        $region38: #{tpu_custom_call.1} parent=11 // pred_check_branch
          %255 = sbr.rel (%p253) target = $region40
        $region39: #{tpu_custom_call.1} parent=11 // pred_region
          _
        $region40: #{tpu_custom_call.1} parent=11 // pred_fallthru
          _
      $region12: #{tpu_custom_call.1} parent=5 // pred_fallthru
        _
      %p256 = scmp.lt.s32.totalorder %s21, 2
      // Predicated region
      $region41: #{tpu_custom_call.1} parent=5 // pred_check
        %p257 = pneg %p256
      $region42: #{tpu_custom_call.1} parent=5 // pred_check_branch
        %259 = sbr.rel (%p257) target = $region44
      $region43: #{tpu_custom_call.1} parent=5 // pred_region
        // Predicated region
        $region45: #{tpu_custom_call.1} parent=43 // pred_check
          %p260 = pneg %p41
        $region46: #{tpu_custom_call.1} parent=43 // pred_check_branch
          %262 = sbr.rel (%p260) target = $region48
        $region47: #{tpu_custom_call.1} parent=43 // pred_region
          %s263 = sand.u32 %s31, 1
          %s264 = scalar_lea.sflag [#allocation6], %s263
          %s265 = sand.u32 %s31, 1
          %s266 = smul.addr %s265, 256
          %s267 = scalar_lea.vmem [#allocation5], %s266
          %s269 = ssub.s32 4096, 4096
          %270 = vsyncadd %s264, %s269
          %s271 = smul.addr %s21, 32
          %s272 = smul.addr %s271, 128
          %s273 = scalar_lea.hbm %s0, %s272
          %s274 = sshll.u32 %s267, 4
          %s275 = int_to_ptr.vmem [resolvable:$true] %s274
          %280 = dma.hbm_to_vmem [thread:$0]  %s273, 4096, %s275, %s264, 128, 128, 8
        $region48: #{tpu_custom_call.1} parent=43 // pred_fallthru
          _
      $region44: #{tpu_custom_call.1} parent=5 // pred_fallthru
        _
      %p281 = scmp.le.s32.totalorder 1, %s21
      %p282 = scmp.lt.s32.totalorder %s21, 3
      %p283 = pnand %p281, %p282
      %p284 = pneg %p283
      // Predicated region
      $region49: #{tpu_custom_call.1} parent=5 // pred_check
        _
      $region50: #{tpu_custom_call.1} parent=5 // pred_check_branch
        %286 = sbr.rel (%p283) target = $region52
      $region51: #{tpu_custom_call.1} parent=5 // pred_region
        %s287 = ssub.s32 %s21, 1
        %s288 = sand.u32 %s34, 1
        %s289 = scalar_lea.sflag [#allocation6], %s288
        %s290 = sand.u32 %s34, 1
        %s291 = smul.addr %s290, 256
        %s292 = scalar_lea.vmem [#allocation5], %s291
        // Predicated region
        $region53: #{tpu_custom_call.1} parent=51 // pred_check
          %p293 = pneg %p47
        $region54: #{tpu_custom_call.1} parent=51 // pred_check_branch
          %295 = sbr.rel (%p293) target = $region56
        $region55: #{tpu_custom_call.1} parent=51 // pred_region
          %296 = dma.done %s289, 4096
        $region56: #{tpu_custom_call.1} parent=51 // pred_fallthru
          _
        %s297 = sand.u32 %s34, 1
        %s298 = scalar_lea.sflag [#allocation6], %s297
        %s299 = sand.u32 %s34, 1
        %s300 = smul.addr %s299, 256
        %s301 = scalar_lea.vmem [#allocation5], %s300
        %p302 = pneg %p47
        %p303 = pneg %p44
        %p304 = pneg %p68
        %p305 = pneg %p65
        %p306 = pneg %p89
        %p307 = pneg %p86
        %p308 = pneg %p110
        %p309 = pneg %p107
        %p310 = pneg %p131
        %p311 = pneg %p128
        %p312 = pneg %p152
        %p313 = pneg %p149
        %p314 = pneg %p173
        %p315 = pneg %p170
        %p316 = pneg %p194
        %p317 = pneg %p191
        %p318 = pneg %p220
        %p319 = pneg %p217
        %s320 = sand.u32 %s207, 1
        %s321 = scalar_lea.sflag [#allocation7], %s320
        %s322 = sand.u32 %s207, 1
        %s323 = smul.addr %s322, 256
        %s324 = scalar_lea.vmem [#allocation8], %s323
        %v326 = vld [vmem:[%s292] sm:$0xff]
        %v327 = vld [vmem:[%s292 + $0x8] sm:$0xff]
        %v328 = vld [vmem:[%s292 + $0x10] sm:$0xff]
        %v329 = vld [vmem:[%s292 + $0x18] sm:$0xff]
        %v330 = vld [vmem:[%s292 + $0x20] sm:$0xff]
        %v331 = vld [vmem:[%s292 + $0x28] sm:$0xff]
        %v332 = vld [vmem:[%s292 + $0x30] sm:$0xff]
        %v333 = vld [vmem:[%s292 + $0x38] sm:$0xff]
        %v334 = vld [vmem:[%s292 + $0x40] sm:$0xff]
        %v335 = vld [vmem:[%s292 + $0x48] sm:$0xff]
        %v336 = vld [vmem:[%s292 + $0x50] sm:$0xff]
        %v337 = vld [vmem:[%s292 + $0x58] sm:$0xff]
        %v338 = vld [vmem:[%s292 + $0x60] sm:$0xff]
        %v339 = vld [vmem:[%s292 + $0x68] sm:$0xff]
        %v340 = vld [vmem:[%s292 + $0x70] sm:$0xff]
        %v341 = vld [vmem:[%s292 + $0x78] sm:$0xff]
        %v342 = vld [vmem:[%s292 + $0x80] sm:$0xff]
        %v343 = vld [vmem:[%s292 + $0x88] sm:$0xff]
        %v344 = vld [vmem:[%s292 + $0x90] sm:$0xff]
        %v345 = vld [vmem:[%s292 + $0x98] sm:$0xff]
        %v346 = vld [vmem:[%s292 + $0xa0] sm:$0xff]
        %v347 = vld [vmem:[%s292 + $0xa8] sm:$0xff]
        %v348 = vld [vmem:[%s292 + $0xb0] sm:$0xff]
        %v349 = vld [vmem:[%s292 + $0xb8] sm:$0xff]
        %v350 = vld [vmem:[%s292 + $0xc0] sm:$0xff]
        %v351 = vld [vmem:[%s292 + $0xc8] sm:$0xff]
        %v352 = vld [vmem:[%s292 + $0xd0] sm:$0xff]
        %v353 = vld [vmem:[%s292 + $0xd8] sm:$0xff]
        %v354 = vld [vmem:[%s292 + $0xe0] sm:$0xff]
        %v355 = vld [vmem:[%s292 + $0xe8] sm:$0xff]
        %v356 = vld [vmem:[%s292 + $0xf0] sm:$0xff]
        %v357 = vld [vmem:[%s292 + $0xf8] sm:$0xff]
        %vm358 = vcmask 261120
        %359 = vst.msk [vmem:[#allocation2] sm:$0xff] %vm358, 0
        %360 = vst.msk [vmem:[#allocation2 + $0x8] sm:$0xff] %vm358, 0
        %s361 = scalar_lea.vmem [#allocation2], 272
        %362 = vst.msk [vmem:[%s361] sm:$0xff] %vm358, 0
        %363 = vst.msk [vmem:[%s361 + $0x8] sm:$0xff] %vm358, 0
        %vm364 = vcmask 257027
        %vm365 = vsmask.f32 7950
        %vm366 = vmand %vm364, %vm365
        %v367 = vld [vmem:[#allocation2] sm:$0x8]
        %v368 = vsel %vm366, 0, %v367
        %369 = vst [vmem:[#allocation2] sm:$0x8] %v368
        %v370 = vld [vmem:[#allocation2 + $0x10] sm:$0x8]
        %v371 = vsel %vm366, 0, %v370
        %372 = vst [vmem:[#allocation2 + $0x10] sm:$0x8] %v371
        %v373 = vld [vmem:[#allocation2 + $0x20] sm:$0x8]
        %v374 = vsel %vm366, 0, %v373
        %375 = vst [vmem:[#allocation2 + $0x20] sm:$0x8] %v374
        %v376 = vld [vmem:[#allocation2 + $0x30] sm:$0x8]
        %v377 = vsel %vm366, 0, %v376
        %378 = vst [vmem:[#allocation2 + $0x30] sm:$0x8] %v377
        %v379 = vld [vmem:[#allocation2 + $0x40] sm:$0x8]
        %v380 = vsel %vm366, 0, %v379
        %381 = vst [vmem:[#allocation2 + $0x40] sm:$0x8] %v380
        %v382 = vld [vmem:[#allocation2 + $0x50] sm:$0x8]
        %v383 = vsel %vm366, 0, %v382
        %384 = vst [vmem:[#allocation2 + $0x50] sm:$0x8] %v383
        %v385 = vld [vmem:[#allocation2 + $0x60] sm:$0x8]
        %v386 = vsel %vm366, 0, %v385
        %387 = vst [vmem:[#allocation2 + $0x60] sm:$0x8] %v386
        %v388 = vld [vmem:[#allocation2 + $0x70] sm:$0x8]
        %v389 = vsel %vm366, 0, %v388
        %390 = vst [vmem:[#allocation2 + $0x70] sm:$0x8] %v389
        %v391 = vld [vmem:[#allocation2 + $0x80] sm:$0x8]
        %v392 = vsel %vm366, 0, %v391
        %393 = vst [vmem:[#allocation2 + $0x80] sm:$0x8] %v392
        %v394 = vld [vmem:[#allocation2 + $0x90] sm:$0x8]
        %v395 = vsel %vm366, 0, %v394
        %396 = vst [vmem:[#allocation2 + $0x90] sm:$0x8] %v395
        %v397 = vld [vmem:[#allocation2 + $0xa0] sm:$0x8]
        %v398 = vsel %vm366, 0, %v397
        %399 = vst [vmem:[#allocation2 + $0xa0] sm:$0x8] %v398
        %v400 = vld [vmem:[#allocation2 + $0xb0] sm:$0x8]
        %v401 = vsel %vm366, 0, %v400
        %402 = vst [vmem:[#allocation2 + $0xb0] sm:$0x8] %v401
        %v403 = vld [vmem:[#allocation2 + $0xc0] sm:$0x8]
        %v404 = vsel %vm366, 0, %v403
        %405 = vst [vmem:[#allocation2 + $0xc0] sm:$0x8] %v404
        %v406 = vld [vmem:[#allocation2 + $0xd0] sm:$0x8]
        %v407 = vsel %vm366, 0, %v406
        %408 = vst [vmem:[#allocation2 + $0xd0] sm:$0x8] %v407
        %v409 = vld [vmem:[#allocation2 + $0xe0] sm:$0x8]
        %v410 = vsel %vm366, 0, %v409
        %411 = vst [vmem:[#allocation2 + $0xe0] sm:$0x8] %v410
        %v412 = vld [vmem:[#allocation2 + $0xf0] sm:$0x8]
        %v413 = vsel %vm366, 0, %v412
        %414 = vst [vmem:[#allocation2 + $0xf0] sm:$0x8] %v413
        %v415 = vld [vmem:[#allocation2 + $0x100] sm:$0x8]
        %v416 = vsel %vm366, 0, %v415
        %417 = vst [vmem:[#allocation2 + $0x100] sm:$0x8] %v416
        %v418 = vld [vmem:[#allocation2 + $0x110] sm:$0x8]
        %v419 = vsel %vm366, 0, %v418
        %420 = vst [vmem:[#allocation2 + $0x110] sm:$0x8] %v419
        %vm421 = vcmask 258052
        %vm422 = vsmask.f32 4352
        %vm423 = vmand %vm421, %vm422
        %v424 = vld [vmem:[#allocation2 + $0x8] sm:$0x10]
        %v425 = vsel %vm423, 0, %v424
        %426 = vst [vmem:[#allocation2 + $0x8] sm:$0x10] %v425
        %v427 = vld [vmem:[#allocation2 + $0x18] sm:$0x10]
        %v428 = vsel %vm423, 0, %v427
        %429 = vst [vmem:[#allocation2 + $0x18] sm:$0x10] %v428
        %v430 = vld [vmem:[#allocation2 + $0x28] sm:$0x10]
        %v431 = vsel %vm423, 0, %v430
        %432 = vst [vmem:[#allocation2 + $0x28] sm:$0x10] %v431
        %v433 = vld [vmem:[#allocation2 + $0x38] sm:$0x10]
        %v434 = vsel %vm423, 0, %v433
        %435 = vst [vmem:[#allocation2 + $0x38] sm:$0x10] %v434
        %v436 = vld [vmem:[#allocation2 + $0x48] sm:$0x10]
        %v437 = vsel %vm423, 0, %v436
        %438 = vst [vmem:[#allocation2 + $0x48] sm:$0x10] %v437
        %v439 = vld [vmem:[#allocation2 + $0x58] sm:$0x10]
        %v440 = vsel %vm423, 0, %v439
        %441 = vst [vmem:[#allocation2 + $0x58] sm:$0x10] %v440
        %v442 = vld [vmem:[#allocation2 + $0x68] sm:$0x10]
        %v443 = vsel %vm423, 0, %v442
        %444 = vst [vmem:[#allocation2 + $0x68] sm:$0x10] %v443
        %v445 = vld [vmem:[#allocation2 + $0x78] sm:$0x10]
        %v446 = vsel %vm423, 0, %v445
        %447 = vst [vmem:[#allocation2 + $0x78] sm:$0x10] %v446
        %v448 = vld [vmem:[#allocation2 + $0x88] sm:$0x10]
        %v449 = vsel %vm423, 0, %v448
        %450 = vst [vmem:[#allocation2 + $0x88] sm:$0x10] %v449
        %v451 = vld [vmem:[#allocation2 + $0x98] sm:$0x10]
        %v452 = vsel %vm423, 0, %v451
        %453 = vst [vmem:[#allocation2 + $0x98] sm:$0x10] %v452
        %v454 = vld [vmem:[#allocation2 + $0xa8] sm:$0x10]
        %v455 = vsel %vm423, 0, %v454
        %456 = vst [vmem:[#allocation2 + $0xa8] sm:$0x10] %v455
        %v457 = vld [vmem:[#allocation2 + $0xb8] sm:$0x10]
        %v458 = vsel %vm423, 0, %v457
        %459 = vst [vmem:[#allocation2 + $0xb8] sm:$0x10] %v458
        %v460 = vld [vmem:[#allocation2 + $0xc8] sm:$0x10]
        %v461 = vsel %vm423, 0, %v460
        %462 = vst [vmem:[#allocation2 + $0xc8] sm:$0x10] %v461
        %v463 = vld [vmem:[#allocation2 + $0xd8] sm:$0x10]
        %v464 = vsel %vm423, 0, %v463
        %465 = vst [vmem:[#allocation2 + $0xd8] sm:$0x10] %v464
        %v466 = vld [vmem:[#allocation2 + $0xe8] sm:$0x10]
        %v467 = vsel %vm423, 0, %v466
        %468 = vst [vmem:[#allocation2 + $0xe8] sm:$0x10] %v467
        %v469 = vld [vmem:[#allocation2 + $0xf8] sm:$0x10]
        %v470 = vsel %vm423, 0, %v469
        %471 = vst [vmem:[#allocation2 + $0xf8] sm:$0x10] %v470
        %v472 = vld [vmem:[#allocation2 + $0x108] sm:$0x10]
        %v473 = vsel %vm423, 0, %v472
        %474 = vst [vmem:[#allocation2 + $0x108] sm:$0x10] %v473
        %v475 = vld [vmem:[#allocation2 + $0x118] sm:$0x10]
        %v476 = vsel %vm423, 0, %v475
        %477 = vst [vmem:[#allocation2 + $0x118] sm:$0x10] %v476
        %v478 = vpack.c.bf16 %v327, %v326
        %v479 = vpack.c.bf16 %v329, %v328
        %v480 = vpack.c.bf16 %v331, %v330
        %v481 = vpack.c.bf16 %v333, %v332
        %v482 = vpack.c.bf16 %v335, %v334
        %v483 = vpack.c.bf16 %v337, %v336
        %v484 = vpack.c.bf16 %v339, %v338
        %v485 = vpack.c.bf16 %v341, %v340
        %v486 = vpack.c.bf16 %v343, %v342
        %v487 = vpack.c.bf16 %v345, %v344
        %v488 = vpack.c.bf16 %v347, %v346
        %v489 = vpack.c.bf16 %v349, %v348
        %v490 = vpack.c.bf16 %v351, %v350
        %v491 = vpack.c.bf16 %v353, %v352
        %v492 = vpack.c.bf16 %v355, %v354
        %v493 = vpack.c.bf16 %v357, %v356
        %v510 = vrot.slane %v478, 4
        %v511 = vrot.slane %v479, 4
        %v512 = vrot.slane %v480, 4
        %v513 = vrot.slane %v481, 4
        %v514 = vrot.slane %v482, 4
        %v515 = vrot.slane %v483, 4
        %v516 = vrot.slane %v484, 4
        %v517 = vrot.slane %v485, 4
        %v518 = vrot.slane %v486, 4
        %v519 = vrot.slane %v487, 4
        %v520 = vrot.slane %v488, 4
        %v521 = vrot.slane %v489, 4
        %v522 = vrot.slane %v490, 4
        %v523 = vrot.slane %v491, 4
        %v524 = vrot.slane %v492, 4
        %v525 = vrot.slane %v493, 4
        %s542 = scalar_lea.vmem [#allocation2], 16
        %vm543 = vcmask 261124
        %544 = vst.msk [vmem:[%s542] sm:$0xf0] %vm543, %v510
        %vm545 = vcmask 257024
        %546 = vst.msk [vmem:[%s542 + $0x8] sm:$0xf] %vm545, %v510
        %547 = vst.msk [vmem:[%s542 + $0x10] sm:$0xf0] %vm543, %v511
        %548 = vst.msk [vmem:[%s542 + $0x18] sm:$0xf] %vm545, %v511
        %549 = vst.msk [vmem:[%s542 + $0x20] sm:$0xf0] %vm543, %v512
        %550 = vst.msk [vmem:[%s542 + $0x28] sm:$0xf] %vm545, %v512
        %551 = vst.msk [vmem:[%s542 + $0x30] sm:$0xf0] %vm543, %v513
        %552 = vst.msk [vmem:[%s542 + $0x38] sm:$0xf] %vm545, %v513
        %553 = vst.msk [vmem:[%s542 + $0x40] sm:$0xf0] %vm543, %v514
        %554 = vst.msk [vmem:[%s542 + $0x48] sm:$0xf] %vm545, %v514
        %555 = vst.msk [vmem:[%s542 + $0x50] sm:$0xf0] %vm543, %v515
        %556 = vst.msk [vmem:[%s542 + $0x58] sm:$0xf] %vm545, %v515
        %557 = vst.msk [vmem:[%s542 + $0x60] sm:$0xf0] %vm543, %v516
        %558 = vst.msk [vmem:[%s542 + $0x68] sm:$0xf] %vm545, %v516
        %559 = vst.msk [vmem:[%s542 + $0x70] sm:$0xf0] %vm543, %v517
        %560 = vst.msk [vmem:[%s542 + $0x78] sm:$0xf] %vm545, %v517
        %561 = vst.msk [vmem:[%s542 + $0x80] sm:$0xf0] %vm543, %v518
        %562 = vst.msk [vmem:[%s542 + $0x88] sm:$0xf] %vm545, %v518
        %563 = vst.msk [vmem:[%s542 + $0x90] sm:$0xf0] %vm543, %v519
        %564 = vst.msk [vmem:[%s542 + $0x98] sm:$0xf] %vm545, %v519
        %565 = vst.msk [vmem:[%s542 + $0xa0] sm:$0xf0] %vm543, %v520
        %566 = vst.msk [vmem:[%s542 + $0xa8] sm:$0xf] %vm545, %v520
        %567 = vst.msk [vmem:[%s542 + $0xb0] sm:$0xf0] %vm543, %v521
        %568 = vst.msk [vmem:[%s542 + $0xb8] sm:$0xf] %vm545, %v521
        %569 = vst.msk [vmem:[%s542 + $0xc0] sm:$0xf0] %vm543, %v522
        %570 = vst.msk [vmem:[%s542 + $0xc8] sm:$0xf] %vm545, %v522
        %571 = vst.msk [vmem:[%s542 + $0xd0] sm:$0xf0] %vm543, %v523
        %572 = vst.msk [vmem:[%s542 + $0xd8] sm:$0xf] %vm545, %v523
        %573 = vst.msk [vmem:[%s542 + $0xe0] sm:$0xf0] %vm543, %v524
        %574 = vst.msk [vmem:[%s542 + $0xe8] sm:$0xf] %vm545, %v524
        %575 = vst.msk [vmem:[%s542 + $0xf0] sm:$0xf0] %vm543, %v525
        %576 = vst.msk [vmem:[%s542 + $0xf8] sm:$0xf] %vm545, %v525
        %v577 = vld [vmem:[#allocation2] sm:$0xf8]
        %v578 = vld [vmem:[#allocation2 + $0x8] sm:$0xf]
        %v579 = vld [vmem:[#allocation2 + $0x10] sm:$0xf8]
        %v580 = vld [vmem:[#allocation2 + $0x18] sm:$0xf]
        %v581 = vld [vmem:[#allocation2 + $0x20] sm:$0xf8]
        %v582 = vld [vmem:[#allocation2 + $0x28] sm:$0xf]
        %v583 = vld [vmem:[#allocation2 + $0x30] sm:$0xf8]
        %v584 = vld [vmem:[#allocation2 + $0x38] sm:$0xf]
        %v585 = vld [vmem:[#allocation2 + $0x40] sm:$0xf8]
        %v586 = vld [vmem:[#allocation2 + $0x48] sm:$0xf]
        %v587 = vld [vmem:[#allocation2 + $0x50] sm:$0xf8]
        %v588 = vld [vmem:[#allocation2 + $0x58] sm:$0xf]
        %v589 = vld [vmem:[#allocation2 + $0x60] sm:$0xf8]
        %v590 = vld [vmem:[#allocation2 + $0x68] sm:$0xf]
        %v591 = vld [vmem:[#allocation2 + $0x70] sm:$0xf8]
        %v592 = vld [vmem:[#allocation2 + $0x78] sm:$0xf]
        %v593 = vld [vmem:[#allocation2 + $0x80] sm:$0xf8]
        %v594 = vld [vmem:[#allocation2 + $0x88] sm:$0xf]
        %v595 = vld [vmem:[#allocation2 + $0x90] sm:$0xf8]
        %v596 = vld [vmem:[#allocation2 + $0x98] sm:$0xf]
        %v597 = vld [vmem:[#allocation2 + $0xa0] sm:$0xf8]
        %v598 = vld [vmem:[#allocation2 + $0xa8] sm:$0xf]
        %v599 = vld [vmem:[#allocation2 + $0xb0] sm:$0xf8]
        %v600 = vld [vmem:[#allocation2 + $0xb8] sm:$0xf]
        %v601 = vld [vmem:[#allocation2 + $0xc0] sm:$0xf8]
        %v602 = vld [vmem:[#allocation2 + $0xc8] sm:$0xf]
        %v603 = vld [vmem:[#allocation2 + $0xd0] sm:$0xf8]
        %v604 = vld [vmem:[#allocation2 + $0xd8] sm:$0xf]
        %v605 = vld [vmem:[#allocation2 + $0xe0] sm:$0xf8]
        %v606 = vld [vmem:[#allocation2 + $0xe8] sm:$0xf]
        %v607 = vld [vmem:[#allocation2 + $0xf0] sm:$0xf8]
        %v608 = vld [vmem:[#allocation2 + $0xf8] sm:$0xf]
        %v610 = vshrl.u32 %v577, 16
        %v612 = vrot.slane %v610, 3
        %v613 = vshll.u32 %v577, 16
        %v615 = vrot.slane %v613, 4
        %v616 = vor.u32 %v612, %v615
        %v618 = vshrl.u32 %v578, 16
        %v620 = vrot.slane %v618, 3
        %v621 = vshll.u32 %v578, 16
        %v623 = vrot.slane %v621, 4
        %v624 = vor.u32 %v620, %v623
        %v625 = vsel %vm422, %v616, %v624
        %v627 = vshrl.u32 %v579, 16
        %v629 = vrot.slane %v627, 3
        %v630 = vshll.u32 %v579, 16
        %v632 = vrot.slane %v630, 4
        %v633 = vor.u32 %v629, %v632
        %v635 = vshrl.u32 %v580, 16
        %v637 = vrot.slane %v635, 3
        %v638 = vshll.u32 %v580, 16
        %v640 = vrot.slane %v638, 4
        %v641 = vor.u32 %v637, %v640
        %v642 = vsel %vm422, %v633, %v641
        %v644 = vshrl.u32 %v581, 16
        %v646 = vrot.slane %v644, 3
        %v647 = vshll.u32 %v581, 16
        %v649 = vrot.slane %v647, 4
        %v650 = vor.u32 %v646, %v649
        %v652 = vshrl.u32 %v582, 16
        %v654 = vrot.slane %v652, 3
        %v655 = vshll.u32 %v582, 16
        %v657 = vrot.slane %v655, 4
        %v658 = vor.u32 %v654, %v657
        %v659 = vsel %vm422, %v650, %v658
        %v661 = vshrl.u32 %v583, 16
        %v663 = vrot.slane %v661, 3
        %v664 = vshll.u32 %v583, 16
        %v666 = vrot.slane %v664, 4
        %v667 = vor.u32 %v663, %v666
        %v669 = vshrl.u32 %v584, 16
        %v671 = vrot.slane %v669, 3
        %v672 = vshll.u32 %v584, 16
        %v674 = vrot.slane %v672, 4
        %v675 = vor.u32 %v671, %v674
        %v676 = vsel %vm422, %v667, %v675
        %v678 = vshrl.u32 %v585, 16
        %v680 = vrot.slane %v678, 3
        %v681 = vshll.u32 %v585, 16
        %v683 = vrot.slane %v681, 4
        %v684 = vor.u32 %v680, %v683
        %v686 = vshrl.u32 %v586, 16
        %v688 = vrot.slane %v686, 3
        %v689 = vshll.u32 %v586, 16
        %v691 = vrot.slane %v689, 4
        %v692 = vor.u32 %v688, %v691
        %v693 = vsel %vm422, %v684, %v692
        %v695 = vshrl.u32 %v587, 16
        %v697 = vrot.slane %v695, 3
        %v698 = vshll.u32 %v587, 16
        %v700 = vrot.slane %v698, 4
        %v701 = vor.u32 %v697, %v700
        %v703 = vshrl.u32 %v588, 16
        %v705 = vrot.slane %v703, 3
        %v706 = vshll.u32 %v588, 16
        %v708 = vrot.slane %v706, 4
        %v709 = vor.u32 %v705, %v708
        %v710 = vsel %vm422, %v701, %v709
        %v712 = vshrl.u32 %v589, 16
        %v714 = vrot.slane %v712, 3
        %v715 = vshll.u32 %v589, 16
        %v717 = vrot.slane %v715, 4
        %v718 = vor.u32 %v714, %v717
        %v720 = vshrl.u32 %v590, 16
        %v722 = vrot.slane %v720, 3
        %v723 = vshll.u32 %v590, 16
        %v725 = vrot.slane %v723, 4
        %v726 = vor.u32 %v722, %v725
        %v727 = vsel %vm422, %v718, %v726
        %v729 = vshrl.u32 %v591, 16
        %v731 = vrot.slane %v729, 3
        %v732 = vshll.u32 %v591, 16
        %v734 = vrot.slane %v732, 4
        %v735 = vor.u32 %v731, %v734
        %v737 = vshrl.u32 %v592, 16
        %v739 = vrot.slane %v737, 3
        %v740 = vshll.u32 %v592, 16
        %v742 = vrot.slane %v740, 4
        %v743 = vor.u32 %v739, %v742
        %v744 = vsel %vm422, %v735, %v743
        %v746 = vshrl.u32 %v593, 16
        %v748 = vrot.slane %v746, 3
        %v749 = vshll.u32 %v593, 16
        %v751 = vrot.slane %v749, 4
        %v752 = vor.u32 %v748, %v751
        %v754 = vshrl.u32 %v594, 16
        %v756 = vrot.slane %v754, 3
        %v757 = vshll.u32 %v594, 16
        %v759 = vrot.slane %v757, 4
        %v760 = vor.u32 %v756, %v759
        %v761 = vsel %vm422, %v752, %v760
        %v763 = vshrl.u32 %v595, 16
        %v765 = vrot.slane %v763, 3
        %v766 = vshll.u32 %v595, 16
        %v768 = vrot.slane %v766, 4
        %v769 = vor.u32 %v765, %v768
        %v771 = vshrl.u32 %v596, 16
        %v773 = vrot.slane %v771, 3
        %v774 = vshll.u32 %v596, 16
        %v776 = vrot.slane %v774, 4
        %v777 = vor.u32 %v773, %v776
        %v778 = vsel %vm422, %v769, %v777
        %v780 = vshrl.u32 %v597, 16
        %v782 = vrot.slane %v780, 3
        %v783 = vshll.u32 %v597, 16
        %v785 = vrot.slane %v783, 4
        %v786 = vor.u32 %v782, %v785
        %v788 = vshrl.u32 %v598, 16
        %v790 = vrot.slane %v788, 3
        %v791 = vshll.u32 %v598, 16
        %v793 = vrot.slane %v791, 4
        %v794 = vor.u32 %v790, %v793
        %v795 = vsel %vm422, %v786, %v794
        %v797 = vshrl.u32 %v599, 16
        %v799 = vrot.slane %v797, 3
        %v800 = vshll.u32 %v599, 16
        %v802 = vrot.slane %v800, 4
        %v803 = vor.u32 %v799, %v802
        %v805 = vshrl.u32 %v600, 16
        %v807 = vrot.slane %v805, 3
        %v808 = vshll.u32 %v600, 16
        %v810 = vrot.slane %v808, 4
        %v811 = vor.u32 %v807, %v810
        %v812 = vsel %vm422, %v803, %v811
        %v814 = vshrl.u32 %v601, 16
        %v816 = vrot.slane %v814, 3
        %v817 = vshll.u32 %v601, 16
        %v819 = vrot.slane %v817, 4
        %v820 = vor.u32 %v816, %v819
        %v822 = vshrl.u32 %v602, 16
        %v824 = vrot.slane %v822, 3
        %v825 = vshll.u32 %v602, 16
        %v827 = vrot.slane %v825, 4
        %v828 = vor.u32 %v824, %v827
        %v829 = vsel %vm422, %v820, %v828
        %v831 = vshrl.u32 %v603, 16
        %v833 = vrot.slane %v831, 3
        %v834 = vshll.u32 %v603, 16
        %v836 = vrot.slane %v834, 4
        %v837 = vor.u32 %v833, %v836
        %v839 = vshrl.u32 %v604, 16
        %v841 = vrot.slane %v839, 3
        %v842 = vshll.u32 %v604, 16
        %v844 = vrot.slane %v842, 4
        %v845 = vor.u32 %v841, %v844
        %v846 = vsel %vm422, %v837, %v845
        %v848 = vshrl.u32 %v605, 16
        %v850 = vrot.slane %v848, 3
        %v851 = vshll.u32 %v605, 16
        %v853 = vrot.slane %v851, 4
        %v854 = vor.u32 %v850, %v853
        %v856 = vshrl.u32 %v606, 16
        %v858 = vrot.slane %v856, 3
        %v859 = vshll.u32 %v606, 16
        %v861 = vrot.slane %v859, 4
        %v862 = vor.u32 %v858, %v861
        %v863 = vsel %vm422, %v854, %v862
        %v865 = vshrl.u32 %v607, 16
        %v867 = vrot.slane %v865, 3
        %v868 = vshll.u32 %v607, 16
        %v870 = vrot.slane %v868, 4
        %v871 = vor.u32 %v867, %v870
        %v873 = vshrl.u32 %v608, 16
        %v875 = vrot.slane %v873, 3
        %v876 = vshll.u32 %v608, 16
        %v878 = vrot.slane %v876, 4
        %v879 = vor.u32 %v875, %v878
        %v880 = vsel %vm422, %v871, %v879
        %v881 = vld [vmem:[%s1] sm:$0xf]
        %v882 = vld [vmem:[%s1 + $0x4] sm:$0xf]
        %v883 = vld [vmem:[%s1 + $0x8] sm:$0xf]
        %v884 = vld [vmem:[%s1 + $0xc] sm:$0xf]
        %v885 = vld [vmem:[#allocation2] sm:$0xf0]
        %v886 = vld [vmem:[#allocation2 + $0x10] sm:$0xf0]
        %v887 = vld [vmem:[#allocation2 + $0x20] sm:$0xf0]
        %v888 = vld [vmem:[#allocation2 + $0x30] sm:$0xf0]
        %v889 = vld [vmem:[#allocation2 + $0x40] sm:$0xf0]
        %v890 = vld [vmem:[#allocation2 + $0x50] sm:$0xf0]
        %v891 = vld [vmem:[#allocation2 + $0x60] sm:$0xf0]
        %v892 = vld [vmem:[#allocation2 + $0x70] sm:$0xf0]
        %v893 = vld [vmem:[#allocation2 + $0x80] sm:$0xf0]
        %v894 = vld [vmem:[#allocation2 + $0x90] sm:$0xf0]
        %v895 = vld [vmem:[#allocation2 + $0xa0] sm:$0xf0]
        %v896 = vld [vmem:[#allocation2 + $0xb0] sm:$0xf0]
        %v897 = vld [vmem:[#allocation2 + $0xc0] sm:$0xf0]
        %v898 = vld [vmem:[#allocation2 + $0xd0] sm:$0xf0]
        %v899 = vld [vmem:[#allocation2 + $0xe0] sm:$0xf0]
        %v900 = vld [vmem:[#allocation2 + $0xf0] sm:$0xf0]
        %vm933 = vcmask 1043456
        %v934 = vrot.slane %v885, 4
        %v935 = vrot.slane %v578, 4
        %v936 = vsel %vm933, %v934, %v935
        %v937 = vrot.slane %v886, 4
        %v938 = vrot.slane %v580, 4
        %v939 = vsel %vm933, %v937, %v938
        %v940 = vrot.slane %v887, 4
        %v941 = vrot.slane %v582, 4
        %v942 = vsel %vm933, %v940, %v941
        %v943 = vrot.slane %v888, 4
        %v944 = vrot.slane %v584, 4
        %v945 = vsel %vm933, %v943, %v944
        %v946 = vrot.slane %v889, 4
        %v947 = vrot.slane %v586, 4
        %v948 = vsel %vm933, %v946, %v947
        %v949 = vrot.slane %v890, 4
        %v950 = vrot.slane %v588, 4
        %v951 = vsel %vm933, %v949, %v950
        %v952 = vrot.slane %v891, 4
        %v953 = vrot.slane %v590, 4
        %v954 = vsel %vm933, %v952, %v953
        %v955 = vrot.slane %v892, 4
        %v956 = vrot.slane %v592, 4
        %v957 = vsel %vm933, %v955, %v956
        %v958 = vrot.slane %v893, 4
        %v959 = vrot.slane %v594, 4
        %v960 = vsel %vm933, %v958, %v959
        %v961 = vrot.slane %v894, 4
        %v962 = vrot.slane %v596, 4
        %v963 = vsel %vm933, %v961, %v962
        %v964 = vrot.slane %v895, 4
        %v965 = vrot.slane %v598, 4
        %v966 = vsel %vm933, %v964, %v965
        %v967 = vrot.slane %v896, 4
        %v968 = vrot.slane %v600, 4
        %v969 = vsel %vm933, %v967, %v968
        %v970 = vrot.slane %v897, 4
        %v971 = vrot.slane %v602, 4
        %v972 = vsel %vm933, %v970, %v971
        %v973 = vrot.slane %v898, 4
        %v974 = vrot.slane %v604, 4
        %v975 = vsel %vm933, %v973, %v974
        %v976 = vrot.slane %v899, 4
        %v977 = vrot.slane %v606, 4
        %v978 = vsel %vm933, %v976, %v977
        %v979 = vrot.slane %v900, 4
        %v980 = vrot.slane %v608, 4
        %v981 = vsel %vm933, %v979, %v980
        %v982 = vld [vmem:[%s1 + $0x10] sm:$0xf]
        %v983 = vld [vmem:[%s1 + $0x14] sm:$0xf]
        %v984 = vld [vmem:[%s1 + $0x18] sm:$0xf]
        %v985 = vld [vmem:[%s1 + $0x1c] sm:$0xf]
        %v990 = vunpack.c.l.b16 %v982
        %v991 = vunpack.c.l.b16 %v983
        %v992 = vunpack.c.l.b16 %v984
        %v993 = vunpack.c.l.b16 %v985
        %v994 = vpack.c.b16 %v991, %v990
        %v995 = vpack.c.b16 %v993, %v992
        %v999 = vsel %vm358, %v936, 0
        %v1002 = vsel %vm358, %v939, 0
        %v1005 = vsel %vm358, %v942, 0
        %v1008 = vsel %vm358, %v945, 0
        %v1011 = vsel %vm358, %v948, 0
        %v1014 = vsel %vm358, %v951, 0
        %v1017 = vsel %vm358, %v954, 0
        %v1020 = vsel %vm358, %v957, 0
        %v1023 = vsel %vm358, %v960, 0
        %v1026 = vsel %vm358, %v963, 0
        %v1029 = vsel %vm358, %v966, 0
        %v1032 = vsel %vm358, %v969, 0
        %v1035 = vsel %vm358, %v972, 0
        %v1038 = vsel %vm358, %v975, 0
        %v1041 = vsel %vm358, %v978, 0
        %v1044 = vsel %vm358, %v981, 0
        %1046 = vmatprep.subr.bf16.mxu0 0
        %1047 = vmatpush1.bf16.msra.mxu0 %v994
        %1048 = vmatprep.subr.bf16.mxu0 0
        %1049 = vmatpush1.bf16.msra.mxu0 %v995
        %1050 = vmatprep.subr.bf16.mxu0 0
        %1051 = vmatpush1.bf16.msra.mxu0 0
        %1052 = vmatprep.subr.bf16.mxu0 0
        %1053 = vmatpush1.bf16.msra.mxu0 0
        %1054 = vmatprep.subr.bf16.mxu0 0
        %1055 = vmatpush1.bf16.msra.mxu0 0
        %1056 = vmatprep.subr.bf16.mxu0 0
        %1057 = vmatpush1.bf16.msra.mxu0 0
        %1058 = vmatprep.subr.bf16.mxu0 0
        %1059 = vmatpush1.bf16.msra.mxu0 0
        %1060 = vmatprep.subr.bf16.mxu0 0
        %1061 = vmatpush1.bf16.msra.mxu0 0
        %1062 = vmatprep.subr.bf16.mxu0 0
        %1063 = vmatpush1.bf16.msra.mxu0 0
        %1064 = vmatprep.subr.bf16.mxu0 0
        %1065 = vmatpush1.bf16.msra.mxu0 0
        %1066 = vmatprep.subr.bf16.mxu0 0
        %1067 = vmatpush1.bf16.msra.mxu0 0
        %1068 = vmatprep.subr.bf16.mxu0 0
        %1069 = vmatpush1.bf16.msra.mxu0 0
        %1070 = vmatprep.subr.bf16.mxu0 0
        %1071 = vmatpush1.bf16.msra.mxu0 0
        %1072 = vmatprep.subr.bf16.mxu0 0
        %1073 = vmatpush1.bf16.msra.mxu0 0
        %1074 = vmatprep.subr.bf16.mxu0 0
        %1075 = vmatpush1.bf16.msra.mxu0 0
        %1076 = vmatprep.subr.bf16.mxu0 0
        %1077 = vmatpush1.bf16.msra.mxu0 0
        %1078 = vmatprep.mubr.bf16.mxu0 0
        %1079 = vmatmul.mubr.bf16.gmra.mrb[0].mxu0 %v999
        %v1080 = vpop.f32.mrb[0].mxu0
        %v1081 = vadd.f32 0.0, %v1080
        %v1082 = vpop.f32.mrb[0].mxu0
        %v1083 = vpop.f32.mrb[0].mxu0
        %v1084 = vadd.f32 0.0, %v1083
        %v1085 = vpop.f32.mrb[0].mxu0
        %1086 = vmatprep.mubr.bf16.mxu0 0
        %1087 = vmatmul.mubr.bf16.gmra.mrb[0].mxu0 %v1002
        %v1088 = vpop.f32.mrb[0].mxu0
        %v1089 = vadd.f32 0.0, %v1088
        %v1090 = vpop.f32.mrb[0].mxu0
        %v1091 = vpop.f32.mrb[0].mxu0
        %v1092 = vadd.f32 0.0, %v1091
        %v1093 = vpop.f32.mrb[0].mxu0
        %1094 = vmatprep.mubr.bf16.mxu0 0
        %1095 = vmatmul.mubr.bf16.gmra.mrb[0].mxu0 %v1005
        %v1096 = vpop.f32.mrb[0].mxu0
        %v1097 = vadd.f32 0.0, %v1096
        %v1098 = vpop.f32.mrb[0].mxu0
        %v1099 = vpop.f32.mrb[0].mxu0
        %v1100 = vadd.f32 0.0, %v1099
        %v1101 = vpop.f32.mrb[0].mxu0
        %1102 = vmatprep.mubr.bf16.mxu0 0
        %1103 = vmatmul.mubr.bf16.gmra.mrb[0].mxu0 %v1008
        %v1104 = vpop.f32.mrb[0].mxu0
        %v1105 = vadd.f32 0.0, %v1104
        %v1106 = vpop.f32.mrb[0].mxu0
        %v1107 = vpop.f32.mrb[0].mxu0
        %v1108 = vadd.f32 0.0, %v1107
        %v1109 = vpop.f32.mrb[0].mxu0
        %1110 = vmatprep.mubr.bf16.mxu0 0
        %1111 = vmatmul.mubr.bf16.gmra.mrb[0].mxu0 %v1011
        %v1112 = vpop.f32.mrb[0].mxu0
        %v1113 = vadd.f32 0.0, %v1112
        %v1114 = vpop.f32.mrb[0].mxu0
        %v1115 = vpop.f32.mrb[0].mxu0
        %v1116 = vadd.f32 0.0, %v1115
        %v1117 = vpop.f32.mrb[0].mxu0
        %1118 = vmatprep.mubr.bf16.mxu0 0
        %1119 = vmatmul.mubr.bf16.gmra.mrb[0].mxu0 %v1014
        %v1120 = vpop.f32.mrb[0].mxu0
        %v1121 = vadd.f32 0.0, %v1120
        %v1122 = vpop.f32.mrb[0].mxu0
        %v1123 = vpop.f32.mrb[0].mxu0
        %v1124 = vadd.f32 0.0, %v1123
        %v1125 = vpop.f32.mrb[0].mxu0
        %1126 = vmatprep.mubr.bf16.mxu0 0
        %1127 = vmatmul.mubr.bf16.gmra.mrb[0].mxu0 %v1017
        %v1128 = vpop.f32.mrb[0].mxu0
        %v1129 = vadd.f32 0.0, %v1128
        %v1130 = vpop.f32.mrb[0].mxu0
        %v1131 = vpop.f32.mrb[0].mxu0
        %v1132 = vadd.f32 0.0, %v1131
        %v1133 = vpop.f32.mrb[0].mxu0
        %1134 = vmatprep.mubr.bf16.mxu0 0
        %1135 = vmatmul.mubr.bf16.gmra.mrb[0].mxu0 %v1020
        %v1136 = vpop.f32.mrb[0].mxu0
        %v1137 = vadd.f32 0.0, %v1136
        %v1138 = vpop.f32.mrb[0].mxu0
        %v1139 = vpop.f32.mrb[0].mxu0
        %v1140 = vadd.f32 0.0, %v1139
        %v1141 = vpop.f32.mrb[0].mxu0
        %1142 = vmatprep.mubr.bf16.mxu0 0
        %1143 = vmatmul.mubr.bf16.gmra.mrb[0].mxu0 %v1023
        %v1144 = vpop.f32.mrb[0].mxu0
        %v1145 = vadd.f32 0.0, %v1144
        %v1146 = vpop.f32.mrb[0].mxu0
        %v1147 = vpop.f32.mrb[0].mxu0
        %v1148 = vadd.f32 0.0, %v1147
        %v1149 = vpop.f32.mrb[0].mxu0
        %1150 = vmatprep.mubr.bf16.mxu0 0
        %1151 = vmatmul.mubr.bf16.gmra.mrb[0].mxu0 %v1026
        %v1152 = vpop.f32.mrb[0].mxu0
        %v1153 = vadd.f32 0.0, %v1152
        %v1154 = vpop.f32.mrb[0].mxu0
        %v1155 = vpop.f32.mrb[0].mxu0
        %v1156 = vadd.f32 0.0, %v1155
        %v1157 = vpop.f32.mrb[0].mxu0
        %1158 = vmatprep.mubr.bf16.mxu0 0
        %1159 = vmatmul.mubr.bf16.gmra.mrb[0].mxu0 %v1029
        %v1160 = vpop.f32.mrb[0].mxu0
        %v1161 = vadd.f32 0.0, %v1160
        %v1162 = vpop.f32.mrb[0].mxu0
        %v1163 = vpop.f32.mrb[0].mxu0
        %v1164 = vadd.f32 0.0, %v1163
        %v1165 = vpop.f32.mrb[0].mxu0
        %1166 = vmatprep.mubr.bf16.mxu0 0
        %1167 = vmatmul.mubr.bf16.gmra.mrb[0].mxu0 %v1032
        %v1168 = vpop.f32.mrb[0].mxu0
        %v1169 = vadd.f32 0.0, %v1168
        %v1170 = vpop.f32.mrb[0].mxu0
        %v1171 = vpop.f32.mrb[0].mxu0
        %v1172 = vadd.f32 0.0, %v1171
        %v1173 = vpop.f32.mrb[0].mxu0
        %1174 = vmatprep.mubr.bf16.mxu0 0
        %1175 = vmatmul.mubr.bf16.gmra.mrb[0].mxu0 %v1035
        %v1176 = vpop.f32.mrb[0].mxu0
        %v1177 = vadd.f32 0.0, %v1176
        %v1178 = vpop.f32.mrb[0].mxu0
        %v1179 = vpop.f32.mrb[0].mxu0
        %v1180 = vadd.f32 0.0, %v1179
        %v1181 = vpop.f32.mrb[0].mxu0
        %1182 = vmatprep.mubr.bf16.mxu0 0
        %1183 = vmatmul.mubr.bf16.gmra.mrb[0].mxu0 %v1038
        %v1184 = vpop.f32.mrb[0].mxu0
        %v1185 = vadd.f32 0.0, %v1184
        %v1186 = vpop.f32.mrb[0].mxu0
        %v1187 = vpop.f32.mrb[0].mxu0
        %v1188 = vadd.f32 0.0, %v1187
        %v1189 = vpop.f32.mrb[0].mxu0
        %1190 = vmatprep.mubr.bf16.mxu0 0
        %1191 = vmatmul.mubr.bf16.gmra.mrb[0].mxu0 %v1041
        %v1192 = vpop.f32.mrb[0].mxu0
        %v1193 = vadd.f32 0.0, %v1192
        %v1194 = vpop.f32.mrb[0].mxu0
        %v1195 = vpop.f32.mrb[0].mxu0
        %v1196 = vadd.f32 0.0, %v1195
        %v1197 = vpop.f32.mrb[0].mxu0
        %1198 = vmatprep.mubr.bf16.mxu0 0
        %1199 = vmatmul.mubr.bf16.gmra.mrb[0].mxu0 %v1044
        %v1200 = vpop.f32.mrb[0].mxu0
        %v1201 = vadd.f32 0.0, %v1200
        %v1202 = vpop.f32.mrb[0].mxu0
        %v1203 = vpop.f32.mrb[0].mxu0
        %v1204 = vadd.f32 0.0, %v1203
        %v1205 = vpop.f32.mrb[0].mxu0
        %1206 = vdwg.mxu0
        %v1211 = vunpack.c.l.b16 %v881
        %v1212 = vunpack.c.l.b16 %v882
        %v1213 = vunpack.c.l.b16 %v883
        %v1214 = vunpack.c.l.b16 %v884
        %v1215 = vpack.c.b16 %v1212, %v1211
        %v1216 = vpack.c.b16 %v1214, %v1213
        %v1220 = vsel %vm358, %v625, 0
        %v1223 = vsel %vm358, %v642, 0
        %v1226 = vsel %vm358, %v659, 0
        %v1229 = vsel %vm358, %v676, 0
        %v1232 = vsel %vm358, %v693, 0
        %v1235 = vsel %vm358, %v710, 0
        %v1238 = vsel %vm358, %v727, 0
        %v1241 = vsel %vm358, %v744, 0
        %v1244 = vsel %vm358, %v761, 0
        %v1247 = vsel %vm358, %v778, 0
        %v1250 = vsel %vm358, %v795, 0
        %v1253 = vsel %vm358, %v812, 0
        %v1256 = vsel %vm358, %v829, 0
        %v1259 = vsel %vm358, %v846, 0
        %v1262 = vsel %vm358, %v863, 0
        %v1265 = vsel %vm358, %v880, 0
        %1267 = vmatprep.subr.bf16.mxu0 0
        %1268 = vmatpush1.bf16.msra.mxu0 %v1215
        %1269 = vmatprep.subr.bf16.mxu0 0
        %1270 = vmatpush1.bf16.msra.mxu0 %v1216
        %1271 = vmatprep.subr.bf16.mxu0 0
        %1272 = vmatpush1.bf16.msra.mxu0 0
        %1273 = vmatprep.subr.bf16.mxu0 0
        %1274 = vmatpush1.bf16.msra.mxu0 0
        %1275 = vmatprep.subr.bf16.mxu0 0
        %1276 = vmatpush1.bf16.msra.mxu0 0
        %1277 = vmatprep.subr.bf16.mxu0 0
        %1278 = vmatpush1.bf16.msra.mxu0 0
        %1279 = vmatprep.subr.bf16.mxu0 0
        %1280 = vmatpush1.bf16.msra.mxu0 0
        %1281 = vmatprep.subr.bf16.mxu0 0
        %1282 = vmatpush1.bf16.msra.mxu0 0
        %1283 = vmatprep.subr.bf16.mxu0 0
        %1284 = vmatpush1.bf16.msra.mxu0 0
        %1285 = vmatprep.subr.bf16.mxu0 0
        %1286 = vmatpush1.bf16.msra.mxu0 0
        %1287 = vmatprep.subr.bf16.mxu0 0
        %1288 = vmatpush1.bf16.msra.mxu0 0
        %1289 = vmatprep.subr.bf16.mxu0 0
        %1290 = vmatpush1.bf16.msra.mxu0 0
        %1291 = vmatprep.subr.bf16.mxu0 0
        %1292 = vmatpush1.bf16.msra.mxu0 0
        %1293 = vmatprep.subr.bf16.mxu0 0
        %1294 = vmatpush1.bf16.msra.mxu0 0
        %1295 = vmatprep.subr.bf16.mxu0 0
        %1296 = vmatpush1.bf16.msra.mxu0 0
        %1297 = vmatprep.subr.bf16.mxu0 0
        %1298 = vmatpush1.bf16.msra.mxu0 0
        %1299 = vmatprep.mubr.bf16.mxu0 0
        %1300 = vmatmul.mubr.bf16.gmra.mrb[0].mxu0 %v1220
        %v1301 = vpop.f32.mrb[0].mxu0
        %v1302 = vadd.f32 %v1081, %v1301
        %v1303 = vpop.f32.mrb[0].mxu0
        %v1304 = vpop.f32.mrb[0].mxu0
        %v1305 = vadd.f32 %v1084, %v1304
        %v1306 = vpop.f32.mrb[0].mxu0
        %1307 = vmatprep.mubr.bf16.mxu0 0
        %1308 = vmatmul.mubr.bf16.gmra.mrb[0].mxu0 %v1223
        %v1309 = vpop.f32.mrb[0].mxu0
        %v1310 = vadd.f32 %v1089, %v1309
        %v1311 = vpop.f32.mrb[0].mxu0
        %v1312 = vpop.f32.mrb[0].mxu0
        %v1313 = vadd.f32 %v1092, %v1312
        %v1314 = vpop.f32.mrb[0].mxu0
        %1315 = vmatprep.mubr.bf16.mxu0 0
        %1316 = vmatmul.mubr.bf16.gmra.mrb[0].mxu0 %v1226
        %v1317 = vpop.f32.mrb[0].mxu0
        %v1318 = vadd.f32 %v1097, %v1317
        %v1319 = vpop.f32.mrb[0].mxu0
        %v1320 = vpop.f32.mrb[0].mxu0
        %v1321 = vadd.f32 %v1100, %v1320
        %v1322 = vpop.f32.mrb[0].mxu0
        %1323 = vmatprep.mubr.bf16.mxu0 0
        %1324 = vmatmul.mubr.bf16.gmra.mrb[0].mxu0 %v1229
        %v1325 = vpop.f32.mrb[0].mxu0
        %v1326 = vadd.f32 %v1105, %v1325
        %v1327 = vpop.f32.mrb[0].mxu0
        %v1328 = vpop.f32.mrb[0].mxu0
        %v1329 = vadd.f32 %v1108, %v1328
        %v1330 = vpop.f32.mrb[0].mxu0
        %1331 = vmatprep.mubr.bf16.mxu0 0
        %1332 = vmatmul.mubr.bf16.gmra.mrb[0].mxu0 %v1232
        %v1333 = vpop.f32.mrb[0].mxu0
        %v1334 = vadd.f32 %v1113, %v1333
        %v1335 = vpop.f32.mrb[0].mxu0
        %v1336 = vpop.f32.mrb[0].mxu0
        %v1337 = vadd.f32 %v1116, %v1336
        %v1338 = vpop.f32.mrb[0].mxu0
        %1339 = vmatprep.mubr.bf16.mxu0 0
        %1340 = vmatmul.mubr.bf16.gmra.mrb[0].mxu0 %v1235
        %v1341 = vpop.f32.mrb[0].mxu0
        %v1342 = vadd.f32 %v1121, %v1341
        %v1343 = vpop.f32.mrb[0].mxu0
        %v1344 = vpop.f32.mrb[0].mxu0
        %v1345 = vadd.f32 %v1124, %v1344
        %v1346 = vpop.f32.mrb[0].mxu0
        %1347 = vmatprep.mubr.bf16.mxu0 0
        %1348 = vmatmul.mubr.bf16.gmra.mrb[0].mxu0 %v1238
        %v1349 = vpop.f32.mrb[0].mxu0
        %v1350 = vadd.f32 %v1129, %v1349
        %v1351 = vpop.f32.mrb[0].mxu0
        %v1352 = vpop.f32.mrb[0].mxu0
        %v1353 = vadd.f32 %v1132, %v1352
        %v1354 = vpop.f32.mrb[0].mxu0
        %1355 = vmatprep.mubr.bf16.mxu0 0
        %1356 = vmatmul.mubr.bf16.gmra.mrb[0].mxu0 %v1241
        %v1357 = vpop.f32.mrb[0].mxu0
        %v1358 = vadd.f32 %v1137, %v1357
        %v1359 = vpop.f32.mrb[0].mxu0
        %v1360 = vpop.f32.mrb[0].mxu0
        %v1361 = vadd.f32 %v1140, %v1360
        %v1362 = vpop.f32.mrb[0].mxu0
        %1363 = vmatprep.mubr.bf16.mxu0 0
        %1364 = vmatmul.mubr.bf16.gmra.mrb[0].mxu0 %v1244
        %v1365 = vpop.f32.mrb[0].mxu0
        %v1366 = vadd.f32 %v1145, %v1365
        %v1367 = vpop.f32.mrb[0].mxu0
        %v1368 = vpop.f32.mrb[0].mxu0
        %v1369 = vadd.f32 %v1148, %v1368
        %v1370 = vpop.f32.mrb[0].mxu0
        %1371 = vmatprep.mubr.bf16.mxu0 0
        %1372 = vmatmul.mubr.bf16.gmra.mrb[0].mxu0 %v1247
        %v1373 = vpop.f32.mrb[0].mxu0
        %v1374 = vadd.f32 %v1153, %v1373
        %v1375 = vpop.f32.mrb[0].mxu0
        %v1376 = vpop.f32.mrb[0].mxu0
        %v1377 = vadd.f32 %v1156, %v1376
        %v1378 = vpop.f32.mrb[0].mxu0
        %1379 = vmatprep.mubr.bf16.mxu0 0
        %1380 = vmatmul.mubr.bf16.gmra.mrb[0].mxu0 %v1250
        %v1381 = vpop.f32.mrb[0].mxu0
        %v1382 = vadd.f32 %v1161, %v1381
        %v1383 = vpop.f32.mrb[0].mxu0
        %v1384 = vpop.f32.mrb[0].mxu0
        %v1385 = vadd.f32 %v1164, %v1384
        %v1386 = vpop.f32.mrb[0].mxu0
        %1387 = vmatprep.mubr.bf16.mxu0 0
        %1388 = vmatmul.mubr.bf16.gmra.mrb[0].mxu0 %v1253
        %v1389 = vpop.f32.mrb[0].mxu0
        %v1390 = vadd.f32 %v1169, %v1389
        %v1391 = vpop.f32.mrb[0].mxu0
        %v1392 = vpop.f32.mrb[0].mxu0
        %v1393 = vadd.f32 %v1172, %v1392
        %v1394 = vpop.f32.mrb[0].mxu0
        %1395 = vmatprep.mubr.bf16.mxu0 0
        %1396 = vmatmul.mubr.bf16.gmra.mrb[0].mxu0 %v1256
        %v1397 = vpop.f32.mrb[0].mxu0
        %v1398 = vadd.f32 %v1177, %v1397
        %v1399 = vpop.f32.mrb[0].mxu0
        %v1400 = vpop.f32.mrb[0].mxu0
        %v1401 = vadd.f32 %v1180, %v1400
        %v1402 = vpop.f32.mrb[0].mxu0
        %1403 = vmatprep.mubr.bf16.mxu0 0
        %1404 = vmatmul.mubr.bf16.gmra.mrb[0].mxu0 %v1259
        %v1405 = vpop.f32.mrb[0].mxu0
        %v1406 = vadd.f32 %v1185, %v1405
        %v1407 = vpop.f32.mrb[0].mxu0
        %v1408 = vpop.f32.mrb[0].mxu0
        %v1409 = vadd.f32 %v1188, %v1408
        %v1410 = vpop.f32.mrb[0].mxu0
        %1411 = vmatprep.mubr.bf16.mxu0 0
        %1412 = vmatmul.mubr.bf16.gmra.mrb[0].mxu0 %v1262
        %v1413 = vpop.f32.mrb[0].mxu0
        %v1414 = vadd.f32 %v1193, %v1413
        %v1415 = vpop.f32.mrb[0].mxu0
        %v1416 = vpop.f32.mrb[0].mxu0
        %v1417 = vadd.f32 %v1196, %v1416
        %v1418 = vpop.f32.mrb[0].mxu0
        %1419 = vmatprep.mubr.bf16.mxu0 0
        %1420 = vmatmul.mubr.bf16.gmra.mrb[0].mxu0 %v1265
        %v1421 = vpop.f32.mrb[0].mxu0
        %v1422 = vadd.f32 %v1201, %v1421
        %v1423 = vpop.f32.mrb[0].mxu0
        %v1424 = vpop.f32.mrb[0].mxu0
        %v1425 = vadd.f32 %v1204, %v1424
        %v1426 = vpop.f32.mrb[0].mxu0
        %1427 = vdwg.mxu0
        %v1428 = vld [vmem:[#allocation2 + $0x8] sm:$0x1f]
        %v1429 = vld [vmem:[#allocation2 + $0x18] sm:$0x1f]
        %v1430 = vld [vmem:[#allocation2 + $0x28] sm:$0x1f]
        %v1431 = vld [vmem:[#allocation2 + $0x38] sm:$0x1f]
        %v1432 = vld [vmem:[#allocation2 + $0x48] sm:$0x1f]
        %v1433 = vld [vmem:[#allocation2 + $0x58] sm:$0x1f]
        %v1434 = vld [vmem:[#allocation2 + $0x68] sm:$0x1f]
        %v1435 = vld [vmem:[#allocation2 + $0x78] sm:$0x1f]
        %v1436 = vld [vmem:[#allocation2 + $0x88] sm:$0x1f]
        %v1437 = vld [vmem:[#allocation2 + $0x98] sm:$0x1f]
        %v1438 = vld [vmem:[#allocation2 + $0xa8] sm:$0x1f]
        %v1439 = vld [vmem:[#allocation2 + $0xb8] sm:$0x1f]
        %v1440 = vld [vmem:[#allocation2 + $0xc8] sm:$0x1f]
        %v1441 = vld [vmem:[#allocation2 + $0xd8] sm:$0x1f]
        %v1442 = vld [vmem:[#allocation2 + $0xe8] sm:$0x1f]
        %v1443 = vld [vmem:[#allocation2 + $0xf8] sm:$0x1f]
        %vm1444 = vsmask.f32 3328
        %v1446 = vshrl.u32 %v885, 16
        %v1448 = vrot.slane %v1446, 4
        %v1449 = vshll.u32 %v885, 16
        %v1451 = vrot.slane %v1449, 5
        %v1452 = vor.u32 %v1448, %v1451
        %v1454 = vshrl.u32 %v1428, 16
        %v1456 = vrot.slane %v1454, 4
        %v1457 = vshll.u32 %v1428, 16
        %v1459 = vrot.slane %v1457, 5
        %v1460 = vor.u32 %v1456, %v1459
        %v1461 = vsel %vm1444, %v1452, %v1460
        %v1463 = vshrl.u32 %v886, 16
        %v1465 = vrot.slane %v1463, 4
        %v1466 = vshll.u32 %v886, 16
        %v1468 = vrot.slane %v1466, 5
        %v1469 = vor.u32 %v1465, %v1468
        %v1471 = vshrl.u32 %v1429, 16
        %v1473 = vrot.slane %v1471, 4
        %v1474 = vshll.u32 %v1429, 16
        %v1476 = vrot.slane %v1474, 5
        %v1477 = vor.u32 %v1473, %v1476
        %v1478 = vsel %vm1444, %v1469, %v1477
        %v1480 = vshrl.u32 %v887, 16
        %v1482 = vrot.slane %v1480, 4
        %v1483 = vshll.u32 %v887, 16
        %v1485 = vrot.slane %v1483, 5
        %v1486 = vor.u32 %v1482, %v1485
        %v1488 = vshrl.u32 %v1430, 16
        %v1490 = vrot.slane %v1488, 4
        %v1491 = vshll.u32 %v1430, 16
        %v1493 = vrot.slane %v1491, 5
        %v1494 = vor.u32 %v1490, %v1493
        %v1495 = vsel %vm1444, %v1486, %v1494
        %v1497 = vshrl.u32 %v888, 16
        %v1499 = vrot.slane %v1497, 4
        %v1500 = vshll.u32 %v888, 16
        %v1502 = vrot.slane %v1500, 5
        %v1503 = vor.u32 %v1499, %v1502
        %v1505 = vshrl.u32 %v1431, 16
        %v1507 = vrot.slane %v1505, 4
        %v1508 = vshll.u32 %v1431, 16
        %v1510 = vrot.slane %v1508, 5
        %v1511 = vor.u32 %v1507, %v1510
        %v1512 = vsel %vm1444, %v1503, %v1511
        %v1514 = vshrl.u32 %v889, 16
        %v1516 = vrot.slane %v1514, 4
        %v1517 = vshll.u32 %v889, 16
        %v1519 = vrot.slane %v1517, 5
        %v1520 = vor.u32 %v1516, %v1519
        %v1522 = vshrl.u32 %v1432, 16
        %v1524 = vrot.slane %v1522, 4
        %v1525 = vshll.u32 %v1432, 16
        %v1527 = vrot.slane %v1525, 5
        %v1528 = vor.u32 %v1524, %v1527
        %v1529 = vsel %vm1444, %v1520, %v1528
        %v1531 = vshrl.u32 %v890, 16
        %v1533 = vrot.slane %v1531, 4
        %v1534 = vshll.u32 %v890, 16
        %v1536 = vrot.slane %v1534, 5
        %v1537 = vor.u32 %v1533, %v1536
        %v1539 = vshrl.u32 %v1433, 16
        %v1541 = vrot.slane %v1539, 4
        %v1542 = vshll.u32 %v1433, 16
        %v1544 = vrot.slane %v1542, 5
        %v1545 = vor.u32 %v1541, %v1544
        %v1546 = vsel %vm1444, %v1537, %v1545
        %v1548 = vshrl.u32 %v891, 16
        %v1550 = vrot.slane %v1548, 4
        %v1551 = vshll.u32 %v891, 16
        %v1553 = vrot.slane %v1551, 5
        %v1554 = vor.u32 %v1550, %v1553
        %v1556 = vshrl.u32 %v1434, 16
        %v1558 = vrot.slane %v1556, 4
        %v1559 = vshll.u32 %v1434, 16
        %v1561 = vrot.slane %v1559, 5
        %v1562 = vor.u32 %v1558, %v1561
        %v1563 = vsel %vm1444, %v1554, %v1562
        %v1565 = vshrl.u32 %v892, 16
        %v1567 = vrot.slane %v1565, 4
        %v1568 = vshll.u32 %v892, 16
        %v1570 = vrot.slane %v1568, 5
        %v1571 = vor.u32 %v1567, %v1570
        %v1573 = vshrl.u32 %v1435, 16
        %v1575 = vrot.slane %v1573, 4
        %v1576 = vshll.u32 %v1435, 16
        %v1578 = vrot.slane %v1576, 5
        %v1579 = vor.u32 %v1575, %v1578
        %v1580 = vsel %vm1444, %v1571, %v1579
        %v1582 = vshrl.u32 %v893, 16
        %v1584 = vrot.slane %v1582, 4
        %v1585 = vshll.u32 %v893, 16
        %v1587 = vrot.slane %v1585, 5
        %v1588 = vor.u32 %v1584, %v1587
        %v1590 = vshrl.u32 %v1436, 16
        %v1592 = vrot.slane %v1590, 4
        %v1593 = vshll.u32 %v1436, 16
        %v1595 = vrot.slane %v1593, 5
        %v1596 = vor.u32 %v1592, %v1595
        %v1597 = vsel %vm1444, %v1588, %v1596
        %v1599 = vshrl.u32 %v894, 16
        %v1601 = vrot.slane %v1599, 4
        %v1602 = vshll.u32 %v894, 16
        %v1604 = vrot.slane %v1602, 5
        %v1605 = vor.u32 %v1601, %v1604
        %v1607 = vshrl.u32 %v1437, 16
        %v1609 = vrot.slane %v1607, 4
        %v1610 = vshll.u32 %v1437, 16
        %v1612 = vrot.slane %v1610, 5
        %v1613 = vor.u32 %v1609, %v1612
        %v1614 = vsel %vm1444, %v1605, %v1613
        %v1616 = vshrl.u32 %v895, 16
        %v1618 = vrot.slane %v1616, 4
        %v1619 = vshll.u32 %v895, 16
        %v1621 = vrot.slane %v1619, 5
        %v1622 = vor.u32 %v1618, %v1621
        %v1624 = vshrl.u32 %v1438, 16
        %v1626 = vrot.slane %v1624, 4
        %v1627 = vshll.u32 %v1438, 16
        %v1629 = vrot.slane %v1627, 5
        %v1630 = vor.u32 %v1626, %v1629
        %v1631 = vsel %vm1444, %v1622, %v1630
        %v1633 = vshrl.u32 %v896, 16
        %v1635 = vrot.slane %v1633, 4
        %v1636 = vshll.u32 %v896, 16
        %v1638 = vrot.slane %v1636, 5
        %v1639 = vor.u32 %v1635, %v1638
        %v1641 = vshrl.u32 %v1439, 16
        %v1643 = vrot.slane %v1641, 4
        %v1644 = vshll.u32 %v1439, 16
        %v1646 = vrot.slane %v1644, 5
        %v1647 = vor.u32 %v1643, %v1646
        %v1648 = vsel %vm1444, %v1639, %v1647
        %v1650 = vshrl.u32 %v897, 16
        %v1652 = vrot.slane %v1650, 4
        %v1653 = vshll.u32 %v897, 16
        %v1655 = vrot.slane %v1653, 5
        %v1656 = vor.u32 %v1652, %v1655
        %v1658 = vshrl.u32 %v1440, 16
        %v1660 = vrot.slane %v1658, 4
        %v1661 = vshll.u32 %v1440, 16
        %v1663 = vrot.slane %v1661, 5
        %v1664 = vor.u32 %v1660, %v1663
        %v1665 = vsel %vm1444, %v1656, %v1664
        %v1667 = vshrl.u32 %v898, 16
        %v1669 = vrot.slane %v1667, 4
        %v1670 = vshll.u32 %v898, 16
        %v1672 = vrot.slane %v1670, 5
        %v1673 = vor.u32 %v1669, %v1672
        %v1675 = vshrl.u32 %v1441, 16
        %v1677 = vrot.slane %v1675, 4
        %v1678 = vshll.u32 %v1441, 16
        %v1680 = vrot.slane %v1678, 5
        %v1681 = vor.u32 %v1677, %v1680
        %v1682 = vsel %vm1444, %v1673, %v1681
        %v1684 = vshrl.u32 %v899, 16
        %v1686 = vrot.slane %v1684, 4
        %v1687 = vshll.u32 %v899, 16
        %v1689 = vrot.slane %v1687, 5
        %v1690 = vor.u32 %v1686, %v1689
        %v1692 = vshrl.u32 %v1442, 16
        %v1694 = vrot.slane %v1692, 4
        %v1695 = vshll.u32 %v1442, 16
        %v1697 = vrot.slane %v1695, 5
        %v1698 = vor.u32 %v1694, %v1697
        %v1699 = vsel %vm1444, %v1690, %v1698
        %v1701 = vshrl.u32 %v900, 16
        %v1703 = vrot.slane %v1701, 4
        %v1704 = vshll.u32 %v900, 16
        %v1706 = vrot.slane %v1704, 5
        %v1707 = vor.u32 %v1703, %v1706
        %v1709 = vshrl.u32 %v1443, 16
        %v1711 = vrot.slane %v1709, 4
        %v1712 = vshll.u32 %v1443, 16
        %v1714 = vrot.slane %v1712, 5
        %v1715 = vor.u32 %v1711, %v1714
        %v1716 = vsel %vm1444, %v1707, %v1715
        %v1717 = vld [vmem:[%s1 + $0x20] sm:$0xf]
        %v1718 = vld [vmem:[%s1 + $0x24] sm:$0xf]
        %v1719 = vld [vmem:[%s1 + $0x28] sm:$0xf]
        %v1720 = vld [vmem:[%s1 + $0x2c] sm:$0xf]
        %v1725 = vunpack.c.l.b16 %v1717
        %v1726 = vunpack.c.l.b16 %v1718
        %v1727 = vunpack.c.l.b16 %v1719
        %v1728 = vunpack.c.l.b16 %v1720
        %v1729 = vpack.c.b16 %v1726, %v1725
        %v1730 = vpack.c.b16 %v1728, %v1727
        %v1734 = vsel %vm358, %v1461, 0
        %v1737 = vsel %vm358, %v1478, 0
        %v1740 = vsel %vm358, %v1495, 0
        %v1743 = vsel %vm358, %v1512, 0
        %v1746 = vsel %vm358, %v1529, 0
        %v1749 = vsel %vm358, %v1546, 0
        %v1752 = vsel %vm358, %v1563, 0
        %v1755 = vsel %vm358, %v1580, 0
        %v1758 = vsel %vm358, %v1597, 0
        %v1761 = vsel %vm358, %v1614, 0
        %v1764 = vsel %vm358, %v1631, 0
        %v1767 = vsel %vm358, %v1648, 0
        %v1770 = vsel %vm358, %v1665, 0
        %v1773 = vsel %vm358, %v1682, 0
        %v1776 = vsel %vm358, %v1699, 0
        %v1779 = vsel %vm358, %v1716, 0
        %1781 = vmatprep.subr.bf16.mxu0 0
        %1782 = vmatpush1.bf16.msra.mxu0 %v1729
        %1783 = vmatprep.subr.bf16.mxu0 0
        %1784 = vmatpush1.bf16.msra.mxu0 %v1730
        %1785 = vmatprep.subr.bf16.mxu0 0
        %1786 = vmatpush1.bf16.msra.mxu0 0
        %1787 = vmatprep.subr.bf16.mxu0 0
        %1788 = vmatpush1.bf16.msra.mxu0 0
        %1789 = vmatprep.subr.bf16.mxu0 0
        %1790 = vmatpush1.bf16.msra.mxu0 0
        %1791 = vmatprep.subr.bf16.mxu0 0
        %1792 = vmatpush1.bf16.msra.mxu0 0
        %1793 = vmatprep.subr.bf16.mxu0 0
        %1794 = vmatpush1.bf16.msra.mxu0 0
        %1795 = vmatprep.subr.bf16.mxu0 0
        %1796 = vmatpush1.bf16.msra.mxu0 0
        %1797 = vmatprep.subr.bf16.mxu0 0
        %1798 = vmatpush1.bf16.msra.mxu0 0
        %1799 = vmatprep.subr.bf16.mxu0 0
        %1800 = vmatpush1.bf16.msra.mxu0 0
        %1801 = vmatprep.subr.bf16.mxu0 0
        %1802 = vmatpush1.bf16.msra.mxu0 0
        %1803 = vmatprep.subr.bf16.mxu0 0
        %1804 = vmatpush1.bf16.msra.mxu0 0
        %1805 = vmatprep.subr.bf16.mxu0 0
        %1806 = vmatpush1.bf16.msra.mxu0 0
        %1807 = vmatprep.subr.bf16.mxu0 0
        %1808 = vmatpush1.bf16.msra.mxu0 0
        %1809 = vmatprep.subr.bf16.mxu0 0
        %1810 = vmatpush1.bf16.msra.mxu0 0
        %1811 = vmatprep.subr.bf16.mxu0 0
        %1812 = vmatpush1.bf16.msra.mxu0 0
        %1813 = vmatprep.mubr.bf16.mxu0 0
        %1814 = vmatmul.mubr.bf16.gmra.mrb[0].mxu0 %v1734
        %v1815 = vpop.f32.mrb[0].mxu0
        %v1816 = vadd.f32 0.0, %v1815
        %v1817 = vpop.f32.mrb[0].mxu0
        %v1818 = vpop.f32.mrb[0].mxu0
        %v1819 = vadd.f32 0.0, %v1818
        %v1820 = vpop.f32.mrb[0].mxu0
        %1821 = vmatprep.mubr.bf16.mxu0 0
        %1822 = vmatmul.mubr.bf16.gmra.mrb[0].mxu0 %v1737
        %v1823 = vpop.f32.mrb[0].mxu0
        %v1824 = vadd.f32 0.0, %v1823
        %v1825 = vpop.f32.mrb[0].mxu0
        %v1826 = vpop.f32.mrb[0].mxu0
        %v1827 = vadd.f32 0.0, %v1826
        %v1828 = vpop.f32.mrb[0].mxu0
        %1829 = vmatprep.mubr.bf16.mxu0 0
        %1830 = vmatmul.mubr.bf16.gmra.mrb[0].mxu0 %v1740
        %v1831 = vpop.f32.mrb[0].mxu0
        %v1832 = vadd.f32 0.0, %v1831
        %v1833 = vpop.f32.mrb[0].mxu0
        %v1834 = vpop.f32.mrb[0].mxu0
        %v1835 = vadd.f32 0.0, %v1834
        %v1836 = vpop.f32.mrb[0].mxu0
        %1837 = vmatprep.mubr.bf16.mxu0 0
        %1838 = vmatmul.mubr.bf16.gmra.mrb[0].mxu0 %v1743
        %v1839 = vpop.f32.mrb[0].mxu0
        %v1840 = vadd.f32 0.0, %v1839
        %v1841 = vpop.f32.mrb[0].mxu0
        %v1842 = vpop.f32.mrb[0].mxu0
        %v1843 = vadd.f32 0.0, %v1842
        %v1844 = vpop.f32.mrb[0].mxu0
        %1845 = vmatprep.mubr.bf16.mxu0 0
        %1846 = vmatmul.mubr.bf16.gmra.mrb[0].mxu0 %v1746
        %v1847 = vpop.f32.mrb[0].mxu0
        %v1848 = vadd.f32 0.0, %v1847
        %v1849 = vpop.f32.mrb[0].mxu0
        %v1850 = vpop.f32.mrb[0].mxu0
        %v1851 = vadd.f32 0.0, %v1850
        %v1852 = vpop.f32.mrb[0].mxu0
        %1853 = vmatprep.mubr.bf16.mxu0 0
        %1854 = vmatmul.mubr.bf16.gmra.mrb[0].mxu0 %v1749
        %v1855 = vpop.f32.mrb[0].mxu0
        %v1856 = vadd.f32 0.0, %v1855
        %v1857 = vpop.f32.mrb[0].mxu0
        %v1858 = vpop.f32.mrb[0].mxu0
        %v1859 = vadd.f32 0.0, %v1858
        %v1860 = vpop.f32.mrb[0].mxu0
        %1861 = vmatprep.mubr.bf16.mxu0 0
        %1862 = vmatmul.mubr.bf16.gmra.mrb[0].mxu0 %v1752
        %v1863 = vpop.f32.mrb[0].mxu0
        %v1864 = vadd.f32 0.0, %v1863
        %v1865 = vpop.f32.mrb[0].mxu0
        %v1866 = vpop.f32.mrb[0].mxu0
        %v1867 = vadd.f32 0.0, %v1866
        %v1868 = vpop.f32.mrb[0].mxu0
        %1869 = vmatprep.mubr.bf16.mxu0 0
        %1870 = vmatmul.mubr.bf16.gmra.mrb[0].mxu0 %v1755
        %v1871 = vpop.f32.mrb[0].mxu0
        %v1872 = vadd.f32 0.0, %v1871
        %v1873 = vpop.f32.mrb[0].mxu0
        %v1874 = vpop.f32.mrb[0].mxu0
        %v1875 = vadd.f32 0.0, %v1874
        %v1876 = vpop.f32.mrb[0].mxu0
        %1877 = vmatprep.mubr.bf16.mxu0 0
        %1878 = vmatmul.mubr.bf16.gmra.mrb[0].mxu0 %v1758
        %v1879 = vpop.f32.mrb[0].mxu0
        %v1880 = vadd.f32 0.0, %v1879
        %v1881 = vpop.f32.mrb[0].mxu0
        %v1882 = vpop.f32.mrb[0].mxu0
        %v1883 = vadd.f32 0.0, %v1882
        %v1884 = vpop.f32.mrb[0].mxu0
        %1885 = vmatprep.mubr.bf16.mxu0 0
        %1886 = vmatmul.mubr.bf16.gmra.mrb[0].mxu0 %v1761
        %v1887 = vpop.f32.mrb[0].mxu0
        %v1888 = vadd.f32 0.0, %v1887
        %v1889 = vpop.f32.mrb[0].mxu0
        %v1890 = vpop.f32.mrb[0].mxu0
        %v1891 = vadd.f32 0.0, %v1890
        %v1892 = vpop.f32.mrb[0].mxu0
        %1893 = vmatprep.mubr.bf16.mxu0 0
        %1894 = vmatmul.mubr.bf16.gmra.mrb[0].mxu0 %v1764
        %v1895 = vpop.f32.mrb[0].mxu0
        %v1896 = vadd.f32 0.0, %v1895
        %v1897 = vpop.f32.mrb[0].mxu0
        %v1898 = vpop.f32.mrb[0].mxu0
        %v1899 = vadd.f32 0.0, %v1898
        %v1900 = vpop.f32.mrb[0].mxu0
        %1901 = vmatprep.mubr.bf16.mxu0 0
        %1902 = vmatmul.mubr.bf16.gmra.mrb[0].mxu0 %v1767
        %v1903 = vpop.f32.mrb[0].mxu0
        %v1904 = vadd.f32 0.0, %v1903
        %v1905 = vpop.f32.mrb[0].mxu0
        %v1906 = vpop.f32.mrb[0].mxu0
        %v1907 = vadd.f32 0.0, %v1906
        %v1908 = vpop.f32.mrb[0].mxu0
        %1909 = vmatprep.mubr.bf16.mxu0 0
        %1910 = vmatmul.mubr.bf16.gmra.mrb[0].mxu0 %v1770
        %v1911 = vpop.f32.mrb[0].mxu0
        %v1912 = vadd.f32 0.0, %v1911
        %v1913 = vpop.f32.mrb[0].mxu0
        %v1914 = vpop.f32.mrb[0].mxu0
        %v1915 = vadd.f32 0.0, %v1914
        %v1916 = vpop.f32.mrb[0].mxu0
        %1917 = vmatprep.mubr.bf16.mxu0 0
        %1918 = vmatmul.mubr.bf16.gmra.mrb[0].mxu0 %v1773
        %v1919 = vpop.f32.mrb[0].mxu0
        %v1920 = vadd.f32 0.0, %v1919
        %v1921 = vpop.f32.mrb[0].mxu0
        %v1922 = vpop.f32.mrb[0].mxu0
        %v1923 = vadd.f32 0.0, %v1922
        %v1924 = vpop.f32.mrb[0].mxu0
        %1925 = vmatprep.mubr.bf16.mxu0 0
        %1926 = vmatmul.mubr.bf16.gmra.mrb[0].mxu0 %v1776
        %v1927 = vpop.f32.mrb[0].mxu0
        %v1928 = vadd.f32 0.0, %v1927
        %v1929 = vpop.f32.mrb[0].mxu0
        %v1930 = vpop.f32.mrb[0].mxu0
        %v1931 = vadd.f32 0.0, %v1930
        %v1932 = vpop.f32.mrb[0].mxu0
        %1933 = vmatprep.mubr.bf16.mxu0 0
        %1934 = vmatmul.mubr.bf16.gmra.mrb[0].mxu0 %v1779
        %v1935 = vpop.f32.mrb[0].mxu0
        %v1936 = vadd.f32 0.0, %v1935
        %v1937 = vpop.f32.mrb[0].mxu0
        %v1938 = vpop.f32.mrb[0].mxu0
        %v1939 = vadd.f32 0.0, %v1938
        %v1940 = vpop.f32.mrb[0].mxu0
        %1941 = vdwg.mxu0
        %v1942 = vadd.f32 %v1302, %v1816
        %v1943 = vadd.f32 %v1305, %v1819
        %v1944 = vadd.f32 %v1310, %v1824
        %v1945 = vadd.f32 %v1313, %v1827
        %v1946 = vadd.f32 %v1318, %v1832
        %v1947 = vadd.f32 %v1321, %v1835
        %v1948 = vadd.f32 %v1326, %v1840
        %v1949 = vadd.f32 %v1329, %v1843
        %v1950 = vadd.f32 %v1334, %v1848
        %v1951 = vadd.f32 %v1337, %v1851
        %v1952 = vadd.f32 %v1342, %v1856
        %v1953 = vadd.f32 %v1345, %v1859
        %v1954 = vadd.f32 %v1350, %v1864
        %v1955 = vadd.f32 %v1353, %v1867
        %v1956 = vadd.f32 %v1358, %v1872
        %v1957 = vadd.f32 %v1361, %v1875
        %v1958 = vadd.f32 %v1366, %v1880
        %v1959 = vadd.f32 %v1369, %v1883
        %v1960 = vadd.f32 %v1374, %v1888
        %v1961 = vadd.f32 %v1377, %v1891
        %v1962 = vadd.f32 %v1382, %v1896
        %v1963 = vadd.f32 %v1385, %v1899
        %v1964 = vadd.f32 %v1390, %v1904
        %v1965 = vadd.f32 %v1393, %v1907
        %v1966 = vadd.f32 %v1398, %v1912
        %v1967 = vadd.f32 %v1401, %v1915
        %v1968 = vadd.f32 %v1406, %v1920
        %v1969 = vadd.f32 %v1409, %v1923
        %v1970 = vadd.f32 %v1414, %v1928
        %v1971 = vadd.f32 %v1417, %v1931
        %v1972 = vadd.f32 %v1422, %v1936
        %v1973 = vadd.f32 %v1425, %v1939
        %v1974 = vld [vmem:[%s542] sm:$0xf8]
        %v1975 = vld [vmem:[%s542 + $0x8] sm:$0xf]
        %v1976 = vld [vmem:[%s542 + $0x10] sm:$0xf8]
        %v1977 = vld [vmem:[%s542 + $0x18] sm:$0xf]
        %v1978 = vld [vmem:[%s542 + $0x20] sm:$0xf8]
        %v1979 = vld [vmem:[%s542 + $0x28] sm:$0xf]
        %v1980 = vld [vmem:[%s542 + $0x30] sm:$0xf8]
        %v1981 = vld [vmem:[%s542 + $0x38] sm:$0xf]
        %v1982 = vld [vmem:[%s542 + $0x40] sm:$0xf8]
        %v1983 = vld [vmem:[%s542 + $0x48] sm:$0xf]
        %v1984 = vld [vmem:[%s542 + $0x50] sm:$0xf8]
        %v1985 = vld [vmem:[%s542 + $0x58] sm:$0xf]
        %v1986 = vld [vmem:[%s542 + $0x60] sm:$0xf8]
        %v1987 = vld [vmem:[%s542 + $0x68] sm:$0xf]
        %v1988 = vld [vmem:[%s542 + $0x70] sm:$0xf8]
        %v1989 = vld [vmem:[%s542 + $0x78] sm:$0xf]
        %v1990 = vld [vmem:[%s542 + $0x80] sm:$0xf8]
        %v1991 = vld [vmem:[%s542 + $0x88] sm:$0xf]
        %v1992 = vld [vmem:[%s542 + $0x90] sm:$0xf8]
        %v1993 = vld [vmem:[%s542 + $0x98] sm:$0xf]
        %v1994 = vld [vmem:[%s542 + $0xa0] sm:$0xf8]
        %v1995 = vld [vmem:[%s542 + $0xa8] sm:$0xf]
        %v1996 = vld [vmem:[%s542 + $0xb0] sm:$0xf8]
        %v1997 = vld [vmem:[%s542 + $0xb8] sm:$0xf]
        %v1998 = vld [vmem:[%s542 + $0xc0] sm:$0xf8]
        %v1999 = vld [vmem:[%s542 + $0xc8] sm:$0xf]
        %v2000 = vld [vmem:[%s542 + $0xd0] sm:$0xf8]
        %v2001 = vld [vmem:[%s542 + $0xd8] sm:$0xf]
        %v2002 = vld [vmem:[%s542 + $0xe0] sm:$0xf8]
        %v2003 = vld [vmem:[%s542 + $0xe8] sm:$0xf]
        %v2004 = vld [vmem:[%s542 + $0xf0] sm:$0xf8]
        %v2005 = vld [vmem:[%s542 + $0xf8] sm:$0xf]
        %v2007 = vshrl.u32 %v1974, 16
        %v2009 = vrot.slane %v2007, 3
        %v2010 = vshll.u32 %v1974, 16
        %v2012 = vrot.slane %v2010, 4
        %v2013 = vor.u32 %v2009, %v2012
        %v2015 = vshrl.u32 %v1975, 16
        %v2017 = vrot.slane %v2015, 3
        %v2018 = vshll.u32 %v1975, 16
        %v2020 = vrot.slane %v2018, 4
        %v2021 = vor.u32 %v2017, %v2020
        %v2022 = vsel %vm422, %v2013, %v2021
        %v2024 = vshrl.u32 %v1976, 16
        %v2026 = vrot.slane %v2024, 3
        %v2027 = vshll.u32 %v1976, 16
        %v2029 = vrot.slane %v2027, 4
        %v2030 = vor.u32 %v2026, %v2029
        %v2032 = vshrl.u32 %v1977, 16
        %v2034 = vrot.slane %v2032, 3
        %v2035 = vshll.u32 %v1977, 16
        %v2037 = vrot.slane %v2035, 4
        %v2038 = vor.u32 %v2034, %v2037
        %v2039 = vsel %vm422, %v2030, %v2038
        %v2041 = vshrl.u32 %v1978, 16
        %v2043 = vrot.slane %v2041, 3
        %v2044 = vshll.u32 %v1978, 16
        %v2046 = vrot.slane %v2044, 4
        %v2047 = vor.u32 %v2043, %v2046
        %v2049 = vshrl.u32 %v1979, 16
        %v2051 = vrot.slane %v2049, 3
        %v2052 = vshll.u32 %v1979, 16
        %v2054 = vrot.slane %v2052, 4
        %v2055 = vor.u32 %v2051, %v2054
        %v2056 = vsel %vm422, %v2047, %v2055
        %v2058 = vshrl.u32 %v1980, 16
        %v2060 = vrot.slane %v2058, 3
        %v2061 = vshll.u32 %v1980, 16
        %v2063 = vrot.slane %v2061, 4
        %v2064 = vor.u32 %v2060, %v2063
        %v2066 = vshrl.u32 %v1981, 16
        %v2068 = vrot.slane %v2066, 3
        %v2069 = vshll.u32 %v1981, 16
        %v2071 = vrot.slane %v2069, 4
        %v2072 = vor.u32 %v2068, %v2071
        %v2073 = vsel %vm422, %v2064, %v2072
        %v2075 = vshrl.u32 %v1982, 16
        %v2077 = vrot.slane %v2075, 3
        %v2078 = vshll.u32 %v1982, 16
        %v2080 = vrot.slane %v2078, 4
        %v2081 = vor.u32 %v2077, %v2080
        %v2083 = vshrl.u32 %v1983, 16
        %v2085 = vrot.slane %v2083, 3
        %v2086 = vshll.u32 %v1983, 16
        %v2088 = vrot.slane %v2086, 4
        %v2089 = vor.u32 %v2085, %v2088
        %v2090 = vsel %vm422, %v2081, %v2089
        %v2092 = vshrl.u32 %v1984, 16
        %v2094 = vrot.slane %v2092, 3
        %v2095 = vshll.u32 %v1984, 16
        %v2097 = vrot.slane %v2095, 4
        %v2098 = vor.u32 %v2094, %v2097
        %v2100 = vshrl.u32 %v1985, 16
        %v2102 = vrot.slane %v2100, 3
        %v2103 = vshll.u32 %v1985, 16
        %v2105 = vrot.slane %v2103, 4
        %v2106 = vor.u32 %v2102, %v2105
        %v2107 = vsel %vm422, %v2098, %v2106
        %v2109 = vshrl.u32 %v1986, 16
        %v2111 = vrot.slane %v2109, 3
        %v2112 = vshll.u32 %v1986, 16
        %v2114 = vrot.slane %v2112, 4
        %v2115 = vor.u32 %v2111, %v2114
        %v2117 = vshrl.u32 %v1987, 16
        %v2119 = vrot.slane %v2117, 3
        %v2120 = vshll.u32 %v1987, 16
        %v2122 = vrot.slane %v2120, 4
        %v2123 = vor.u32 %v2119, %v2122
        %v2124 = vsel %vm422, %v2115, %v2123
        %v2126 = vshrl.u32 %v1988, 16
        %v2128 = vrot.slane %v2126, 3
        %v2129 = vshll.u32 %v1988, 16
        %v2131 = vrot.slane %v2129, 4
        %v2132 = vor.u32 %v2128, %v2131
        %v2134 = vshrl.u32 %v1989, 16
        %v2136 = vrot.slane %v2134, 3
        %v2137 = vshll.u32 %v1989, 16
        %v2139 = vrot.slane %v2137, 4
        %v2140 = vor.u32 %v2136, %v2139
        %v2141 = vsel %vm422, %v2132, %v2140
        %v2143 = vshrl.u32 %v1990, 16
        %v2145 = vrot.slane %v2143, 3
        %v2146 = vshll.u32 %v1990, 16
        %v2148 = vrot.slane %v2146, 4
        %v2149 = vor.u32 %v2145, %v2148
        %v2151 = vshrl.u32 %v1991, 16
        %v2153 = vrot.slane %v2151, 3
        %v2154 = vshll.u32 %v1991, 16
        %v2156 = vrot.slane %v2154, 4
        %v2157 = vor.u32 %v2153, %v2156
        %v2158 = vsel %vm422, %v2149, %v2157
        %v2160 = vshrl.u32 %v1992, 16
        %v2162 = vrot.slane %v2160, 3
        %v2163 = vshll.u32 %v1992, 16
        %v2165 = vrot.slane %v2163, 4
        %v2166 = vor.u32 %v2162, %v2165
        %v2168 = vshrl.u32 %v1993, 16
        %v2170 = vrot.slane %v2168, 3
        %v2171 = vshll.u32 %v1993, 16
        %v2173 = vrot.slane %v2171, 4
        %v2174 = vor.u32 %v2170, %v2173
        %v2175 = vsel %vm422, %v2166, %v2174
        %v2177 = vshrl.u32 %v1994, 16
        %v2179 = vrot.slane %v2177, 3
        %v2180 = vshll.u32 %v1994, 16
        %v2182 = vrot.slane %v2180, 4
        %v2183 = vor.u32 %v2179, %v2182
        %v2185 = vshrl.u32 %v1995, 16
        %v2187 = vrot.slane %v2185, 3
        %v2188 = vshll.u32 %v1995, 16
        %v2190 = vrot.slane %v2188, 4
        %v2191 = vor.u32 %v2187, %v2190
        %v2192 = vsel %vm422, %v2183, %v2191
        %v2194 = vshrl.u32 %v1996, 16
        %v2196 = vrot.slane %v2194, 3
        %v2197 = vshll.u32 %v1996, 16
        %v2199 = vrot.slane %v2197, 4
        %v2200 = vor.u32 %v2196, %v2199
        %v2202 = vshrl.u32 %v1997, 16
        %v2204 = vrot.slane %v2202, 3
        %v2205 = vshll.u32 %v1997, 16
        %v2207 = vrot.slane %v2205, 4
        %v2208 = vor.u32 %v2204, %v2207
        %v2209 = vsel %vm422, %v2200, %v2208
        %v2211 = vshrl.u32 %v1998, 16
        %v2213 = vrot.slane %v2211, 3
        %v2214 = vshll.u32 %v1998, 16
        %v2216 = vrot.slane %v2214, 4
        %v2217 = vor.u32 %v2213, %v2216
        %v2219 = vshrl.u32 %v1999, 16
        %v2221 = vrot.slane %v2219, 3
        %v2222 = vshll.u32 %v1999, 16
        %v2224 = vrot.slane %v2222, 4
        %v2225 = vor.u32 %v2221, %v2224
        %v2226 = vsel %vm422, %v2217, %v2225
        %v2228 = vshrl.u32 %v2000, 16
        %v2230 = vrot.slane %v2228, 3
        %v2231 = vshll.u32 %v2000, 16
        %v2233 = vrot.slane %v2231, 4
        %v2234 = vor.u32 %v2230, %v2233
        %v2236 = vshrl.u32 %v2001, 16
        %v2238 = vrot.slane %v2236, 3
        %v2239 = vshll.u32 %v2001, 16
        %v2241 = vrot.slane %v2239, 4
        %v2242 = vor.u32 %v2238, %v2241
        %v2243 = vsel %vm422, %v2234, %v2242
        %v2245 = vshrl.u32 %v2002, 16
        %v2247 = vrot.slane %v2245, 3
        %v2248 = vshll.u32 %v2002, 16
        %v2250 = vrot.slane %v2248, 4
        %v2251 = vor.u32 %v2247, %v2250
        %v2253 = vshrl.u32 %v2003, 16
        %v2255 = vrot.slane %v2253, 3
        %v2256 = vshll.u32 %v2003, 16
        %v2258 = vrot.slane %v2256, 4
        %v2259 = vor.u32 %v2255, %v2258
        %v2260 = vsel %vm422, %v2251, %v2259
        %v2262 = vshrl.u32 %v2004, 16
        %v2264 = vrot.slane %v2262, 3
        %v2265 = vshll.u32 %v2004, 16
        %v2267 = vrot.slane %v2265, 4
        %v2268 = vor.u32 %v2264, %v2267
        %v2270 = vshrl.u32 %v2005, 16
        %v2272 = vrot.slane %v2270, 3
        %v2273 = vshll.u32 %v2005, 16
        %v2275 = vrot.slane %v2273, 4
        %v2276 = vor.u32 %v2272, %v2275
        %v2277 = vsel %vm422, %v2268, %v2276
        %v2278 = vld [vmem:[%s1 + $0x30] sm:$0xf]
        %v2279 = vld [vmem:[%s1 + $0x34] sm:$0xf]
        %v2280 = vld [vmem:[%s1 + $0x38] sm:$0xf]
        %v2281 = vld [vmem:[%s1 + $0x3c] sm:$0xf]
        %v2282 = vld [vmem:[%s542] sm:$0xf0]
        %v2283 = vld [vmem:[%s542 + $0x10] sm:$0xf0]
        %v2284 = vld [vmem:[%s542 + $0x20] sm:$0xf0]
        %v2285 = vld [vmem:[%s542 + $0x30] sm:$0xf0]
        %v2286 = vld [vmem:[%s542 + $0x40] sm:$0xf0]
        %v2287 = vld [vmem:[%s542 + $0x50] sm:$0xf0]
        %v2288 = vld [vmem:[%s542 + $0x60] sm:$0xf0]
        %v2289 = vld [vmem:[%s542 + $0x70] sm:$0xf0]
        %v2290 = vld [vmem:[%s542 + $0x80] sm:$0xf0]
        %v2291 = vld [vmem:[%s542 + $0x90] sm:$0xf0]
        %v2292 = vld [vmem:[%s542 + $0xa0] sm:$0xf0]
        %v2293 = vld [vmem:[%s542 + $0xb0] sm:$0xf0]
        %v2294 = vld [vmem:[%s542 + $0xc0] sm:$0xf0]
        %v2295 = vld [vmem:[%s542 + $0xd0] sm:$0xf0]
        %v2296 = vld [vmem:[%s542 + $0xe0] sm:$0xf0]
        %v2297 = vld [vmem:[%s542 + $0xf0] sm:$0xf0]
        %v2330 = vrot.slane %v2282, 4
        %v2331 = vrot.slane %v1975, 4
        %v2332 = vsel %vm933, %v2330, %v2331
        %v2333 = vrot.slane %v2283, 4
        %v2334 = vrot.slane %v1977, 4
        %v2335 = vsel %vm933, %v2333, %v2334
        %v2336 = vrot.slane %v2284, 4
        %v2337 = vrot.slane %v1979, 4
        %v2338 = vsel %vm933, %v2336, %v2337
        %v2339 = vrot.slane %v2285, 4
        %v2340 = vrot.slane %v1981, 4
        %v2341 = vsel %vm933, %v2339, %v2340
        %v2342 = vrot.slane %v2286, 4
        %v2343 = vrot.slane %v1983, 4
        %v2344 = vsel %vm933, %v2342, %v2343
        %v2345 = vrot.slane %v2287, 4
        %v2346 = vrot.slane %v1985, 4
        %v2347 = vsel %vm933, %v2345, %v2346
        %v2348 = vrot.slane %v2288, 4
        %v2349 = vrot.slane %v1987, 4
        %v2350 = vsel %vm933, %v2348, %v2349
        %v2351 = vrot.slane %v2289, 4
        %v2352 = vrot.slane %v1989, 4
        %v2353 = vsel %vm933, %v2351, %v2352
        %v2354 = vrot.slane %v2290, 4
        %v2355 = vrot.slane %v1991, 4
        %v2356 = vsel %vm933, %v2354, %v2355
        %v2357 = vrot.slane %v2291, 4
        %v2358 = vrot.slane %v1993, 4
        %v2359 = vsel %vm933, %v2357, %v2358
        %v2360 = vrot.slane %v2292, 4
        %v2361 = vrot.slane %v1995, 4
        %v2362 = vsel %vm933, %v2360, %v2361
        %v2363 = vrot.slane %v2293, 4
        %v2364 = vrot.slane %v1997, 4
        %v2365 = vsel %vm933, %v2363, %v2364
        %v2366 = vrot.slane %v2294, 4
        %v2367 = vrot.slane %v1999, 4
        %v2368 = vsel %vm933, %v2366, %v2367
        %v2369 = vrot.slane %v2295, 4
        %v2370 = vrot.slane %v2001, 4
        %v2371 = vsel %vm933, %v2369, %v2370
        %v2372 = vrot.slane %v2296, 4
        %v2373 = vrot.slane %v2003, 4
        %v2374 = vsel %vm933, %v2372, %v2373
        %v2375 = vrot.slane %v2297, 4
        %v2376 = vrot.slane %v2005, 4
        %v2377 = vsel %vm933, %v2375, %v2376
        %v2378 = vld [vmem:[%s1 + $0x40] sm:$0xf]
        %v2379 = vld [vmem:[%s1 + $0x44] sm:$0xf]
        %v2380 = vld [vmem:[%s1 + $0x48] sm:$0xf]
        %v2381 = vld [vmem:[%s1 + $0x4c] sm:$0xf]
        %v2386 = vunpack.c.l.b16 %v2378
        %v2387 = vunpack.c.l.b16 %v2379
        %v2388 = vunpack.c.l.b16 %v2380
        %v2389 = vunpack.c.l.b16 %v2381
        %v2390 = vpack.c.b16 %v2387, %v2386
        %v2391 = vpack.c.b16 %v2389, %v2388
        %v2395 = vsel %vm358, %v2332, 0
        %v2398 = vsel %vm358, %v2335, 0
        %v2401 = vsel %vm358, %v2338, 0
        %v2404 = vsel %vm358, %v2341, 0
        %v2407 = vsel %vm358, %v2344, 0
        %v2410 = vsel %vm358, %v2347, 0
        %v2413 = vsel %vm358, %v2350, 0
        %v2416 = vsel %vm358, %v2353, 0
        %v2419 = vsel %vm358, %v2356, 0
        %v2422 = vsel %vm358, %v2359, 0
        %v2425 = vsel %vm358, %v2362, 0
        %v2428 = vsel %vm358, %v2365, 0
        %v2431 = vsel %vm358, %v2368, 0
        %v2434 = vsel %vm358, %v2371, 0
        %v2437 = vsel %vm358, %v2374, 0
        %v2440 = vsel %vm358, %v2377, 0
        %2442 = vmatprep.subr.bf16.mxu0 0
        %2443 = vmatpush1.bf16.msra.mxu0 %v2390
        %2444 = vmatprep.subr.bf16.mxu0 0
        %2445 = vmatpush1.bf16.msra.mxu0 %v2391
        %2446 = vmatprep.subr.bf16.mxu0 0
        %2447 = vmatpush1.bf16.msra.mxu0 0
        %2448 = vmatprep.subr.bf16.mxu0 0
        %2449 = vmatpush1.bf16.msra.mxu0 0
        %2450 = vmatprep.subr.bf16.mxu0 0
        %2451 = vmatpush1.bf16.msra.mxu0 0
        %2452 = vmatprep.subr.bf16.mxu0 0
        %2453 = vmatpush1.bf16.msra.mxu0 0
        %2454 = vmatprep.subr.bf16.mxu0 0
        %2455 = vmatpush1.bf16.msra.mxu0 0
        %2456 = vmatprep.subr.bf16.mxu0 0
        %2457 = vmatpush1.bf16.msra.mxu0 0
        %2458 = vmatprep.subr.bf16.mxu0 0
        %2459 = vmatpush1.bf16.msra.mxu0 0
        %2460 = vmatprep.subr.bf16.mxu0 0
        %2461 = vmatpush1.bf16.msra.mxu0 0
        %2462 = vmatprep.subr.bf16.mxu0 0
        %2463 = vmatpush1.bf16.msra.mxu0 0
        %2464 = vmatprep.subr.bf16.mxu0 0
        %2465 = vmatpush1.bf16.msra.mxu0 0
        %2466 = vmatprep.subr.bf16.mxu0 0
        %2467 = vmatpush1.bf16.msra.mxu0 0
        %2468 = vmatprep.subr.bf16.mxu0 0
        %2469 = vmatpush1.bf16.msra.mxu0 0
        %2470 = vmatprep.subr.bf16.mxu0 0
        %2471 = vmatpush1.bf16.msra.mxu0 0
        %2472 = vmatprep.subr.bf16.mxu0 0
        %2473 = vmatpush1.bf16.msra.mxu0 0
        %2474 = vmatprep.mubr.bf16.mxu0 0
        %2475 = vmatmul.mubr.bf16.gmra.mrb[0].mxu0 %v2395
        %v2476 = vpop.f32.mrb[0].mxu0
        %v2477 = vadd.f32 0.0, %v2476
        %v2478 = vpop.f32.mrb[0].mxu0
        %v2479 = vpop.f32.mrb[0].mxu0
        %v2480 = vadd.f32 0.0, %v2479
        %v2481 = vpop.f32.mrb[0].mxu0
        %2482 = vmatprep.mubr.bf16.mxu0 0
        %2483 = vmatmul.mubr.bf16.gmra.mrb[0].mxu0 %v2398
        %v2484 = vpop.f32.mrb[0].mxu0
        %v2485 = vadd.f32 0.0, %v2484
        %v2486 = vpop.f32.mrb[0].mxu0
        %v2487 = vpop.f32.mrb[0].mxu0
        %v2488 = vadd.f32 0.0, %v2487
        %v2489 = vpop.f32.mrb[0].mxu0
        %2490 = vmatprep.mubr.bf16.mxu0 0
        %2491 = vmatmul.mubr.bf16.gmra.mrb[0].mxu0 %v2401
        %v2492 = vpop.f32.mrb[0].mxu0
        %v2493 = vadd.f32 0.0, %v2492
        %v2494 = vpop.f32.mrb[0].mxu0
        %v2495 = vpop.f32.mrb[0].mxu0
        %v2496 = vadd.f32 0.0, %v2495
        %v2497 = vpop.f32.mrb[0].mxu0
        %2498 = vmatprep.mubr.bf16.mxu0 0
        %2499 = vmatmul.mubr.bf16.gmra.mrb[0].mxu0 %v2404
        %v2500 = vpop.f32.mrb[0].mxu0
        %v2501 = vadd.f32 0.0, %v2500
        %v2502 = vpop.f32.mrb[0].mxu0
        %v2503 = vpop.f32.mrb[0].mxu0
        %v2504 = vadd.f32 0.0, %v2503
        %v2505 = vpop.f32.mrb[0].mxu0
        %2506 = vmatprep.mubr.bf16.mxu0 0
        %2507 = vmatmul.mubr.bf16.gmra.mrb[0].mxu0 %v2407
        %v2508 = vpop.f32.mrb[0].mxu0
        %v2509 = vadd.f32 0.0, %v2508
        %v2510 = vpop.f32.mrb[0].mxu0
        %v2511 = vpop.f32.mrb[0].mxu0
        %v2512 = vadd.f32 0.0, %v2511
        %v2513 = vpop.f32.mrb[0].mxu0
        %2514 = vmatprep.mubr.bf16.mxu0 0
        %2515 = vmatmul.mubr.bf16.gmra.mrb[0].mxu0 %v2410
        %v2516 = vpop.f32.mrb[0].mxu0
        %v2517 = vadd.f32 0.0, %v2516
        %v2518 = vpop.f32.mrb[0].mxu0
        %v2519 = vpop.f32.mrb[0].mxu0
        %v2520 = vadd.f32 0.0, %v2519
        %v2521 = vpop.f32.mrb[0].mxu0
        %2522 = vmatprep.mubr.bf16.mxu0 0
        %2523 = vmatmul.mubr.bf16.gmra.mrb[0].mxu0 %v2413
        %v2524 = vpop.f32.mrb[0].mxu0
        %v2525 = vadd.f32 0.0, %v2524
        %v2526 = vpop.f32.mrb[0].mxu0
        %v2527 = vpop.f32.mrb[0].mxu0
        %v2528 = vadd.f32 0.0, %v2527
        %v2529 = vpop.f32.mrb[0].mxu0
        %2530 = vmatprep.mubr.bf16.mxu0 0
        %2531 = vmatmul.mubr.bf16.gmra.mrb[0].mxu0 %v2416
        %v2532 = vpop.f32.mrb[0].mxu0
        %v2533 = vadd.f32 0.0, %v2532
        %v2534 = vpop.f32.mrb[0].mxu0
        %v2535 = vpop.f32.mrb[0].mxu0
        %v2536 = vadd.f32 0.0, %v2535
        %v2537 = vpop.f32.mrb[0].mxu0
        %2538 = vmatprep.mubr.bf16.mxu0 0
        %2539 = vmatmul.mubr.bf16.gmra.mrb[0].mxu0 %v2419
        %v2540 = vpop.f32.mrb[0].mxu0
        %v2541 = vadd.f32 0.0, %v2540
        %v2542 = vpop.f32.mrb[0].mxu0
        %v2543 = vpop.f32.mrb[0].mxu0
        %v2544 = vadd.f32 0.0, %v2543
        %v2545 = vpop.f32.mrb[0].mxu0
        %2546 = vmatprep.mubr.bf16.mxu0 0
        %2547 = vmatmul.mubr.bf16.gmra.mrb[0].mxu0 %v2422
        %v2548 = vpop.f32.mrb[0].mxu0
        %v2549 = vadd.f32 0.0, %v2548
        %v2550 = vpop.f32.mrb[0].mxu0
        %v2551 = vpop.f32.mrb[0].mxu0
        %v2552 = vadd.f32 0.0, %v2551
        %v2553 = vpop.f32.mrb[0].mxu0
        %2554 = vmatprep.mubr.bf16.mxu0 0
        %2555 = vmatmul.mubr.bf16.gmra.mrb[0].mxu0 %v2425
        %v2556 = vpop.f32.mrb[0].mxu0
        %v2557 = vadd.f32 0.0, %v2556
        %v2558 = vpop.f32.mrb[0].mxu0
        %v2559 = vpop.f32.mrb[0].mxu0
        %v2560 = vadd.f32 0.0, %v2559
        %v2561 = vpop.f32.mrb[0].mxu0
        %2562 = vmatprep.mubr.bf16.mxu0 0
        %2563 = vmatmul.mubr.bf16.gmra.mrb[0].mxu0 %v2428
        %v2564 = vpop.f32.mrb[0].mxu0
        %v2565 = vadd.f32 0.0, %v2564
        %v2566 = vpop.f32.mrb[0].mxu0
        %v2567 = vpop.f32.mrb[0].mxu0
        %v2568 = vadd.f32 0.0, %v2567
        %v2569 = vpop.f32.mrb[0].mxu0
        %2570 = vmatprep.mubr.bf16.mxu0 0
        %2571 = vmatmul.mubr.bf16.gmra.mrb[0].mxu0 %v2431
        %v2572 = vpop.f32.mrb[0].mxu0
        %v2573 = vadd.f32 0.0, %v2572
        %v2574 = vpop.f32.mrb[0].mxu0
        %v2575 = vpop.f32.mrb[0].mxu0
        %v2576 = vadd.f32 0.0, %v2575
        %v2577 = vpop.f32.mrb[0].mxu0
        %2578 = vmatprep.mubr.bf16.mxu0 0
        %2579 = vmatmul.mubr.bf16.gmra.mrb[0].mxu0 %v2434
        %v2580 = vpop.f32.mrb[0].mxu0
        %v2581 = vadd.f32 0.0, %v2580
        %v2582 = vpop.f32.mrb[0].mxu0
        %v2583 = vpop.f32.mrb[0].mxu0
        %v2584 = vadd.f32 0.0, %v2583
        %v2585 = vpop.f32.mrb[0].mxu0
        %2586 = vmatprep.mubr.bf16.mxu0 0
        %2587 = vmatmul.mubr.bf16.gmra.mrb[0].mxu0 %v2437
        %v2588 = vpop.f32.mrb[0].mxu0
        %v2589 = vadd.f32 0.0, %v2588
        %v2590 = vpop.f32.mrb[0].mxu0
        %v2591 = vpop.f32.mrb[0].mxu0
        %v2592 = vadd.f32 0.0, %v2591
        %v2593 = vpop.f32.mrb[0].mxu0
        %2594 = vmatprep.mubr.bf16.mxu0 0
        %2595 = vmatmul.mubr.bf16.gmra.mrb[0].mxu0 %v2440
        %v2596 = vpop.f32.mrb[0].mxu0
        %v2597 = vadd.f32 0.0, %v2596
        %v2598 = vpop.f32.mrb[0].mxu0
        %v2599 = vpop.f32.mrb[0].mxu0
        %v2600 = vadd.f32 0.0, %v2599
        %v2601 = vpop.f32.mrb[0].mxu0
        %2602 = vdwg.mxu0
        %v2607 = vunpack.c.l.b16 %v2278
        %v2608 = vunpack.c.l.b16 %v2279
        %v2609 = vunpack.c.l.b16 %v2280
        %v2610 = vunpack.c.l.b16 %v2281
        %v2611 = vpack.c.b16 %v2608, %v2607
        %v2612 = vpack.c.b16 %v2610, %v2609
        %v2616 = vsel %vm358, %v2022, 0
        %v2619 = vsel %vm358, %v2039, 0
        %v2622 = vsel %vm358, %v2056, 0
        %v2625 = vsel %vm358, %v2073, 0
        %v2628 = vsel %vm358, %v2090, 0
        %v2631 = vsel %vm358, %v2107, 0
        %v2634 = vsel %vm358, %v2124, 0
        %v2637 = vsel %vm358, %v2141, 0
        %v2640 = vsel %vm358, %v2158, 0
        %v2643 = vsel %vm358, %v2175, 0
        %v2646 = vsel %vm358, %v2192, 0
        %v2649 = vsel %vm358, %v2209, 0
        %v2652 = vsel %vm358, %v2226, 0
        %v2655 = vsel %vm358, %v2243, 0
        %v2658 = vsel %vm358, %v2260, 0
        %v2661 = vsel %vm358, %v2277, 0
        %2663 = vmatprep.subr.bf16.mxu0 0
        %2664 = vmatpush1.bf16.msra.mxu0 %v2611
        %2665 = vmatprep.subr.bf16.mxu0 0
        %2666 = vmatpush1.bf16.msra.mxu0 %v2612
        %2667 = vmatprep.subr.bf16.mxu0 0
        %2668 = vmatpush1.bf16.msra.mxu0 0
        %2669 = vmatprep.subr.bf16.mxu0 0
        %2670 = vmatpush1.bf16.msra.mxu0 0
        %2671 = vmatprep.subr.bf16.mxu0 0
        %2672 = vmatpush1.bf16.msra.mxu0 0
        %2673 = vmatprep.subr.bf16.mxu0 0
        %2674 = vmatpush1.bf16.msra.mxu0 0
        %2675 = vmatprep.subr.bf16.mxu0 0
        %2676 = vmatpush1.bf16.msra.mxu0 0
        %2677 = vmatprep.subr.bf16.mxu0 0
        %2678 = vmatpush1.bf16.msra.mxu0 0
        %2679 = vmatprep.subr.bf16.mxu0 0
        %2680 = vmatpush1.bf16.msra.mxu0 0
        %2681 = vmatprep.subr.bf16.mxu0 0
        %2682 = vmatpush1.bf16.msra.mxu0 0
        %2683 = vmatprep.subr.bf16.mxu0 0
        %2684 = vmatpush1.bf16.msra.mxu0 0
        %2685 = vmatprep.subr.bf16.mxu0 0
        %2686 = vmatpush1.bf16.msra.mxu0 0
        %2687 = vmatprep.subr.bf16.mxu0 0
        %2688 = vmatpush1.bf16.msra.mxu0 0
        %2689 = vmatprep.subr.bf16.mxu0 0
        %2690 = vmatpush1.bf16.msra.mxu0 0
        %2691 = vmatprep.subr.bf16.mxu0 0
        %2692 = vmatpush1.bf16.msra.mxu0 0
        %2693 = vmatprep.subr.bf16.mxu0 0
        %2694 = vmatpush1.bf16.msra.mxu0 0
        %2695 = vmatprep.mubr.bf16.mxu0 0
        %2696 = vmatmul.mubr.bf16.gmra.mrb[0].mxu0 %v2616
        %v2697 = vpop.f32.mrb[0].mxu0
        %v2698 = vadd.f32 %v2477, %v2697
        %v2699 = vpop.f32.mrb[0].mxu0
        %v2700 = vpop.f32.mrb[0].mxu0
        %v2701 = vadd.f32 %v2480, %v2700
        %v2702 = vpop.f32.mrb[0].mxu0
        %2703 = vmatprep.mubr.bf16.mxu0 0
        %2704 = vmatmul.mubr.bf16.gmra.mrb[0].mxu0 %v2619
        %v2705 = vpop.f32.mrb[0].mxu0
        %v2706 = vadd.f32 %v2485, %v2705
        %v2707 = vpop.f32.mrb[0].mxu0
        %v2708 = vpop.f32.mrb[0].mxu0
        %v2709 = vadd.f32 %v2488, %v2708
        %v2710 = vpop.f32.mrb[0].mxu0
        %2711 = vmatprep.mubr.bf16.mxu0 0
        %2712 = vmatmul.mubr.bf16.gmra.mrb[0].mxu0 %v2622
        %v2713 = vpop.f32.mrb[0].mxu0
        %v2714 = vadd.f32 %v2493, %v2713
        %v2715 = vpop.f32.mrb[0].mxu0
        %v2716 = vpop.f32.mrb[0].mxu0
        %v2717 = vadd.f32 %v2496, %v2716
        %v2718 = vpop.f32.mrb[0].mxu0
        %2719 = vmatprep.mubr.bf16.mxu0 0
        %2720 = vmatmul.mubr.bf16.gmra.mrb[0].mxu0 %v2625
        %v2721 = vpop.f32.mrb[0].mxu0
        %v2722 = vadd.f32 %v2501, %v2721
        %v2723 = vpop.f32.mrb[0].mxu0
        %v2724 = vpop.f32.mrb[0].mxu0
        %v2725 = vadd.f32 %v2504, %v2724
        %v2726 = vpop.f32.mrb[0].mxu0
        %2727 = vmatprep.mubr.bf16.mxu0 0
        %2728 = vmatmul.mubr.bf16.gmra.mrb[0].mxu0 %v2628
        %v2729 = vpop.f32.mrb[0].mxu0
        %v2730 = vadd.f32 %v2509, %v2729
        %v2731 = vpop.f32.mrb[0].mxu0
        %v2732 = vpop.f32.mrb[0].mxu0
        %v2733 = vadd.f32 %v2512, %v2732
        %v2734 = vpop.f32.mrb[0].mxu0
        %2735 = vmatprep.mubr.bf16.mxu0 0
        %2736 = vmatmul.mubr.bf16.gmra.mrb[0].mxu0 %v2631
        %v2737 = vpop.f32.mrb[0].mxu0
        %v2738 = vadd.f32 %v2517, %v2737
        %v2739 = vpop.f32.mrb[0].mxu0
        %v2740 = vpop.f32.mrb[0].mxu0
        %v2741 = vadd.f32 %v2520, %v2740
        %v2742 = vpop.f32.mrb[0].mxu0
        %2743 = vmatprep.mubr.bf16.mxu0 0
        %2744 = vmatmul.mubr.bf16.gmra.mrb[0].mxu0 %v2634
        %v2745 = vpop.f32.mrb[0].mxu0
        %v2746 = vadd.f32 %v2525, %v2745
        %v2747 = vpop.f32.mrb[0].mxu0
        %v2748 = vpop.f32.mrb[0].mxu0
        %v2749 = vadd.f32 %v2528, %v2748
        %v2750 = vpop.f32.mrb[0].mxu0
        %2751 = vmatprep.mubr.bf16.mxu0 0
        %2752 = vmatmul.mubr.bf16.gmra.mrb[0].mxu0 %v2637
        %v2753 = vpop.f32.mrb[0].mxu0
        %v2754 = vadd.f32 %v2533, %v2753
        %v2755 = vpop.f32.mrb[0].mxu0
        %v2756 = vpop.f32.mrb[0].mxu0
        %v2757 = vadd.f32 %v2536, %v2756
        %v2758 = vpop.f32.mrb[0].mxu0
        %2759 = vmatprep.mubr.bf16.mxu0 0
        %2760 = vmatmul.mubr.bf16.gmra.mrb[0].mxu0 %v2640
        %v2761 = vpop.f32.mrb[0].mxu0
        %v2762 = vadd.f32 %v2541, %v2761
        %v2763 = vpop.f32.mrb[0].mxu0
        %v2764 = vpop.f32.mrb[0].mxu0
        %v2765 = vadd.f32 %v2544, %v2764
        %v2766 = vpop.f32.mrb[0].mxu0
        %2767 = vmatprep.mubr.bf16.mxu0 0
        %2768 = vmatmul.mubr.bf16.gmra.mrb[0].mxu0 %v2643
        %v2769 = vpop.f32.mrb[0].mxu0
        %v2770 = vadd.f32 %v2549, %v2769
        %v2771 = vpop.f32.mrb[0].mxu0
        %v2772 = vpop.f32.mrb[0].mxu0
        %v2773 = vadd.f32 %v2552, %v2772
        %v2774 = vpop.f32.mrb[0].mxu0
        %2775 = vmatprep.mubr.bf16.mxu0 0
        %2776 = vmatmul.mubr.bf16.gmra.mrb[0].mxu0 %v2646
        %v2777 = vpop.f32.mrb[0].mxu0
        %v2778 = vadd.f32 %v2557, %v2777
        %v2779 = vpop.f32.mrb[0].mxu0
        %v2780 = vpop.f32.mrb[0].mxu0
        %v2781 = vadd.f32 %v2560, %v2780
        %v2782 = vpop.f32.mrb[0].mxu0
        %2783 = vmatprep.mubr.bf16.mxu0 0
        %2784 = vmatmul.mubr.bf16.gmra.mrb[0].mxu0 %v2649
        %v2785 = vpop.f32.mrb[0].mxu0
        %v2786 = vadd.f32 %v2565, %v2785
        %v2787 = vpop.f32.mrb[0].mxu0
        %v2788 = vpop.f32.mrb[0].mxu0
        %v2789 = vadd.f32 %v2568, %v2788
        %v2790 = vpop.f32.mrb[0].mxu0
        %2791 = vmatprep.mubr.bf16.mxu0 0
        %2792 = vmatmul.mubr.bf16.gmra.mrb[0].mxu0 %v2652
        %v2793 = vpop.f32.mrb[0].mxu0
        %v2794 = vadd.f32 %v2573, %v2793
        %v2795 = vpop.f32.mrb[0].mxu0
        %v2796 = vpop.f32.mrb[0].mxu0
        %v2797 = vadd.f32 %v2576, %v2796
        %v2798 = vpop.f32.mrb[0].mxu0
        %2799 = vmatprep.mubr.bf16.mxu0 0
        %2800 = vmatmul.mubr.bf16.gmra.mrb[0].mxu0 %v2655
        %v2801 = vpop.f32.mrb[0].mxu0
        %v2802 = vadd.f32 %v2581, %v2801
        %v2803 = vpop.f32.mrb[0].mxu0
        %v2804 = vpop.f32.mrb[0].mxu0
        %v2805 = vadd.f32 %v2584, %v2804
        %v2806 = vpop.f32.mrb[0].mxu0
        %2807 = vmatprep.mubr.bf16.mxu0 0
        %2808 = vmatmul.mubr.bf16.gmra.mrb[0].mxu0 %v2658
        %v2809 = vpop.f32.mrb[0].mxu0
        %v2810 = vadd.f32 %v2589, %v2809
        %v2811 = vpop.f32.mrb[0].mxu0
        %v2812 = vpop.f32.mrb[0].mxu0
        %v2813 = vadd.f32 %v2592, %v2812
        %v2814 = vpop.f32.mrb[0].mxu0
        %2815 = vmatprep.mubr.bf16.mxu0 0
        %2816 = vmatmul.mubr.bf16.gmra.mrb[0].mxu0 %v2661
        %v2817 = vpop.f32.mrb[0].mxu0
        %v2818 = vadd.f32 %v2597, %v2817
        %v2819 = vpop.f32.mrb[0].mxu0
        %v2820 = vpop.f32.mrb[0].mxu0
        %v2821 = vadd.f32 %v2600, %v2820
        %v2822 = vpop.f32.mrb[0].mxu0
        %2823 = vdwg.mxu0
        %v2824 = vld [vmem:[%s542 + $0x8] sm:$0x1f]
        %v2825 = vld [vmem:[%s542 + $0x18] sm:$0x1f]
        %v2826 = vld [vmem:[%s542 + $0x28] sm:$0x1f]
        %v2827 = vld [vmem:[%s542 + $0x38] sm:$0x1f]
        %v2828 = vld [vmem:[%s542 + $0x48] sm:$0x1f]
        %v2829 = vld [vmem:[%s542 + $0x58] sm:$0x1f]
        %v2830 = vld [vmem:[%s542 + $0x68] sm:$0x1f]
        %v2831 = vld [vmem:[%s542 + $0x78] sm:$0x1f]
        %v2832 = vld [vmem:[%s542 + $0x88] sm:$0x1f]
        %v2833 = vld [vmem:[%s542 + $0x98] sm:$0x1f]
        %v2834 = vld [vmem:[%s542 + $0xa8] sm:$0x1f]
        %v2835 = vld [vmem:[%s542 + $0xb8] sm:$0x1f]
        %v2836 = vld [vmem:[%s542 + $0xc8] sm:$0x1f]
        %v2837 = vld [vmem:[%s542 + $0xd8] sm:$0x1f]
        %v2838 = vld [vmem:[%s542 + $0xe8] sm:$0x1f]
        %v2839 = vld [vmem:[%s542 + $0xf8] sm:$0x1f]
        %v2841 = vshrl.u32 %v2282, 16
        %v2843 = vrot.slane %v2841, 4
        %v2844 = vshll.u32 %v2282, 16
        %v2846 = vrot.slane %v2844, 5
        %v2847 = vor.u32 %v2843, %v2846
        %v2849 = vshrl.u32 %v2824, 16
        %v2851 = vrot.slane %v2849, 4
        %v2852 = vshll.u32 %v2824, 16
        %v2854 = vrot.slane %v2852, 5
        %v2855 = vor.u32 %v2851, %v2854
        %v2856 = vsel %vm1444, %v2847, %v2855
        %v2858 = vshrl.u32 %v2283, 16
        %v2860 = vrot.slane %v2858, 4
        %v2861 = vshll.u32 %v2283, 16
        %v2863 = vrot.slane %v2861, 5
        %v2864 = vor.u32 %v2860, %v2863
        %v2866 = vshrl.u32 %v2825, 16
        %v2868 = vrot.slane %v2866, 4
        %v2869 = vshll.u32 %v2825, 16
        %v2871 = vrot.slane %v2869, 5
        %v2872 = vor.u32 %v2868, %v2871
        %v2873 = vsel %vm1444, %v2864, %v2872
        %v2875 = vshrl.u32 %v2284, 16
        %v2877 = vrot.slane %v2875, 4
        %v2878 = vshll.u32 %v2284, 16
        %v2880 = vrot.slane %v2878, 5
        %v2881 = vor.u32 %v2877, %v2880
        %v2883 = vshrl.u32 %v2826, 16
        %v2885 = vrot.slane %v2883, 4
        %v2886 = vshll.u32 %v2826, 16
        %v2888 = vrot.slane %v2886, 5
        %v2889 = vor.u32 %v2885, %v2888
        %v2890 = vsel %vm1444, %v2881, %v2889
        %v2892 = vshrl.u32 %v2285, 16
        %v2894 = vrot.slane %v2892, 4
        %v2895 = vshll.u32 %v2285, 16
        %v2897 = vrot.slane %v2895, 5
        %v2898 = vor.u32 %v2894, %v2897
        %v2900 = vshrl.u32 %v2827, 16
        %v2902 = vrot.slane %v2900, 4
        %v2903 = vshll.u32 %v2827, 16
        %v2905 = vrot.slane %v2903, 5
        %v2906 = vor.u32 %v2902, %v2905
        %v2907 = vsel %vm1444, %v2898, %v2906
        %v2909 = vshrl.u32 %v2286, 16
        %v2911 = vrot.slane %v2909, 4
        %v2912 = vshll.u32 %v2286, 16
        %v2914 = vrot.slane %v2912, 5
        %v2915 = vor.u32 %v2911, %v2914
        %v2917 = vshrl.u32 %v2828, 16
        %v2919 = vrot.slane %v2917, 4
        %v2920 = vshll.u32 %v2828, 16
        %v2922 = vrot.slane %v2920, 5
        %v2923 = vor.u32 %v2919, %v2922
        %v2924 = vsel %vm1444, %v2915, %v2923
        %v2926 = vshrl.u32 %v2287, 16
        %v2928 = vrot.slane %v2926, 4
        %v2929 = vshll.u32 %v2287, 16
        %v2931 = vrot.slane %v2929, 5
        %v2932 = vor.u32 %v2928, %v2931
        %v2934 = vshrl.u32 %v2829, 16
        %v2936 = vrot.slane %v2934, 4
        %v2937 = vshll.u32 %v2829, 16
        %v2939 = vrot.slane %v2937, 5
        %v2940 = vor.u32 %v2936, %v2939
        %v2941 = vsel %vm1444, %v2932, %v2940
        %v2943 = vshrl.u32 %v2288, 16
        %v2945 = vrot.slane %v2943, 4
        %v2946 = vshll.u32 %v2288, 16
        %v2948 = vrot.slane %v2946, 5
        %v2949 = vor.u32 %v2945, %v2948
        %v2951 = vshrl.u32 %v2830, 16
        %v2953 = vrot.slane %v2951, 4
        %v2954 = vshll.u32 %v2830, 16
        %v2956 = vrot.slane %v2954, 5
        %v2957 = vor.u32 %v2953, %v2956
        %v2958 = vsel %vm1444, %v2949, %v2957
        %v2960 = vshrl.u32 %v2289, 16
        %v2962 = vrot.slane %v2960, 4
        %v2963 = vshll.u32 %v2289, 16
        %v2965 = vrot.slane %v2963, 5
        %v2966 = vor.u32 %v2962, %v2965
        %v2968 = vshrl.u32 %v2831, 16
        %v2970 = vrot.slane %v2968, 4
        %v2971 = vshll.u32 %v2831, 16
        %v2973 = vrot.slane %v2971, 5
        %v2974 = vor.u32 %v2970, %v2973
        %v2975 = vsel %vm1444, %v2966, %v2974
        %v2977 = vshrl.u32 %v2290, 16
        %v2979 = vrot.slane %v2977, 4
        %v2980 = vshll.u32 %v2290, 16
        %v2982 = vrot.slane %v2980, 5
        %v2983 = vor.u32 %v2979, %v2982
        %v2985 = vshrl.u32 %v2832, 16
        %v2987 = vrot.slane %v2985, 4
        %v2988 = vshll.u32 %v2832, 16
        %v2990 = vrot.slane %v2988, 5
        %v2991 = vor.u32 %v2987, %v2990
        %v2992 = vsel %vm1444, %v2983, %v2991
        %v2994 = vshrl.u32 %v2291, 16
        %v2996 = vrot.slane %v2994, 4
        %v2997 = vshll.u32 %v2291, 16
        %v2999 = vrot.slane %v2997, 5
        %v3000 = vor.u32 %v2996, %v2999
        %v3002 = vshrl.u32 %v2833, 16
        %v3004 = vrot.slane %v3002, 4
        %v3005 = vshll.u32 %v2833, 16
        %v3007 = vrot.slane %v3005, 5
        %v3008 = vor.u32 %v3004, %v3007
        %v3009 = vsel %vm1444, %v3000, %v3008
        %v3011 = vshrl.u32 %v2292, 16
        %v3013 = vrot.slane %v3011, 4
        %v3014 = vshll.u32 %v2292, 16
        %v3016 = vrot.slane %v3014, 5
        %v3017 = vor.u32 %v3013, %v3016
        %v3019 = vshrl.u32 %v2834, 16
        %v3021 = vrot.slane %v3019, 4
        %v3022 = vshll.u32 %v2834, 16
        %v3024 = vrot.slane %v3022, 5
        %v3025 = vor.u32 %v3021, %v3024
        %v3026 = vsel %vm1444, %v3017, %v3025
        %v3028 = vshrl.u32 %v2293, 16
        %v3030 = vrot.slane %v3028, 4
        %v3031 = vshll.u32 %v2293, 16
        %v3033 = vrot.slane %v3031, 5
        %v3034 = vor.u32 %v3030, %v3033
        %v3036 = vshrl.u32 %v2835, 16
        %v3038 = vrot.slane %v3036, 4
        %v3039 = vshll.u32 %v2835, 16
        %v3041 = vrot.slane %v3039, 5
        %v3042 = vor.u32 %v3038, %v3041
        %v3043 = vsel %vm1444, %v3034, %v3042
        %v3045 = vshrl.u32 %v2294, 16
        %v3047 = vrot.slane %v3045, 4
        %v3048 = vshll.u32 %v2294, 16
        %v3050 = vrot.slane %v3048, 5
        %v3051 = vor.u32 %v3047, %v3050
        %v3053 = vshrl.u32 %v2836, 16
        %v3055 = vrot.slane %v3053, 4
        %v3056 = vshll.u32 %v2836, 16
        %v3058 = vrot.slane %v3056, 5
        %v3059 = vor.u32 %v3055, %v3058
        %v3060 = vsel %vm1444, %v3051, %v3059
        %v3062 = vshrl.u32 %v2295, 16
        %v3064 = vrot.slane %v3062, 4
        %v3065 = vshll.u32 %v2295, 16
        %v3067 = vrot.slane %v3065, 5
        %v3068 = vor.u32 %v3064, %v3067
        %v3070 = vshrl.u32 %v2837, 16
        %v3072 = vrot.slane %v3070, 4
        %v3073 = vshll.u32 %v2837, 16
        %v3075 = vrot.slane %v3073, 5
        %v3076 = vor.u32 %v3072, %v3075
        %v3077 = vsel %vm1444, %v3068, %v3076
        %v3079 = vshrl.u32 %v2296, 16
        %v3081 = vrot.slane %v3079, 4
        %v3082 = vshll.u32 %v2296, 16
        %v3084 = vrot.slane %v3082, 5
        %v3085 = vor.u32 %v3081, %v3084
        %v3087 = vshrl.u32 %v2838, 16
        %v3089 = vrot.slane %v3087, 4
        %v3090 = vshll.u32 %v2838, 16
        %v3092 = vrot.slane %v3090, 5
        %v3093 = vor.u32 %v3089, %v3092
        %v3094 = vsel %vm1444, %v3085, %v3093
        %v3096 = vshrl.u32 %v2297, 16
        %v3098 = vrot.slane %v3096, 4
        %v3099 = vshll.u32 %v2297, 16
        %v3101 = vrot.slane %v3099, 5
        %v3102 = vor.u32 %v3098, %v3101
        %v3104 = vshrl.u32 %v2839, 16
        %v3106 = vrot.slane %v3104, 4
        %v3107 = vshll.u32 %v2839, 16
        %v3109 = vrot.slane %v3107, 5
        %v3110 = vor.u32 %v3106, %v3109
        %v3111 = vsel %vm1444, %v3102, %v3110
        %v3112 = vld [vmem:[%s1 + $0x50] sm:$0xf]
        %v3113 = vld [vmem:[%s1 + $0x54] sm:$0xf]
        %v3114 = vld [vmem:[%s1 + $0x58] sm:$0xf]
        %v3115 = vld [vmem:[%s1 + $0x5c] sm:$0xf]
        %v3120 = vunpack.c.l.b16 %v3112
        %v3121 = vunpack.c.l.b16 %v3113
        %v3122 = vunpack.c.l.b16 %v3114
        %v3123 = vunpack.c.l.b16 %v3115
        %v3124 = vpack.c.b16 %v3121, %v3120
        %v3125 = vpack.c.b16 %v3123, %v3122
        %v3129 = vsel %vm358, %v2856, 0
        %v3132 = vsel %vm358, %v2873, 0
        %v3135 = vsel %vm358, %v2890, 0
        %v3138 = vsel %vm358, %v2907, 0
        %v3141 = vsel %vm358, %v2924, 0
        %v3144 = vsel %vm358, %v2941, 0
        %v3147 = vsel %vm358, %v2958, 0
        %v3150 = vsel %vm358, %v2975, 0
        %v3153 = vsel %vm358, %v2992, 0
        %v3156 = vsel %vm358, %v3009, 0
        %v3159 = vsel %vm358, %v3026, 0
        %v3162 = vsel %vm358, %v3043, 0
        %v3165 = vsel %vm358, %v3060, 0
        %v3168 = vsel %vm358, %v3077, 0
        %v3171 = vsel %vm358, %v3094, 0
        %v3174 = vsel %vm358, %v3111, 0
        %3176 = vmatprep.subr.bf16.mxu0 0
        %3177 = vmatpush1.bf16.msra.mxu0 %v3124
        %3178 = vmatprep.subr.bf16.mxu0 0
        %3179 = vmatpush1.bf16.msra.mxu0 %v3125
        %3180 = vmatprep.subr.bf16.mxu0 0
        %3181 = vmatpush1.bf16.msra.mxu0 0
        %3182 = vmatprep.subr.bf16.mxu0 0
        %3183 = vmatpush1.bf16.msra.mxu0 0
        %3184 = vmatprep.subr.bf16.mxu0 0
        %3185 = vmatpush1.bf16.msra.mxu0 0
        %3186 = vmatprep.subr.bf16.mxu0 0
        %3187 = vmatpush1.bf16.msra.mxu0 0
        %3188 = vmatprep.subr.bf16.mxu0 0
        %3189 = vmatpush1.bf16.msra.mxu0 0
        %3190 = vmatprep.subr.bf16.mxu0 0
        %3191 = vmatpush1.bf16.msra.mxu0 0
        %3192 = vmatprep.subr.bf16.mxu0 0
        %3193 = vmatpush1.bf16.msra.mxu0 0
        %3194 = vmatprep.subr.bf16.mxu0 0
        %3195 = vmatpush1.bf16.msra.mxu0 0
        %3196 = vmatprep.subr.bf16.mxu0 0
        %3197 = vmatpush1.bf16.msra.mxu0 0
        %3198 = vmatprep.subr.bf16.mxu0 0
        %3199 = vmatpush1.bf16.msra.mxu0 0
        %3200 = vmatprep.subr.bf16.mxu0 0
        %3201 = vmatpush1.bf16.msra.mxu0 0
        %3202 = vmatprep.subr.bf16.mxu0 0
        %3203 = vmatpush1.bf16.msra.mxu0 0
        %3204 = vmatprep.subr.bf16.mxu0 0
        %3205 = vmatpush1.bf16.msra.mxu0 0
        %3206 = vmatprep.subr.bf16.mxu0 0
        %3207 = vmatpush1.bf16.msra.mxu0 0
        %3208 = vmatprep.mubr.bf16.mxu0 0
        %3209 = vmatmul.mubr.bf16.gmra.mrb[0].mxu0 %v3129
        %v3210 = vpop.f32.mrb[0].mxu0
        %v3211 = vadd.f32 0.0, %v3210
        %v3212 = vpop.f32.mrb[0].mxu0
        %v3213 = vpop.f32.mrb[0].mxu0
        %v3214 = vadd.f32 0.0, %v3213
        %v3215 = vpop.f32.mrb[0].mxu0
        %3216 = vmatprep.mubr.bf16.mxu0 0
        %3217 = vmatmul.mubr.bf16.gmra.mrb[0].mxu0 %v3132
        %v3218 = vpop.f32.mrb[0].mxu0
        %v3219 = vadd.f32 0.0, %v3218
        %v3220 = vpop.f32.mrb[0].mxu0
        %v3221 = vpop.f32.mrb[0].mxu0
        %v3222 = vadd.f32 0.0, %v3221
        %v3223 = vpop.f32.mrb[0].mxu0
        %3224 = vmatprep.mubr.bf16.mxu0 0
        %3225 = vmatmul.mubr.bf16.gmra.mrb[0].mxu0 %v3135
        %v3226 = vpop.f32.mrb[0].mxu0
        %v3227 = vadd.f32 0.0, %v3226
        %v3228 = vpop.f32.mrb[0].mxu0
        %v3229 = vpop.f32.mrb[0].mxu0
        %v3230 = vadd.f32 0.0, %v3229
        %v3231 = vpop.f32.mrb[0].mxu0
        %3232 = vmatprep.mubr.bf16.mxu0 0
        %3233 = vmatmul.mubr.bf16.gmra.mrb[0].mxu0 %v3138
        %v3234 = vpop.f32.mrb[0].mxu0
        %v3235 = vadd.f32 0.0, %v3234
        %v3236 = vpop.f32.mrb[0].mxu0
        %v3237 = vpop.f32.mrb[0].mxu0
        %v3238 = vadd.f32 0.0, %v3237
        %v3239 = vpop.f32.mrb[0].mxu0
        %3240 = vmatprep.mubr.bf16.mxu0 0
        %3241 = vmatmul.mubr.bf16.gmra.mrb[0].mxu0 %v3141
        %v3242 = vpop.f32.mrb[0].mxu0
        %v3243 = vadd.f32 0.0, %v3242
        %v3244 = vpop.f32.mrb[0].mxu0
        %v3245 = vpop.f32.mrb[0].mxu0
        %v3246 = vadd.f32 0.0, %v3245
        %v3247 = vpop.f32.mrb[0].mxu0
        %3248 = vmatprep.mubr.bf16.mxu0 0
        %3249 = vmatmul.mubr.bf16.gmra.mrb[0].mxu0 %v3144
        %v3250 = vpop.f32.mrb[0].mxu0
        %v3251 = vadd.f32 0.0, %v3250
        %v3252 = vpop.f32.mrb[0].mxu0
        %v3253 = vpop.f32.mrb[0].mxu0
        %v3254 = vadd.f32 0.0, %v3253
        %v3255 = vpop.f32.mrb[0].mxu0
        %3256 = vmatprep.mubr.bf16.mxu0 0
        %3257 = vmatmul.mubr.bf16.gmra.mrb[0].mxu0 %v3147
        %v3258 = vpop.f32.mrb[0].mxu0
        %v3259 = vadd.f32 0.0, %v3258
        %v3260 = vpop.f32.mrb[0].mxu0
        %v3261 = vpop.f32.mrb[0].mxu0
        %v3262 = vadd.f32 0.0, %v3261
        %v3263 = vpop.f32.mrb[0].mxu0
        %3264 = vmatprep.mubr.bf16.mxu0 0
        %3265 = vmatmul.mubr.bf16.gmra.mrb[0].mxu0 %v3150
        %v3266 = vpop.f32.mrb[0].mxu0
        %v3267 = vadd.f32 0.0, %v3266
        %v3268 = vpop.f32.mrb[0].mxu0
        %v3269 = vpop.f32.mrb[0].mxu0
        %v3270 = vadd.f32 0.0, %v3269
        %v3271 = vpop.f32.mrb[0].mxu0
        %3272 = vmatprep.mubr.bf16.mxu0 0
        %3273 = vmatmul.mubr.bf16.gmra.mrb[0].mxu0 %v3153
        %v3274 = vpop.f32.mrb[0].mxu0
        %v3275 = vadd.f32 0.0, %v3274
        %v3276 = vpop.f32.mrb[0].mxu0
        %v3277 = vpop.f32.mrb[0].mxu0
        %v3278 = vadd.f32 0.0, %v3277
        %v3279 = vpop.f32.mrb[0].mxu0
        %3280 = vmatprep.mubr.bf16.mxu0 0
        %3281 = vmatmul.mubr.bf16.gmra.mrb[0].mxu0 %v3156
        %v3282 = vpop.f32.mrb[0].mxu0
        %v3283 = vadd.f32 0.0, %v3282
        %v3284 = vpop.f32.mrb[0].mxu0
        %v3285 = vpop.f32.mrb[0].mxu0
        %v3286 = vadd.f32 0.0, %v3285
        %v3287 = vpop.f32.mrb[0].mxu0
        %3288 = vmatprep.mubr.bf16.mxu0 0
        %3289 = vmatmul.mubr.bf16.gmra.mrb[0].mxu0 %v3159
        %v3290 = vpop.f32.mrb[0].mxu0
        %v3291 = vadd.f32 0.0, %v3290
        %v3292 = vpop.f32.mrb[0].mxu0
        %v3293 = vpop.f32.mrb[0].mxu0
        %v3294 = vadd.f32 0.0, %v3293
        %v3295 = vpop.f32.mrb[0].mxu0
        %3296 = vmatprep.mubr.bf16.mxu0 0
        %3297 = vmatmul.mubr.bf16.gmra.mrb[0].mxu0 %v3162
        %v3298 = vpop.f32.mrb[0].mxu0
        %v3299 = vadd.f32 0.0, %v3298
        %v3300 = vpop.f32.mrb[0].mxu0
        %v3301 = vpop.f32.mrb[0].mxu0
        %v3302 = vadd.f32 0.0, %v3301
        %v3303 = vpop.f32.mrb[0].mxu0
        %3304 = vmatprep.mubr.bf16.mxu0 0
        %3305 = vmatmul.mubr.bf16.gmra.mrb[0].mxu0 %v3165
        %v3306 = vpop.f32.mrb[0].mxu0
        %v3307 = vadd.f32 0.0, %v3306
        %v3308 = vpop.f32.mrb[0].mxu0
        %v3309 = vpop.f32.mrb[0].mxu0
        %v3310 = vadd.f32 0.0, %v3309
        %v3311 = vpop.f32.mrb[0].mxu0
        %3312 = vmatprep.mubr.bf16.mxu0 0
        %3313 = vmatmul.mubr.bf16.gmra.mrb[0].mxu0 %v3168
        %v3314 = vpop.f32.mrb[0].mxu0
        %v3315 = vadd.f32 0.0, %v3314
        %v3316 = vpop.f32.mrb[0].mxu0
        %v3317 = vpop.f32.mrb[0].mxu0
        %v3318 = vadd.f32 0.0, %v3317
        %v3319 = vpop.f32.mrb[0].mxu0
        %3320 = vmatprep.mubr.bf16.mxu0 0
        %3321 = vmatmul.mubr.bf16.gmra.mrb[0].mxu0 %v3171
        %v3322 = vpop.f32.mrb[0].mxu0
        %v3323 = vadd.f32 0.0, %v3322
        %v3324 = vpop.f32.mrb[0].mxu0
        %v3325 = vpop.f32.mrb[0].mxu0
        %v3326 = vadd.f32 0.0, %v3325
        %v3327 = vpop.f32.mrb[0].mxu0
        %3328 = vmatprep.mubr.bf16.mxu0 0
        %3329 = vmatmul.mubr.bf16.gmra.mrb[0].mxu0 %v3174
        %v3330 = vpop.f32.mrb[0].mxu0
        %v3331 = vadd.f32 0.0, %v3330
        %v3332 = vpop.f32.mrb[0].mxu0
        %v3333 = vpop.f32.mrb[0].mxu0
        %v3334 = vadd.f32 0.0, %v3333
        %v3335 = vpop.f32.mrb[0].mxu0
        %3336 = vdwg.mxu0
        %v3337 = vadd.f32 %v2698, %v3211
        %v3338 = vadd.f32 %v2701, %v3214
        %v3339 = vadd.f32 %v2706, %v3219
        %v3340 = vadd.f32 %v2709, %v3222
        %v3341 = vadd.f32 %v2714, %v3227
        %v3342 = vadd.f32 %v2717, %v3230
        %v3343 = vadd.f32 %v2722, %v3235
        %v3344 = vadd.f32 %v2725, %v3238
        %v3345 = vadd.f32 %v2730, %v3243
        %v3346 = vadd.f32 %v2733, %v3246
        %v3347 = vadd.f32 %v2738, %v3251
        %v3348 = vadd.f32 %v2741, %v3254
        %v3349 = vadd.f32 %v2746, %v3259
        %v3350 = vadd.f32 %v2749, %v3262
        %v3351 = vadd.f32 %v2754, %v3267
        %v3352 = vadd.f32 %v2757, %v3270
        %v3353 = vadd.f32 %v2762, %v3275
        %v3354 = vadd.f32 %v2765, %v3278
        %v3355 = vadd.f32 %v2770, %v3283
        %v3356 = vadd.f32 %v2773, %v3286
        %v3357 = vadd.f32 %v2778, %v3291
        %v3358 = vadd.f32 %v2781, %v3294
        %v3359 = vadd.f32 %v2786, %v3299
        %v3360 = vadd.f32 %v2789, %v3302
        %v3361 = vadd.f32 %v2794, %v3307
        %v3362 = vadd.f32 %v2797, %v3310
        %v3363 = vadd.f32 %v2802, %v3315
        %v3364 = vadd.f32 %v2805, %v3318
        %v3365 = vadd.f32 %v2810, %v3323
        %v3366 = vadd.f32 %v2813, %v3326
        %v3367 = vadd.f32 %v2818, %v3331
        %v3368 = vadd.f32 %v2821, %v3334
        %s3369 = scalar_lea.vmem [#allocation2], 32
        %v3370 = vld [vmem:[%s3369] sm:$0xf8]
        %v3371 = vld [vmem:[%s3369 + $0x8] sm:$0xf]
        %v3372 = vld [vmem:[%s3369 + $0x10] sm:$0xf8]
        %v3373 = vld [vmem:[%s3369 + $0x18] sm:$0xf]
        %v3374 = vld [vmem:[%s3369 + $0x20] sm:$0xf8]
        %v3375 = vld [vmem:[%s3369 + $0x28] sm:$0xf]
        %v3376 = vld [vmem:[%s3369 + $0x30] sm:$0xf8]
        %v3377 = vld [vmem:[%s3369 + $0x38] sm:$0xf]
        %v3378 = vld [vmem:[%s3369 + $0x40] sm:$0xf8]
        %v3379 = vld [vmem:[%s3369 + $0x48] sm:$0xf]
        %v3380 = vld [vmem:[%s3369 + $0x50] sm:$0xf8]
        %v3381 = vld [vmem:[%s3369 + $0x58] sm:$0xf]
        %v3382 = vld [vmem:[%s3369 + $0x60] sm:$0xf8]
        %v3383 = vld [vmem:[%s3369 + $0x68] sm:$0xf]
        %v3384 = vld [vmem:[%s3369 + $0x70] sm:$0xf8]
        %v3385 = vld [vmem:[%s3369 + $0x78] sm:$0xf]
        %v3386 = vld [vmem:[%s3369 + $0x80] sm:$0xf8]
        %v3387 = vld [vmem:[%s3369 + $0x88] sm:$0xf]
        %v3388 = vld [vmem:[%s3369 + $0x90] sm:$0xf8]
        %v3389 = vld [vmem:[%s3369 + $0x98] sm:$0xf]
        %v3390 = vld [vmem:[%s3369 + $0xa0] sm:$0xf8]
        %v3391 = vld [vmem:[%s3369 + $0xa8] sm:$0xf]
        %v3392 = vld [vmem:[%s3369 + $0xb0] sm:$0xf8]
        %v3393 = vld [vmem:[%s3369 + $0xb8] sm:$0xf]
        %v3394 = vld [vmem:[%s3369 + $0xc0] sm:$0xf8]
        %v3395 = vld [vmem:[%s3369 + $0xc8] sm:$0xf]
        %v3396 = vld [vmem:[%s3369 + $0xd0] sm:$0xf8]
        %v3397 = vld [vmem:[%s3369 + $0xd8] sm:$0xf]
        %v3398 = vld [vmem:[%s3369 + $0xe0] sm:$0xf8]
        %v3399 = vld [vmem:[%s3369 + $0xe8] sm:$0xf]
        %v3400 = vld [vmem:[%s3369 + $0xf0] sm:$0xf8]
        %v3401 = vld [vmem:[%s3369 + $0xf8] sm:$0xf]
        %v3403 = vshrl.u32 %v3370, 16
        %v3405 = vrot.slane %v3403, 3
        %v3406 = vshll.u32 %v3370, 16
        %v3408 = vrot.slane %v3406, 4
        %v3409 = vor.u32 %v3405, %v3408
        %v3411 = vshrl.u32 %v3371, 16
        %v3413 = vrot.slane %v3411, 3
        %v3414 = vshll.u32 %v3371, 16
        %v3416 = vrot.slane %v3414, 4
        %v3417 = vor.u32 %v3413, %v3416
        %v3418 = vsel %vm422, %v3409, %v3417
        %v3420 = vshrl.u32 %v3372, 16
        %v3422 = vrot.slane %v3420, 3
        %v3423 = vshll.u32 %v3372, 16
        %v3425 = vrot.slane %v3423, 4
        %v3426 = vor.u32 %v3422, %v3425
        %v3428 = vshrl.u32 %v3373, 16
        %v3430 = vrot.slane %v3428, 3
        %v3431 = vshll.u32 %v3373, 16
        %v3433 = vrot.slane %v3431, 4
        %v3434 = vor.u32 %v3430, %v3433
        %v3435 = vsel %vm422, %v3426, %v3434
        %v3437 = vshrl.u32 %v3374, 16
        %v3439 = vrot.slane %v3437, 3
        %v3440 = vshll.u32 %v3374, 16
        %v3442 = vrot.slane %v3440, 4
        %v3443 = vor.u32 %v3439, %v3442
        %v3445 = vshrl.u32 %v3375, 16
        %v3447 = vrot.slane %v3445, 3
        %v3448 = vshll.u32 %v3375, 16
        %v3450 = vrot.slane %v3448, 4
        %v3451 = vor.u32 %v3447, %v3450
        %v3452 = vsel %vm422, %v3443, %v3451
        %v3454 = vshrl.u32 %v3376, 16
        %v3456 = vrot.slane %v3454, 3
        %v3457 = vshll.u32 %v3376, 16
        %v3459 = vrot.slane %v3457, 4
        %v3460 = vor.u32 %v3456, %v3459
        %v3462 = vshrl.u32 %v3377, 16
        %v3464 = vrot.slane %v3462, 3
        %v3465 = vshll.u32 %v3377, 16
        %v3467 = vrot.slane %v3465, 4
        %v3468 = vor.u32 %v3464, %v3467
        %v3469 = vsel %vm422, %v3460, %v3468
        %v3471 = vshrl.u32 %v3378, 16
        %v3473 = vrot.slane %v3471, 3
        %v3474 = vshll.u32 %v3378, 16
        %v3476 = vrot.slane %v3474, 4
        %v3477 = vor.u32 %v3473, %v3476
        %v3479 = vshrl.u32 %v3379, 16
        %v3481 = vrot.slane %v3479, 3
        %v3482 = vshll.u32 %v3379, 16
        %v3484 = vrot.slane %v3482, 4
        %v3485 = vor.u32 %v3481, %v3484
        %v3486 = vsel %vm422, %v3477, %v3485
        %v3488 = vshrl.u32 %v3380, 16
        %v3490 = vrot.slane %v3488, 3
        %v3491 = vshll.u32 %v3380, 16
        %v3493 = vrot.slane %v3491, 4
        %v3494 = vor.u32 %v3490, %v3493
        %v3496 = vshrl.u32 %v3381, 16
        %v3498 = vrot.slane %v3496, 3
        %v3499 = vshll.u32 %v3381, 16
        %v3501 = vrot.slane %v3499, 4
        %v3502 = vor.u32 %v3498, %v3501
        %v3503 = vsel %vm422, %v3494, %v3502
        %v3505 = vshrl.u32 %v3382, 16
        %v3507 = vrot.slane %v3505, 3
        %v3508 = vshll.u32 %v3382, 16
        %v3510 = vrot.slane %v3508, 4
        %v3511 = vor.u32 %v3507, %v3510
        %v3513 = vshrl.u32 %v3383, 16
        %v3515 = vrot.slane %v3513, 3
        %v3516 = vshll.u32 %v3383, 16
        %v3518 = vrot.slane %v3516, 4
        %v3519 = vor.u32 %v3515, %v3518
        %v3520 = vsel %vm422, %v3511, %v3519
        %v3522 = vshrl.u32 %v3384, 16
        %v3524 = vrot.slane %v3522, 3
        %v3525 = vshll.u32 %v3384, 16
        %v3527 = vrot.slane %v3525, 4
        %v3528 = vor.u32 %v3524, %v3527
        %v3530 = vshrl.u32 %v3385, 16
        %v3532 = vrot.slane %v3530, 3
        %v3533 = vshll.u32 %v3385, 16
        %v3535 = vrot.slane %v3533, 4
        %v3536 = vor.u32 %v3532, %v3535
        %v3537 = vsel %vm422, %v3528, %v3536
        %v3539 = vshrl.u32 %v3386, 16
        %v3541 = vrot.slane %v3539, 3
        %v3542 = vshll.u32 %v3386, 16
        %v3544 = vrot.slane %v3542, 4
        %v3545 = vor.u32 %v3541, %v3544
        %v3547 = vshrl.u32 %v3387, 16
        %v3549 = vrot.slane %v3547, 3
        %v3550 = vshll.u32 %v3387, 16
        %v3552 = vrot.slane %v3550, 4
        %v3553 = vor.u32 %v3549, %v3552
        %v3554 = vsel %vm422, %v3545, %v3553
        %v3556 = vshrl.u32 %v3388, 16
        %v3558 = vrot.slane %v3556, 3
        %v3559 = vshll.u32 %v3388, 16
        %v3561 = vrot.slane %v3559, 4
        %v3562 = vor.u32 %v3558, %v3561
        %v3564 = vshrl.u32 %v3389, 16
        %v3566 = vrot.slane %v3564, 3
        %v3567 = vshll.u32 %v3389, 16
        %v3569 = vrot.slane %v3567, 4
        %v3570 = vor.u32 %v3566, %v3569
        %v3571 = vsel %vm422, %v3562, %v3570
        %v3573 = vshrl.u32 %v3390, 16
        %v3575 = vrot.slane %v3573, 3
        %v3576 = vshll.u32 %v3390, 16
        %v3578 = vrot.slane %v3576, 4
        %v3579 = vor.u32 %v3575, %v3578
        %v3581 = vshrl.u32 %v3391, 16
        %v3583 = vrot.slane %v3581, 3
        %v3584 = vshll.u32 %v3391, 16
        %v3586 = vrot.slane %v3584, 4
        %v3587 = vor.u32 %v3583, %v3586
        %v3588 = vsel %vm422, %v3579, %v3587
        %v3590 = vshrl.u32 %v3392, 16
        %v3592 = vrot.slane %v3590, 3
        %v3593 = vshll.u32 %v3392, 16
        %v3595 = vrot.slane %v3593, 4
        %v3596 = vor.u32 %v3592, %v3595
        %v3598 = vshrl.u32 %v3393, 16
        %v3600 = vrot.slane %v3598, 3
        %v3601 = vshll.u32 %v3393, 16
        %v3603 = vrot.slane %v3601, 4
        %v3604 = vor.u32 %v3600, %v3603
        %v3605 = vsel %vm422, %v3596, %v3604
        %v3607 = vshrl.u32 %v3394, 16
        %v3609 = vrot.slane %v3607, 3
        %v3610 = vshll.u32 %v3394, 16
        %v3612 = vrot.slane %v3610, 4
        %v3613 = vor.u32 %v3609, %v3612
        %v3615 = vshrl.u32 %v3395, 16
        %v3617 = vrot.slane %v3615, 3
        %v3618 = vshll.u32 %v3395, 16
        %v3620 = vrot.slane %v3618, 4
        %v3621 = vor.u32 %v3617, %v3620
        %v3622 = vsel %vm422, %v3613, %v3621
        %v3624 = vshrl.u32 %v3396, 16
        %v3626 = vrot.slane %v3624, 3
        %v3627 = vshll.u32 %v3396, 16
        %v3629 = vrot.slane %v3627, 4
        %v3630 = vor.u32 %v3626, %v3629
        %v3632 = vshrl.u32 %v3397, 16
        %v3634 = vrot.slane %v3632, 3
        %v3635 = vshll.u32 %v3397, 16
        %v3637 = vrot.slane %v3635, 4
        %v3638 = vor.u32 %v3634, %v3637
        %v3639 = vsel %vm422, %v3630, %v3638
        %v3641 = vshrl.u32 %v3398, 16
        %v3643 = vrot.slane %v3641, 3
        %v3644 = vshll.u32 %v3398, 16
        %v3646 = vrot.slane %v3644, 4
        %v3647 = vor.u32 %v3643, %v3646
        %v3649 = vshrl.u32 %v3399, 16
        %v3651 = vrot.slane %v3649, 3
        %v3652 = vshll.u32 %v3399, 16
        %v3654 = vrot.slane %v3652, 4
        %v3655 = vor.u32 %v3651, %v3654
        %v3656 = vsel %vm422, %v3647, %v3655
        %v3658 = vshrl.u32 %v3400, 16
        %v3660 = vrot.slane %v3658, 3
        %v3661 = vshll.u32 %v3400, 16
        %v3663 = vrot.slane %v3661, 4
        %v3664 = vor.u32 %v3660, %v3663
        %v3666 = vshrl.u32 %v3401, 16
        %v3668 = vrot.slane %v3666, 3
        %v3669 = vshll.u32 %v3401, 16
        %v3671 = vrot.slane %v3669, 4
        %v3672 = vor.u32 %v3668, %v3671
        %v3673 = vsel %vm422, %v3664, %v3672
        %v3674 = vld [vmem:[%s1 + $0x60] sm:$0xf]
        %v3675 = vld [vmem:[%s1 + $0x64] sm:$0xf]
        %v3676 = vld [vmem:[%s1 + $0x68] sm:$0xf]
        %v3677 = vld [vmem:[%s1 + $0x6c] sm:$0xf]
        %v3678 = vld [vmem:[%s3369] sm:$0xf0]
        %v3679 = vld [vmem:[%s3369 + $0x10] sm:$0xf0]
        %v3680 = vld [vmem:[%s3369 + $0x20] sm:$0xf0]
        %v3681 = vld [vmem:[%s3369 + $0x30] sm:$0xf0]
        %v3682 = vld [vmem:[%s3369 + $0x40] sm:$0xf0]
        %v3683 = vld [vmem:[%s3369 + $0x50] sm:$0xf0]
        %v3684 = vld [vmem:[%s3369 + $0x60] sm:$0xf0]
        %v3685 = vld [vmem:[%s3369 + $0x70] sm:$0xf0]
        %v3686 = vld [vmem:[%s3369 + $0x80] sm:$0xf0]
        %v3687 = vld [vmem:[%s3369 + $0x90] sm:$0xf0]
        %v3688 = vld [vmem:[%s3369 + $0xa0] sm:$0xf0]
        %v3689 = vld [vmem:[%s3369 + $0xb0] sm:$0xf0]
        %v3690 = vld [vmem:[%s3369 + $0xc0] sm:$0xf0]
        %v3691 = vld [vmem:[%s3369 + $0xd0] sm:$0xf0]
        %v3692 = vld [vmem:[%s3369 + $0xe0] sm:$0xf0]
        %v3693 = vld [vmem:[%s3369 + $0xf0] sm:$0xf0]
        %v3726 = vrot.slane %v3678, 4
        %v3727 = vrot.slane %v3371, 4
        %v3728 = vsel %vm933, %v3726, %v3727
        %v3729 = vrot.slane %v3679, 4
        %v3730 = vrot.slane %v3373, 4
        %v3731 = vsel %vm933, %v3729, %v3730
        %v3732 = vrot.slane %v3680, 4
        %v3733 = vrot.slane %v3375, 4
        %v3734 = vsel %vm933, %v3732, %v3733
        %v3735 = vrot.slane %v3681, 4
        %v3736 = vrot.slane %v3377, 4
        %v3737 = vsel %vm933, %v3735, %v3736
        %v3738 = vrot.slane %v3682, 4
        %v3739 = vrot.slane %v3379, 4
        %v3740 = vsel %vm933, %v3738, %v3739
        %v3741 = vrot.slane %v3683, 4
        %v3742 = vrot.slane %v3381, 4
        %v3743 = vsel %vm933, %v3741, %v3742
        %v3744 = vrot.slane %v3684, 4
        %v3745 = vrot.slane %v3383, 4
        %v3746 = vsel %vm933, %v3744, %v3745
        %v3747 = vrot.slane %v3685, 4
        %v3748 = vrot.slane %v3385, 4
        %v3749 = vsel %vm933, %v3747, %v3748
        %v3750 = vrot.slane %v3686, 4
        %v3751 = vrot.slane %v3387, 4
        %v3752 = vsel %vm933, %v3750, %v3751
        %v3753 = vrot.slane %v3687, 4
        %v3754 = vrot.slane %v3389, 4
        %v3755 = vsel %vm933, %v3753, %v3754
        %v3756 = vrot.slane %v3688, 4
        %v3757 = vrot.slane %v3391, 4
        %v3758 = vsel %vm933, %v3756, %v3757
        %v3759 = vrot.slane %v3689, 4
        %v3760 = vrot.slane %v3393, 4
        %v3761 = vsel %vm933, %v3759, %v3760
        %v3762 = vrot.slane %v3690, 4
        %v3763 = vrot.slane %v3395, 4
        %v3764 = vsel %vm933, %v3762, %v3763
        %v3765 = vrot.slane %v3691, 4
        %v3766 = vrot.slane %v3397, 4
        %v3767 = vsel %vm933, %v3765, %v3766
        %v3768 = vrot.slane %v3692, 4
        %v3769 = vrot.slane %v3399, 4
        %v3770 = vsel %vm933, %v3768, %v3769
        %v3771 = vrot.slane %v3693, 4
        %v3772 = vrot.slane %v3401, 4
        %v3773 = vsel %vm933, %v3771, %v3772
        %v3774 = vld [vmem:[%s1 + $0x70] sm:$0xf]
        %v3775 = vld [vmem:[%s1 + $0x74] sm:$0xf]
        %v3776 = vld [vmem:[%s1 + $0x78] sm:$0xf]
        %v3777 = vld [vmem:[%s1 + $0x7c] sm:$0xf]
        %v3782 = vunpack.c.l.b16 %v3774
        %v3783 = vunpack.c.l.b16 %v3775
        %v3784 = vunpack.c.l.b16 %v3776
        %v3785 = vunpack.c.l.b16 %v3777
        %v3786 = vpack.c.b16 %v3783, %v3782
        %v3787 = vpack.c.b16 %v3785, %v3784
        %v3791 = vsel %vm358, %v3728, 0
        %v3794 = vsel %vm358, %v3731, 0
        %v3797 = vsel %vm358, %v3734, 0
        %v3800 = vsel %vm358, %v3737, 0
        %v3803 = vsel %vm358, %v3740, 0
        %v3806 = vsel %vm358, %v3743, 0
        %v3809 = vsel %vm358, %v3746, 0
        %v3812 = vsel %vm358, %v3749, 0
        %v3815 = vsel %vm358, %v3752, 0
        %v3818 = vsel %vm358, %v3755, 0
        %v3821 = vsel %vm358, %v3758, 0
        %v3824 = vsel %vm358, %v3761, 0
        %v3827 = vsel %vm358, %v3764, 0
        %v3830 = vsel %vm358, %v3767, 0
        %v3833 = vsel %vm358, %v3770, 0
        %v3836 = vsel %vm358, %v3773, 0
        %3838 = vmatprep.subr.bf16.mxu0 0
        %3839 = vmatpush1.bf16.msra.mxu0 %v3786
        %3840 = vmatprep.subr.bf16.mxu0 0
        %3841 = vmatpush1.bf16.msra.mxu0 %v3787
        %3842 = vmatprep.subr.bf16.mxu0 0
        %3843 = vmatpush1.bf16.msra.mxu0 0
        %3844 = vmatprep.subr.bf16.mxu0 0
        %3845 = vmatpush1.bf16.msra.mxu0 0
        %3846 = vmatprep.subr.bf16.mxu0 0
        %3847 = vmatpush1.bf16.msra.mxu0 0
        %3848 = vmatprep.subr.bf16.mxu0 0
        %3849 = vmatpush1.bf16.msra.mxu0 0
        %3850 = vmatprep.subr.bf16.mxu0 0
        %3851 = vmatpush1.bf16.msra.mxu0 0
        %3852 = vmatprep.subr.bf16.mxu0 0
        %3853 = vmatpush1.bf16.msra.mxu0 0
        %3854 = vmatprep.subr.bf16.mxu0 0
        %3855 = vmatpush1.bf16.msra.mxu0 0
        %3856 = vmatprep.subr.bf16.mxu0 0
        %3857 = vmatpush1.bf16.msra.mxu0 0
        %3858 = vmatprep.subr.bf16.mxu0 0
        %3859 = vmatpush1.bf16.msra.mxu0 0
        %3860 = vmatprep.subr.bf16.mxu0 0
        %3861 = vmatpush1.bf16.msra.mxu0 0
        %3862 = vmatprep.subr.bf16.mxu0 0
        %3863 = vmatpush1.bf16.msra.mxu0 0
        %3864 = vmatprep.subr.bf16.mxu0 0
        %3865 = vmatpush1.bf16.msra.mxu0 0
        %3866 = vmatprep.subr.bf16.mxu0 0
        %3867 = vmatpush1.bf16.msra.mxu0 0
        %3868 = vmatprep.subr.bf16.mxu0 0
        %3869 = vmatpush1.bf16.msra.mxu0 0
        %3870 = vmatprep.mubr.bf16.mxu0 0
        %3871 = vmatmul.mubr.bf16.gmra.mrb[0].mxu0 %v3791
        %v3872 = vpop.f32.mrb[0].mxu0
        %v3873 = vadd.f32 0.0, %v3872
        %v3874 = vpop.f32.mrb[0].mxu0
        %v3875 = vpop.f32.mrb[0].mxu0
        %v3876 = vadd.f32 0.0, %v3875
        %v3877 = vpop.f32.mrb[0].mxu0
        %3878 = vmatprep.mubr.bf16.mxu0 0
        %3879 = vmatmul.mubr.bf16.gmra.mrb[0].mxu0 %v3794
        %v3880 = vpop.f32.mrb[0].mxu0
        %v3881 = vadd.f32 0.0, %v3880
        %v3882 = vpop.f32.mrb[0].mxu0
        %v3883 = vpop.f32.mrb[0].mxu0
        %v3884 = vadd.f32 0.0, %v3883
        %v3885 = vpop.f32.mrb[0].mxu0
        %3886 = vmatprep.mubr.bf16.mxu0 0
        %3887 = vmatmul.mubr.bf16.gmra.mrb[0].mxu0 %v3797
        %v3888 = vpop.f32.mrb[0].mxu0
        %v3889 = vadd.f32 0.0, %v3888
        %v3890 = vpop.f32.mrb[0].mxu0
        %v3891 = vpop.f32.mrb[0].mxu0
        %v3892 = vadd.f32 0.0, %v3891
        %v3893 = vpop.f32.mrb[0].mxu0
        %3894 = vmatprep.mubr.bf16.mxu0 0
        %3895 = vmatmul.mubr.bf16.gmra.mrb[0].mxu0 %v3800
        %v3896 = vpop.f32.mrb[0].mxu0
        %v3897 = vadd.f32 0.0, %v3896
        %v3898 = vpop.f32.mrb[0].mxu0
        %v3899 = vpop.f32.mrb[0].mxu0
        %v3900 = vadd.f32 0.0, %v3899
        %v3901 = vpop.f32.mrb[0].mxu0
        %3902 = vmatprep.mubr.bf16.mxu0 0
        %3903 = vmatmul.mubr.bf16.gmra.mrb[0].mxu0 %v3803
        %v3904 = vpop.f32.mrb[0].mxu0
        %v3905 = vadd.f32 0.0, %v3904
        %v3906 = vpop.f32.mrb[0].mxu0
        %v3907 = vpop.f32.mrb[0].mxu0
        %v3908 = vadd.f32 0.0, %v3907
        %v3909 = vpop.f32.mrb[0].mxu0
        %3910 = vmatprep.mubr.bf16.mxu0 0
        %3911 = vmatmul.mubr.bf16.gmra.mrb[0].mxu0 %v3806
        %v3912 = vpop.f32.mrb[0].mxu0
        %v3913 = vadd.f32 0.0, %v3912
        %v3914 = vpop.f32.mrb[0].mxu0
        %v3915 = vpop.f32.mrb[0].mxu0
        %v3916 = vadd.f32 0.0, %v3915
        %v3917 = vpop.f32.mrb[0].mxu0
        %3918 = vmatprep.mubr.bf16.mxu0 0
        %3919 = vmatmul.mubr.bf16.gmra.mrb[0].mxu0 %v3809
        %v3920 = vpop.f32.mrb[0].mxu0
        %v3921 = vadd.f32 0.0, %v3920
        %v3922 = vpop.f32.mrb[0].mxu0
        %v3923 = vpop.f32.mrb[0].mxu0
        %v3924 = vadd.f32 0.0, %v3923
        %v3925 = vpop.f32.mrb[0].mxu0
        %3926 = vmatprep.mubr.bf16.mxu0 0
        %3927 = vmatmul.mubr.bf16.gmra.mrb[0].mxu0 %v3812
        %v3928 = vpop.f32.mrb[0].mxu0
        %v3929 = vadd.f32 0.0, %v3928
        %v3930 = vpop.f32.mrb[0].mxu0
        %v3931 = vpop.f32.mrb[0].mxu0
        %v3932 = vadd.f32 0.0, %v3931
        %v3933 = vpop.f32.mrb[0].mxu0
        %3934 = vmatprep.mubr.bf16.mxu0 0
        %3935 = vmatmul.mubr.bf16.gmra.mrb[0].mxu0 %v3815
        %v3936 = vpop.f32.mrb[0].mxu0
        %v3937 = vadd.f32 0.0, %v3936
        %v3938 = vpop.f32.mrb[0].mxu0
        %v3939 = vpop.f32.mrb[0].mxu0
        %v3940 = vadd.f32 0.0, %v3939
        %v3941 = vpop.f32.mrb[0].mxu0
        %3942 = vmatprep.mubr.bf16.mxu0 0
        %3943 = vmatmul.mubr.bf16.gmra.mrb[0].mxu0 %v3818
        %v3944 = vpop.f32.mrb[0].mxu0
        %v3945 = vadd.f32 0.0, %v3944
        %v3946 = vpop.f32.mrb[0].mxu0
        %v3947 = vpop.f32.mrb[0].mxu0
        %v3948 = vadd.f32 0.0, %v3947
        %v3949 = vpop.f32.mrb[0].mxu0
        %3950 = vmatprep.mubr.bf16.mxu0 0
        %3951 = vmatmul.mubr.bf16.gmra.mrb[0].mxu0 %v3821
        %v3952 = vpop.f32.mrb[0].mxu0
        %v3953 = vadd.f32 0.0, %v3952
        %v3954 = vpop.f32.mrb[0].mxu0
        %v3955 = vpop.f32.mrb[0].mxu0
        %v3956 = vadd.f32 0.0, %v3955
        %v3957 = vpop.f32.mrb[0].mxu0
        %3958 = vmatprep.mubr.bf16.mxu0 0
        %3959 = vmatmul.mubr.bf16.gmra.mrb[0].mxu0 %v3824
        %v3960 = vpop.f32.mrb[0].mxu0
        %v3961 = vadd.f32 0.0, %v3960
        %v3962 = vpop.f32.mrb[0].mxu0
        %v3963 = vpop.f32.mrb[0].mxu0
        %v3964 = vadd.f32 0.0, %v3963
        %v3965 = vpop.f32.mrb[0].mxu0
        %3966 = vmatprep.mubr.bf16.mxu0 0
        %3967 = vmatmul.mubr.bf16.gmra.mrb[0].mxu0 %v3827
        %v3968 = vpop.f32.mrb[0].mxu0
        %v3969 = vadd.f32 0.0, %v3968
        %v3970 = vpop.f32.mrb[0].mxu0
        %v3971 = vpop.f32.mrb[0].mxu0
        %v3972 = vadd.f32 0.0, %v3971
        %v3973 = vpop.f32.mrb[0].mxu0
        %3974 = vmatprep.mubr.bf16.mxu0 0
        %3975 = vmatmul.mubr.bf16.gmra.mrb[0].mxu0 %v3830
        %v3976 = vpop.f32.mrb[0].mxu0
        %v3977 = vadd.f32 0.0, %v3976
        %v3978 = vpop.f32.mrb[0].mxu0
        %v3979 = vpop.f32.mrb[0].mxu0
        %v3980 = vadd.f32 0.0, %v3979
        %v3981 = vpop.f32.mrb[0].mxu0
        %3982 = vmatprep.mubr.bf16.mxu0 0
        %3983 = vmatmul.mubr.bf16.gmra.mrb[0].mxu0 %v3833
        %v3984 = vpop.f32.mrb[0].mxu0
        %v3985 = vadd.f32 0.0, %v3984
        %v3986 = vpop.f32.mrb[0].mxu0
        %v3987 = vpop.f32.mrb[0].mxu0
        %v3988 = vadd.f32 0.0, %v3987
        %v3989 = vpop.f32.mrb[0].mxu0
        %3990 = vmatprep.mubr.bf16.mxu0 0
        %3991 = vmatmul.mubr.bf16.gmra.mrb[0].mxu0 %v3836
        %v3992 = vpop.f32.mrb[0].mxu0
        %v3993 = vadd.f32 0.0, %v3992
        %v3994 = vpop.f32.mrb[0].mxu0
        %v3995 = vpop.f32.mrb[0].mxu0
        %v3996 = vadd.f32 0.0, %v3995
        %v3997 = vpop.f32.mrb[0].mxu0
        %3998 = vdwg.mxu0
        %v4003 = vunpack.c.l.b16 %v3674
        %v4004 = vunpack.c.l.b16 %v3675
        %v4005 = vunpack.c.l.b16 %v3676
        %v4006 = vunpack.c.l.b16 %v3677
        %v4007 = vpack.c.b16 %v4004, %v4003
        %v4008 = vpack.c.b16 %v4006, %v4005
        %v4012 = vsel %vm358, %v3418, 0
        %v4015 = vsel %vm358, %v3435, 0
        %v4018 = vsel %vm358, %v3452, 0
        %v4021 = vsel %vm358, %v3469, 0
        %v4024 = vsel %vm358, %v3486, 0
        %v4027 = vsel %vm358, %v3503, 0
        %v4030 = vsel %vm358, %v3520, 0
        %v4033 = vsel %vm358, %v3537, 0
        %v4036 = vsel %vm358, %v3554, 0
        %v4039 = vsel %vm358, %v3571, 0
        %v4042 = vsel %vm358, %v3588, 0
        %v4045 = vsel %vm358, %v3605, 0
        %v4048 = vsel %vm358, %v3622, 0
        %v4051 = vsel %vm358, %v3639, 0
        %v4054 = vsel %vm358, %v3656, 0
        %v4057 = vsel %vm358, %v3673, 0
        %4059 = vmatprep.subr.bf16.mxu0 0
        %4060 = vmatpush1.bf16.msra.mxu0 %v4007
        %4061 = vmatprep.subr.bf16.mxu0 0
        %4062 = vmatpush1.bf16.msra.mxu0 %v4008
        %4063 = vmatprep.subr.bf16.mxu0 0
        %4064 = vmatpush1.bf16.msra.mxu0 0
        %4065 = vmatprep.subr.bf16.mxu0 0
        %4066 = vmatpush1.bf16.msra.mxu0 0
        %4067 = vmatprep.subr.bf16.mxu0 0
        %4068 = vmatpush1.bf16.msra.mxu0 0
        %4069 = vmatprep.subr.bf16.mxu0 0
        %4070 = vmatpush1.bf16.msra.mxu0 0
        %4071 = vmatprep.subr.bf16.mxu0 0
        %4072 = vmatpush1.bf16.msra.mxu0 0
        %4073 = vmatprep.subr.bf16.mxu0 0
        %4074 = vmatpush1.bf16.msra.mxu0 0
        %4075 = vmatprep.subr.bf16.mxu0 0
        %4076 = vmatpush1.bf16.msra.mxu0 0
        %4077 = vmatprep.subr.bf16.mxu0 0
        %4078 = vmatpush1.bf16.msra.mxu0 0
        %4079 = vmatprep.subr.bf16.mxu0 0
        %4080 = vmatpush1.bf16.msra.mxu0 0
        %4081 = vmatprep.subr.bf16.mxu0 0
        %4082 = vmatpush1.bf16.msra.mxu0 0
        %4083 = vmatprep.subr.bf16.mxu0 0
        %4084 = vmatpush1.bf16.msra.mxu0 0
        %4085 = vmatprep.subr.bf16.mxu0 0
        %4086 = vmatpush1.bf16.msra.mxu0 0
        %4087 = vmatprep.subr.bf16.mxu0 0
        %4088 = vmatpush1.bf16.msra.mxu0 0
        %4089 = vmatprep.subr.bf16.mxu0 0
        %4090 = vmatpush1.bf16.msra.mxu0 0
        %4091 = vmatprep.mubr.bf16.mxu0 0
        %4092 = vmatmul.mubr.bf16.gmra.mrb[0].mxu0 %v4012
        %v4093 = vpop.f32.mrb[0].mxu0
        %v4094 = vadd.f32 %v3873, %v4093
        %v4095 = vpop.f32.mrb[0].mxu0
        %v4096 = vpop.f32.mrb[0].mxu0
        %v4097 = vadd.f32 %v3876, %v4096
        %v4098 = vpop.f32.mrb[0].mxu0
        %4099 = vmatprep.mubr.bf16.mxu0 0
        %4100 = vmatmul.mubr.bf16.gmra.mrb[0].mxu0 %v4015
        %v4101 = vpop.f32.mrb[0].mxu0
        %v4102 = vadd.f32 %v3881, %v4101
        %v4103 = vpop.f32.mrb[0].mxu0
        %v4104 = vpop.f32.mrb[0].mxu0
        %v4105 = vadd.f32 %v3884, %v4104
        %v4106 = vpop.f32.mrb[0].mxu0
        %4107 = vmatprep.mubr.bf16.mxu0 0
        %4108 = vmatmul.mubr.bf16.gmra.mrb[0].mxu0 %v4018
        %v4109 = vpop.f32.mrb[0].mxu0
        %v4110 = vadd.f32 %v3889, %v4109
        %v4111 = vpop.f32.mrb[0].mxu0
        %v4112 = vpop.f32.mrb[0].mxu0
        %v4113 = vadd.f32 %v3892, %v4112
        %v4114 = vpop.f32.mrb[0].mxu0
        %4115 = vmatprep.mubr.bf16.mxu0 0
        %4116 = vmatmul.mubr.bf16.gmra.mrb[0].mxu0 %v4021
        %v4117 = vpop.f32.mrb[0].mxu0
        %v4118 = vadd.f32 %v3897, %v4117
        %v4119 = vpop.f32.mrb[0].mxu0
        %v4120 = vpop.f32.mrb[0].mxu0
        %v4121 = vadd.f32 %v3900, %v4120
        %v4122 = vpop.f32.mrb[0].mxu0
        %4123 = vmatprep.mubr.bf16.mxu0 0
        %4124 = vmatmul.mubr.bf16.gmra.mrb[0].mxu0 %v4024
        %v4125 = vpop.f32.mrb[0].mxu0
        %v4126 = vadd.f32 %v3905, %v4125
        %v4127 = vpop.f32.mrb[0].mxu0
        %v4128 = vpop.f32.mrb[0].mxu0
        %v4129 = vadd.f32 %v3908, %v4128
        %v4130 = vpop.f32.mrb[0].mxu0
        %4131 = vmatprep.mubr.bf16.mxu0 0
        %4132 = vmatmul.mubr.bf16.gmra.mrb[0].mxu0 %v4027
        %v4133 = vpop.f32.mrb[0].mxu0
        %v4134 = vadd.f32 %v3913, %v4133
        %v4135 = vpop.f32.mrb[0].mxu0
        %v4136 = vpop.f32.mrb[0].mxu0
        %v4137 = vadd.f32 %v3916, %v4136
        %v4138 = vpop.f32.mrb[0].mxu0
        %4139 = vmatprep.mubr.bf16.mxu0 0
        %4140 = vmatmul.mubr.bf16.gmra.mrb[0].mxu0 %v4030
        %v4141 = vpop.f32.mrb[0].mxu0
        %v4142 = vadd.f32 %v3921, %v4141
        %v4143 = vpop.f32.mrb[0].mxu0
        %v4144 = vpop.f32.mrb[0].mxu0
        %v4145 = vadd.f32 %v3924, %v4144
        %v4146 = vpop.f32.mrb[0].mxu0
        %4147 = vmatprep.mubr.bf16.mxu0 0
        %4148 = vmatmul.mubr.bf16.gmra.mrb[0].mxu0 %v4033
        %v4149 = vpop.f32.mrb[0].mxu0
        %v4150 = vadd.f32 %v3929, %v4149
        %v4151 = vpop.f32.mrb[0].mxu0
        %v4152 = vpop.f32.mrb[0].mxu0
        %v4153 = vadd.f32 %v3932, %v4152
        %v4154 = vpop.f32.mrb[0].mxu0
        %4155 = vmatprep.mubr.bf16.mxu0 0
        %4156 = vmatmul.mubr.bf16.gmra.mrb[0].mxu0 %v4036
        %v4157 = vpop.f32.mrb[0].mxu0
        %v4158 = vadd.f32 %v3937, %v4157
        %v4159 = vpop.f32.mrb[0].mxu0
        %v4160 = vpop.f32.mrb[0].mxu0
        %v4161 = vadd.f32 %v3940, %v4160
        %v4162 = vpop.f32.mrb[0].mxu0
        %4163 = vmatprep.mubr.bf16.mxu0 0
        %4164 = vmatmul.mubr.bf16.gmra.mrb[0].mxu0 %v4039
        %v4165 = vpop.f32.mrb[0].mxu0
        %v4166 = vadd.f32 %v3945, %v4165
        %v4167 = vpop.f32.mrb[0].mxu0
        %v4168 = vpop.f32.mrb[0].mxu0
        %v4169 = vadd.f32 %v3948, %v4168
        %v4170 = vpop.f32.mrb[0].mxu0
        %4171 = vmatprep.mubr.bf16.mxu0 0
        %4172 = vmatmul.mubr.bf16.gmra.mrb[0].mxu0 %v4042
        %v4173 = vpop.f32.mrb[0].mxu0
        %v4174 = vadd.f32 %v3953, %v4173
        %v4175 = vpop.f32.mrb[0].mxu0
        %v4176 = vpop.f32.mrb[0].mxu0
        %v4177 = vadd.f32 %v3956, %v4176
        %v4178 = vpop.f32.mrb[0].mxu0
        %4179 = vmatprep.mubr.bf16.mxu0 0
        %4180 = vmatmul.mubr.bf16.gmra.mrb[0].mxu0 %v4045
        %v4181 = vpop.f32.mrb[0].mxu0
        %v4182 = vadd.f32 %v3961, %v4181
        %v4183 = vpop.f32.mrb[0].mxu0
        %v4184 = vpop.f32.mrb[0].mxu0
        %v4185 = vadd.f32 %v3964, %v4184
        %v4186 = vpop.f32.mrb[0].mxu0
        %4187 = vmatprep.mubr.bf16.mxu0 0
        %4188 = vmatmul.mubr.bf16.gmra.mrb[0].mxu0 %v4048
        %v4189 = vpop.f32.mrb[0].mxu0
        %v4190 = vadd.f32 %v3969, %v4189
        %v4191 = vpop.f32.mrb[0].mxu0
        %v4192 = vpop.f32.mrb[0].mxu0
        %v4193 = vadd.f32 %v3972, %v4192
        %v4194 = vpop.f32.mrb[0].mxu0
        %4195 = vmatprep.mubr.bf16.mxu0 0
        %4196 = vmatmul.mubr.bf16.gmra.mrb[0].mxu0 %v4051
        %v4197 = vpop.f32.mrb[0].mxu0
        %v4198 = vadd.f32 %v3977, %v4197
        %v4199 = vpop.f32.mrb[0].mxu0
        %v4200 = vpop.f32.mrb[0].mxu0
        %v4201 = vadd.f32 %v3980, %v4200
        %v4202 = vpop.f32.mrb[0].mxu0
        %4203 = vmatprep.mubr.bf16.mxu0 0
        %4204 = vmatmul.mubr.bf16.gmra.mrb[0].mxu0 %v4054
        %v4205 = vpop.f32.mrb[0].mxu0
        %v4206 = vadd.f32 %v3985, %v4205
        %v4207 = vpop.f32.mrb[0].mxu0
        %v4208 = vpop.f32.mrb[0].mxu0
        %v4209 = vadd.f32 %v3988, %v4208
        %v4210 = vpop.f32.mrb[0].mxu0
        %4211 = vmatprep.mubr.bf16.mxu0 0
        %4212 = vmatmul.mubr.bf16.gmra.mrb[0].mxu0 %v4057
        %v4213 = vpop.f32.mrb[0].mxu0
        %v4214 = vadd.f32 %v3993, %v4213
        %v4215 = vpop.f32.mrb[0].mxu0
        %v4216 = vpop.f32.mrb[0].mxu0
        %v4217 = vadd.f32 %v3996, %v4216
        %v4218 = vpop.f32.mrb[0].mxu0
        %4219 = vdwg.mxu0
        %v4220 = vld [vmem:[%s3369 + $0x8] sm:$0x1f]
        %v4221 = vld [vmem:[%s3369 + $0x18] sm:$0x1f]
        %v4222 = vld [vmem:[%s3369 + $0x28] sm:$0x1f]
        %v4223 = vld [vmem:[%s3369 + $0x38] sm:$0x1f]
        %v4224 = vld [vmem:[%s3369 + $0x48] sm:$0x1f]
        %v4225 = vld [vmem:[%s3369 + $0x58] sm:$0x1f]
        %v4226 = vld [vmem:[%s3369 + $0x68] sm:$0x1f]
        %v4227 = vld [vmem:[%s3369 + $0x78] sm:$0x1f]
        %v4228 = vld [vmem:[%s3369 + $0x88] sm:$0x1f]
        %v4229 = vld [vmem:[%s3369 + $0x98] sm:$0x1f]
        %v4230 = vld [vmem:[%s3369 + $0xa8] sm:$0x1f]
        %v4231 = vld [vmem:[%s3369 + $0xb8] sm:$0x1f]
        %v4232 = vld [vmem:[%s3369 + $0xc8] sm:$0x1f]
        %v4233 = vld [vmem:[%s3369 + $0xd8] sm:$0x1f]
        %v4234 = vld [vmem:[%s3369 + $0xe8] sm:$0x1f]
        %v4235 = vld [vmem:[%s3369 + $0xf8] sm:$0x1f]
        %v4237 = vshrl.u32 %v3678, 16
        %v4239 = vrot.slane %v4237, 4
        %v4240 = vshll.u32 %v3678, 16
        %v4242 = vrot.slane %v4240, 5
        %v4243 = vor.u32 %v4239, %v4242
        %v4245 = vshrl.u32 %v4220, 16
        %v4247 = vrot.slane %v4245, 4
        %v4248 = vshll.u32 %v4220, 16
        %v4250 = vrot.slane %v4248, 5
        %v4251 = vor.u32 %v4247, %v4250
        %v4252 = vsel %vm1444, %v4243, %v4251
        %v4254 = vshrl.u32 %v3679, 16
        %v4256 = vrot.slane %v4254, 4
        %v4257 = vshll.u32 %v3679, 16
        %v4259 = vrot.slane %v4257, 5
        %v4260 = vor.u32 %v4256, %v4259
        %v4262 = vshrl.u32 %v4221, 16
        %v4264 = vrot.slane %v4262, 4
        %v4265 = vshll.u32 %v4221, 16
        %v4267 = vrot.slane %v4265, 5
        %v4268 = vor.u32 %v4264, %v4267
        %v4269 = vsel %vm1444, %v4260, %v4268
        %v4271 = vshrl.u32 %v3680, 16
        %v4273 = vrot.slane %v4271, 4
        %v4274 = vshll.u32 %v3680, 16
        %v4276 = vrot.slane %v4274, 5
        %v4277 = vor.u32 %v4273, %v4276
        %v4279 = vshrl.u32 %v4222, 16
        %v4281 = vrot.slane %v4279, 4
        %v4282 = vshll.u32 %v4222, 16
        %v4284 = vrot.slane %v4282, 5
        %v4285 = vor.u32 %v4281, %v4284
        %v4286 = vsel %vm1444, %v4277, %v4285
        %v4288 = vshrl.u32 %v3681, 16
        %v4290 = vrot.slane %v4288, 4
        %v4291 = vshll.u32 %v3681, 16
        %v4293 = vrot.slane %v4291, 5
        %v4294 = vor.u32 %v4290, %v4293
        %v4296 = vshrl.u32 %v4223, 16
        %v4298 = vrot.slane %v4296, 4
        %v4299 = vshll.u32 %v4223, 16
        %v4301 = vrot.slane %v4299, 5
        %v4302 = vor.u32 %v4298, %v4301
        %v4303 = vsel %vm1444, %v4294, %v4302
        %v4305 = vshrl.u32 %v3682, 16
        %v4307 = vrot.slane %v4305, 4
        %v4308 = vshll.u32 %v3682, 16
        %v4310 = vrot.slane %v4308, 5
        %v4311 = vor.u32 %v4307, %v4310
        %v4313 = vshrl.u32 %v4224, 16
        %v4315 = vrot.slane %v4313, 4
        %v4316 = vshll.u32 %v4224, 16
        %v4318 = vrot.slane %v4316, 5
        %v4319 = vor.u32 %v4315, %v4318
        %v4320 = vsel %vm1444, %v4311, %v4319
        %v4322 = vshrl.u32 %v3683, 16
        %v4324 = vrot.slane %v4322, 4
        %v4325 = vshll.u32 %v3683, 16
        %v4327 = vrot.slane %v4325, 5
        %v4328 = vor.u32 %v4324, %v4327
        %v4330 = vshrl.u32 %v4225, 16
        %v4332 = vrot.slane %v4330, 4
        %v4333 = vshll.u32 %v4225, 16
        %v4335 = vrot.slane %v4333, 5
        %v4336 = vor.u32 %v4332, %v4335
        %v4337 = vsel %vm1444, %v4328, %v4336
        %v4339 = vshrl.u32 %v3684, 16
        %v4341 = vrot.slane %v4339, 4
        %v4342 = vshll.u32 %v3684, 16
        %v4344 = vrot.slane %v4342, 5
        %v4345 = vor.u32 %v4341, %v4344
        %v4347 = vshrl.u32 %v4226, 16
        %v4349 = vrot.slane %v4347, 4
        %v4350 = vshll.u32 %v4226, 16
        %v4352 = vrot.slane %v4350, 5
        %v4353 = vor.u32 %v4349, %v4352
        %v4354 = vsel %vm1444, %v4345, %v4353
        %v4356 = vshrl.u32 %v3685, 16
        %v4358 = vrot.slane %v4356, 4
        %v4359 = vshll.u32 %v3685, 16
        %v4361 = vrot.slane %v4359, 5
        %v4362 = vor.u32 %v4358, %v4361
        %v4364 = vshrl.u32 %v4227, 16
        %v4366 = vrot.slane %v4364, 4
        %v4367 = vshll.u32 %v4227, 16
        %v4369 = vrot.slane %v4367, 5
        %v4370 = vor.u32 %v4366, %v4369
        %v4371 = vsel %vm1444, %v4362, %v4370
        %v4373 = vshrl.u32 %v3686, 16
        %v4375 = vrot.slane %v4373, 4
        %v4376 = vshll.u32 %v3686, 16
        %v4378 = vrot.slane %v4376, 5
        %v4379 = vor.u32 %v4375, %v4378
        %v4381 = vshrl.u32 %v4228, 16
        %v4383 = vrot.slane %v4381, 4
        %v4384 = vshll.u32 %v4228, 16
        %v4386 = vrot.slane %v4384, 5
        %v4387 = vor.u32 %v4383, %v4386
        %v4388 = vsel %vm1444, %v4379, %v4387
        %v4390 = vshrl.u32 %v3687, 16
        %v4392 = vrot.slane %v4390, 4
        %v4393 = vshll.u32 %v3687, 16
        %v4395 = vrot.slane %v4393, 5
        %v4396 = vor.u32 %v4392, %v4395
        %v4398 = vshrl.u32 %v4229, 16
        %v4400 = vrot.slane %v4398, 4
        %v4401 = vshll.u32 %v4229, 16
        %v4403 = vrot.slane %v4401, 5
        %v4404 = vor.u32 %v4400, %v4403
        %v4405 = vsel %vm1444, %v4396, %v4404
        %v4407 = vshrl.u32 %v3688, 16
        %v4409 = vrot.slane %v4407, 4
        %v4410 = vshll.u32 %v3688, 16
        %v4412 = vrot.slane %v4410, 5
        %v4413 = vor.u32 %v4409, %v4412
        %v4415 = vshrl.u32 %v4230, 16
        %v4417 = vrot.slane %v4415, 4
        %v4418 = vshll.u32 %v4230, 16
        %v4420 = vrot.slane %v4418, 5
        %v4421 = vor.u32 %v4417, %v4420
        %v4422 = vsel %vm1444, %v4413, %v4421
        %v4424 = vshrl.u32 %v3689, 16
        %v4426 = vrot.slane %v4424, 4
        %v4427 = vshll.u32 %v3689, 16
        %v4429 = vrot.slane %v4427, 5
        %v4430 = vor.u32 %v4426, %v4429
        %v4432 = vshrl.u32 %v4231, 16
        %v4434 = vrot.slane %v4432, 4
        %v4435 = vshll.u32 %v4231, 16
        %v4437 = vrot.slane %v4435, 5
        %v4438 = vor.u32 %v4434, %v4437
        %v4439 = vsel %vm1444, %v4430, %v4438
        %v4441 = vshrl.u32 %v3690, 16
        %v4443 = vrot.slane %v4441, 4
        %v4444 = vshll.u32 %v3690, 16
        %v4446 = vrot.slane %v4444, 5
        %v4447 = vor.u32 %v4443, %v4446
        %v4449 = vshrl.u32 %v4232, 16
        %v4451 = vrot.slane %v4449, 4
        %v4452 = vshll.u32 %v4232, 16
        %v4454 = vrot.slane %v4452, 5
        %v4455 = vor.u32 %v4451, %v4454
        %v4456 = vsel %vm1444, %v4447, %v4455
        %v4458 = vshrl.u32 %v3691, 16
        %v4460 = vrot.slane %v4458, 4
        %v4461 = vshll.u32 %v3691, 16
        %v4463 = vrot.slane %v4461, 5
        %v4464 = vor.u32 %v4460, %v4463
        %v4466 = vshrl.u32 %v4233, 16
        %v4468 = vrot.slane %v4466, 4
        %v4469 = vshll.u32 %v4233, 16
        %v4471 = vrot.slane %v4469, 5
        %v4472 = vor.u32 %v4468, %v4471
        %v4473 = vsel %vm1444, %v4464, %v4472
        %v4475 = vshrl.u32 %v3692, 16
        %v4477 = vrot.slane %v4475, 4
        %v4478 = vshll.u32 %v3692, 16
        %v4480 = vrot.slane %v4478, 5
        %v4481 = vor.u32 %v4477, %v4480
        %v4483 = vshrl.u32 %v4234, 16
        %v4485 = vrot.slane %v4483, 4
        %v4486 = vshll.u32 %v4234, 16
        %v4488 = vrot.slane %v4486, 5
        %v4489 = vor.u32 %v4485, %v4488
        %v4490 = vsel %vm1444, %v4481, %v4489
        %v4492 = vshrl.u32 %v3693, 16
        %v4494 = vrot.slane %v4492, 4
        %v4495 = vshll.u32 %v3693, 16
        %v4497 = vrot.slane %v4495, 5
        %v4498 = vor.u32 %v4494, %v4497
        %v4500 = vshrl.u32 %v4235, 16
        %v4502 = vrot.slane %v4500, 4
        %v4503 = vshll.u32 %v4235, 16
        %v4505 = vrot.slane %v4503, 5
        %v4506 = vor.u32 %v4502, %v4505
        %v4507 = vsel %vm1444, %v4498, %v4506
        %v4508 = vld [vmem:[%s1 + $0x80] sm:$0xf]
        %v4509 = vld [vmem:[%s1 + $0x84] sm:$0xf]
        %v4510 = vld [vmem:[%s1 + $0x88] sm:$0xf]
        %v4511 = vld [vmem:[%s1 + $0x8c] sm:$0xf]
        %v4516 = vunpack.c.l.b16 %v4508
        %v4517 = vunpack.c.l.b16 %v4509
        %v4518 = vunpack.c.l.b16 %v4510
        %v4519 = vunpack.c.l.b16 %v4511
        %v4520 = vpack.c.b16 %v4517, %v4516
        %v4521 = vpack.c.b16 %v4519, %v4518
        %v4525 = vsel %vm358, %v4252, 0
        %v4528 = vsel %vm358, %v4269, 0
        %v4531 = vsel %vm358, %v4286, 0
        %v4534 = vsel %vm358, %v4303, 0
        %v4537 = vsel %vm358, %v4320, 0
        %v4540 = vsel %vm358, %v4337, 0
        %v4543 = vsel %vm358, %v4354, 0
        %v4546 = vsel %vm358, %v4371, 0
        %v4549 = vsel %vm358, %v4388, 0
        %v4552 = vsel %vm358, %v4405, 0
        %v4555 = vsel %vm358, %v4422, 0
        %v4558 = vsel %vm358, %v4439, 0
        %v4561 = vsel %vm358, %v4456, 0
        %v4564 = vsel %vm358, %v4473, 0
        %v4567 = vsel %vm358, %v4490, 0
        %v4570 = vsel %vm358, %v4507, 0
        %4572 = vmatprep.subr.bf16.mxu0 0
        %4573 = vmatpush1.bf16.msra.mxu0 %v4520
        %4574 = vmatprep.subr.bf16.mxu0 0
        %4575 = vmatpush1.bf16.msra.mxu0 %v4521
        %4576 = vmatprep.subr.bf16.mxu0 0
        %4577 = vmatpush1.bf16.msra.mxu0 0
        %4578 = vmatprep.subr.bf16.mxu0 0
        %4579 = vmatpush1.bf16.msra.mxu0 0
        %4580 = vmatprep.subr.bf16.mxu0 0
        %4581 = vmatpush1.bf16.msra.mxu0 0
        %4582 = vmatprep.subr.bf16.mxu0 0
        %4583 = vmatpush1.bf16.msra.mxu0 0
        %4584 = vmatprep.subr.bf16.mxu0 0
        %4585 = vmatpush1.bf16.msra.mxu0 0
        %4586 = vmatprep.subr.bf16.mxu0 0
        %4587 = vmatpush1.bf16.msra.mxu0 0
        %4588 = vmatprep.subr.bf16.mxu0 0
        %4589 = vmatpush1.bf16.msra.mxu0 0
        %4590 = vmatprep.subr.bf16.mxu0 0
        %4591 = vmatpush1.bf16.msra.mxu0 0
        %4592 = vmatprep.subr.bf16.mxu0 0
        %4593 = vmatpush1.bf16.msra.mxu0 0
        %4594 = vmatprep.subr.bf16.mxu0 0
        %4595 = vmatpush1.bf16.msra.mxu0 0
        %4596 = vmatprep.subr.bf16.mxu0 0
        %4597 = vmatpush1.bf16.msra.mxu0 0
        %4598 = vmatprep.subr.bf16.mxu0 0
        %4599 = vmatpush1.bf16.msra.mxu0 0
        %4600 = vmatprep.subr.bf16.mxu0 0
        %4601 = vmatpush1.bf16.msra.mxu0 0
        %4602 = vmatprep.subr.bf16.mxu0 0
        %4603 = vmatpush1.bf16.msra.mxu0 0
        %4604 = vmatprep.mubr.bf16.mxu0 0
        %4605 = vmatmul.mubr.bf16.gmra.mrb[0].mxu0 %v4525
        %v4606 = vpop.f32.mrb[0].mxu0
        %v4607 = vadd.f32 0.0, %v4606
        %v4608 = vpop.f32.mrb[0].mxu0
        %v4609 = vpop.f32.mrb[0].mxu0
        %v4610 = vadd.f32 0.0, %v4609
        %v4611 = vpop.f32.mrb[0].mxu0
        %4612 = vmatprep.mubr.bf16.mxu0 0
        %4613 = vmatmul.mubr.bf16.gmra.mrb[0].mxu0 %v4528
        %v4614 = vpop.f32.mrb[0].mxu0
        %v4615 = vadd.f32 0.0, %v4614
        %v4616 = vpop.f32.mrb[0].mxu0
        %v4617 = vpop.f32.mrb[0].mxu0
        %v4618 = vadd.f32 0.0, %v4617
        %v4619 = vpop.f32.mrb[0].mxu0
        %4620 = vmatprep.mubr.bf16.mxu0 0
        %4621 = vmatmul.mubr.bf16.gmra.mrb[0].mxu0 %v4531
        %v4622 = vpop.f32.mrb[0].mxu0
        %v4623 = vadd.f32 0.0, %v4622
        %v4624 = vpop.f32.mrb[0].mxu0
        %v4625 = vpop.f32.mrb[0].mxu0
        %v4626 = vadd.f32 0.0, %v4625
        %v4627 = vpop.f32.mrb[0].mxu0
        %4628 = vmatprep.mubr.bf16.mxu0 0
        %4629 = vmatmul.mubr.bf16.gmra.mrb[0].mxu0 %v4534
        %v4630 = vpop.f32.mrb[0].mxu0
        %v4631 = vadd.f32 0.0, %v4630
        %v4632 = vpop.f32.mrb[0].mxu0
        %v4633 = vpop.f32.mrb[0].mxu0
        %v4634 = vadd.f32 0.0, %v4633
        %v4635 = vpop.f32.mrb[0].mxu0
        %4636 = vmatprep.mubr.bf16.mxu0 0
        %4637 = vmatmul.mubr.bf16.gmra.mrb[0].mxu0 %v4537
        %v4638 = vpop.f32.mrb[0].mxu0
        %v4639 = vadd.f32 0.0, %v4638
        %v4640 = vpop.f32.mrb[0].mxu0
        %v4641 = vpop.f32.mrb[0].mxu0
        %v4642 = vadd.f32 0.0, %v4641
        %v4643 = vpop.f32.mrb[0].mxu0
        %4644 = vmatprep.mubr.bf16.mxu0 0
        %4645 = vmatmul.mubr.bf16.gmra.mrb[0].mxu0 %v4540
        %v4646 = vpop.f32.mrb[0].mxu0
        %v4647 = vadd.f32 0.0, %v4646
        %v4648 = vpop.f32.mrb[0].mxu0
        %v4649 = vpop.f32.mrb[0].mxu0
        %v4650 = vadd.f32 0.0, %v4649
        %v4651 = vpop.f32.mrb[0].mxu0
        %4652 = vmatprep.mubr.bf16.mxu0 0
        %4653 = vmatmul.mubr.bf16.gmra.mrb[0].mxu0 %v4543
        %v4654 = vpop.f32.mrb[0].mxu0
        %v4655 = vadd.f32 0.0, %v4654
        %v4656 = vpop.f32.mrb[0].mxu0
        %v4657 = vpop.f32.mrb[0].mxu0
        %v4658 = vadd.f32 0.0, %v4657
        %v4659 = vpop.f32.mrb[0].mxu0
        %4660 = vmatprep.mubr.bf16.mxu0 0
        %4661 = vmatmul.mubr.bf16.gmra.mrb[0].mxu0 %v4546
        %v4662 = vpop.f32.mrb[0].mxu0
        %v4663 = vadd.f32 0.0, %v4662
        %v4664 = vpop.f32.mrb[0].mxu0
        %v4665 = vpop.f32.mrb[0].mxu0
        %v4666 = vadd.f32 0.0, %v4665
        %v4667 = vpop.f32.mrb[0].mxu0
        %4668 = vmatprep.mubr.bf16.mxu0 0
        %4669 = vmatmul.mubr.bf16.gmra.mrb[0].mxu0 %v4549
        %v4670 = vpop.f32.mrb[0].mxu0
        %v4671 = vadd.f32 0.0, %v4670
        %v4672 = vpop.f32.mrb[0].mxu0
        %v4673 = vpop.f32.mrb[0].mxu0
        %v4674 = vadd.f32 0.0, %v4673
        %v4675 = vpop.f32.mrb[0].mxu0
        %4676 = vmatprep.mubr.bf16.mxu0 0
        %4677 = vmatmul.mubr.bf16.gmra.mrb[0].mxu0 %v4552
        %v4678 = vpop.f32.mrb[0].mxu0
        %v4679 = vadd.f32 0.0, %v4678
        %v4680 = vpop.f32.mrb[0].mxu0
        %v4681 = vpop.f32.mrb[0].mxu0
        %v4682 = vadd.f32 0.0, %v4681
        %v4683 = vpop.f32.mrb[0].mxu0
        %4684 = vmatprep.mubr.bf16.mxu0 0
        %4685 = vmatmul.mubr.bf16.gmra.mrb[0].mxu0 %v4555
        %v4686 = vpop.f32.mrb[0].mxu0
        %v4687 = vadd.f32 0.0, %v4686
        %v4688 = vpop.f32.mrb[0].mxu0
        %v4689 = vpop.f32.mrb[0].mxu0
        %v4690 = vadd.f32 0.0, %v4689
        %v4691 = vpop.f32.mrb[0].mxu0
        %4692 = vmatprep.mubr.bf16.mxu0 0
        %4693 = vmatmul.mubr.bf16.gmra.mrb[0].mxu0 %v4558
        %v4694 = vpop.f32.mrb[0].mxu0
        %v4695 = vadd.f32 0.0, %v4694
        %v4696 = vpop.f32.mrb[0].mxu0
        %v4697 = vpop.f32.mrb[0].mxu0
        %v4698 = vadd.f32 0.0, %v4697
        %v4699 = vpop.f32.mrb[0].mxu0
        %4700 = vmatprep.mubr.bf16.mxu0 0
        %4701 = vmatmul.mubr.bf16.gmra.mrb[0].mxu0 %v4561
        %v4702 = vpop.f32.mrb[0].mxu0
        %v4703 = vadd.f32 0.0, %v4702
        %v4704 = vpop.f32.mrb[0].mxu0
        %v4705 = vpop.f32.mrb[0].mxu0
        %v4706 = vadd.f32 0.0, %v4705
        %v4707 = vpop.f32.mrb[0].mxu0
        %4708 = vmatprep.mubr.bf16.mxu0 0
        %4709 = vmatmul.mubr.bf16.gmra.mrb[0].mxu0 %v4564
        %v4710 = vpop.f32.mrb[0].mxu0
        %v4711 = vadd.f32 0.0, %v4710
        %v4712 = vpop.f32.mrb[0].mxu0
        %v4713 = vpop.f32.mrb[0].mxu0
        %v4714 = vadd.f32 0.0, %v4713
        %v4715 = vpop.f32.mrb[0].mxu0
        %4716 = vmatprep.mubr.bf16.mxu0 0
        %4717 = vmatmul.mubr.bf16.gmra.mrb[0].mxu0 %v4567
        %v4718 = vpop.f32.mrb[0].mxu0
        %v4719 = vadd.f32 0.0, %v4718
        %v4720 = vpop.f32.mrb[0].mxu0
        %v4721 = vpop.f32.mrb[0].mxu0
        %v4722 = vadd.f32 0.0, %v4721
        %v4723 = vpop.f32.mrb[0].mxu0
        %4724 = vmatprep.mubr.bf16.mxu0 0
        %4725 = vmatmul.mubr.bf16.gmra.mrb[0].mxu0 %v4570
        %v4726 = vpop.f32.mrb[0].mxu0
        %v4727 = vadd.f32 0.0, %v4726
        %v4728 = vpop.f32.mrb[0].mxu0
        %v4729 = vpop.f32.mrb[0].mxu0
        %v4730 = vadd.f32 0.0, %v4729
        %v4731 = vpop.f32.mrb[0].mxu0
        %4732 = vdwg.mxu0
        %v4733 = vadd.f32 %v4094, %v4607
        %v4734 = vadd.f32 %v4097, %v4610
        %v4735 = vadd.f32 %v4102, %v4615
        %v4736 = vadd.f32 %v4105, %v4618
        %v4737 = vadd.f32 %v4110, %v4623
        %v4738 = vadd.f32 %v4113, %v4626
        %v4739 = vadd.f32 %v4118, %v4631
        %v4740 = vadd.f32 %v4121, %v4634
        %v4741 = vadd.f32 %v4126, %v4639
        %v4742 = vadd.f32 %v4129, %v4642
        %v4743 = vadd.f32 %v4134, %v4647
        %v4744 = vadd.f32 %v4137, %v4650
        %v4745 = vadd.f32 %v4142, %v4655
        %v4746 = vadd.f32 %v4145, %v4658
        %v4747 = vadd.f32 %v4150, %v4663
        %v4748 = vadd.f32 %v4153, %v4666
        %v4749 = vadd.f32 %v4158, %v4671
        %v4750 = vadd.f32 %v4161, %v4674
        %v4751 = vadd.f32 %v4166, %v4679
        %v4752 = vadd.f32 %v4169, %v4682
        %v4753 = vadd.f32 %v4174, %v4687
        %v4754 = vadd.f32 %v4177, %v4690
        %v4755 = vadd.f32 %v4182, %v4695
        %v4756 = vadd.f32 %v4185, %v4698
        %v4757 = vadd.f32 %v4190, %v4703
        %v4758 = vadd.f32 %v4193, %v4706
        %v4759 = vadd.f32 %v4198, %v4711
        %v4760 = vadd.f32 %v4201, %v4714
        %v4761 = vadd.f32 %v4206, %v4719
        %v4762 = vadd.f32 %v4209, %v4722
        %v4763 = vadd.f32 %v4214, %v4727
        %v4764 = vadd.f32 %v4217, %v4730
        %v4765 = vadd.f32 %v1942, %v3337
        %v4766 = vadd.f32 %v1943, %v3338
        %v4767 = vadd.f32 %v1944, %v3339
        %v4768 = vadd.f32 %v1945, %v3340
        %v4769 = vadd.f32 %v1946, %v3341
        %v4770 = vadd.f32 %v1947, %v3342
        %v4771 = vadd.f32 %v1948, %v3343
        %v4772 = vadd.f32 %v1949, %v3344
        %v4773 = vadd.f32 %v1950, %v3345
        %v4774 = vadd.f32 %v1951, %v3346
        %v4775 = vadd.f32 %v1952, %v3347
        %v4776 = vadd.f32 %v1953, %v3348
        %v4777 = vadd.f32 %v1954, %v3349
        %v4778 = vadd.f32 %v1955, %v3350
        %v4779 = vadd.f32 %v1956, %v3351
        %v4780 = vadd.f32 %v1957, %v3352
        %v4781 = vadd.f32 %v1958, %v3353
        %v4782 = vadd.f32 %v1959, %v3354
        %v4783 = vadd.f32 %v1960, %v3355
        %v4784 = vadd.f32 %v1961, %v3356
        %v4785 = vadd.f32 %v1962, %v3357
        %v4786 = vadd.f32 %v1963, %v3358
        %v4787 = vadd.f32 %v1964, %v3359
        %v4788 = vadd.f32 %v1965, %v3360
        %v4789 = vadd.f32 %v1966, %v3361
        %v4790 = vadd.f32 %v1967, %v3362
        %v4791 = vadd.f32 %v1968, %v3363
        %v4792 = vadd.f32 %v1969, %v3364
        %v4793 = vadd.f32 %v1970, %v3365
        %v4794 = vadd.f32 %v1971, %v3366
        %v4795 = vadd.f32 %v1972, %v3367
        %v4796 = vadd.f32 %v1973, %v3368
        %v4797 = vadd.f32 %v4765, %v4733
        %v4798 = vadd.f32 %v4766, %v4734
        %v4799 = vadd.f32 %v4767, %v4735
        %v4800 = vadd.f32 %v4768, %v4736
        %v4801 = vadd.f32 %v4769, %v4737
        %v4802 = vadd.f32 %v4770, %v4738
        %v4803 = vadd.f32 %v4771, %v4739
        %v4804 = vadd.f32 %v4772, %v4740
        %v4805 = vadd.f32 %v4773, %v4741
        %v4806 = vadd.f32 %v4774, %v4742
        %v4807 = vadd.f32 %v4775, %v4743
        %v4808 = vadd.f32 %v4776, %v4744
        %v4809 = vadd.f32 %v4777, %v4745
        %v4810 = vadd.f32 %v4778, %v4746
        %v4811 = vadd.f32 %v4779, %v4747
        %v4812 = vadd.f32 %v4780, %v4748
        %v4813 = vadd.f32 %v4781, %v4749
        %v4814 = vadd.f32 %v4782, %v4750
        %v4815 = vadd.f32 %v4783, %v4751
        %v4816 = vadd.f32 %v4784, %v4752
        %v4817 = vadd.f32 %v4785, %v4753
        %v4818 = vadd.f32 %v4786, %v4754
        %v4819 = vadd.f32 %v4787, %v4755
        %v4820 = vadd.f32 %v4788, %v4756
        %v4821 = vadd.f32 %v4789, %v4757
        %v4822 = vadd.f32 %v4790, %v4758
        %v4823 = vadd.f32 %v4791, %v4759
        %v4824 = vadd.f32 %v4792, %v4760
        %v4825 = vadd.f32 %v4793, %v4761
        %v4826 = vadd.f32 %v4794, %v4762
        %v4827 = vadd.f32 %v4795, %v4763
        %v4828 = vadd.f32 %v4796, %v4764
        %s4829 = sld [smem:[#allocation4]]
        %vm4830 = vcmp.gt.f32.partialorder %v4797, 0.0
        %vm4831 = vcmp.gt.f32.partialorder %v4798, 0.0
        %vm4832 = vcmp.gt.f32.partialorder %v4799, 0.0
        %vm4833 = vcmp.gt.f32.partialorder %v4800, 0.0
        %vm4834 = vcmp.gt.f32.partialorder %v4801, 0.0
        %vm4835 = vcmp.gt.f32.partialorder %v4802, 0.0
        %vm4836 = vcmp.gt.f32.partialorder %v4803, 0.0
        %vm4837 = vcmp.gt.f32.partialorder %v4804, 0.0
        %vm4838 = vcmp.gt.f32.partialorder %v4805, 0.0
        %vm4839 = vcmp.gt.f32.partialorder %v4806, 0.0
        %vm4840 = vcmp.gt.f32.partialorder %v4807, 0.0
        %vm4841 = vcmp.gt.f32.partialorder %v4808, 0.0
        %vm4842 = vcmp.gt.f32.partialorder %v4809, 0.0
        %vm4843 = vcmp.gt.f32.partialorder %v4810, 0.0
        %vm4844 = vcmp.gt.f32.partialorder %v4811, 0.0
        %vm4845 = vcmp.gt.f32.partialorder %v4812, 0.0
        %vm4846 = vcmp.gt.f32.partialorder %v4813, 0.0
        %vm4847 = vcmp.gt.f32.partialorder %v4814, 0.0
        %vm4848 = vcmp.gt.f32.partialorder %v4815, 0.0
        %vm4849 = vcmp.gt.f32.partialorder %v4816, 0.0
        %vm4850 = vcmp.gt.f32.partialorder %v4817, 0.0
        %vm4851 = vcmp.gt.f32.partialorder %v4818, 0.0
        %vm4852 = vcmp.gt.f32.partialorder %v4819, 0.0
        %vm4853 = vcmp.gt.f32.partialorder %v4820, 0.0
        %vm4854 = vcmp.gt.f32.partialorder %v4821, 0.0
        %vm4855 = vcmp.gt.f32.partialorder %v4822, 0.0
        %vm4856 = vcmp.gt.f32.partialorder %v4823, 0.0
        %vm4857 = vcmp.gt.f32.partialorder %v4824, 0.0
        %vm4858 = vcmp.gt.f32.partialorder %v4825, 0.0
        %vm4859 = vcmp.gt.f32.partialorder %v4826, 0.0
        %vm4860 = vcmp.gt.f32.partialorder %v4827, 0.0
        %vm4861 = vcmp.gt.f32.partialorder %v4828, 0.0
        %v4862 = vstv %s4829
        %v4863 = vmul.f32 %v4862, %v4797
        %v4864 = vmul.f32 %v4862, %v4798
        %v4865 = vmul.f32 %v4862, %v4799
        %v4866 = vmul.f32 %v4862, %v4800
        %v4867 = vmul.f32 %v4862, %v4801
        %v4868 = vmul.f32 %v4862, %v4802
        %v4869 = vmul.f32 %v4862, %v4803
        %v4870 = vmul.f32 %v4862, %v4804
        %v4871 = vmul.f32 %v4862, %v4805
        %v4872 = vmul.f32 %v4862, %v4806
        %v4873 = vmul.f32 %v4862, %v4807
        %v4874 = vmul.f32 %v4862, %v4808
        %v4875 = vmul.f32 %v4862, %v4809
        %v4876 = vmul.f32 %v4862, %v4810
        %v4877 = vmul.f32 %v4862, %v4811
        %v4878 = vmul.f32 %v4862, %v4812
        %v4879 = vmul.f32 %v4862, %v4813
        %v4880 = vmul.f32 %v4862, %v4814
        %v4881 = vmul.f32 %v4862, %v4815
        %v4882 = vmul.f32 %v4862, %v4816
        %v4883 = vmul.f32 %v4862, %v4817
        %v4884 = vmul.f32 %v4862, %v4818
        %v4885 = vmul.f32 %v4862, %v4819
        %v4886 = vmul.f32 %v4862, %v4820
        %v4887 = vmul.f32 %v4862, %v4821
        %v4888 = vmul.f32 %v4862, %v4822
        %v4889 = vmul.f32 %v4862, %v4823
        %v4890 = vmul.f32 %v4862, %v4824
        %v4891 = vmul.f32 %v4862, %v4825
        %v4892 = vmul.f32 %v4862, %v4826
        %v4893 = vmul.f32 %v4862, %v4827
        %v4894 = vmul.f32 %v4862, %v4828
        %v4895 = vsel %vm4830, %v4797, %v4863
        %v4896 = vsel %vm4831, %v4798, %v4864
        %v4897 = vsel %vm4832, %v4799, %v4865
        %v4898 = vsel %vm4833, %v4800, %v4866
        %v4899 = vsel %vm4834, %v4801, %v4867
        %v4900 = vsel %vm4835, %v4802, %v4868
        %v4901 = vsel %vm4836, %v4803, %v4869
        %v4902 = vsel %vm4837, %v4804, %v4870
        %v4903 = vsel %vm4838, %v4805, %v4871
        %v4904 = vsel %vm4839, %v4806, %v4872
        %v4905 = vsel %vm4840, %v4807, %v4873
        %v4906 = vsel %vm4841, %v4808, %v4874
        %v4907 = vsel %vm4842, %v4809, %v4875
        %v4908 = vsel %vm4843, %v4810, %v4876
        %v4909 = vsel %vm4844, %v4811, %v4877
        %v4910 = vsel %vm4845, %v4812, %v4878
        %v4911 = vsel %vm4846, %v4813, %v4879
        %v4912 = vsel %vm4847, %v4814, %v4880
        %v4913 = vsel %vm4848, %v4815, %v4881
        %v4914 = vsel %vm4849, %v4816, %v4882
        %v4915 = vsel %vm4850, %v4817, %v4883
        %v4916 = vsel %vm4851, %v4818, %v4884
        %v4917 = vsel %vm4852, %v4819, %v4885
        %v4918 = vsel %vm4853, %v4820, %v4886
        %v4919 = vsel %vm4854, %v4821, %v4887
        %v4920 = vsel %vm4855, %v4822, %v4888
        %v4921 = vsel %vm4856, %v4823, %v4889
        %v4922 = vsel %vm4857, %v4824, %v4890
        %v4923 = vsel %vm4858, %v4825, %v4891
        %v4924 = vsel %vm4859, %v4826, %v4892
        %v4925 = vsel %vm4860, %v4827, %v4893
        %v4926 = vsel %vm4861, %v4828, %v4894
        %v4927 = vpack.c.bf16 %v4896, %v4895
        %v4928 = vpack.c.bf16 %v4898, %v4897
        %v4929 = vpack.c.bf16 %v4900, %v4899
        %v4930 = vpack.c.bf16 %v4902, %v4901
        %v4931 = vpack.c.bf16 %v4904, %v4903
        %v4932 = vpack.c.bf16 %v4906, %v4905
        %v4933 = vpack.c.bf16 %v4908, %v4907
        %v4934 = vpack.c.bf16 %v4910, %v4909
        %v4935 = vpack.c.bf16 %v4912, %v4911
        %v4936 = vpack.c.bf16 %v4914, %v4913
        %v4937 = vpack.c.bf16 %v4916, %v4915
        %v4938 = vpack.c.bf16 %v4918, %v4917
        %v4939 = vpack.c.bf16 %v4920, %v4919
        %v4940 = vpack.c.bf16 %v4922, %v4921
        %v4941 = vpack.c.bf16 %v4924, %v4923
        %v4942 = vpack.c.bf16 %v4926, %v4925
        %v4959 = vrot.slane %v4927, 4
        %v4960 = vrot.slane %v4928, 4
        %v4961 = vrot.slane %v4929, 4
        %v4962 = vrot.slane %v4930, 4
        %v4963 = vrot.slane %v4931, 4
        %v4964 = vrot.slane %v4932, 4
        %v4965 = vrot.slane %v4933, 4
        %v4966 = vrot.slane %v4934, 4
        %v4967 = vrot.slane %v4935, 4
        %v4968 = vrot.slane %v4936, 4
        %v4969 = vrot.slane %v4937, 4
        %v4970 = vrot.slane %v4938, 4
        %v4971 = vrot.slane %v4939, 4
        %v4972 = vrot.slane %v4940, 4
        %v4973 = vrot.slane %v4941, 4
        %v4974 = vrot.slane %v4942, 4
        %4991 = vst.msk [vmem:[%s542] sm:$0xf0] %vm543, %v4959
        %4992 = vst.msk [vmem:[%s542 + $0x8] sm:$0xf] %vm545, %v4959
        %4993 = vst.msk [vmem:[%s542 + $0x10] sm:$0xf0] %vm543, %v4960
        %4994 = vst.msk [vmem:[%s542 + $0x18] sm:$0xf] %vm545, %v4960
        %4995 = vst.msk [vmem:[%s542 + $0x20] sm:$0xf0] %vm543, %v4961
        %4996 = vst.msk [vmem:[%s542 + $0x28] sm:$0xf] %vm545, %v4961
        %4997 = vst.msk [vmem:[%s542 + $0x30] sm:$0xf0] %vm543, %v4962
        %4998 = vst.msk [vmem:[%s542 + $0x38] sm:$0xf] %vm545, %v4962
        %4999 = vst.msk [vmem:[%s542 + $0x40] sm:$0xf0] %vm543, %v4963
        %5000 = vst.msk [vmem:[%s542 + $0x48] sm:$0xf] %vm545, %v4963
        %5001 = vst.msk [vmem:[%s542 + $0x50] sm:$0xf0] %vm543, %v4964
        %5002 = vst.msk [vmem:[%s542 + $0x58] sm:$0xf] %vm545, %v4964
        %5003 = vst.msk [vmem:[%s542 + $0x60] sm:$0xf0] %vm543, %v4965
        %5004 = vst.msk [vmem:[%s542 + $0x68] sm:$0xf] %vm545, %v4965
        %5005 = vst.msk [vmem:[%s542 + $0x70] sm:$0xf0] %vm543, %v4966
        %5006 = vst.msk [vmem:[%s542 + $0x78] sm:$0xf] %vm545, %v4966
        %5007 = vst.msk [vmem:[%s542 + $0x80] sm:$0xf0] %vm543, %v4967
        %5008 = vst.msk [vmem:[%s542 + $0x88] sm:$0xf] %vm545, %v4967
        %5009 = vst.msk [vmem:[%s542 + $0x90] sm:$0xf0] %vm543, %v4968
        %5010 = vst.msk [vmem:[%s542 + $0x98] sm:$0xf] %vm545, %v4968
        %5011 = vst.msk [vmem:[%s542 + $0xa0] sm:$0xf0] %vm543, %v4969
        %5012 = vst.msk [vmem:[%s542 + $0xa8] sm:$0xf] %vm545, %v4969
        %5013 = vst.msk [vmem:[%s542 + $0xb0] sm:$0xf0] %vm543, %v4970
        %5014 = vst.msk [vmem:[%s542 + $0xb8] sm:$0xf] %vm545, %v4970
        %5015 = vst.msk [vmem:[%s542 + $0xc0] sm:$0xf0] %vm543, %v4971
        %5016 = vst.msk [vmem:[%s542 + $0xc8] sm:$0xf] %vm545, %v4971
        %5017 = vst.msk [vmem:[%s542 + $0xd0] sm:$0xf0] %vm543, %v4972
        %5018 = vst.msk [vmem:[%s542 + $0xd8] sm:$0xf] %vm545, %v4972
        %5019 = vst.msk [vmem:[%s542 + $0xe0] sm:$0xf0] %vm543, %v4973
        %5020 = vst.msk [vmem:[%s542 + $0xe8] sm:$0xf] %vm545, %v4973
        %5021 = vst.msk [vmem:[%s542 + $0xf0] sm:$0xf0] %vm543, %v4974
        %5022 = vst.msk [vmem:[%s542 + $0xf8] sm:$0xf] %vm545, %v4974
        %v5023 = vld [vmem:[#allocation2] sm:$0xf8]
        %v5024 = vld [vmem:[#allocation2 + $0x8] sm:$0xf]
        %v5025 = vld [vmem:[#allocation2 + $0x10] sm:$0xf8]
        %v5026 = vld [vmem:[#allocation2 + $0x18] sm:$0xf]
        %v5027 = vld [vmem:[#allocation2 + $0x20] sm:$0xf8]
        %v5028 = vld [vmem:[#allocation2 + $0x28] sm:$0xf]
        %v5029 = vld [vmem:[#allocation2 + $0x30] sm:$0xf8]
        %v5030 = vld [vmem:[#allocation2 + $0x38] sm:$0xf]
        %v5031 = vld [vmem:[#allocation2 + $0x40] sm:$0xf8]
        %v5032 = vld [vmem:[#allocation2 + $0x48] sm:$0xf]
        %v5033 = vld [vmem:[#allocation2 + $0x50] sm:$0xf8]
        %v5034 = vld [vmem:[#allocation2 + $0x58] sm:$0xf]
        %v5035 = vld [vmem:[#allocation2 + $0x60] sm:$0xf8]
        %v5036 = vld [vmem:[#allocation2 + $0x68] sm:$0xf]
        %v5037 = vld [vmem:[#allocation2 + $0x70] sm:$0xf8]
        %v5038 = vld [vmem:[#allocation2 + $0x78] sm:$0xf]
        %v5039 = vld [vmem:[#allocation2 + $0x80] sm:$0xf8]
        %v5040 = vld [vmem:[#allocation2 + $0x88] sm:$0xf]
        %v5041 = vld [vmem:[#allocation2 + $0x90] sm:$0xf8]
        %v5042 = vld [vmem:[#allocation2 + $0x98] sm:$0xf]
        %v5043 = vld [vmem:[#allocation2 + $0xa0] sm:$0xf8]
        %v5044 = vld [vmem:[#allocation2 + $0xa8] sm:$0xf]
        %v5045 = vld [vmem:[#allocation2 + $0xb0] sm:$0xf8]
        %v5046 = vld [vmem:[#allocation2 + $0xb8] sm:$0xf]
        %v5047 = vld [vmem:[#allocation2 + $0xc0] sm:$0xf8]
        %v5048 = vld [vmem:[#allocation2 + $0xc8] sm:$0xf]
        %v5049 = vld [vmem:[#allocation2 + $0xd0] sm:$0xf8]
        %v5050 = vld [vmem:[#allocation2 + $0xd8] sm:$0xf]
        %v5051 = vld [vmem:[#allocation2 + $0xe0] sm:$0xf8]
        %v5052 = vld [vmem:[#allocation2 + $0xe8] sm:$0xf]
        %v5053 = vld [vmem:[#allocation2 + $0xf0] sm:$0xf8]
        %v5054 = vld [vmem:[#allocation2 + $0xf8] sm:$0xf]
        %v5056 = vshrl.u32 %v5023, 16
        %v5058 = vrot.slane %v5056, 3
        %v5059 = vshll.u32 %v5023, 16
        %v5061 = vrot.slane %v5059, 4
        %v5062 = vor.u32 %v5058, %v5061
        %v5064 = vshrl.u32 %v5024, 16
        %v5066 = vrot.slane %v5064, 3
        %v5067 = vshll.u32 %v5024, 16
        %v5069 = vrot.slane %v5067, 4
        %v5070 = vor.u32 %v5066, %v5069
        %v5071 = vsel %vm422, %v5062, %v5070
        %v5073 = vshrl.u32 %v5025, 16
        %v5075 = vrot.slane %v5073, 3
        %v5076 = vshll.u32 %v5025, 16
        %v5078 = vrot.slane %v5076, 4
        %v5079 = vor.u32 %v5075, %v5078
        %v5081 = vshrl.u32 %v5026, 16
        %v5083 = vrot.slane %v5081, 3
        %v5084 = vshll.u32 %v5026, 16
        %v5086 = vrot.slane %v5084, 4
        %v5087 = vor.u32 %v5083, %v5086
        %v5088 = vsel %vm422, %v5079, %v5087
        %v5090 = vshrl.u32 %v5027, 16
        %v5092 = vrot.slane %v5090, 3
        %v5093 = vshll.u32 %v5027, 16
        %v5095 = vrot.slane %v5093, 4
        %v5096 = vor.u32 %v5092, %v5095
        %v5098 = vshrl.u32 %v5028, 16
        %v5100 = vrot.slane %v5098, 3
        %v5101 = vshll.u32 %v5028, 16
        %v5103 = vrot.slane %v5101, 4
        %v5104 = vor.u32 %v5100, %v5103
        %v5105 = vsel %vm422, %v5096, %v5104
        %v5107 = vshrl.u32 %v5029, 16
        %v5109 = vrot.slane %v5107, 3
        %v5110 = vshll.u32 %v5029, 16
        %v5112 = vrot.slane %v5110, 4
        %v5113 = vor.u32 %v5109, %v5112
        %v5115 = vshrl.u32 %v5030, 16
        %v5117 = vrot.slane %v5115, 3
        %v5118 = vshll.u32 %v5030, 16
        %v5120 = vrot.slane %v5118, 4
        %v5121 = vor.u32 %v5117, %v5120
        %v5122 = vsel %vm422, %v5113, %v5121
        %v5124 = vshrl.u32 %v5031, 16
        %v5126 = vrot.slane %v5124, 3
        %v5127 = vshll.u32 %v5031, 16
        %v5129 = vrot.slane %v5127, 4
        %v5130 = vor.u32 %v5126, %v5129
        %v5132 = vshrl.u32 %v5032, 16
        %v5134 = vrot.slane %v5132, 3
        %v5135 = vshll.u32 %v5032, 16
        %v5137 = vrot.slane %v5135, 4
        %v5138 = vor.u32 %v5134, %v5137
        %v5139 = vsel %vm422, %v5130, %v5138
        %v5141 = vshrl.u32 %v5033, 16
        %v5143 = vrot.slane %v5141, 3
        %v5144 = vshll.u32 %v5033, 16
        %v5146 = vrot.slane %v5144, 4
        %v5147 = vor.u32 %v5143, %v5146
        %v5149 = vshrl.u32 %v5034, 16
        %v5151 = vrot.slane %v5149, 3
        %v5152 = vshll.u32 %v5034, 16
        %v5154 = vrot.slane %v5152, 4
        %v5155 = vor.u32 %v5151, %v5154
        %v5156 = vsel %vm422, %v5147, %v5155
        %v5158 = vshrl.u32 %v5035, 16
        %v5160 = vrot.slane %v5158, 3
        %v5161 = vshll.u32 %v5035, 16
        %v5163 = vrot.slane %v5161, 4
        %v5164 = vor.u32 %v5160, %v5163
        %v5166 = vshrl.u32 %v5036, 16
        %v5168 = vrot.slane %v5166, 3
        %v5169 = vshll.u32 %v5036, 16
        %v5171 = vrot.slane %v5169, 4
        %v5172 = vor.u32 %v5168, %v5171
        %v5173 = vsel %vm422, %v5164, %v5172
        %v5175 = vshrl.u32 %v5037, 16
        %v5177 = vrot.slane %v5175, 3
        %v5178 = vshll.u32 %v5037, 16
        %v5180 = vrot.slane %v5178, 4
        %v5181 = vor.u32 %v5177, %v5180
        %v5183 = vshrl.u32 %v5038, 16
        %v5185 = vrot.slane %v5183, 3
        %v5186 = vshll.u32 %v5038, 16
        %v5188 = vrot.slane %v5186, 4
        %v5189 = vor.u32 %v5185, %v5188
        %v5190 = vsel %vm422, %v5181, %v5189
        %v5192 = vshrl.u32 %v5039, 16
        %v5194 = vrot.slane %v5192, 3
        %v5195 = vshll.u32 %v5039, 16
        %v5197 = vrot.slane %v5195, 4
        %v5198 = vor.u32 %v5194, %v5197
        %v5200 = vshrl.u32 %v5040, 16
        %v5202 = vrot.slane %v5200, 3
        %v5203 = vshll.u32 %v5040, 16
        %v5205 = vrot.slane %v5203, 4
        %v5206 = vor.u32 %v5202, %v5205
        %v5207 = vsel %vm422, %v5198, %v5206
        %v5209 = vshrl.u32 %v5041, 16
        %v5211 = vrot.slane %v5209, 3
        %v5212 = vshll.u32 %v5041, 16
        %v5214 = vrot.slane %v5212, 4
        %v5215 = vor.u32 %v5211, %v5214
        %v5217 = vshrl.u32 %v5042, 16
        %v5219 = vrot.slane %v5217, 3
        %v5220 = vshll.u32 %v5042, 16
        %v5222 = vrot.slane %v5220, 4
        %v5223 = vor.u32 %v5219, %v5222
        %v5224 = vsel %vm422, %v5215, %v5223
        %v5226 = vshrl.u32 %v5043, 16
        %v5228 = vrot.slane %v5226, 3
        %v5229 = vshll.u32 %v5043, 16
        %v5231 = vrot.slane %v5229, 4
        %v5232 = vor.u32 %v5228, %v5231
        %v5234 = vshrl.u32 %v5044, 16
        %v5236 = vrot.slane %v5234, 3
        %v5237 = vshll.u32 %v5044, 16
        %v5239 = vrot.slane %v5237, 4
        %v5240 = vor.u32 %v5236, %v5239
        %v5241 = vsel %vm422, %v5232, %v5240
        %v5243 = vshrl.u32 %v5045, 16
        %v5245 = vrot.slane %v5243, 3
        %v5246 = vshll.u32 %v5045, 16
        %v5248 = vrot.slane %v5246, 4
        %v5249 = vor.u32 %v5245, %v5248
        %v5251 = vshrl.u32 %v5046, 16
        %v5253 = vrot.slane %v5251, 3
        %v5254 = vshll.u32 %v5046, 16
        %v5256 = vrot.slane %v5254, 4
        %v5257 = vor.u32 %v5253, %v5256
        %v5258 = vsel %vm422, %v5249, %v5257
        %v5260 = vshrl.u32 %v5047, 16
        %v5262 = vrot.slane %v5260, 3
        %v5263 = vshll.u32 %v5047, 16
        %v5265 = vrot.slane %v5263, 4
        %v5266 = vor.u32 %v5262, %v5265
        %v5268 = vshrl.u32 %v5048, 16
        %v5270 = vrot.slane %v5268, 3
        %v5271 = vshll.u32 %v5048, 16
        %v5273 = vrot.slane %v5271, 4
        %v5274 = vor.u32 %v5270, %v5273
        %v5275 = vsel %vm422, %v5266, %v5274
        %v5277 = vshrl.u32 %v5049, 16
        %v5279 = vrot.slane %v5277, 3
        %v5280 = vshll.u32 %v5049, 16
        %v5282 = vrot.slane %v5280, 4
        %v5283 = vor.u32 %v5279, %v5282
        %v5285 = vshrl.u32 %v5050, 16
        %v5287 = vrot.slane %v5285, 3
        %v5288 = vshll.u32 %v5050, 16
        %v5290 = vrot.slane %v5288, 4
        %v5291 = vor.u32 %v5287, %v5290
        %v5292 = vsel %vm422, %v5283, %v5291
        %v5294 = vshrl.u32 %v5051, 16
        %v5296 = vrot.slane %v5294, 3
        %v5297 = vshll.u32 %v5051, 16
        %v5299 = vrot.slane %v5297, 4
        %v5300 = vor.u32 %v5296, %v5299
        %v5302 = vshrl.u32 %v5052, 16
        %v5304 = vrot.slane %v5302, 3
        %v5305 = vshll.u32 %v5052, 16
        %v5307 = vrot.slane %v5305, 4
        %v5308 = vor.u32 %v5304, %v5307
        %v5309 = vsel %vm422, %v5300, %v5308
        %v5311 = vshrl.u32 %v5053, 16
        %v5313 = vrot.slane %v5311, 3
        %v5314 = vshll.u32 %v5053, 16
        %v5316 = vrot.slane %v5314, 4
        %v5317 = vor.u32 %v5313, %v5316
        %v5319 = vshrl.u32 %v5054, 16
        %v5321 = vrot.slane %v5319, 3
        %v5322 = vshll.u32 %v5054, 16
        %v5324 = vrot.slane %v5322, 4
        %v5325 = vor.u32 %v5321, %v5324
        %v5326 = vsel %vm422, %v5317, %v5325
        %v5327 = vld [vmem:[%s3] sm:$0xf]
        %v5328 = vld [vmem:[%s3 + $0x4] sm:$0xf]
        %v5329 = vld [vmem:[%s3 + $0x8] sm:$0xf]
        %v5330 = vld [vmem:[%s3 + $0xc] sm:$0xf]
        %v5331 = vld [vmem:[#allocation2] sm:$0xf0]
        %v5332 = vld [vmem:[#allocation2 + $0x10] sm:$0xf0]
        %v5333 = vld [vmem:[#allocation2 + $0x20] sm:$0xf0]
        %v5334 = vld [vmem:[#allocation2 + $0x30] sm:$0xf0]
        %v5335 = vld [vmem:[#allocation2 + $0x40] sm:$0xf0]
        %v5336 = vld [vmem:[#allocation2 + $0x50] sm:$0xf0]
        %v5337 = vld [vmem:[#allocation2 + $0x60] sm:$0xf0]
        %v5338 = vld [vmem:[#allocation2 + $0x70] sm:$0xf0]
        %v5339 = vld [vmem:[#allocation2 + $0x80] sm:$0xf0]
        %v5340 = vld [vmem:[#allocation2 + $0x90] sm:$0xf0]
        %v5341 = vld [vmem:[#allocation2 + $0xa0] sm:$0xf0]
        %v5342 = vld [vmem:[#allocation2 + $0xb0] sm:$0xf0]
        %v5343 = vld [vmem:[#allocation2 + $0xc0] sm:$0xf0]
        %v5344 = vld [vmem:[#allocation2 + $0xd0] sm:$0xf0]
        %v5345 = vld [vmem:[#allocation2 + $0xe0] sm:$0xf0]
        %v5346 = vld [vmem:[#allocation2 + $0xf0] sm:$0xf0]
        %v5379 = vrot.slane %v5331, 4
        %v5380 = vrot.slane %v5024, 4
        %v5381 = vsel %vm933, %v5379, %v5380
        %v5382 = vrot.slane %v5332, 4
        %v5383 = vrot.slane %v5026, 4
        %v5384 = vsel %vm933, %v5382, %v5383
        %v5385 = vrot.slane %v5333, 4
        %v5386 = vrot.slane %v5028, 4
        %v5387 = vsel %vm933, %v5385, %v5386
        %v5388 = vrot.slane %v5334, 4
        %v5389 = vrot.slane %v5030, 4
        %v5390 = vsel %vm933, %v5388, %v5389
        %v5391 = vrot.slane %v5335, 4
        %v5392 = vrot.slane %v5032, 4
        %v5393 = vsel %vm933, %v5391, %v5392
        %v5394 = vrot.slane %v5336, 4
        %v5395 = vrot.slane %v5034, 4
        %v5396 = vsel %vm933, %v5394, %v5395
        %v5397 = vrot.slane %v5337, 4
        %v5398 = vrot.slane %v5036, 4
        %v5399 = vsel %vm933, %v5397, %v5398
        %v5400 = vrot.slane %v5338, 4
        %v5401 = vrot.slane %v5038, 4
        %v5402 = vsel %vm933, %v5400, %v5401
        %v5403 = vrot.slane %v5339, 4
        %v5404 = vrot.slane %v5040, 4
        %v5405 = vsel %vm933, %v5403, %v5404
        %v5406 = vrot.slane %v5340, 4
        %v5407 = vrot.slane %v5042, 4
        %v5408 = vsel %vm933, %v5406, %v5407
        %v5409 = vrot.slane %v5341, 4
        %v5410 = vrot.slane %v5044, 4
        %v5411 = vsel %vm933, %v5409, %v5410
        %v5412 = vrot.slane %v5342, 4
        %v5413 = vrot.slane %v5046, 4
        %v5414 = vsel %vm933, %v5412, %v5413
        %v5415 = vrot.slane %v5343, 4
        %v5416 = vrot.slane %v5048, 4
        %v5417 = vsel %vm933, %v5415, %v5416
        %v5418 = vrot.slane %v5344, 4
        %v5419 = vrot.slane %v5050, 4
        %v5420 = vsel %vm933, %v5418, %v5419
        %v5421 = vrot.slane %v5345, 4
        %v5422 = vrot.slane %v5052, 4
        %v5423 = vsel %vm933, %v5421, %v5422
        %v5424 = vrot.slane %v5346, 4
        %v5425 = vrot.slane %v5054, 4
        %v5426 = vsel %vm933, %v5424, %v5425
        %v5427 = vld [vmem:[%s3 + $0x10] sm:$0xf]
        %v5428 = vld [vmem:[%s3 + $0x14] sm:$0xf]
        %v5429 = vld [vmem:[%s3 + $0x18] sm:$0xf]
        %v5430 = vld [vmem:[%s3 + $0x1c] sm:$0xf]
        %v5435 = vunpack.c.l.b16 %v5427
        %v5436 = vunpack.c.l.b16 %v5428
        %v5437 = vunpack.c.l.b16 %v5429
        %v5438 = vunpack.c.l.b16 %v5430
        %v5439 = vpack.c.b16 %v5436, %v5435
        %v5440 = vpack.c.b16 %v5438, %v5437
        %v5444 = vsel %vm358, %v5381, 0
        %v5447 = vsel %vm358, %v5384, 0
        %v5450 = vsel %vm358, %v5387, 0
        %v5453 = vsel %vm358, %v5390, 0
        %v5456 = vsel %vm358, %v5393, 0
        %v5459 = vsel %vm358, %v5396, 0
        %v5462 = vsel %vm358, %v5399, 0
        %v5465 = vsel %vm358, %v5402, 0
        %v5468 = vsel %vm358, %v5405, 0
        %v5471 = vsel %vm358, %v5408, 0
        %v5474 = vsel %vm358, %v5411, 0
        %v5477 = vsel %vm358, %v5414, 0
        %v5480 = vsel %vm358, %v5417, 0
        %v5483 = vsel %vm358, %v5420, 0
        %v5486 = vsel %vm358, %v5423, 0
        %v5489 = vsel %vm358, %v5426, 0
        %5491 = vmatprep.subr.bf16.mxu0 0
        %5492 = vmatpush1.bf16.msra.mxu0 %v5439
        %5493 = vmatprep.subr.bf16.mxu0 0
        %5494 = vmatpush1.bf16.msra.mxu0 %v5440
        %5495 = vmatprep.subr.bf16.mxu0 0
        %5496 = vmatpush1.bf16.msra.mxu0 0
        %5497 = vmatprep.subr.bf16.mxu0 0
        %5498 = vmatpush1.bf16.msra.mxu0 0
        %5499 = vmatprep.subr.bf16.mxu0 0
        %5500 = vmatpush1.bf16.msra.mxu0 0
        %5501 = vmatprep.subr.bf16.mxu0 0
        %5502 = vmatpush1.bf16.msra.mxu0 0
        %5503 = vmatprep.subr.bf16.mxu0 0
        %5504 = vmatpush1.bf16.msra.mxu0 0
        %5505 = vmatprep.subr.bf16.mxu0 0
        %5506 = vmatpush1.bf16.msra.mxu0 0
        %5507 = vmatprep.subr.bf16.mxu0 0
        %5508 = vmatpush1.bf16.msra.mxu0 0
        %5509 = vmatprep.subr.bf16.mxu0 0
        %5510 = vmatpush1.bf16.msra.mxu0 0
        %5511 = vmatprep.subr.bf16.mxu0 0
        %5512 = vmatpush1.bf16.msra.mxu0 0
        %5513 = vmatprep.subr.bf16.mxu0 0
        %5514 = vmatpush1.bf16.msra.mxu0 0
        %5515 = vmatprep.subr.bf16.mxu0 0
        %5516 = vmatpush1.bf16.msra.mxu0 0
        %5517 = vmatprep.subr.bf16.mxu0 0
        %5518 = vmatpush1.bf16.msra.mxu0 0
        %5519 = vmatprep.subr.bf16.mxu0 0
        %5520 = vmatpush1.bf16.msra.mxu0 0
        %5521 = vmatprep.subr.bf16.mxu0 0
        %5522 = vmatpush1.bf16.msra.mxu0 0
        %5523 = vmatprep.mubr.bf16.mxu0 0
        %5524 = vmatmul.mubr.bf16.gmra.mrb[0].mxu0 %v5444
        %v5525 = vpop.f32.mrb[0].mxu0
        %v5526 = vadd.f32 0.0, %v5525
        %v5527 = vpop.f32.mrb[0].mxu0
        %v5528 = vpop.f32.mrb[0].mxu0
        %v5529 = vadd.f32 0.0, %v5528
        %v5530 = vpop.f32.mrb[0].mxu0
        %5531 = vmatprep.mubr.bf16.mxu0 0
        %5532 = vmatmul.mubr.bf16.gmra.mrb[0].mxu0 %v5447
        %v5533 = vpop.f32.mrb[0].mxu0
        %v5534 = vadd.f32 0.0, %v5533
        %v5535 = vpop.f32.mrb[0].mxu0
        %v5536 = vpop.f32.mrb[0].mxu0
        %v5537 = vadd.f32 0.0, %v5536
        %v5538 = vpop.f32.mrb[0].mxu0
        %5539 = vmatprep.mubr.bf16.mxu0 0
        %5540 = vmatmul.mubr.bf16.gmra.mrb[0].mxu0 %v5450
        %v5541 = vpop.f32.mrb[0].mxu0
        %v5542 = vadd.f32 0.0, %v5541
        %v5543 = vpop.f32.mrb[0].mxu0
        %v5544 = vpop.f32.mrb[0].mxu0
        %v5545 = vadd.f32 0.0, %v5544
        %v5546 = vpop.f32.mrb[0].mxu0
        %5547 = vmatprep.mubr.bf16.mxu0 0
        %5548 = vmatmul.mubr.bf16.gmra.mrb[0].mxu0 %v5453
        %v5549 = vpop.f32.mrb[0].mxu0
        %v5550 = vadd.f32 0.0, %v5549
        %v5551 = vpop.f32.mrb[0].mxu0
        %v5552 = vpop.f32.mrb[0].mxu0
        %v5553 = vadd.f32 0.0, %v5552
        %v5554 = vpop.f32.mrb[0].mxu0
        %5555 = vmatprep.mubr.bf16.mxu0 0
        %5556 = vmatmul.mubr.bf16.gmra.mrb[0].mxu0 %v5456
        %v5557 = vpop.f32.mrb[0].mxu0
        %v5558 = vadd.f32 0.0, %v5557
        %v5559 = vpop.f32.mrb[0].mxu0
        %v5560 = vpop.f32.mrb[0].mxu0
        %v5561 = vadd.f32 0.0, %v5560
        %v5562 = vpop.f32.mrb[0].mxu0
        %5563 = vmatprep.mubr.bf16.mxu0 0
        %5564 = vmatmul.mubr.bf16.gmra.mrb[0].mxu0 %v5459
        %v5565 = vpop.f32.mrb[0].mxu0
        %v5566 = vadd.f32 0.0, %v5565
        %v5567 = vpop.f32.mrb[0].mxu0
        %v5568 = vpop.f32.mrb[0].mxu0
        %v5569 = vadd.f32 0.0, %v5568
        %v5570 = vpop.f32.mrb[0].mxu0
        %5571 = vmatprep.mubr.bf16.mxu0 0
        %5572 = vmatmul.mubr.bf16.gmra.mrb[0].mxu0 %v5462
        %v5573 = vpop.f32.mrb[0].mxu0
        %v5574 = vadd.f32 0.0, %v5573
        %v5575 = vpop.f32.mrb[0].mxu0
        %v5576 = vpop.f32.mrb[0].mxu0
        %v5577 = vadd.f32 0.0, %v5576
        %v5578 = vpop.f32.mrb[0].mxu0
        %5579 = vmatprep.mubr.bf16.mxu0 0
        %5580 = vmatmul.mubr.bf16.gmra.mrb[0].mxu0 %v5465
        %v5581 = vpop.f32.mrb[0].mxu0
        %v5582 = vadd.f32 0.0, %v5581
        %v5583 = vpop.f32.mrb[0].mxu0
        %v5584 = vpop.f32.mrb[0].mxu0
        %v5585 = vadd.f32 0.0, %v5584
        %v5586 = vpop.f32.mrb[0].mxu0
        %5587 = vmatprep.mubr.bf16.mxu0 0
        %5588 = vmatmul.mubr.bf16.gmra.mrb[0].mxu0 %v5468
        %v5589 = vpop.f32.mrb[0].mxu0
        %v5590 = vadd.f32 0.0, %v5589
        %v5591 = vpop.f32.mrb[0].mxu0
        %v5592 = vpop.f32.mrb[0].mxu0
        %v5593 = vadd.f32 0.0, %v5592
        %v5594 = vpop.f32.mrb[0].mxu0
        %5595 = vmatprep.mubr.bf16.mxu0 0
        %5596 = vmatmul.mubr.bf16.gmra.mrb[0].mxu0 %v5471
        %v5597 = vpop.f32.mrb[0].mxu0
        %v5598 = vadd.f32 0.0, %v5597
        %v5599 = vpop.f32.mrb[0].mxu0
        %v5600 = vpop.f32.mrb[0].mxu0
        %v5601 = vadd.f32 0.0, %v5600
        %v5602 = vpop.f32.mrb[0].mxu0
        %5603 = vmatprep.mubr.bf16.mxu0 0
        %5604 = vmatmul.mubr.bf16.gmra.mrb[0].mxu0 %v5474
        %v5605 = vpop.f32.mrb[0].mxu0
        %v5606 = vadd.f32 0.0, %v5605
        %v5607 = vpop.f32.mrb[0].mxu0
        %v5608 = vpop.f32.mrb[0].mxu0
        %v5609 = vadd.f32 0.0, %v5608
        %v5610 = vpop.f32.mrb[0].mxu0
        %5611 = vmatprep.mubr.bf16.mxu0 0
        %5612 = vmatmul.mubr.bf16.gmra.mrb[0].mxu0 %v5477
        %v5613 = vpop.f32.mrb[0].mxu0
        %v5614 = vadd.f32 0.0, %v5613
        %v5615 = vpop.f32.mrb[0].mxu0
        %v5616 = vpop.f32.mrb[0].mxu0
        %v5617 = vadd.f32 0.0, %v5616
        %v5618 = vpop.f32.mrb[0].mxu0
        %5619 = vmatprep.mubr.bf16.mxu0 0
        %5620 = vmatmul.mubr.bf16.gmra.mrb[0].mxu0 %v5480
        %v5621 = vpop.f32.mrb[0].mxu0
        %v5622 = vadd.f32 0.0, %v5621
        %v5623 = vpop.f32.mrb[0].mxu0
        %v5624 = vpop.f32.mrb[0].mxu0
        %v5625 = vadd.f32 0.0, %v5624
        %v5626 = vpop.f32.mrb[0].mxu0
        %5627 = vmatprep.mubr.bf16.mxu0 0
        %5628 = vmatmul.mubr.bf16.gmra.mrb[0].mxu0 %v5483
        %v5629 = vpop.f32.mrb[0].mxu0
        %v5630 = vadd.f32 0.0, %v5629
        %v5631 = vpop.f32.mrb[0].mxu0
        %v5632 = vpop.f32.mrb[0].mxu0
        %v5633 = vadd.f32 0.0, %v5632
        %v5634 = vpop.f32.mrb[0].mxu0
        %5635 = vmatprep.mubr.bf16.mxu0 0
        %5636 = vmatmul.mubr.bf16.gmra.mrb[0].mxu0 %v5486
        %v5637 = vpop.f32.mrb[0].mxu0
        %v5638 = vadd.f32 0.0, %v5637
        %v5639 = vpop.f32.mrb[0].mxu0
        %v5640 = vpop.f32.mrb[0].mxu0
        %v5641 = vadd.f32 0.0, %v5640
        %v5642 = vpop.f32.mrb[0].mxu0
        %5643 = vmatprep.mubr.bf16.mxu0 0
        %5644 = vmatmul.mubr.bf16.gmra.mrb[0].mxu0 %v5489
        %v5645 = vpop.f32.mrb[0].mxu0
        %v5646 = vadd.f32 0.0, %v5645
        %v5647 = vpop.f32.mrb[0].mxu0
        %v5648 = vpop.f32.mrb[0].mxu0
        %v5649 = vadd.f32 0.0, %v5648
        %v5650 = vpop.f32.mrb[0].mxu0
        %5651 = vdwg.mxu0
        %v5656 = vunpack.c.l.b16 %v5327
        %v5657 = vunpack.c.l.b16 %v5328
        %v5658 = vunpack.c.l.b16 %v5329
        %v5659 = vunpack.c.l.b16 %v5330
        %v5660 = vpack.c.b16 %v5657, %v5656
        %v5661 = vpack.c.b16 %v5659, %v5658
        %v5665 = vsel %vm358, %v5071, 0
        %v5668 = vsel %vm358, %v5088, 0
        %v5671 = vsel %vm358, %v5105, 0
        %v5674 = vsel %vm358, %v5122, 0
        %v5677 = vsel %vm358, %v5139, 0
        %v5680 = vsel %vm358, %v5156, 0
        %v5683 = vsel %vm358, %v5173, 0
        %v5686 = vsel %vm358, %v5190, 0
        %v5689 = vsel %vm358, %v5207, 0
        %v5692 = vsel %vm358, %v5224, 0
        %v5695 = vsel %vm358, %v5241, 0
        %v5698 = vsel %vm358, %v5258, 0
        %v5701 = vsel %vm358, %v5275, 0
        %v5704 = vsel %vm358, %v5292, 0
        %v5707 = vsel %vm358, %v5309, 0
        %v5710 = vsel %vm358, %v5326, 0
        %5712 = vmatprep.subr.bf16.mxu0 0
        %5713 = vmatpush1.bf16.msra.mxu0 %v5660
        %5714 = vmatprep.subr.bf16.mxu0 0
        %5715 = vmatpush1.bf16.msra.mxu0 %v5661
        %5716 = vmatprep.subr.bf16.mxu0 0
        %5717 = vmatpush1.bf16.msra.mxu0 0
        %5718 = vmatprep.subr.bf16.mxu0 0
        %5719 = vmatpush1.bf16.msra.mxu0 0
        %5720 = vmatprep.subr.bf16.mxu0 0
        %5721 = vmatpush1.bf16.msra.mxu0 0
        %5722 = vmatprep.subr.bf16.mxu0 0
        %5723 = vmatpush1.bf16.msra.mxu0 0
        %5724 = vmatprep.subr.bf16.mxu0 0
        %5725 = vmatpush1.bf16.msra.mxu0 0
        %5726 = vmatprep.subr.bf16.mxu0 0
        %5727 = vmatpush1.bf16.msra.mxu0 0
        %5728 = vmatprep.subr.bf16.mxu0 0
        %5729 = vmatpush1.bf16.msra.mxu0 0
        %5730 = vmatprep.subr.bf16.mxu0 0
        %5731 = vmatpush1.bf16.msra.mxu0 0
        %5732 = vmatprep.subr.bf16.mxu0 0
        %5733 = vmatpush1.bf16.msra.mxu0 0
        %5734 = vmatprep.subr.bf16.mxu0 0
        %5735 = vmatpush1.bf16.msra.mxu0 0
        %5736 = vmatprep.subr.bf16.mxu0 0
        %5737 = vmatpush1.bf16.msra.mxu0 0
        %5738 = vmatprep.subr.bf16.mxu0 0
        %5739 = vmatpush1.bf16.msra.mxu0 0
        %5740 = vmatprep.subr.bf16.mxu0 0
        %5741 = vmatpush1.bf16.msra.mxu0 0
        %5742 = vmatprep.subr.bf16.mxu0 0
        %5743 = vmatpush1.bf16.msra.mxu0 0
        %5744 = vmatprep.mubr.bf16.mxu0 0
        %5745 = vmatmul.mubr.bf16.gmra.mrb[0].mxu0 %v5665
        %v5746 = vpop.f32.mrb[0].mxu0
        %v5747 = vadd.f32 %v5526, %v5746
        %v5748 = vpop.f32.mrb[0].mxu0
        %v5749 = vpop.f32.mrb[0].mxu0
        %v5750 = vadd.f32 %v5529, %v5749
        %v5751 = vpop.f32.mrb[0].mxu0
        %5752 = vmatprep.mubr.bf16.mxu0 0
        %5753 = vmatmul.mubr.bf16.gmra.mrb[0].mxu0 %v5668
        %v5754 = vpop.f32.mrb[0].mxu0
        %v5755 = vadd.f32 %v5534, %v5754
        %v5756 = vpop.f32.mrb[0].mxu0
        %v5757 = vpop.f32.mrb[0].mxu0
        %v5758 = vadd.f32 %v5537, %v5757
        %v5759 = vpop.f32.mrb[0].mxu0
        %5760 = vmatprep.mubr.bf16.mxu0 0
        %5761 = vmatmul.mubr.bf16.gmra.mrb[0].mxu0 %v5671
        %v5762 = vpop.f32.mrb[0].mxu0
        %v5763 = vadd.f32 %v5542, %v5762
        %v5764 = vpop.f32.mrb[0].mxu0
        %v5765 = vpop.f32.mrb[0].mxu0
        %v5766 = vadd.f32 %v5545, %v5765
        %v5767 = vpop.f32.mrb[0].mxu0
        %5768 = vmatprep.mubr.bf16.mxu0 0
        %5769 = vmatmul.mubr.bf16.gmra.mrb[0].mxu0 %v5674
        %v5770 = vpop.f32.mrb[0].mxu0
        %v5771 = vadd.f32 %v5550, %v5770
        %v5772 = vpop.f32.mrb[0].mxu0
        %v5773 = vpop.f32.mrb[0].mxu0
        %v5774 = vadd.f32 %v5553, %v5773
        %v5775 = vpop.f32.mrb[0].mxu0
        %5776 = vmatprep.mubr.bf16.mxu0 0
        %5777 = vmatmul.mubr.bf16.gmra.mrb[0].mxu0 %v5677
        %v5778 = vpop.f32.mrb[0].mxu0
        %v5779 = vadd.f32 %v5558, %v5778
        %v5780 = vpop.f32.mrb[0].mxu0
        %v5781 = vpop.f32.mrb[0].mxu0
        %v5782 = vadd.f32 %v5561, %v5781
        %v5783 = vpop.f32.mrb[0].mxu0
        %5784 = vmatprep.mubr.bf16.mxu0 0
        %5785 = vmatmul.mubr.bf16.gmra.mrb[0].mxu0 %v5680
        %v5786 = vpop.f32.mrb[0].mxu0
        %v5787 = vadd.f32 %v5566, %v5786
        %v5788 = vpop.f32.mrb[0].mxu0
        %v5789 = vpop.f32.mrb[0].mxu0
        %v5790 = vadd.f32 %v5569, %v5789
        %v5791 = vpop.f32.mrb[0].mxu0
        %5792 = vmatprep.mubr.bf16.mxu0 0
        %5793 = vmatmul.mubr.bf16.gmra.mrb[0].mxu0 %v5683
        %v5794 = vpop.f32.mrb[0].mxu0
        %v5795 = vadd.f32 %v5574, %v5794
        %v5796 = vpop.f32.mrb[0].mxu0
        %v5797 = vpop.f32.mrb[0].mxu0
        %v5798 = vadd.f32 %v5577, %v5797
        %v5799 = vpop.f32.mrb[0].mxu0
        %5800 = vmatprep.mubr.bf16.mxu0 0
        %5801 = vmatmul.mubr.bf16.gmra.mrb[0].mxu0 %v5686
        %v5802 = vpop.f32.mrb[0].mxu0
        %v5803 = vadd.f32 %v5582, %v5802
        %v5804 = vpop.f32.mrb[0].mxu0
        %v5805 = vpop.f32.mrb[0].mxu0
        %v5806 = vadd.f32 %v5585, %v5805
        %v5807 = vpop.f32.mrb[0].mxu0
        %5808 = vmatprep.mubr.bf16.mxu0 0
        %5809 = vmatmul.mubr.bf16.gmra.mrb[0].mxu0 %v5689
        %v5810 = vpop.f32.mrb[0].mxu0
        %v5811 = vadd.f32 %v5590, %v5810
        %v5812 = vpop.f32.mrb[0].mxu0
        %v5813 = vpop.f32.mrb[0].mxu0
        %v5814 = vadd.f32 %v5593, %v5813
        %v5815 = vpop.f32.mrb[0].mxu0
        %5816 = vmatprep.mubr.bf16.mxu0 0
        %5817 = vmatmul.mubr.bf16.gmra.mrb[0].mxu0 %v5692
        %v5818 = vpop.f32.mrb[0].mxu0
        %v5819 = vadd.f32 %v5598, %v5818
        %v5820 = vpop.f32.mrb[0].mxu0
        %v5821 = vpop.f32.mrb[0].mxu0
        %v5822 = vadd.f32 %v5601, %v5821
        %v5823 = vpop.f32.mrb[0].mxu0
        %5824 = vmatprep.mubr.bf16.mxu0 0
        %5825 = vmatmul.mubr.bf16.gmra.mrb[0].mxu0 %v5695
        %v5826 = vpop.f32.mrb[0].mxu0
        %v5827 = vadd.f32 %v5606, %v5826
        %v5828 = vpop.f32.mrb[0].mxu0
        %v5829 = vpop.f32.mrb[0].mxu0
        %v5830 = vadd.f32 %v5609, %v5829
        %v5831 = vpop.f32.mrb[0].mxu0
        %5832 = vmatprep.mubr.bf16.mxu0 0
        %5833 = vmatmul.mubr.bf16.gmra.mrb[0].mxu0 %v5698
        %v5834 = vpop.f32.mrb[0].mxu0
        %v5835 = vadd.f32 %v5614, %v5834
        %v5836 = vpop.f32.mrb[0].mxu0
        %v5837 = vpop.f32.mrb[0].mxu0
        %v5838 = vadd.f32 %v5617, %v5837
        %v5839 = vpop.f32.mrb[0].mxu0
        %5840 = vmatprep.mubr.bf16.mxu0 0
        %5841 = vmatmul.mubr.bf16.gmra.mrb[0].mxu0 %v5701
        %v5842 = vpop.f32.mrb[0].mxu0
        %v5843 = vadd.f32 %v5622, %v5842
        %v5844 = vpop.f32.mrb[0].mxu0
        %v5845 = vpop.f32.mrb[0].mxu0
        %v5846 = vadd.f32 %v5625, %v5845
        %v5847 = vpop.f32.mrb[0].mxu0
        %5848 = vmatprep.mubr.bf16.mxu0 0
        %5849 = vmatmul.mubr.bf16.gmra.mrb[0].mxu0 %v5704
        %v5850 = vpop.f32.mrb[0].mxu0
        %v5851 = vadd.f32 %v5630, %v5850
        %v5852 = vpop.f32.mrb[0].mxu0
        %v5853 = vpop.f32.mrb[0].mxu0
        %v5854 = vadd.f32 %v5633, %v5853
        %v5855 = vpop.f32.mrb[0].mxu0
        %5856 = vmatprep.mubr.bf16.mxu0 0
        %5857 = vmatmul.mubr.bf16.gmra.mrb[0].mxu0 %v5707
        %v5858 = vpop.f32.mrb[0].mxu0
        %v5859 = vadd.f32 %v5638, %v5858
        %v5860 = vpop.f32.mrb[0].mxu0
        %v5861 = vpop.f32.mrb[0].mxu0
        %v5862 = vadd.f32 %v5641, %v5861
        %v5863 = vpop.f32.mrb[0].mxu0
        %5864 = vmatprep.mubr.bf16.mxu0 0
        %5865 = vmatmul.mubr.bf16.gmra.mrb[0].mxu0 %v5710
        %v5866 = vpop.f32.mrb[0].mxu0
        %v5867 = vadd.f32 %v5646, %v5866
        %v5868 = vpop.f32.mrb[0].mxu0
        %v5869 = vpop.f32.mrb[0].mxu0
        %v5870 = vadd.f32 %v5649, %v5869
        %v5871 = vpop.f32.mrb[0].mxu0
        %5872 = vdwg.mxu0
        %v5873 = vld [vmem:[#allocation2 + $0x8] sm:$0x1f]
        %v5874 = vld [vmem:[#allocation2 + $0x18] sm:$0x1f]
        %v5875 = vld [vmem:[#allocation2 + $0x28] sm:$0x1f]
        %v5876 = vld [vmem:[#allocation2 + $0x38] sm:$0x1f]
        %v5877 = vld [vmem:[#allocation2 + $0x48] sm:$0x1f]
        %v5878 = vld [vmem:[#allocation2 + $0x58] sm:$0x1f]
        %v5879 = vld [vmem:[#allocation2 + $0x68] sm:$0x1f]
        %v5880 = vld [vmem:[#allocation2 + $0x78] sm:$0x1f]
        %v5881 = vld [vmem:[#allocation2 + $0x88] sm:$0x1f]
        %v5882 = vld [vmem:[#allocation2 + $0x98] sm:$0x1f]
        %v5883 = vld [vmem:[#allocation2 + $0xa8] sm:$0x1f]
        %v5884 = vld [vmem:[#allocation2 + $0xb8] sm:$0x1f]
        %v5885 = vld [vmem:[#allocation2 + $0xc8] sm:$0x1f]
        %v5886 = vld [vmem:[#allocation2 + $0xd8] sm:$0x1f]
        %v5887 = vld [vmem:[#allocation2 + $0xe8] sm:$0x1f]
        %v5888 = vld [vmem:[#allocation2 + $0xf8] sm:$0x1f]
        %v5890 = vshrl.u32 %v5331, 16
        %v5892 = vrot.slane %v5890, 4
        %v5893 = vshll.u32 %v5331, 16
        %v5895 = vrot.slane %v5893, 5
        %v5896 = vor.u32 %v5892, %v5895
        %v5898 = vshrl.u32 %v5873, 16
        %v5900 = vrot.slane %v5898, 4
        %v5901 = vshll.u32 %v5873, 16
        %v5903 = vrot.slane %v5901, 5
        %v5904 = vor.u32 %v5900, %v5903
        %v5905 = vsel %vm1444, %v5896, %v5904
        %v5907 = vshrl.u32 %v5332, 16
        %v5909 = vrot.slane %v5907, 4
        %v5910 = vshll.u32 %v5332, 16
        %v5912 = vrot.slane %v5910, 5
        %v5913 = vor.u32 %v5909, %v5912
        %v5915 = vshrl.u32 %v5874, 16
        %v5917 = vrot.slane %v5915, 4
        %v5918 = vshll.u32 %v5874, 16
        %v5920 = vrot.slane %v5918, 5
        %v5921 = vor.u32 %v5917, %v5920
        %v5922 = vsel %vm1444, %v5913, %v5921
        %v5924 = vshrl.u32 %v5333, 16
        %v5926 = vrot.slane %v5924, 4
        %v5927 = vshll.u32 %v5333, 16
        %v5929 = vrot.slane %v5927, 5
        %v5930 = vor.u32 %v5926, %v5929
        %v5932 = vshrl.u32 %v5875, 16
        %v5934 = vrot.slane %v5932, 4
        %v5935 = vshll.u32 %v5875, 16
        %v5937 = vrot.slane %v5935, 5
        %v5938 = vor.u32 %v5934, %v5937
        %v5939 = vsel %vm1444, %v5930, %v5938
        %v5941 = vshrl.u32 %v5334, 16
        %v5943 = vrot.slane %v5941, 4
        %v5944 = vshll.u32 %v5334, 16
        %v5946 = vrot.slane %v5944, 5
        %v5947 = vor.u32 %v5943, %v5946
        %v5949 = vshrl.u32 %v5876, 16
        %v5951 = vrot.slane %v5949, 4
        %v5952 = vshll.u32 %v5876, 16
        %v5954 = vrot.slane %v5952, 5
        %v5955 = vor.u32 %v5951, %v5954
        %v5956 = vsel %vm1444, %v5947, %v5955
        %v5958 = vshrl.u32 %v5335, 16
        %v5960 = vrot.slane %v5958, 4
        %v5961 = vshll.u32 %v5335, 16
        %v5963 = vrot.slane %v5961, 5
        %v5964 = vor.u32 %v5960, %v5963
        %v5966 = vshrl.u32 %v5877, 16
        %v5968 = vrot.slane %v5966, 4
        %v5969 = vshll.u32 %v5877, 16
        %v5971 = vrot.slane %v5969, 5
        %v5972 = vor.u32 %v5968, %v5971
        %v5973 = vsel %vm1444, %v5964, %v5972
        %v5975 = vshrl.u32 %v5336, 16
        %v5977 = vrot.slane %v5975, 4
        %v5978 = vshll.u32 %v5336, 16
        %v5980 = vrot.slane %v5978, 5
        %v5981 = vor.u32 %v5977, %v5980
        %v5983 = vshrl.u32 %v5878, 16
        %v5985 = vrot.slane %v5983, 4
        %v5986 = vshll.u32 %v5878, 16
        %v5988 = vrot.slane %v5986, 5
        %v5989 = vor.u32 %v5985, %v5988
        %v5990 = vsel %vm1444, %v5981, %v5989
        %v5992 = vshrl.u32 %v5337, 16
        %v5994 = vrot.slane %v5992, 4
        %v5995 = vshll.u32 %v5337, 16
        %v5997 = vrot.slane %v5995, 5
        %v5998 = vor.u32 %v5994, %v5997
        %v6000 = vshrl.u32 %v5879, 16
        %v6002 = vrot.slane %v6000, 4
        %v6003 = vshll.u32 %v5879, 16
        %v6005 = vrot.slane %v6003, 5
        %v6006 = vor.u32 %v6002, %v6005
        %v6007 = vsel %vm1444, %v5998, %v6006
        %v6009 = vshrl.u32 %v5338, 16
        %v6011 = vrot.slane %v6009, 4
        %v6012 = vshll.u32 %v5338, 16
        %v6014 = vrot.slane %v6012, 5
        %v6015 = vor.u32 %v6011, %v6014
        %v6017 = vshrl.u32 %v5880, 16
        %v6019 = vrot.slane %v6017, 4
        %v6020 = vshll.u32 %v5880, 16
        %v6022 = vrot.slane %v6020, 5
        %v6023 = vor.u32 %v6019, %v6022
        %v6024 = vsel %vm1444, %v6015, %v6023
        %v6026 = vshrl.u32 %v5339, 16
        %v6028 = vrot.slane %v6026, 4
        %v6029 = vshll.u32 %v5339, 16
        %v6031 = vrot.slane %v6029, 5
        %v6032 = vor.u32 %v6028, %v6031
        %v6034 = vshrl.u32 %v5881, 16
        %v6036 = vrot.slane %v6034, 4
        %v6037 = vshll.u32 %v5881, 16
        %v6039 = vrot.slane %v6037, 5
        %v6040 = vor.u32 %v6036, %v6039
        %v6041 = vsel %vm1444, %v6032, %v6040
        %v6043 = vshrl.u32 %v5340, 16
        %v6045 = vrot.slane %v6043, 4
        %v6046 = vshll.u32 %v5340, 16
        %v6048 = vrot.slane %v6046, 5
        %v6049 = vor.u32 %v6045, %v6048
        %v6051 = vshrl.u32 %v5882, 16
        %v6053 = vrot.slane %v6051, 4
        %v6054 = vshll.u32 %v5882, 16
        %v6056 = vrot.slane %v6054, 5
        %v6057 = vor.u32 %v6053, %v6056
        %v6058 = vsel %vm1444, %v6049, %v6057
        %v6060 = vshrl.u32 %v5341, 16
        %v6062 = vrot.slane %v6060, 4
        %v6063 = vshll.u32 %v5341, 16
        %v6065 = vrot.slane %v6063, 5
        %v6066 = vor.u32 %v6062, %v6065
        %v6068 = vshrl.u32 %v5883, 16
        %v6070 = vrot.slane %v6068, 4
        %v6071 = vshll.u32 %v5883, 16
        %v6073 = vrot.slane %v6071, 5
        %v6074 = vor.u32 %v6070, %v6073
        %v6075 = vsel %vm1444, %v6066, %v6074
        %v6077 = vshrl.u32 %v5342, 16
        %v6079 = vrot.slane %v6077, 4
        %v6080 = vshll.u32 %v5342, 16
        %v6082 = vrot.slane %v6080, 5
        %v6083 = vor.u32 %v6079, %v6082
        %v6085 = vshrl.u32 %v5884, 16
        %v6087 = vrot.slane %v6085, 4
        %v6088 = vshll.u32 %v5884, 16
        %v6090 = vrot.slane %v6088, 5
        %v6091 = vor.u32 %v6087, %v6090
        %v6092 = vsel %vm1444, %v6083, %v6091
        %v6094 = vshrl.u32 %v5343, 16
        %v6096 = vrot.slane %v6094, 4
        %v6097 = vshll.u32 %v5343, 16
        %v6099 = vrot.slane %v6097, 5
        %v6100 = vor.u32 %v6096, %v6099
        %v6102 = vshrl.u32 %v5885, 16
        %v6104 = vrot.slane %v6102, 4
        %v6105 = vshll.u32 %v5885, 16
        %v6107 = vrot.slane %v6105, 5
        %v6108 = vor.u32 %v6104, %v6107
        %v6109 = vsel %vm1444, %v6100, %v6108
        %v6111 = vshrl.u32 %v5344, 16
        %v6113 = vrot.slane %v6111, 4
        %v6114 = vshll.u32 %v5344, 16
        %v6116 = vrot.slane %v6114, 5
        %v6117 = vor.u32 %v6113, %v6116
        %v6119 = vshrl.u32 %v5886, 16
        %v6121 = vrot.slane %v6119, 4
        %v6122 = vshll.u32 %v5886, 16
        %v6124 = vrot.slane %v6122, 5
        %v6125 = vor.u32 %v6121, %v6124
        %v6126 = vsel %vm1444, %v6117, %v6125
        %v6128 = vshrl.u32 %v5345, 16
        %v6130 = vrot.slane %v6128, 4
        %v6131 = vshll.u32 %v5345, 16
        %v6133 = vrot.slane %v6131, 5
        %v6134 = vor.u32 %v6130, %v6133
        %v6136 = vshrl.u32 %v5887, 16
        %v6138 = vrot.slane %v6136, 4
        %v6139 = vshll.u32 %v5887, 16
        %v6141 = vrot.slane %v6139, 5
        %v6142 = vor.u32 %v6138, %v6141
        %v6143 = vsel %vm1444, %v6134, %v6142
        %v6145 = vshrl.u32 %v5346, 16
        %v6147 = vrot.slane %v6145, 4
        %v6148 = vshll.u32 %v5346, 16
        %v6150 = vrot.slane %v6148, 5
        %v6151 = vor.u32 %v6147, %v6150
        %v6153 = vshrl.u32 %v5888, 16
        %v6155 = vrot.slane %v6153, 4
        %v6156 = vshll.u32 %v5888, 16
        %v6158 = vrot.slane %v6156, 5
        %v6159 = vor.u32 %v6155, %v6158
        %v6160 = vsel %vm1444, %v6151, %v6159
        %v6161 = vld [vmem:[%s3 + $0x20] sm:$0xf]
        %v6162 = vld [vmem:[%s3 + $0x24] sm:$0xf]
        %v6163 = vld [vmem:[%s3 + $0x28] sm:$0xf]
        %v6164 = vld [vmem:[%s3 + $0x2c] sm:$0xf]
        %v6169 = vunpack.c.l.b16 %v6161
        %v6170 = vunpack.c.l.b16 %v6162
        %v6171 = vunpack.c.l.b16 %v6163
        %v6172 = vunpack.c.l.b16 %v6164
        %v6173 = vpack.c.b16 %v6170, %v6169
        %v6174 = vpack.c.b16 %v6172, %v6171
        %v6178 = vsel %vm358, %v5905, 0
        %v6181 = vsel %vm358, %v5922, 0
        %v6184 = vsel %vm358, %v5939, 0
        %v6187 = vsel %vm358, %v5956, 0
        %v6190 = vsel %vm358, %v5973, 0
        %v6193 = vsel %vm358, %v5990, 0
        %v6196 = vsel %vm358, %v6007, 0
        %v6199 = vsel %vm358, %v6024, 0
        %v6202 = vsel %vm358, %v6041, 0
        %v6205 = vsel %vm358, %v6058, 0
        %v6208 = vsel %vm358, %v6075, 0
        %v6211 = vsel %vm358, %v6092, 0
        %v6214 = vsel %vm358, %v6109, 0
        %v6217 = vsel %vm358, %v6126, 0
        %v6220 = vsel %vm358, %v6143, 0
        %v6223 = vsel %vm358, %v6160, 0
        %6225 = vmatprep.subr.bf16.mxu0 0
        %6226 = vmatpush1.bf16.msra.mxu0 %v6173
        %6227 = vmatprep.subr.bf16.mxu0 0
        %6228 = vmatpush1.bf16.msra.mxu0 %v6174
        %6229 = vmatprep.subr.bf16.mxu0 0
        %6230 = vmatpush1.bf16.msra.mxu0 0
        %6231 = vmatprep.subr.bf16.mxu0 0
        %6232 = vmatpush1.bf16.msra.mxu0 0
        %6233 = vmatprep.subr.bf16.mxu0 0
        %6234 = vmatpush1.bf16.msra.mxu0 0
        %6235 = vmatprep.subr.bf16.mxu0 0
        %6236 = vmatpush1.bf16.msra.mxu0 0
        %6237 = vmatprep.subr.bf16.mxu0 0
        %6238 = vmatpush1.bf16.msra.mxu0 0
        %6239 = vmatprep.subr.bf16.mxu0 0
        %6240 = vmatpush1.bf16.msra.mxu0 0
        %6241 = vmatprep.subr.bf16.mxu0 0
        %6242 = vmatpush1.bf16.msra.mxu0 0
        %6243 = vmatprep.subr.bf16.mxu0 0
        %6244 = vmatpush1.bf16.msra.mxu0 0
        %6245 = vmatprep.subr.bf16.mxu0 0
        %6246 = vmatpush1.bf16.msra.mxu0 0
        %6247 = vmatprep.subr.bf16.mxu0 0
        %6248 = vmatpush1.bf16.msra.mxu0 0
        %6249 = vmatprep.subr.bf16.mxu0 0
        %6250 = vmatpush1.bf16.msra.mxu0 0
        %6251 = vmatprep.subr.bf16.mxu0 0
        %6252 = vmatpush1.bf16.msra.mxu0 0
        %6253 = vmatprep.subr.bf16.mxu0 0
        %6254 = vmatpush1.bf16.msra.mxu0 0
        %6255 = vmatprep.subr.bf16.mxu0 0
        %6256 = vmatpush1.bf16.msra.mxu0 0
        %6257 = vmatprep.mubr.bf16.mxu0 0
        %6258 = vmatmul.mubr.bf16.gmra.mrb[0].mxu0 %v6178
        %v6259 = vpop.f32.mrb[0].mxu0
        %v6260 = vadd.f32 0.0, %v6259
        %v6261 = vpop.f32.mrb[0].mxu0
        %v6262 = vpop.f32.mrb[0].mxu0
        %v6263 = vadd.f32 0.0, %v6262
        %v6264 = vpop.f32.mrb[0].mxu0
        %6265 = vmatprep.mubr.bf16.mxu0 0
        %6266 = vmatmul.mubr.bf16.gmra.mrb[0].mxu0 %v6181
        %v6267 = vpop.f32.mrb[0].mxu0
        %v6268 = vadd.f32 0.0, %v6267
        %v6269 = vpop.f32.mrb[0].mxu0
        %v6270 = vpop.f32.mrb[0].mxu0
        %v6271 = vadd.f32 0.0, %v6270
        %v6272 = vpop.f32.mrb[0].mxu0
        %6273 = vmatprep.mubr.bf16.mxu0 0
        %6274 = vmatmul.mubr.bf16.gmra.mrb[0].mxu0 %v6184
        %v6275 = vpop.f32.mrb[0].mxu0
        %v6276 = vadd.f32 0.0, %v6275
        %v6277 = vpop.f32.mrb[0].mxu0
        %v6278 = vpop.f32.mrb[0].mxu0
        %v6279 = vadd.f32 0.0, %v6278
        %v6280 = vpop.f32.mrb[0].mxu0
        %6281 = vmatprep.mubr.bf16.mxu0 0
        %6282 = vmatmul.mubr.bf16.gmra.mrb[0].mxu0 %v6187
        %v6283 = vpop.f32.mrb[0].mxu0
        %v6284 = vadd.f32 0.0, %v6283
        %v6285 = vpop.f32.mrb[0].mxu0
        %v6286 = vpop.f32.mrb[0].mxu0
        %v6287 = vadd.f32 0.0, %v6286
        %v6288 = vpop.f32.mrb[0].mxu0
        %6289 = vmatprep.mubr.bf16.mxu0 0
        %6290 = vmatmul.mubr.bf16.gmra.mrb[0].mxu0 %v6190
        %v6291 = vpop.f32.mrb[0].mxu0
        %v6292 = vadd.f32 0.0, %v6291
        %v6293 = vpop.f32.mrb[0].mxu0
        %v6294 = vpop.f32.mrb[0].mxu0
        %v6295 = vadd.f32 0.0, %v6294
        %v6296 = vpop.f32.mrb[0].mxu0
        %6297 = vmatprep.mubr.bf16.mxu0 0
        %6298 = vmatmul.mubr.bf16.gmra.mrb[0].mxu0 %v6193
        %v6299 = vpop.f32.mrb[0].mxu0
        %v6300 = vadd.f32 0.0, %v6299
        %v6301 = vpop.f32.mrb[0].mxu0
        %v6302 = vpop.f32.mrb[0].mxu0
        %v6303 = vadd.f32 0.0, %v6302
        %v6304 = vpop.f32.mrb[0].mxu0
        %6305 = vmatprep.mubr.bf16.mxu0 0
        %6306 = vmatmul.mubr.bf16.gmra.mrb[0].mxu0 %v6196
        %v6307 = vpop.f32.mrb[0].mxu0
        %v6308 = vadd.f32 0.0, %v6307
        %v6309 = vpop.f32.mrb[0].mxu0
        %v6310 = vpop.f32.mrb[0].mxu0
        %v6311 = vadd.f32 0.0, %v6310
        %v6312 = vpop.f32.mrb[0].mxu0
        %6313 = vmatprep.mubr.bf16.mxu0 0
        %6314 = vmatmul.mubr.bf16.gmra.mrb[0].mxu0 %v6199
        %v6315 = vpop.f32.mrb[0].mxu0
        %v6316 = vadd.f32 0.0, %v6315
        %v6317 = vpop.f32.mrb[0].mxu0
        %v6318 = vpop.f32.mrb[0].mxu0
        %v6319 = vadd.f32 0.0, %v6318
        %v6320 = vpop.f32.mrb[0].mxu0
        %6321 = vmatprep.mubr.bf16.mxu0 0
        %6322 = vmatmul.mubr.bf16.gmra.mrb[0].mxu0 %v6202
        %v6323 = vpop.f32.mrb[0].mxu0
        %v6324 = vadd.f32 0.0, %v6323
        %v6325 = vpop.f32.mrb[0].mxu0
        %v6326 = vpop.f32.mrb[0].mxu0
        %v6327 = vadd.f32 0.0, %v6326
        %v6328 = vpop.f32.mrb[0].mxu0
        %6329 = vmatprep.mubr.bf16.mxu0 0
        %6330 = vmatmul.mubr.bf16.gmra.mrb[0].mxu0 %v6205
        %v6331 = vpop.f32.mrb[0].mxu0
        %v6332 = vadd.f32 0.0, %v6331
        %v6333 = vpop.f32.mrb[0].mxu0
        %v6334 = vpop.f32.mrb[0].mxu0
        %v6335 = vadd.f32 0.0, %v6334
        %v6336 = vpop.f32.mrb[0].mxu0
        %6337 = vmatprep.mubr.bf16.mxu0 0
        %6338 = vmatmul.mubr.bf16.gmra.mrb[0].mxu0 %v6208
        %v6339 = vpop.f32.mrb[0].mxu0
        %v6340 = vadd.f32 0.0, %v6339
        %v6341 = vpop.f32.mrb[0].mxu0
        %v6342 = vpop.f32.mrb[0].mxu0
        %v6343 = vadd.f32 0.0, %v6342
        %v6344 = vpop.f32.mrb[0].mxu0
        %6345 = vmatprep.mubr.bf16.mxu0 0
        %6346 = vmatmul.mubr.bf16.gmra.mrb[0].mxu0 %v6211
        %v6347 = vpop.f32.mrb[0].mxu0
        %v6348 = vadd.f32 0.0, %v6347
        %v6349 = vpop.f32.mrb[0].mxu0
        %v6350 = vpop.f32.mrb[0].mxu0
        %v6351 = vadd.f32 0.0, %v6350
        %v6352 = vpop.f32.mrb[0].mxu0
        %6353 = vmatprep.mubr.bf16.mxu0 0
        %6354 = vmatmul.mubr.bf16.gmra.mrb[0].mxu0 %v6214
        %v6355 = vpop.f32.mrb[0].mxu0
        %v6356 = vadd.f32 0.0, %v6355
        %v6357 = vpop.f32.mrb[0].mxu0
        %v6358 = vpop.f32.mrb[0].mxu0
        %v6359 = vadd.f32 0.0, %v6358
        %v6360 = vpop.f32.mrb[0].mxu0
        %6361 = vmatprep.mubr.bf16.mxu0 0
        %6362 = vmatmul.mubr.bf16.gmra.mrb[0].mxu0 %v6217
        %v6363 = vpop.f32.mrb[0].mxu0
        %v6364 = vadd.f32 0.0, %v6363
        %v6365 = vpop.f32.mrb[0].mxu0
        %v6366 = vpop.f32.mrb[0].mxu0
        %v6367 = vadd.f32 0.0, %v6366
        %v6368 = vpop.f32.mrb[0].mxu0
        %6369 = vmatprep.mubr.bf16.mxu0 0
        %6370 = vmatmul.mubr.bf16.gmra.mrb[0].mxu0 %v6220
        %v6371 = vpop.f32.mrb[0].mxu0
        %v6372 = vadd.f32 0.0, %v6371
        %v6373 = vpop.f32.mrb[0].mxu0
        %v6374 = vpop.f32.mrb[0].mxu0
        %v6375 = vadd.f32 0.0, %v6374
        %v6376 = vpop.f32.mrb[0].mxu0
        %6377 = vmatprep.mubr.bf16.mxu0 0
        %6378 = vmatmul.mubr.bf16.gmra.mrb[0].mxu0 %v6223
        %v6379 = vpop.f32.mrb[0].mxu0
        %v6380 = vadd.f32 0.0, %v6379
        %v6381 = vpop.f32.mrb[0].mxu0
        %v6382 = vpop.f32.mrb[0].mxu0
        %v6383 = vadd.f32 0.0, %v6382
        %v6384 = vpop.f32.mrb[0].mxu0
        %6385 = vdwg.mxu0
        %v6386 = vadd.f32 %v5747, %v6260
        %v6387 = vadd.f32 %v5750, %v6263
        %v6388 = vadd.f32 %v5755, %v6268
        %v6389 = vadd.f32 %v5758, %v6271
        %v6390 = vadd.f32 %v5763, %v6276
        %v6391 = vadd.f32 %v5766, %v6279
        %v6392 = vadd.f32 %v5771, %v6284
        %v6393 = vadd.f32 %v5774, %v6287
        %v6394 = vadd.f32 %v5779, %v6292
        %v6395 = vadd.f32 %v5782, %v6295
        %v6396 = vadd.f32 %v5787, %v6300
        %v6397 = vadd.f32 %v5790, %v6303
        %v6398 = vadd.f32 %v5795, %v6308
        %v6399 = vadd.f32 %v5798, %v6311
        %v6400 = vadd.f32 %v5803, %v6316
        %v6401 = vadd.f32 %v5806, %v6319
        %v6402 = vadd.f32 %v5811, %v6324
        %v6403 = vadd.f32 %v5814, %v6327
        %v6404 = vadd.f32 %v5819, %v6332
        %v6405 = vadd.f32 %v5822, %v6335
        %v6406 = vadd.f32 %v5827, %v6340
        %v6407 = vadd.f32 %v5830, %v6343
        %v6408 = vadd.f32 %v5835, %v6348
        %v6409 = vadd.f32 %v5838, %v6351
        %v6410 = vadd.f32 %v5843, %v6356
        %v6411 = vadd.f32 %v5846, %v6359
        %v6412 = vadd.f32 %v5851, %v6364
        %v6413 = vadd.f32 %v5854, %v6367
        %v6414 = vadd.f32 %v5859, %v6372
        %v6415 = vadd.f32 %v5862, %v6375
        %v6416 = vadd.f32 %v5867, %v6380
        %v6417 = vadd.f32 %v5870, %v6383
        %v6418 = vld [vmem:[%s542] sm:$0xf8]
        %v6419 = vld [vmem:[%s542 + $0x8] sm:$0xf]
        %v6420 = vld [vmem:[%s542 + $0x10] sm:$0xf8]
        %v6421 = vld [vmem:[%s542 + $0x18] sm:$0xf]
        %v6422 = vld [vmem:[%s542 + $0x20] sm:$0xf8]
        %v6423 = vld [vmem:[%s542 + $0x28] sm:$0xf]
        %v6424 = vld [vmem:[%s542 + $0x30] sm:$0xf8]
        %v6425 = vld [vmem:[%s542 + $0x38] sm:$0xf]
        %v6426 = vld [vmem:[%s542 + $0x40] sm:$0xf8]
        %v6427 = vld [vmem:[%s542 + $0x48] sm:$0xf]
        %v6428 = vld [vmem:[%s542 + $0x50] sm:$0xf8]
        %v6429 = vld [vmem:[%s542 + $0x58] sm:$0xf]
        %v6430 = vld [vmem:[%s542 + $0x60] sm:$0xf8]
        %v6431 = vld [vmem:[%s542 + $0x68] sm:$0xf]
        %v6432 = vld [vmem:[%s542 + $0x70] sm:$0xf8]
        %v6433 = vld [vmem:[%s542 + $0x78] sm:$0xf]
        %v6434 = vld [vmem:[%s542 + $0x80] sm:$0xf8]
        %v6435 = vld [vmem:[%s542 + $0x88] sm:$0xf]
        %v6436 = vld [vmem:[%s542 + $0x90] sm:$0xf8]
        %v6437 = vld [vmem:[%s542 + $0x98] sm:$0xf]
        %v6438 = vld [vmem:[%s542 + $0xa0] sm:$0xf8]
        %v6439 = vld [vmem:[%s542 + $0xa8] sm:$0xf]
        %v6440 = vld [vmem:[%s542 + $0xb0] sm:$0xf8]
        %v6441 = vld [vmem:[%s542 + $0xb8] sm:$0xf]
        %v6442 = vld [vmem:[%s542 + $0xc0] sm:$0xf8]
        %v6443 = vld [vmem:[%s542 + $0xc8] sm:$0xf]
        %v6444 = vld [vmem:[%s542 + $0xd0] sm:$0xf8]
        %v6445 = vld [vmem:[%s542 + $0xd8] sm:$0xf]
        %v6446 = vld [vmem:[%s542 + $0xe0] sm:$0xf8]
        %v6447 = vld [vmem:[%s542 + $0xe8] sm:$0xf]
        %v6448 = vld [vmem:[%s542 + $0xf0] sm:$0xf8]
        %v6449 = vld [vmem:[%s542 + $0xf8] sm:$0xf]
        %v6451 = vshrl.u32 %v6418, 16
        %v6453 = vrot.slane %v6451, 3
        %v6454 = vshll.u32 %v6418, 16
        %v6456 = vrot.slane %v6454, 4
        %v6457 = vor.u32 %v6453, %v6456
        %v6459 = vshrl.u32 %v6419, 16
        %v6461 = vrot.slane %v6459, 3
        %v6462 = vshll.u32 %v6419, 16
        %v6464 = vrot.slane %v6462, 4
        %v6465 = vor.u32 %v6461, %v6464
        %v6466 = vsel %vm422, %v6457, %v6465
        %v6468 = vshrl.u32 %v6420, 16
        %v6470 = vrot.slane %v6468, 3
        %v6471 = vshll.u32 %v6420, 16
        %v6473 = vrot.slane %v6471, 4
        %v6474 = vor.u32 %v6470, %v6473
        %v6476 = vshrl.u32 %v6421, 16
        %v6478 = vrot.slane %v6476, 3
        %v6479 = vshll.u32 %v6421, 16
        %v6481 = vrot.slane %v6479, 4
        %v6482 = vor.u32 %v6478, %v6481
        %v6483 = vsel %vm422, %v6474, %v6482
        %v6485 = vshrl.u32 %v6422, 16
        %v6487 = vrot.slane %v6485, 3
        %v6488 = vshll.u32 %v6422, 16
        %v6490 = vrot.slane %v6488, 4
        %v6491 = vor.u32 %v6487, %v6490
        %v6493 = vshrl.u32 %v6423, 16
        %v6495 = vrot.slane %v6493, 3
        %v6496 = vshll.u32 %v6423, 16
        %v6498 = vrot.slane %v6496, 4
        %v6499 = vor.u32 %v6495, %v6498
        %v6500 = vsel %vm422, %v6491, %v6499
        %v6502 = vshrl.u32 %v6424, 16
        %v6504 = vrot.slane %v6502, 3
        %v6505 = vshll.u32 %v6424, 16
        %v6507 = vrot.slane %v6505, 4
        %v6508 = vor.u32 %v6504, %v6507
        %v6510 = vshrl.u32 %v6425, 16
        %v6512 = vrot.slane %v6510, 3
        %v6513 = vshll.u32 %v6425, 16
        %v6515 = vrot.slane %v6513, 4
        %v6516 = vor.u32 %v6512, %v6515
        %v6517 = vsel %vm422, %v6508, %v6516
        %v6519 = vshrl.u32 %v6426, 16
        %v6521 = vrot.slane %v6519, 3
        %v6522 = vshll.u32 %v6426, 16
        %v6524 = vrot.slane %v6522, 4
        %v6525 = vor.u32 %v6521, %v6524
        %v6527 = vshrl.u32 %v6427, 16
        %v6529 = vrot.slane %v6527, 3
        %v6530 = vshll.u32 %v6427, 16
        %v6532 = vrot.slane %v6530, 4
        %v6533 = vor.u32 %v6529, %v6532
        %v6534 = vsel %vm422, %v6525, %v6533
        %v6536 = vshrl.u32 %v6428, 16
        %v6538 = vrot.slane %v6536, 3
        %v6539 = vshll.u32 %v6428, 16
        %v6541 = vrot.slane %v6539, 4
        %v6542 = vor.u32 %v6538, %v6541
        %v6544 = vshrl.u32 %v6429, 16
        %v6546 = vrot.slane %v6544, 3
        %v6547 = vshll.u32 %v6429, 16
        %v6549 = vrot.slane %v6547, 4
        %v6550 = vor.u32 %v6546, %v6549
        %v6551 = vsel %vm422, %v6542, %v6550
        %v6553 = vshrl.u32 %v6430, 16
        %v6555 = vrot.slane %v6553, 3
        %v6556 = vshll.u32 %v6430, 16
        %v6558 = vrot.slane %v6556, 4
        %v6559 = vor.u32 %v6555, %v6558
        %v6561 = vshrl.u32 %v6431, 16
        %v6563 = vrot.slane %v6561, 3
        %v6564 = vshll.u32 %v6431, 16
        %v6566 = vrot.slane %v6564, 4
        %v6567 = vor.u32 %v6563, %v6566
        %v6568 = vsel %vm422, %v6559, %v6567
        %v6570 = vshrl.u32 %v6432, 16
        %v6572 = vrot.slane %v6570, 3
        %v6573 = vshll.u32 %v6432, 16
        %v6575 = vrot.slane %v6573, 4
        %v6576 = vor.u32 %v6572, %v6575
        %v6578 = vshrl.u32 %v6433, 16
        %v6580 = vrot.slane %v6578, 3
        %v6581 = vshll.u32 %v6433, 16
        %v6583 = vrot.slane %v6581, 4
        %v6584 = vor.u32 %v6580, %v6583
        %v6585 = vsel %vm422, %v6576, %v6584
        %v6587 = vshrl.u32 %v6434, 16
        %v6589 = vrot.slane %v6587, 3
        %v6590 = vshll.u32 %v6434, 16
        %v6592 = vrot.slane %v6590, 4
        %v6593 = vor.u32 %v6589, %v6592
        %v6595 = vshrl.u32 %v6435, 16
        %v6597 = vrot.slane %v6595, 3
        %v6598 = vshll.u32 %v6435, 16
        %v6600 = vrot.slane %v6598, 4
        %v6601 = vor.u32 %v6597, %v6600
        %v6602 = vsel %vm422, %v6593, %v6601
        %v6604 = vshrl.u32 %v6436, 16
        %v6606 = vrot.slane %v6604, 3
        %v6607 = vshll.u32 %v6436, 16
        %v6609 = vrot.slane %v6607, 4
        %v6610 = vor.u32 %v6606, %v6609
        %v6612 = vshrl.u32 %v6437, 16
        %v6614 = vrot.slane %v6612, 3
        %v6615 = vshll.u32 %v6437, 16
        %v6617 = vrot.slane %v6615, 4
        %v6618 = vor.u32 %v6614, %v6617
        %v6619 = vsel %vm422, %v6610, %v6618
        %v6621 = vshrl.u32 %v6438, 16
        %v6623 = vrot.slane %v6621, 3
        %v6624 = vshll.u32 %v6438, 16
        %v6626 = vrot.slane %v6624, 4
        %v6627 = vor.u32 %v6623, %v6626
        %v6629 = vshrl.u32 %v6439, 16
        %v6631 = vrot.slane %v6629, 3
        %v6632 = vshll.u32 %v6439, 16
        %v6634 = vrot.slane %v6632, 4
        %v6635 = vor.u32 %v6631, %v6634
        %v6636 = vsel %vm422, %v6627, %v6635
        %v6638 = vshrl.u32 %v6440, 16
        %v6640 = vrot.slane %v6638, 3
        %v6641 = vshll.u32 %v6440, 16
        %v6643 = vrot.slane %v6641, 4
        %v6644 = vor.u32 %v6640, %v6643
        %v6646 = vshrl.u32 %v6441, 16
        %v6648 = vrot.slane %v6646, 3
        %v6649 = vshll.u32 %v6441, 16
        %v6651 = vrot.slane %v6649, 4
        %v6652 = vor.u32 %v6648, %v6651
        %v6653 = vsel %vm422, %v6644, %v6652
        %v6655 = vshrl.u32 %v6442, 16
        %v6657 = vrot.slane %v6655, 3
        %v6658 = vshll.u32 %v6442, 16
        %v6660 = vrot.slane %v6658, 4
        %v6661 = vor.u32 %v6657, %v6660
        %v6663 = vshrl.u32 %v6443, 16
        %v6665 = vrot.slane %v6663, 3
        %v6666 = vshll.u32 %v6443, 16
        %v6668 = vrot.slane %v6666, 4
        %v6669 = vor.u32 %v6665, %v6668
        %v6670 = vsel %vm422, %v6661, %v6669
        %v6672 = vshrl.u32 %v6444, 16
        %v6674 = vrot.slane %v6672, 3
        %v6675 = vshll.u32 %v6444, 16
        %v6677 = vrot.slane %v6675, 4
        %v6678 = vor.u32 %v6674, %v6677
        %v6680 = vshrl.u32 %v6445, 16
        %v6682 = vrot.slane %v6680, 3
        %v6683 = vshll.u32 %v6445, 16
        %v6685 = vrot.slane %v6683, 4
        %v6686 = vor.u32 %v6682, %v6685
        %v6687 = vsel %vm422, %v6678, %v6686
        %v6689 = vshrl.u32 %v6446, 16
        %v6691 = vrot.slane %v6689, 3
        %v6692 = vshll.u32 %v6446, 16
        %v6694 = vrot.slane %v6692, 4
        %v6695 = vor.u32 %v6691, %v6694
        %v6697 = vshrl.u32 %v6447, 16
        %v6699 = vrot.slane %v6697, 3
        %v6700 = vshll.u32 %v6447, 16
        %v6702 = vrot.slane %v6700, 4
        %v6703 = vor.u32 %v6699, %v6702
        %v6704 = vsel %vm422, %v6695, %v6703
        %v6706 = vshrl.u32 %v6448, 16
        %v6708 = vrot.slane %v6706, 3
        %v6709 = vshll.u32 %v6448, 16
        %v6711 = vrot.slane %v6709, 4
        %v6712 = vor.u32 %v6708, %v6711
        %v6714 = vshrl.u32 %v6449, 16
        %v6716 = vrot.slane %v6714, 3
        %v6717 = vshll.u32 %v6449, 16
        %v6719 = vrot.slane %v6717, 4
        %v6720 = vor.u32 %v6716, %v6719
        %v6721 = vsel %vm422, %v6712, %v6720
        %v6722 = vld [vmem:[%s3 + $0x30] sm:$0xf]
        %v6723 = vld [vmem:[%s3 + $0x34] sm:$0xf]
        %v6724 = vld [vmem:[%s3 + $0x38] sm:$0xf]
        %v6725 = vld [vmem:[%s3 + $0x3c] sm:$0xf]
        %v6726 = vld [vmem:[%s542] sm:$0xf0]
        %v6727 = vld [vmem:[%s542 + $0x10] sm:$0xf0]
        %v6728 = vld [vmem:[%s542 + $0x20] sm:$0xf0]
        %v6729 = vld [vmem:[%s542 + $0x30] sm:$0xf0]
        %v6730 = vld [vmem:[%s542 + $0x40] sm:$0xf0]
        %v6731 = vld [vmem:[%s542 + $0x50] sm:$0xf0]
        %v6732 = vld [vmem:[%s542 + $0x60] sm:$0xf0]
        %v6733 = vld [vmem:[%s542 + $0x70] sm:$0xf0]
        %v6734 = vld [vmem:[%s542 + $0x80] sm:$0xf0]
        %v6735 = vld [vmem:[%s542 + $0x90] sm:$0xf0]
        %v6736 = vld [vmem:[%s542 + $0xa0] sm:$0xf0]
        %v6737 = vld [vmem:[%s542 + $0xb0] sm:$0xf0]
        %v6738 = vld [vmem:[%s542 + $0xc0] sm:$0xf0]
        %v6739 = vld [vmem:[%s542 + $0xd0] sm:$0xf0]
        %v6740 = vld [vmem:[%s542 + $0xe0] sm:$0xf0]
        %v6741 = vld [vmem:[%s542 + $0xf0] sm:$0xf0]
        %v6774 = vrot.slane %v6726, 4
        %v6775 = vrot.slane %v6419, 4
        %v6776 = vsel %vm933, %v6774, %v6775
        %v6777 = vrot.slane %v6727, 4
        %v6778 = vrot.slane %v6421, 4
        %v6779 = vsel %vm933, %v6777, %v6778
        %v6780 = vrot.slane %v6728, 4
        %v6781 = vrot.slane %v6423, 4
        %v6782 = vsel %vm933, %v6780, %v6781
        %v6783 = vrot.slane %v6729, 4
        %v6784 = vrot.slane %v6425, 4
        %v6785 = vsel %vm933, %v6783, %v6784
        %v6786 = vrot.slane %v6730, 4
        %v6787 = vrot.slane %v6427, 4
        %v6788 = vsel %vm933, %v6786, %v6787
        %v6789 = vrot.slane %v6731, 4
        %v6790 = vrot.slane %v6429, 4
        %v6791 = vsel %vm933, %v6789, %v6790
        %v6792 = vrot.slane %v6732, 4
        %v6793 = vrot.slane %v6431, 4
        %v6794 = vsel %vm933, %v6792, %v6793
        %v6795 = vrot.slane %v6733, 4
        %v6796 = vrot.slane %v6433, 4
        %v6797 = vsel %vm933, %v6795, %v6796
        %v6798 = vrot.slane %v6734, 4
        %v6799 = vrot.slane %v6435, 4
        %v6800 = vsel %vm933, %v6798, %v6799
        %v6801 = vrot.slane %v6735, 4
        %v6802 = vrot.slane %v6437, 4
        %v6803 = vsel %vm933, %v6801, %v6802
        %v6804 = vrot.slane %v6736, 4
        %v6805 = vrot.slane %v6439, 4
        %v6806 = vsel %vm933, %v6804, %v6805
        %v6807 = vrot.slane %v6737, 4
        %v6808 = vrot.slane %v6441, 4
        %v6809 = vsel %vm933, %v6807, %v6808
        %v6810 = vrot.slane %v6738, 4
        %v6811 = vrot.slane %v6443, 4
        %v6812 = vsel %vm933, %v6810, %v6811
        %v6813 = vrot.slane %v6739, 4
        %v6814 = vrot.slane %v6445, 4
        %v6815 = vsel %vm933, %v6813, %v6814
        %v6816 = vrot.slane %v6740, 4
        %v6817 = vrot.slane %v6447, 4
        %v6818 = vsel %vm933, %v6816, %v6817
        %v6819 = vrot.slane %v6741, 4
        %v6820 = vrot.slane %v6449, 4
        %v6821 = vsel %vm933, %v6819, %v6820
        %v6822 = vld [vmem:[%s3 + $0x40] sm:$0xf]
        %v6823 = vld [vmem:[%s3 + $0x44] sm:$0xf]
        %v6824 = vld [vmem:[%s3 + $0x48] sm:$0xf]
        %v6825 = vld [vmem:[%s3 + $0x4c] sm:$0xf]
        %v6830 = vunpack.c.l.b16 %v6822
        %v6831 = vunpack.c.l.b16 %v6823
        %v6832 = vunpack.c.l.b16 %v6824
        %v6833 = vunpack.c.l.b16 %v6825
        %v6834 = vpack.c.b16 %v6831, %v6830
        %v6835 = vpack.c.b16 %v6833, %v6832
        %v6839 = vsel %vm358, %v6776, 0
        %v6842 = vsel %vm358, %v6779, 0
        %v6845 = vsel %vm358, %v6782, 0
        %v6848 = vsel %vm358, %v6785, 0
        %v6851 = vsel %vm358, %v6788, 0
        %v6854 = vsel %vm358, %v6791, 0
        %v6857 = vsel %vm358, %v6794, 0
        %v6860 = vsel %vm358, %v6797, 0
        %v6863 = vsel %vm358, %v6800, 0
        %v6866 = vsel %vm358, %v6803, 0
        %v6869 = vsel %vm358, %v6806, 0
        %v6872 = vsel %vm358, %v6809, 0
        %v6875 = vsel %vm358, %v6812, 0
        %v6878 = vsel %vm358, %v6815, 0
        %v6881 = vsel %vm358, %v6818, 0
        %v6884 = vsel %vm358, %v6821, 0
        %6886 = vmatprep.subr.bf16.mxu0 0
        %6887 = vmatpush1.bf16.msra.mxu0 %v6834
        %6888 = vmatprep.subr.bf16.mxu0 0
        %6889 = vmatpush1.bf16.msra.mxu0 %v6835
        %6890 = vmatprep.subr.bf16.mxu0 0
        %6891 = vmatpush1.bf16.msra.mxu0 0
        %6892 = vmatprep.subr.bf16.mxu0 0
        %6893 = vmatpush1.bf16.msra.mxu0 0
        %6894 = vmatprep.subr.bf16.mxu0 0
        %6895 = vmatpush1.bf16.msra.mxu0 0
        %6896 = vmatprep.subr.bf16.mxu0 0
        %6897 = vmatpush1.bf16.msra.mxu0 0
        %6898 = vmatprep.subr.bf16.mxu0 0
        %6899 = vmatpush1.bf16.msra.mxu0 0
        %6900 = vmatprep.subr.bf16.mxu0 0
        %6901 = vmatpush1.bf16.msra.mxu0 0
        %6902 = vmatprep.subr.bf16.mxu0 0
        %6903 = vmatpush1.bf16.msra.mxu0 0
        %6904 = vmatprep.subr.bf16.mxu0 0
        %6905 = vmatpush1.bf16.msra.mxu0 0
        %6906 = vmatprep.subr.bf16.mxu0 0
        %6907 = vmatpush1.bf16.msra.mxu0 0
        %6908 = vmatprep.subr.bf16.mxu0 0
        %6909 = vmatpush1.bf16.msra.mxu0 0
        %6910 = vmatprep.subr.bf16.mxu0 0
        %6911 = vmatpush1.bf16.msra.mxu0 0
        %6912 = vmatprep.subr.bf16.mxu0 0
        %6913 = vmatpush1.bf16.msra.mxu0 0
        %6914 = vmatprep.subr.bf16.mxu0 0
        %6915 = vmatpush1.bf16.msra.mxu0 0
        %6916 = vmatprep.subr.bf16.mxu0 0
        %6917 = vmatpush1.bf16.msra.mxu0 0
        %6918 = vmatprep.mubr.bf16.mxu0 0
        %6919 = vmatmul.mubr.bf16.gmra.mrb[0].mxu0 %v6839
        %v6920 = vpop.f32.mrb[0].mxu0
        %v6921 = vadd.f32 0.0, %v6920
        %v6922 = vpop.f32.mrb[0].mxu0
        %v6923 = vpop.f32.mrb[0].mxu0
        %v6924 = vadd.f32 0.0, %v6923
        %v6925 = vpop.f32.mrb[0].mxu0
        %6926 = vmatprep.mubr.bf16.mxu0 0
        %6927 = vmatmul.mubr.bf16.gmra.mrb[0].mxu0 %v6842
        %v6928 = vpop.f32.mrb[0].mxu0
        %v6929 = vadd.f32 0.0, %v6928
        %v6930 = vpop.f32.mrb[0].mxu0
        %v6931 = vpop.f32.mrb[0].mxu0
        %v6932 = vadd.f32 0.0, %v6931
        %v6933 = vpop.f32.mrb[0].mxu0
        %6934 = vmatprep.mubr.bf16.mxu0 0
        %6935 = vmatmul.mubr.bf16.gmra.mrb[0].mxu0 %v6845
        %v6936 = vpop.f32.mrb[0].mxu0
        %v6937 = vadd.f32 0.0, %v6936
        %v6938 = vpop.f32.mrb[0].mxu0
        %v6939 = vpop.f32.mrb[0].mxu0
        %v6940 = vadd.f32 0.0, %v6939
        %v6941 = vpop.f32.mrb[0].mxu0
        %6942 = vmatprep.mubr.bf16.mxu0 0
        %6943 = vmatmul.mubr.bf16.gmra.mrb[0].mxu0 %v6848
        %v6944 = vpop.f32.mrb[0].mxu0
        %v6945 = vadd.f32 0.0, %v6944
        %v6946 = vpop.f32.mrb[0].mxu0
        %v6947 = vpop.f32.mrb[0].mxu0
        %v6948 = vadd.f32 0.0, %v6947
        %v6949 = vpop.f32.mrb[0].mxu0
        %6950 = vmatprep.mubr.bf16.mxu0 0
        %6951 = vmatmul.mubr.bf16.gmra.mrb[0].mxu0 %v6851
        %v6952 = vpop.f32.mrb[0].mxu0
        %v6953 = vadd.f32 0.0, %v6952
        %v6954 = vpop.f32.mrb[0].mxu0
        %v6955 = vpop.f32.mrb[0].mxu0
        %v6956 = vadd.f32 0.0, %v6955
        %v6957 = vpop.f32.mrb[0].mxu0
        %6958 = vmatprep.mubr.bf16.mxu0 0
        %6959 = vmatmul.mubr.bf16.gmra.mrb[0].mxu0 %v6854
        %v6960 = vpop.f32.mrb[0].mxu0
        %v6961 = vadd.f32 0.0, %v6960
        %v6962 = vpop.f32.mrb[0].mxu0
        %v6963 = vpop.f32.mrb[0].mxu0
        %v6964 = vadd.f32 0.0, %v6963
        %v6965 = vpop.f32.mrb[0].mxu0
        %6966 = vmatprep.mubr.bf16.mxu0 0
        %6967 = vmatmul.mubr.bf16.gmra.mrb[0].mxu0 %v6857
        %v6968 = vpop.f32.mrb[0].mxu0
        %v6969 = vadd.f32 0.0, %v6968
        %v6970 = vpop.f32.mrb[0].mxu0
        %v6971 = vpop.f32.mrb[0].mxu0
        %v6972 = vadd.f32 0.0, %v6971
        %v6973 = vpop.f32.mrb[0].mxu0
        %6974 = vmatprep.mubr.bf16.mxu0 0
        %6975 = vmatmul.mubr.bf16.gmra.mrb[0].mxu0 %v6860
        %v6976 = vpop.f32.mrb[0].mxu0
        %v6977 = vadd.f32 0.0, %v6976
        %v6978 = vpop.f32.mrb[0].mxu0
        %v6979 = vpop.f32.mrb[0].mxu0
        %v6980 = vadd.f32 0.0, %v6979
        %v6981 = vpop.f32.mrb[0].mxu0
        %6982 = vmatprep.mubr.bf16.mxu0 0
        %6983 = vmatmul.mubr.bf16.gmra.mrb[0].mxu0 %v6863
        %v6984 = vpop.f32.mrb[0].mxu0
        %v6985 = vadd.f32 0.0, %v6984
        %v6986 = vpop.f32.mrb[0].mxu0
        %v6987 = vpop.f32.mrb[0].mxu0
        %v6988 = vadd.f32 0.0, %v6987
        %v6989 = vpop.f32.mrb[0].mxu0
        %6990 = vmatprep.mubr.bf16.mxu0 0
        %6991 = vmatmul.mubr.bf16.gmra.mrb[0].mxu0 %v6866
        %v6992 = vpop.f32.mrb[0].mxu0
        %v6993 = vadd.f32 0.0, %v6992
        %v6994 = vpop.f32.mrb[0].mxu0
        %v6995 = vpop.f32.mrb[0].mxu0
        %v6996 = vadd.f32 0.0, %v6995
        %v6997 = vpop.f32.mrb[0].mxu0
        %6998 = vmatprep.mubr.bf16.mxu0 0
        %6999 = vmatmul.mubr.bf16.gmra.mrb[0].mxu0 %v6869
        %v7000 = vpop.f32.mrb[0].mxu0
        %v7001 = vadd.f32 0.0, %v7000
        %v7002 = vpop.f32.mrb[0].mxu0
        %v7003 = vpop.f32.mrb[0].mxu0
        %v7004 = vadd.f32 0.0, %v7003
        %v7005 = vpop.f32.mrb[0].mxu0
        %7006 = vmatprep.mubr.bf16.mxu0 0
        %7007 = vmatmul.mubr.bf16.gmra.mrb[0].mxu0 %v6872
        %v7008 = vpop.f32.mrb[0].mxu0
        %v7009 = vadd.f32 0.0, %v7008
        %v7010 = vpop.f32.mrb[0].mxu0
        %v7011 = vpop.f32.mrb[0].mxu0
        %v7012 = vadd.f32 0.0, %v7011
        %v7013 = vpop.f32.mrb[0].mxu0
        %7014 = vmatprep.mubr.bf16.mxu0 0
        %7015 = vmatmul.mubr.bf16.gmra.mrb[0].mxu0 %v6875
        %v7016 = vpop.f32.mrb[0].mxu0
        %v7017 = vadd.f32 0.0, %v7016
        %v7018 = vpop.f32.mrb[0].mxu0
        %v7019 = vpop.f32.mrb[0].mxu0
        %v7020 = vadd.f32 0.0, %v7019
        %v7021 = vpop.f32.mrb[0].mxu0
        %7022 = vmatprep.mubr.bf16.mxu0 0
        %7023 = vmatmul.mubr.bf16.gmra.mrb[0].mxu0 %v6878
        %v7024 = vpop.f32.mrb[0].mxu0
        %v7025 = vadd.f32 0.0, %v7024
        %v7026 = vpop.f32.mrb[0].mxu0
        %v7027 = vpop.f32.mrb[0].mxu0
        %v7028 = vadd.f32 0.0, %v7027
        %v7029 = vpop.f32.mrb[0].mxu0
        %7030 = vmatprep.mubr.bf16.mxu0 0
        %7031 = vmatmul.mubr.bf16.gmra.mrb[0].mxu0 %v6881
        %v7032 = vpop.f32.mrb[0].mxu0
        %v7033 = vadd.f32 0.0, %v7032
        %v7034 = vpop.f32.mrb[0].mxu0
        %v7035 = vpop.f32.mrb[0].mxu0
        %v7036 = vadd.f32 0.0, %v7035
        %v7037 = vpop.f32.mrb[0].mxu0
        %7038 = vmatprep.mubr.bf16.mxu0 0
        %7039 = vmatmul.mubr.bf16.gmra.mrb[0].mxu0 %v6884
        %v7040 = vpop.f32.mrb[0].mxu0
        %v7041 = vadd.f32 0.0, %v7040
        %v7042 = vpop.f32.mrb[0].mxu0
        %v7043 = vpop.f32.mrb[0].mxu0
        %v7044 = vadd.f32 0.0, %v7043
        %v7045 = vpop.f32.mrb[0].mxu0
        %7046 = vdwg.mxu0
        %v7051 = vunpack.c.l.b16 %v6722
        %v7052 = vunpack.c.l.b16 %v6723
        %v7053 = vunpack.c.l.b16 %v6724
        %v7054 = vunpack.c.l.b16 %v6725
        %v7055 = vpack.c.b16 %v7052, %v7051
        %v7056 = vpack.c.b16 %v7054, %v7053
        %v7060 = vsel %vm358, %v6466, 0
        %v7063 = vsel %vm358, %v6483, 0
        %v7066 = vsel %vm358, %v6500, 0
        %v7069 = vsel %vm358, %v6517, 0
        %v7072 = vsel %vm358, %v6534, 0
        %v7075 = vsel %vm358, %v6551, 0
        %v7078 = vsel %vm358, %v6568, 0
        %v7081 = vsel %vm358, %v6585, 0
        %v7084 = vsel %vm358, %v6602, 0
        %v7087 = vsel %vm358, %v6619, 0
        %v7090 = vsel %vm358, %v6636, 0
        %v7093 = vsel %vm358, %v6653, 0
        %v7096 = vsel %vm358, %v6670, 0
        %v7099 = vsel %vm358, %v6687, 0
        %v7102 = vsel %vm358, %v6704, 0
        %v7105 = vsel %vm358, %v6721, 0
        %7107 = vmatprep.subr.bf16.mxu0 0
        %7108 = vmatpush1.bf16.msra.mxu0 %v7055
        %7109 = vmatprep.subr.bf16.mxu0 0
        %7110 = vmatpush1.bf16.msra.mxu0 %v7056
        %7111 = vmatprep.subr.bf16.mxu0 0
        %7112 = vmatpush1.bf16.msra.mxu0 0
        %7113 = vmatprep.subr.bf16.mxu0 0
        %7114 = vmatpush1.bf16.msra.mxu0 0
        %7115 = vmatprep.subr.bf16.mxu0 0
        %7116 = vmatpush1.bf16.msra.mxu0 0
        %7117 = vmatprep.subr.bf16.mxu0 0
        %7118 = vmatpush1.bf16.msra.mxu0 0
        %7119 = vmatprep.subr.bf16.mxu0 0
        %7120 = vmatpush1.bf16.msra.mxu0 0
        %7121 = vmatprep.subr.bf16.mxu0 0
        %7122 = vmatpush1.bf16.msra.mxu0 0
        %7123 = vmatprep.subr.bf16.mxu0 0
        %7124 = vmatpush1.bf16.msra.mxu0 0
        %7125 = vmatprep.subr.bf16.mxu0 0
        %7126 = vmatpush1.bf16.msra.mxu0 0
        %7127 = vmatprep.subr.bf16.mxu0 0
        %7128 = vmatpush1.bf16.msra.mxu0 0
        %7129 = vmatprep.subr.bf16.mxu0 0
        %7130 = vmatpush1.bf16.msra.mxu0 0
        %7131 = vmatprep.subr.bf16.mxu0 0
        %7132 = vmatpush1.bf16.msra.mxu0 0
        %7133 = vmatprep.subr.bf16.mxu0 0
        %7134 = vmatpush1.bf16.msra.mxu0 0
        %7135 = vmatprep.subr.bf16.mxu0 0
        %7136 = vmatpush1.bf16.msra.mxu0 0
        %7137 = vmatprep.subr.bf16.mxu0 0
        %7138 = vmatpush1.bf16.msra.mxu0 0
        %7139 = vmatprep.mubr.bf16.mxu0 0
        %7140 = vmatmul.mubr.bf16.gmra.mrb[0].mxu0 %v7060
        %v7141 = vpop.f32.mrb[0].mxu0
        %v7142 = vadd.f32 %v6921, %v7141
        %v7143 = vpop.f32.mrb[0].mxu0
        %v7144 = vpop.f32.mrb[0].mxu0
        %v7145 = vadd.f32 %v6924, %v7144
        %v7146 = vpop.f32.mrb[0].mxu0
        %7147 = vmatprep.mubr.bf16.mxu0 0
        %7148 = vmatmul.mubr.bf16.gmra.mrb[0].mxu0 %v7063
        %v7149 = vpop.f32.mrb[0].mxu0
        %v7150 = vadd.f32 %v6929, %v7149
        %v7151 = vpop.f32.mrb[0].mxu0
        %v7152 = vpop.f32.mrb[0].mxu0
        %v7153 = vadd.f32 %v6932, %v7152
        %v7154 = vpop.f32.mrb[0].mxu0
        %7155 = vmatprep.mubr.bf16.mxu0 0
        %7156 = vmatmul.mubr.bf16.gmra.mrb[0].mxu0 %v7066
        %v7157 = vpop.f32.mrb[0].mxu0
        %v7158 = vadd.f32 %v6937, %v7157
        %v7159 = vpop.f32.mrb[0].mxu0
        %v7160 = vpop.f32.mrb[0].mxu0
        %v7161 = vadd.f32 %v6940, %v7160
        %v7162 = vpop.f32.mrb[0].mxu0
        %7163 = vmatprep.mubr.bf16.mxu0 0
        %7164 = vmatmul.mubr.bf16.gmra.mrb[0].mxu0 %v7069
        %v7165 = vpop.f32.mrb[0].mxu0
        %v7166 = vadd.f32 %v6945, %v7165
        %v7167 = vpop.f32.mrb[0].mxu0
        %v7168 = vpop.f32.mrb[0].mxu0
        %v7169 = vadd.f32 %v6948, %v7168
        %v7170 = vpop.f32.mrb[0].mxu0
        %7171 = vmatprep.mubr.bf16.mxu0 0
        %7172 = vmatmul.mubr.bf16.gmra.mrb[0].mxu0 %v7072
        %v7173 = vpop.f32.mrb[0].mxu0
        %v7174 = vadd.f32 %v6953, %v7173
        %v7175 = vpop.f32.mrb[0].mxu0
        %v7176 = vpop.f32.mrb[0].mxu0
        %v7177 = vadd.f32 %v6956, %v7176
        %v7178 = vpop.f32.mrb[0].mxu0
        %7179 = vmatprep.mubr.bf16.mxu0 0
        %7180 = vmatmul.mubr.bf16.gmra.mrb[0].mxu0 %v7075
        %v7181 = vpop.f32.mrb[0].mxu0
        %v7182 = vadd.f32 %v6961, %v7181
        %v7183 = vpop.f32.mrb[0].mxu0
        %v7184 = vpop.f32.mrb[0].mxu0
        %v7185 = vadd.f32 %v6964, %v7184
        %v7186 = vpop.f32.mrb[0].mxu0
        %7187 = vmatprep.mubr.bf16.mxu0 0
        %7188 = vmatmul.mubr.bf16.gmra.mrb[0].mxu0 %v7078
        %v7189 = vpop.f32.mrb[0].mxu0
        %v7190 = vadd.f32 %v6969, %v7189
        %v7191 = vpop.f32.mrb[0].mxu0
        %v7192 = vpop.f32.mrb[0].mxu0
        %v7193 = vadd.f32 %v6972, %v7192
        %v7194 = vpop.f32.mrb[0].mxu0
        %7195 = vmatprep.mubr.bf16.mxu0 0
        %7196 = vmatmul.mubr.bf16.gmra.mrb[0].mxu0 %v7081
        %v7197 = vpop.f32.mrb[0].mxu0
        %v7198 = vadd.f32 %v6977, %v7197
        %v7199 = vpop.f32.mrb[0].mxu0
        %v7200 = vpop.f32.mrb[0].mxu0
        %v7201 = vadd.f32 %v6980, %v7200
        %v7202 = vpop.f32.mrb[0].mxu0
        %7203 = vmatprep.mubr.bf16.mxu0 0
        %7204 = vmatmul.mubr.bf16.gmra.mrb[0].mxu0 %v7084
        %v7205 = vpop.f32.mrb[0].mxu0
        %v7206 = vadd.f32 %v6985, %v7205
        %v7207 = vpop.f32.mrb[0].mxu0
        %v7208 = vpop.f32.mrb[0].mxu0
        %v7209 = vadd.f32 %v6988, %v7208
        %v7210 = vpop.f32.mrb[0].mxu0
        %7211 = vmatprep.mubr.bf16.mxu0 0
        %7212 = vmatmul.mubr.bf16.gmra.mrb[0].mxu0 %v7087
        %v7213 = vpop.f32.mrb[0].mxu0
        %v7214 = vadd.f32 %v6993, %v7213
        %v7215 = vpop.f32.mrb[0].mxu0
        %v7216 = vpop.f32.mrb[0].mxu0
        %v7217 = vadd.f32 %v6996, %v7216
        %v7218 = vpop.f32.mrb[0].mxu0
        %7219 = vmatprep.mubr.bf16.mxu0 0
        %7220 = vmatmul.mubr.bf16.gmra.mrb[0].mxu0 %v7090
        %v7221 = vpop.f32.mrb[0].mxu0
        %v7222 = vadd.f32 %v7001, %v7221
        %v7223 = vpop.f32.mrb[0].mxu0
        %v7224 = vpop.f32.mrb[0].mxu0
        %v7225 = vadd.f32 %v7004, %v7224
        %v7226 = vpop.f32.mrb[0].mxu0
        %7227 = vmatprep.mubr.bf16.mxu0 0
        %7228 = vmatmul.mubr.bf16.gmra.mrb[0].mxu0 %v7093
        %v7229 = vpop.f32.mrb[0].mxu0
        %v7230 = vadd.f32 %v7009, %v7229
        %v7231 = vpop.f32.mrb[0].mxu0
        %v7232 = vpop.f32.mrb[0].mxu0
        %v7233 = vadd.f32 %v7012, %v7232
        %v7234 = vpop.f32.mrb[0].mxu0
        %7235 = vmatprep.mubr.bf16.mxu0 0
        %7236 = vmatmul.mubr.bf16.gmra.mrb[0].mxu0 %v7096
        %v7237 = vpop.f32.mrb[0].mxu0
        %v7238 = vadd.f32 %v7017, %v7237
        %v7239 = vpop.f32.mrb[0].mxu0
        %v7240 = vpop.f32.mrb[0].mxu0
        %v7241 = vadd.f32 %v7020, %v7240
        %v7242 = vpop.f32.mrb[0].mxu0
        %7243 = vmatprep.mubr.bf16.mxu0 0
        %7244 = vmatmul.mubr.bf16.gmra.mrb[0].mxu0 %v7099
        %v7245 = vpop.f32.mrb[0].mxu0
        %v7246 = vadd.f32 %v7025, %v7245
        %v7247 = vpop.f32.mrb[0].mxu0
        %v7248 = vpop.f32.mrb[0].mxu0
        %v7249 = vadd.f32 %v7028, %v7248
        %v7250 = vpop.f32.mrb[0].mxu0
        %7251 = vmatprep.mubr.bf16.mxu0 0
        %7252 = vmatmul.mubr.bf16.gmra.mrb[0].mxu0 %v7102
        %v7253 = vpop.f32.mrb[0].mxu0
        %v7254 = vadd.f32 %v7033, %v7253
        %v7255 = vpop.f32.mrb[0].mxu0
        %v7256 = vpop.f32.mrb[0].mxu0
        %v7257 = vadd.f32 %v7036, %v7256
        %v7258 = vpop.f32.mrb[0].mxu0
        %7259 = vmatprep.mubr.bf16.mxu0 0
        %7260 = vmatmul.mubr.bf16.gmra.mrb[0].mxu0 %v7105
        %v7261 = vpop.f32.mrb[0].mxu0
        %v7262 = vadd.f32 %v7041, %v7261
        %v7263 = vpop.f32.mrb[0].mxu0
        %v7264 = vpop.f32.mrb[0].mxu0
        %v7265 = vadd.f32 %v7044, %v7264
        %v7266 = vpop.f32.mrb[0].mxu0
        %7267 = vdwg.mxu0
        %v7268 = vld [vmem:[%s542 + $0x8] sm:$0x1f]
        %v7269 = vld [vmem:[%s542 + $0x18] sm:$0x1f]
        %v7270 = vld [vmem:[%s542 + $0x28] sm:$0x1f]
        %v7271 = vld [vmem:[%s542 + $0x38] sm:$0x1f]
        %v7272 = vld [vmem:[%s542 + $0x48] sm:$0x1f]
        %v7273 = vld [vmem:[%s542 + $0x58] sm:$0x1f]
        %v7274 = vld [vmem:[%s542 + $0x68] sm:$0x1f]
        %v7275 = vld [vmem:[%s542 + $0x78] sm:$0x1f]
        %v7276 = vld [vmem:[%s542 + $0x88] sm:$0x1f]
        %v7277 = vld [vmem:[%s542 + $0x98] sm:$0x1f]
        %v7278 = vld [vmem:[%s542 + $0xa8] sm:$0x1f]
        %v7279 = vld [vmem:[%s542 + $0xb8] sm:$0x1f]
        %v7280 = vld [vmem:[%s542 + $0xc8] sm:$0x1f]
        %v7281 = vld [vmem:[%s542 + $0xd8] sm:$0x1f]
        %v7282 = vld [vmem:[%s542 + $0xe8] sm:$0x1f]
        %v7283 = vld [vmem:[%s542 + $0xf8] sm:$0x1f]
        %v7285 = vshrl.u32 %v6726, 16
        %v7287 = vrot.slane %v7285, 4
        %v7288 = vshll.u32 %v6726, 16
        %v7290 = vrot.slane %v7288, 5
        %v7291 = vor.u32 %v7287, %v7290
        %v7293 = vshrl.u32 %v7268, 16
        %v7295 = vrot.slane %v7293, 4
        %v7296 = vshll.u32 %v7268, 16
        %v7298 = vrot.slane %v7296, 5
        %v7299 = vor.u32 %v7295, %v7298
        %v7300 = vsel %vm1444, %v7291, %v7299
        %v7302 = vshrl.u32 %v6727, 16
        %v7304 = vrot.slane %v7302, 4
        %v7305 = vshll.u32 %v6727, 16
        %v7307 = vrot.slane %v7305, 5
        %v7308 = vor.u32 %v7304, %v7307
        %v7310 = vshrl.u32 %v7269, 16
        %v7312 = vrot.slane %v7310, 4
        %v7313 = vshll.u32 %v7269, 16
        %v7315 = vrot.slane %v7313, 5
        %v7316 = vor.u32 %v7312, %v7315
        %v7317 = vsel %vm1444, %v7308, %v7316
        %v7319 = vshrl.u32 %v6728, 16
        %v7321 = vrot.slane %v7319, 4
        %v7322 = vshll.u32 %v6728, 16
        %v7324 = vrot.slane %v7322, 5
        %v7325 = vor.u32 %v7321, %v7324
        %v7327 = vshrl.u32 %v7270, 16
        %v7329 = vrot.slane %v7327, 4
        %v7330 = vshll.u32 %v7270, 16
        %v7332 = vrot.slane %v7330, 5
        %v7333 = vor.u32 %v7329, %v7332
        %v7334 = vsel %vm1444, %v7325, %v7333
        %v7336 = vshrl.u32 %v6729, 16
        %v7338 = vrot.slane %v7336, 4
        %v7339 = vshll.u32 %v6729, 16
        %v7341 = vrot.slane %v7339, 5
        %v7342 = vor.u32 %v7338, %v7341
        %v7344 = vshrl.u32 %v7271, 16
        %v7346 = vrot.slane %v7344, 4
        %v7347 = vshll.u32 %v7271, 16
        %v7349 = vrot.slane %v7347, 5
        %v7350 = vor.u32 %v7346, %v7349
        %v7351 = vsel %vm1444, %v7342, %v7350
        %v7353 = vshrl.u32 %v6730, 16
        %v7355 = vrot.slane %v7353, 4
        %v7356 = vshll.u32 %v6730, 16
        %v7358 = vrot.slane %v7356, 5
        %v7359 = vor.u32 %v7355, %v7358
        %v7361 = vshrl.u32 %v7272, 16
        %v7363 = vrot.slane %v7361, 4
        %v7364 = vshll.u32 %v7272, 16
        %v7366 = vrot.slane %v7364, 5
        %v7367 = vor.u32 %v7363, %v7366
        %v7368 = vsel %vm1444, %v7359, %v7367
        %v7370 = vshrl.u32 %v6731, 16
        %v7372 = vrot.slane %v7370, 4
        %v7373 = vshll.u32 %v6731, 16
        %v7375 = vrot.slane %v7373, 5
        %v7376 = vor.u32 %v7372, %v7375
        %v7378 = vshrl.u32 %v7273, 16
        %v7380 = vrot.slane %v7378, 4
        %v7381 = vshll.u32 %v7273, 16
        %v7383 = vrot.slane %v7381, 5
        %v7384 = vor.u32 %v7380, %v7383
        %v7385 = vsel %vm1444, %v7376, %v7384
        %v7387 = vshrl.u32 %v6732, 16
        %v7389 = vrot.slane %v7387, 4
        %v7390 = vshll.u32 %v6732, 16
        %v7392 = vrot.slane %v7390, 5
        %v7393 = vor.u32 %v7389, %v7392
        %v7395 = vshrl.u32 %v7274, 16
        %v7397 = vrot.slane %v7395, 4
        %v7398 = vshll.u32 %v7274, 16
        %v7400 = vrot.slane %v7398, 5
        %v7401 = vor.u32 %v7397, %v7400
        %v7402 = vsel %vm1444, %v7393, %v7401
        %v7404 = vshrl.u32 %v6733, 16
        %v7406 = vrot.slane %v7404, 4
        %v7407 = vshll.u32 %v6733, 16
        %v7409 = vrot.slane %v7407, 5
        %v7410 = vor.u32 %v7406, %v7409
        %v7412 = vshrl.u32 %v7275, 16
        %v7414 = vrot.slane %v7412, 4
        %v7415 = vshll.u32 %v7275, 16
        %v7417 = vrot.slane %v7415, 5
        %v7418 = vor.u32 %v7414, %v7417
        %v7419 = vsel %vm1444, %v7410, %v7418
        %v7421 = vshrl.u32 %v6734, 16
        %v7423 = vrot.slane %v7421, 4
        %v7424 = vshll.u32 %v6734, 16
        %v7426 = vrot.slane %v7424, 5
        %v7427 = vor.u32 %v7423, %v7426
        %v7429 = vshrl.u32 %v7276, 16
        %v7431 = vrot.slane %v7429, 4
        %v7432 = vshll.u32 %v7276, 16
        %v7434 = vrot.slane %v7432, 5
        %v7435 = vor.u32 %v7431, %v7434
        %v7436 = vsel %vm1444, %v7427, %v7435
        %v7438 = vshrl.u32 %v6735, 16
        %v7440 = vrot.slane %v7438, 4
        %v7441 = vshll.u32 %v6735, 16
        %v7443 = vrot.slane %v7441, 5
        %v7444 = vor.u32 %v7440, %v7443
        %v7446 = vshrl.u32 %v7277, 16
        %v7448 = vrot.slane %v7446, 4
        %v7449 = vshll.u32 %v7277, 16
        %v7451 = vrot.slane %v7449, 5
        %v7452 = vor.u32 %v7448, %v7451
        %v7453 = vsel %vm1444, %v7444, %v7452
        %v7455 = vshrl.u32 %v6736, 16
        %v7457 = vrot.slane %v7455, 4
        %v7458 = vshll.u32 %v6736, 16
        %v7460 = vrot.slane %v7458, 5
        %v7461 = vor.u32 %v7457, %v7460
        %v7463 = vshrl.u32 %v7278, 16
        %v7465 = vrot.slane %v7463, 4
        %v7466 = vshll.u32 %v7278, 16
        %v7468 = vrot.slane %v7466, 5
        %v7469 = vor.u32 %v7465, %v7468
        %v7470 = vsel %vm1444, %v7461, %v7469
        %v7472 = vshrl.u32 %v6737, 16
        %v7474 = vrot.slane %v7472, 4
        %v7475 = vshll.u32 %v6737, 16
        %v7477 = vrot.slane %v7475, 5
        %v7478 = vor.u32 %v7474, %v7477
        %v7480 = vshrl.u32 %v7279, 16
        %v7482 = vrot.slane %v7480, 4
        %v7483 = vshll.u32 %v7279, 16
        %v7485 = vrot.slane %v7483, 5
        %v7486 = vor.u32 %v7482, %v7485
        %v7487 = vsel %vm1444, %v7478, %v7486
        %v7489 = vshrl.u32 %v6738, 16
        %v7491 = vrot.slane %v7489, 4
        %v7492 = vshll.u32 %v6738, 16
        %v7494 = vrot.slane %v7492, 5
        %v7495 = vor.u32 %v7491, %v7494
        %v7497 = vshrl.u32 %v7280, 16
        %v7499 = vrot.slane %v7497, 4
        %v7500 = vshll.u32 %v7280, 16
        %v7502 = vrot.slane %v7500, 5
        %v7503 = vor.u32 %v7499, %v7502
        %v7504 = vsel %vm1444, %v7495, %v7503
        %v7506 = vshrl.u32 %v6739, 16
        %v7508 = vrot.slane %v7506, 4
        %v7509 = vshll.u32 %v6739, 16
        %v7511 = vrot.slane %v7509, 5
        %v7512 = vor.u32 %v7508, %v7511
        %v7514 = vshrl.u32 %v7281, 16
        %v7516 = vrot.slane %v7514, 4
        %v7517 = vshll.u32 %v7281, 16
        %v7519 = vrot.slane %v7517, 5
        %v7520 = vor.u32 %v7516, %v7519
        %v7521 = vsel %vm1444, %v7512, %v7520
        %v7523 = vshrl.u32 %v6740, 16
        %v7525 = vrot.slane %v7523, 4
        %v7526 = vshll.u32 %v6740, 16
        %v7528 = vrot.slane %v7526, 5
        %v7529 = vor.u32 %v7525, %v7528
        %v7531 = vshrl.u32 %v7282, 16
        %v7533 = vrot.slane %v7531, 4
        %v7534 = vshll.u32 %v7282, 16
        %v7536 = vrot.slane %v7534, 5
        %v7537 = vor.u32 %v7533, %v7536
        %v7538 = vsel %vm1444, %v7529, %v7537
        %v7540 = vshrl.u32 %v6741, 16
        %v7542 = vrot.slane %v7540, 4
        %v7543 = vshll.u32 %v6741, 16
        %v7545 = vrot.slane %v7543, 5
        %v7546 = vor.u32 %v7542, %v7545
        %v7548 = vshrl.u32 %v7283, 16
        %v7550 = vrot.slane %v7548, 4
        %v7551 = vshll.u32 %v7283, 16
        %v7553 = vrot.slane %v7551, 5
        %v7554 = vor.u32 %v7550, %v7553
        %v7555 = vsel %vm1444, %v7546, %v7554
        %v7556 = vld [vmem:[%s3 + $0x50] sm:$0xf]
        %v7557 = vld [vmem:[%s3 + $0x54] sm:$0xf]
        %v7558 = vld [vmem:[%s3 + $0x58] sm:$0xf]
        %v7559 = vld [vmem:[%s3 + $0x5c] sm:$0xf]
        %v7564 = vunpack.c.l.b16 %v7556
        %v7565 = vunpack.c.l.b16 %v7557
        %v7566 = vunpack.c.l.b16 %v7558
        %v7567 = vunpack.c.l.b16 %v7559
        %v7568 = vpack.c.b16 %v7565, %v7564
        %v7569 = vpack.c.b16 %v7567, %v7566
        %v7573 = vsel %vm358, %v7300, 0
        %v7576 = vsel %vm358, %v7317, 0
        %v7579 = vsel %vm358, %v7334, 0
        %v7582 = vsel %vm358, %v7351, 0
        %v7585 = vsel %vm358, %v7368, 0
        %v7588 = vsel %vm358, %v7385, 0
        %v7591 = vsel %vm358, %v7402, 0
        %v7594 = vsel %vm358, %v7419, 0
        %v7597 = vsel %vm358, %v7436, 0
        %v7600 = vsel %vm358, %v7453, 0
        %v7603 = vsel %vm358, %v7470, 0
        %v7606 = vsel %vm358, %v7487, 0
        %v7609 = vsel %vm358, %v7504, 0
        %v7612 = vsel %vm358, %v7521, 0
        %v7615 = vsel %vm358, %v7538, 0
        %v7618 = vsel %vm358, %v7555, 0
        %7620 = vmatprep.subr.bf16.mxu0 0
        %7621 = vmatpush1.bf16.msra.mxu0 %v7568
        %7622 = vmatprep.subr.bf16.mxu0 0
        %7623 = vmatpush1.bf16.msra.mxu0 %v7569
        %7624 = vmatprep.subr.bf16.mxu0 0
        %7625 = vmatpush1.bf16.msra.mxu0 0
        %7626 = vmatprep.subr.bf16.mxu0 0
        %7627 = vmatpush1.bf16.msra.mxu0 0
        %7628 = vmatprep.subr.bf16.mxu0 0
        %7629 = vmatpush1.bf16.msra.mxu0 0
        %7630 = vmatprep.subr.bf16.mxu0 0
        %7631 = vmatpush1.bf16.msra.mxu0 0
        %7632 = vmatprep.subr.bf16.mxu0 0
        %7633 = vmatpush1.bf16.msra.mxu0 0
        %7634 = vmatprep.subr.bf16.mxu0 0
        %7635 = vmatpush1.bf16.msra.mxu0 0
        %7636 = vmatprep.subr.bf16.mxu0 0
        %7637 = vmatpush1.bf16.msra.mxu0 0
        %7638 = vmatprep.subr.bf16.mxu0 0
        %7639 = vmatpush1.bf16.msra.mxu0 0
        %7640 = vmatprep.subr.bf16.mxu0 0
        %7641 = vmatpush1.bf16.msra.mxu0 0
        %7642 = vmatprep.subr.bf16.mxu0 0
        %7643 = vmatpush1.bf16.msra.mxu0 0
        %7644 = vmatprep.subr.bf16.mxu0 0
        %7645 = vmatpush1.bf16.msra.mxu0 0
        %7646 = vmatprep.subr.bf16.mxu0 0
        %7647 = vmatpush1.bf16.msra.mxu0 0
        %7648 = vmatprep.subr.bf16.mxu0 0
        %7649 = vmatpush1.bf16.msra.mxu0 0
        %7650 = vmatprep.subr.bf16.mxu0 0
        %7651 = vmatpush1.bf16.msra.mxu0 0
        %7652 = vmatprep.mubr.bf16.mxu0 0
        %7653 = vmatmul.mubr.bf16.gmra.mrb[0].mxu0 %v7573
        %v7654 = vpop.f32.mrb[0].mxu0
        %v7655 = vadd.f32 0.0, %v7654
        %v7656 = vpop.f32.mrb[0].mxu0
        %v7657 = vpop.f32.mrb[0].mxu0
        %v7658 = vadd.f32 0.0, %v7657
        %v7659 = vpop.f32.mrb[0].mxu0
        %7660 = vmatprep.mubr.bf16.mxu0 0
        %7661 = vmatmul.mubr.bf16.gmra.mrb[0].mxu0 %v7576
        %v7662 = vpop.f32.mrb[0].mxu0
        %v7663 = vadd.f32 0.0, %v7662
        %v7664 = vpop.f32.mrb[0].mxu0
        %v7665 = vpop.f32.mrb[0].mxu0
        %v7666 = vadd.f32 0.0, %v7665
        %v7667 = vpop.f32.mrb[0].mxu0
        %7668 = vmatprep.mubr.bf16.mxu0 0
        %7669 = vmatmul.mubr.bf16.gmra.mrb[0].mxu0 %v7579
        %v7670 = vpop.f32.mrb[0].mxu0
        %v7671 = vadd.f32 0.0, %v7670
        %v7672 = vpop.f32.mrb[0].mxu0
        %v7673 = vpop.f32.mrb[0].mxu0
        %v7674 = vadd.f32 0.0, %v7673
        %v7675 = vpop.f32.mrb[0].mxu0
        %7676 = vmatprep.mubr.bf16.mxu0 0
        %7677 = vmatmul.mubr.bf16.gmra.mrb[0].mxu0 %v7582
        %v7678 = vpop.f32.mrb[0].mxu0
        %v7679 = vadd.f32 0.0, %v7678
        %v7680 = vpop.f32.mrb[0].mxu0
        %v7681 = vpop.f32.mrb[0].mxu0
        %v7682 = vadd.f32 0.0, %v7681
        %v7683 = vpop.f32.mrb[0].mxu0
        %7684 = vmatprep.mubr.bf16.mxu0 0
        %7685 = vmatmul.mubr.bf16.gmra.mrb[0].mxu0 %v7585
        %v7686 = vpop.f32.mrb[0].mxu0
        %v7687 = vadd.f32 0.0, %v7686
        %v7688 = vpop.f32.mrb[0].mxu0
        %v7689 = vpop.f32.mrb[0].mxu0
        %v7690 = vadd.f32 0.0, %v7689
        %v7691 = vpop.f32.mrb[0].mxu0
        %7692 = vmatprep.mubr.bf16.mxu0 0
        %7693 = vmatmul.mubr.bf16.gmra.mrb[0].mxu0 %v7588
        %v7694 = vpop.f32.mrb[0].mxu0
        %v7695 = vadd.f32 0.0, %v7694
        %v7696 = vpop.f32.mrb[0].mxu0
        %v7697 = vpop.f32.mrb[0].mxu0
        %v7698 = vadd.f32 0.0, %v7697
        %v7699 = vpop.f32.mrb[0].mxu0
        %7700 = vmatprep.mubr.bf16.mxu0 0
        %7701 = vmatmul.mubr.bf16.gmra.mrb[0].mxu0 %v7591
        %v7702 = vpop.f32.mrb[0].mxu0
        %v7703 = vadd.f32 0.0, %v7702
        %v7704 = vpop.f32.mrb[0].mxu0
        %v7705 = vpop.f32.mrb[0].mxu0
        %v7706 = vadd.f32 0.0, %v7705
        %v7707 = vpop.f32.mrb[0].mxu0
        %7708 = vmatprep.mubr.bf16.mxu0 0
        %7709 = vmatmul.mubr.bf16.gmra.mrb[0].mxu0 %v7594
        %v7710 = vpop.f32.mrb[0].mxu0
        %v7711 = vadd.f32 0.0, %v7710
        %v7712 = vpop.f32.mrb[0].mxu0
        %v7713 = vpop.f32.mrb[0].mxu0
        %v7714 = vadd.f32 0.0, %v7713
        %v7715 = vpop.f32.mrb[0].mxu0
        %7716 = vmatprep.mubr.bf16.mxu0 0
        %7717 = vmatmul.mubr.bf16.gmra.mrb[0].mxu0 %v7597
        %v7718 = vpop.f32.mrb[0].mxu0
        %v7719 = vadd.f32 0.0, %v7718
        %v7720 = vpop.f32.mrb[0].mxu0
        %v7721 = vpop.f32.mrb[0].mxu0
        %v7722 = vadd.f32 0.0, %v7721
        %v7723 = vpop.f32.mrb[0].mxu0
        %7724 = vmatprep.mubr.bf16.mxu0 0
        %7725 = vmatmul.mubr.bf16.gmra.mrb[0].mxu0 %v7600
        %v7726 = vpop.f32.mrb[0].mxu0
        %v7727 = vadd.f32 0.0, %v7726
        %v7728 = vpop.f32.mrb[0].mxu0
        %v7729 = vpop.f32.mrb[0].mxu0
        %v7730 = vadd.f32 0.0, %v7729
        %v7731 = vpop.f32.mrb[0].mxu0
        %7732 = vmatprep.mubr.bf16.mxu0 0
        %7733 = vmatmul.mubr.bf16.gmra.mrb[0].mxu0 %v7603
        %v7734 = vpop.f32.mrb[0].mxu0
        %v7735 = vadd.f32 0.0, %v7734
        %v7736 = vpop.f32.mrb[0].mxu0
        %v7737 = vpop.f32.mrb[0].mxu0
        %v7738 = vadd.f32 0.0, %v7737
        %v7739 = vpop.f32.mrb[0].mxu0
        %7740 = vmatprep.mubr.bf16.mxu0 0
        %7741 = vmatmul.mubr.bf16.gmra.mrb[0].mxu0 %v7606
        %v7742 = vpop.f32.mrb[0].mxu0
        %v7743 = vadd.f32 0.0, %v7742
        %v7744 = vpop.f32.mrb[0].mxu0
        %v7745 = vpop.f32.mrb[0].mxu0
        %v7746 = vadd.f32 0.0, %v7745
        %v7747 = vpop.f32.mrb[0].mxu0
        %7748 = vmatprep.mubr.bf16.mxu0 0
        %7749 = vmatmul.mubr.bf16.gmra.mrb[0].mxu0 %v7609
        %v7750 = vpop.f32.mrb[0].mxu0
        %v7751 = vadd.f32 0.0, %v7750
        %v7752 = vpop.f32.mrb[0].mxu0
        %v7753 = vpop.f32.mrb[0].mxu0
        %v7754 = vadd.f32 0.0, %v7753
        %v7755 = vpop.f32.mrb[0].mxu0
        %7756 = vmatprep.mubr.bf16.mxu0 0
        %7757 = vmatmul.mubr.bf16.gmra.mrb[0].mxu0 %v7612
        %v7758 = vpop.f32.mrb[0].mxu0
        %v7759 = vadd.f32 0.0, %v7758
        %v7760 = vpop.f32.mrb[0].mxu0
        %v7761 = vpop.f32.mrb[0].mxu0
        %v7762 = vadd.f32 0.0, %v7761
        %v7763 = vpop.f32.mrb[0].mxu0
        %7764 = vmatprep.mubr.bf16.mxu0 0
        %7765 = vmatmul.mubr.bf16.gmra.mrb[0].mxu0 %v7615
        %v7766 = vpop.f32.mrb[0].mxu0
        %v7767 = vadd.f32 0.0, %v7766
        %v7768 = vpop.f32.mrb[0].mxu0
        %v7769 = vpop.f32.mrb[0].mxu0
        %v7770 = vadd.f32 0.0, %v7769
        %v7771 = vpop.f32.mrb[0].mxu0
        %7772 = vmatprep.mubr.bf16.mxu0 0
        %7773 = vmatmul.mubr.bf16.gmra.mrb[0].mxu0 %v7618
        %v7774 = vpop.f32.mrb[0].mxu0
        %v7775 = vadd.f32 0.0, %v7774
        %v7776 = vpop.f32.mrb[0].mxu0
        %v7777 = vpop.f32.mrb[0].mxu0
        %v7778 = vadd.f32 0.0, %v7777
        %v7779 = vpop.f32.mrb[0].mxu0
        %7780 = vdwg.mxu0
        %v7781 = vadd.f32 %v7142, %v7655
        %v7782 = vadd.f32 %v7145, %v7658
        %v7783 = vadd.f32 %v7150, %v7663
        %v7784 = vadd.f32 %v7153, %v7666
        %v7785 = vadd.f32 %v7158, %v7671
        %v7786 = vadd.f32 %v7161, %v7674
        %v7787 = vadd.f32 %v7166, %v7679
        %v7788 = vadd.f32 %v7169, %v7682
        %v7789 = vadd.f32 %v7174, %v7687
        %v7790 = vadd.f32 %v7177, %v7690
        %v7791 = vadd.f32 %v7182, %v7695
        %v7792 = vadd.f32 %v7185, %v7698
        %v7793 = vadd.f32 %v7190, %v7703
        %v7794 = vadd.f32 %v7193, %v7706
        %v7795 = vadd.f32 %v7198, %v7711
        %v7796 = vadd.f32 %v7201, %v7714
        %v7797 = vadd.f32 %v7206, %v7719
        %v7798 = vadd.f32 %v7209, %v7722
        %v7799 = vadd.f32 %v7214, %v7727
        %v7800 = vadd.f32 %v7217, %v7730
        %v7801 = vadd.f32 %v7222, %v7735
        %v7802 = vadd.f32 %v7225, %v7738
        %v7803 = vadd.f32 %v7230, %v7743
        %v7804 = vadd.f32 %v7233, %v7746
        %v7805 = vadd.f32 %v7238, %v7751
        %v7806 = vadd.f32 %v7241, %v7754
        %v7807 = vadd.f32 %v7246, %v7759
        %v7808 = vadd.f32 %v7249, %v7762
        %v7809 = vadd.f32 %v7254, %v7767
        %v7810 = vadd.f32 %v7257, %v7770
        %v7811 = vadd.f32 %v7262, %v7775
        %v7812 = vadd.f32 %v7265, %v7778
        %v7813 = vld [vmem:[%s3369] sm:$0xf8]
        %v7814 = vld [vmem:[%s3369 + $0x8] sm:$0xf]
        %v7815 = vld [vmem:[%s3369 + $0x10] sm:$0xf8]
        %v7816 = vld [vmem:[%s3369 + $0x18] sm:$0xf]
        %v7817 = vld [vmem:[%s3369 + $0x20] sm:$0xf8]
        %v7818 = vld [vmem:[%s3369 + $0x28] sm:$0xf]
        %v7819 = vld [vmem:[%s3369 + $0x30] sm:$0xf8]
        %v7820 = vld [vmem:[%s3369 + $0x38] sm:$0xf]
        %v7821 = vld [vmem:[%s3369 + $0x40] sm:$0xf8]
        %v7822 = vld [vmem:[%s3369 + $0x48] sm:$0xf]
        %v7823 = vld [vmem:[%s3369 + $0x50] sm:$0xf8]
        %v7824 = vld [vmem:[%s3369 + $0x58] sm:$0xf]
        %v7825 = vld [vmem:[%s3369 + $0x60] sm:$0xf8]
        %v7826 = vld [vmem:[%s3369 + $0x68] sm:$0xf]
        %v7827 = vld [vmem:[%s3369 + $0x70] sm:$0xf8]
        %v7828 = vld [vmem:[%s3369 + $0x78] sm:$0xf]
        %v7829 = vld [vmem:[%s3369 + $0x80] sm:$0xf8]
        %v7830 = vld [vmem:[%s3369 + $0x88] sm:$0xf]
        %v7831 = vld [vmem:[%s3369 + $0x90] sm:$0xf8]
        %v7832 = vld [vmem:[%s3369 + $0x98] sm:$0xf]
        %v7833 = vld [vmem:[%s3369 + $0xa0] sm:$0xf8]
        %v7834 = vld [vmem:[%s3369 + $0xa8] sm:$0xf]
        %v7835 = vld [vmem:[%s3369 + $0xb0] sm:$0xf8]
        %v7836 = vld [vmem:[%s3369 + $0xb8] sm:$0xf]
        %v7837 = vld [vmem:[%s3369 + $0xc0] sm:$0xf8]
        %v7838 = vld [vmem:[%s3369 + $0xc8] sm:$0xf]
        %v7839 = vld [vmem:[%s3369 + $0xd0] sm:$0xf8]
        %v7840 = vld [vmem:[%s3369 + $0xd8] sm:$0xf]
        %v7841 = vld [vmem:[%s3369 + $0xe0] sm:$0xf8]
        %v7842 = vld [vmem:[%s3369 + $0xe8] sm:$0xf]
        %v7843 = vld [vmem:[%s3369 + $0xf0] sm:$0xf8]
        %v7844 = vld [vmem:[%s3369 + $0xf8] sm:$0xf]
        %v7846 = vshrl.u32 %v7813, 16
        %v7848 = vrot.slane %v7846, 3
        %v7849 = vshll.u32 %v7813, 16
        %v7851 = vrot.slane %v7849, 4
        %v7852 = vor.u32 %v7848, %v7851
        %v7854 = vshrl.u32 %v7814, 16
        %v7856 = vrot.slane %v7854, 3
        %v7857 = vshll.u32 %v7814, 16
        %v7859 = vrot.slane %v7857, 4
        %v7860 = vor.u32 %v7856, %v7859
        %v7861 = vsel %vm422, %v7852, %v7860
        %v7863 = vshrl.u32 %v7815, 16
        %v7865 = vrot.slane %v7863, 3
        %v7866 = vshll.u32 %v7815, 16
        %v7868 = vrot.slane %v7866, 4
        %v7869 = vor.u32 %v7865, %v7868
        %v7871 = vshrl.u32 %v7816, 16
        %v7873 = vrot.slane %v7871, 3
        %v7874 = vshll.u32 %v7816, 16
        %v7876 = vrot.slane %v7874, 4
        %v7877 = vor.u32 %v7873, %v7876
        %v7878 = vsel %vm422, %v7869, %v7877
        %v7880 = vshrl.u32 %v7817, 16
        %v7882 = vrot.slane %v7880, 3
        %v7883 = vshll.u32 %v7817, 16
        %v7885 = vrot.slane %v7883, 4
        %v7886 = vor.u32 %v7882, %v7885
        %v7888 = vshrl.u32 %v7818, 16
        %v7890 = vrot.slane %v7888, 3
        %v7891 = vshll.u32 %v7818, 16
        %v7893 = vrot.slane %v7891, 4
        %v7894 = vor.u32 %v7890, %v7893
        %v7895 = vsel %vm422, %v7886, %v7894
        %v7897 = vshrl.u32 %v7819, 16
        %v7899 = vrot.slane %v7897, 3
        %v7900 = vshll.u32 %v7819, 16
        %v7902 = vrot.slane %v7900, 4
        %v7903 = vor.u32 %v7899, %v7902
        %v7905 = vshrl.u32 %v7820, 16
        %v7907 = vrot.slane %v7905, 3
        %v7908 = vshll.u32 %v7820, 16
        %v7910 = vrot.slane %v7908, 4
        %v7911 = vor.u32 %v7907, %v7910
        %v7912 = vsel %vm422, %v7903, %v7911
        %v7914 = vshrl.u32 %v7821, 16
        %v7916 = vrot.slane %v7914, 3
        %v7917 = vshll.u32 %v7821, 16
        %v7919 = vrot.slane %v7917, 4
        %v7920 = vor.u32 %v7916, %v7919
        %v7922 = vshrl.u32 %v7822, 16
        %v7924 = vrot.slane %v7922, 3
        %v7925 = vshll.u32 %v7822, 16
        %v7927 = vrot.slane %v7925, 4
        %v7928 = vor.u32 %v7924, %v7927
        %v7929 = vsel %vm422, %v7920, %v7928
        %v7931 = vshrl.u32 %v7823, 16
        %v7933 = vrot.slane %v7931, 3
        %v7934 = vshll.u32 %v7823, 16
        %v7936 = vrot.slane %v7934, 4
        %v7937 = vor.u32 %v7933, %v7936
        %v7939 = vshrl.u32 %v7824, 16
        %v7941 = vrot.slane %v7939, 3
        %v7942 = vshll.u32 %v7824, 16
        %v7944 = vrot.slane %v7942, 4
        %v7945 = vor.u32 %v7941, %v7944
        %v7946 = vsel %vm422, %v7937, %v7945
        %v7948 = vshrl.u32 %v7825, 16
        %v7950 = vrot.slane %v7948, 3
        %v7951 = vshll.u32 %v7825, 16
        %v7953 = vrot.slane %v7951, 4
        %v7954 = vor.u32 %v7950, %v7953
        %v7956 = vshrl.u32 %v7826, 16
        %v7958 = vrot.slane %v7956, 3
        %v7959 = vshll.u32 %v7826, 16
        %v7961 = vrot.slane %v7959, 4
        %v7962 = vor.u32 %v7958, %v7961
        %v7963 = vsel %vm422, %v7954, %v7962
        %v7965 = vshrl.u32 %v7827, 16
        %v7967 = vrot.slane %v7965, 3
        %v7968 = vshll.u32 %v7827, 16
        %v7970 = vrot.slane %v7968, 4
        %v7971 = vor.u32 %v7967, %v7970
        %v7973 = vshrl.u32 %v7828, 16
        %v7975 = vrot.slane %v7973, 3
        %v7976 = vshll.u32 %v7828, 16
        %v7978 = vrot.slane %v7976, 4
        %v7979 = vor.u32 %v7975, %v7978
        %v7980 = vsel %vm422, %v7971, %v7979
        %v7982 = vshrl.u32 %v7829, 16
        %v7984 = vrot.slane %v7982, 3
        %v7985 = vshll.u32 %v7829, 16
        %v7987 = vrot.slane %v7985, 4
        %v7988 = vor.u32 %v7984, %v7987
        %v7990 = vshrl.u32 %v7830, 16
        %v7992 = vrot.slane %v7990, 3
        %v7993 = vshll.u32 %v7830, 16
        %v7995 = vrot.slane %v7993, 4
        %v7996 = vor.u32 %v7992, %v7995
        %v7997 = vsel %vm422, %v7988, %v7996
        %v7999 = vshrl.u32 %v7831, 16
        %v8001 = vrot.slane %v7999, 3
        %v8002 = vshll.u32 %v7831, 16
        %v8004 = vrot.slane %v8002, 4
        %v8005 = vor.u32 %v8001, %v8004
        %v8007 = vshrl.u32 %v7832, 16
        %v8009 = vrot.slane %v8007, 3
        %v8010 = vshll.u32 %v7832, 16
        %v8012 = vrot.slane %v8010, 4
        %v8013 = vor.u32 %v8009, %v8012
        %v8014 = vsel %vm422, %v8005, %v8013
        %v8016 = vshrl.u32 %v7833, 16
        %v8018 = vrot.slane %v8016, 3
        %v8019 = vshll.u32 %v7833, 16
        %v8021 = vrot.slane %v8019, 4
        %v8022 = vor.u32 %v8018, %v8021
        %v8024 = vshrl.u32 %v7834, 16
        %v8026 = vrot.slane %v8024, 3
        %v8027 = vshll.u32 %v7834, 16
        %v8029 = vrot.slane %v8027, 4
        %v8030 = vor.u32 %v8026, %v8029
        %v8031 = vsel %vm422, %v8022, %v8030
        %v8033 = vshrl.u32 %v7835, 16
        %v8035 = vrot.slane %v8033, 3
        %v8036 = vshll.u32 %v7835, 16
        %v8038 = vrot.slane %v8036, 4
        %v8039 = vor.u32 %v8035, %v8038
        %v8041 = vshrl.u32 %v7836, 16
        %v8043 = vrot.slane %v8041, 3
        %v8044 = vshll.u32 %v7836, 16
        %v8046 = vrot.slane %v8044, 4
        %v8047 = vor.u32 %v8043, %v8046
        %v8048 = vsel %vm422, %v8039, %v8047
        %v8050 = vshrl.u32 %v7837, 16
        %v8052 = vrot.slane %v8050, 3
        %v8053 = vshll.u32 %v7837, 16
        %v8055 = vrot.slane %v8053, 4
        %v8056 = vor.u32 %v8052, %v8055
        %v8058 = vshrl.u32 %v7838, 16
        %v8060 = vrot.slane %v8058, 3
        %v8061 = vshll.u32 %v7838, 16
        %v8063 = vrot.slane %v8061, 4
        %v8064 = vor.u32 %v8060, %v8063
        %v8065 = vsel %vm422, %v8056, %v8064
        %v8067 = vshrl.u32 %v7839, 16
        %v8069 = vrot.slane %v8067, 3
        %v8070 = vshll.u32 %v7839, 16
        %v8072 = vrot.slane %v8070, 4
        %v8073 = vor.u32 %v8069, %v8072
        %v8075 = vshrl.u32 %v7840, 16
        %v8077 = vrot.slane %v8075, 3
        %v8078 = vshll.u32 %v7840, 16
        %v8080 = vrot.slane %v8078, 4
        %v8081 = vor.u32 %v8077, %v8080
        %v8082 = vsel %vm422, %v8073, %v8081
        %v8084 = vshrl.u32 %v7841, 16
        %v8086 = vrot.slane %v8084, 3
        %v8087 = vshll.u32 %v7841, 16
        %v8089 = vrot.slane %v8087, 4
        %v8090 = vor.u32 %v8086, %v8089
        %v8092 = vshrl.u32 %v7842, 16
        %v8094 = vrot.slane %v8092, 3
        %v8095 = vshll.u32 %v7842, 16
        %v8097 = vrot.slane %v8095, 4
        %v8098 = vor.u32 %v8094, %v8097
        %v8099 = vsel %vm422, %v8090, %v8098
        %v8101 = vshrl.u32 %v7843, 16
        %v8103 = vrot.slane %v8101, 3
        %v8104 = vshll.u32 %v7843, 16
        %v8106 = vrot.slane %v8104, 4
        %v8107 = vor.u32 %v8103, %v8106
        %v8109 = vshrl.u32 %v7844, 16
        %v8111 = vrot.slane %v8109, 3
        %v8112 = vshll.u32 %v7844, 16
        %v8114 = vrot.slane %v8112, 4
        %v8115 = vor.u32 %v8111, %v8114
        %v8116 = vsel %vm422, %v8107, %v8115
        %v8117 = vld [vmem:[%s3 + $0x60] sm:$0xf]
        %v8118 = vld [vmem:[%s3 + $0x64] sm:$0xf]
        %v8119 = vld [vmem:[%s3 + $0x68] sm:$0xf]
        %v8120 = vld [vmem:[%s3 + $0x6c] sm:$0xf]
        %v8121 = vld [vmem:[%s3369] sm:$0xf0]
        %v8122 = vld [vmem:[%s3369 + $0x10] sm:$0xf0]
        %v8123 = vld [vmem:[%s3369 + $0x20] sm:$0xf0]
        %v8124 = vld [vmem:[%s3369 + $0x30] sm:$0xf0]
        %v8125 = vld [vmem:[%s3369 + $0x40] sm:$0xf0]
        %v8126 = vld [vmem:[%s3369 + $0x50] sm:$0xf0]
        %v8127 = vld [vmem:[%s3369 + $0x60] sm:$0xf0]
        %v8128 = vld [vmem:[%s3369 + $0x70] sm:$0xf0]
        %v8129 = vld [vmem:[%s3369 + $0x80] sm:$0xf0]
        %v8130 = vld [vmem:[%s3369 + $0x90] sm:$0xf0]
        %v8131 = vld [vmem:[%s3369 + $0xa0] sm:$0xf0]
        %v8132 = vld [vmem:[%s3369 + $0xb0] sm:$0xf0]
        %v8133 = vld [vmem:[%s3369 + $0xc0] sm:$0xf0]
        %v8134 = vld [vmem:[%s3369 + $0xd0] sm:$0xf0]
        %v8135 = vld [vmem:[%s3369 + $0xe0] sm:$0xf0]
        %v8136 = vld [vmem:[%s3369 + $0xf0] sm:$0xf0]
        %v8169 = vrot.slane %v8121, 4
        %v8170 = vrot.slane %v7814, 4
        %v8171 = vsel %vm933, %v8169, %v8170
        %v8172 = vrot.slane %v8122, 4
        %v8173 = vrot.slane %v7816, 4
        %v8174 = vsel %vm933, %v8172, %v8173
        %v8175 = vrot.slane %v8123, 4
        %v8176 = vrot.slane %v7818, 4
        %v8177 = vsel %vm933, %v8175, %v8176
        %v8178 = vrot.slane %v8124, 4
        %v8179 = vrot.slane %v7820, 4
        %v8180 = vsel %vm933, %v8178, %v8179
        %v8181 = vrot.slane %v8125, 4
        %v8182 = vrot.slane %v7822, 4
        %v8183 = vsel %vm933, %v8181, %v8182
        %v8184 = vrot.slane %v8126, 4
        %v8185 = vrot.slane %v7824, 4
        %v8186 = vsel %vm933, %v8184, %v8185
        %v8187 = vrot.slane %v8127, 4
        %v8188 = vrot.slane %v7826, 4
        %v8189 = vsel %vm933, %v8187, %v8188
        %v8190 = vrot.slane %v8128, 4
        %v8191 = vrot.slane %v7828, 4
        %v8192 = vsel %vm933, %v8190, %v8191
        %v8193 = vrot.slane %v8129, 4
        %v8194 = vrot.slane %v7830, 4
        %v8195 = vsel %vm933, %v8193, %v8194
        %v8196 = vrot.slane %v8130, 4
        %v8197 = vrot.slane %v7832, 4
        %v8198 = vsel %vm933, %v8196, %v8197
        %v8199 = vrot.slane %v8131, 4
        %v8200 = vrot.slane %v7834, 4
        %v8201 = vsel %vm933, %v8199, %v8200
        %v8202 = vrot.slane %v8132, 4
        %v8203 = vrot.slane %v7836, 4
        %v8204 = vsel %vm933, %v8202, %v8203
        %v8205 = vrot.slane %v8133, 4
        %v8206 = vrot.slane %v7838, 4
        %v8207 = vsel %vm933, %v8205, %v8206
        %v8208 = vrot.slane %v8134, 4
        %v8209 = vrot.slane %v7840, 4
        %v8210 = vsel %vm933, %v8208, %v8209
        %v8211 = vrot.slane %v8135, 4
        %v8212 = vrot.slane %v7842, 4
        %v8213 = vsel %vm933, %v8211, %v8212
        %v8214 = vrot.slane %v8136, 4
        %v8215 = vrot.slane %v7844, 4
        %v8216 = vsel %vm933, %v8214, %v8215
        %v8217 = vld [vmem:[%s3 + $0x70] sm:$0xf]
        %v8218 = vld [vmem:[%s3 + $0x74] sm:$0xf]
        %v8219 = vld [vmem:[%s3 + $0x78] sm:$0xf]
        %v8220 = vld [vmem:[%s3 + $0x7c] sm:$0xf]
        %v8225 = vunpack.c.l.b16 %v8217
        %v8226 = vunpack.c.l.b16 %v8218
        %v8227 = vunpack.c.l.b16 %v8219
        %v8228 = vunpack.c.l.b16 %v8220
        %v8229 = vpack.c.b16 %v8226, %v8225
        %v8230 = vpack.c.b16 %v8228, %v8227
        %v8234 = vsel %vm358, %v8171, 0
        %v8237 = vsel %vm358, %v8174, 0
        %v8240 = vsel %vm358, %v8177, 0
        %v8243 = vsel %vm358, %v8180, 0
        %v8246 = vsel %vm358, %v8183, 0
        %v8249 = vsel %vm358, %v8186, 0
        %v8252 = vsel %vm358, %v8189, 0
        %v8255 = vsel %vm358, %v8192, 0
        %v8258 = vsel %vm358, %v8195, 0
        %v8261 = vsel %vm358, %v8198, 0
        %v8264 = vsel %vm358, %v8201, 0
        %v8267 = vsel %vm358, %v8204, 0
        %v8270 = vsel %vm358, %v8207, 0
        %v8273 = vsel %vm358, %v8210, 0
        %v8276 = vsel %vm358, %v8213, 0
        %v8279 = vsel %vm358, %v8216, 0
        %8281 = vmatprep.subr.bf16.mxu0 0
        %8282 = vmatpush1.bf16.msra.mxu0 %v8229
        %8283 = vmatprep.subr.bf16.mxu0 0
        %8284 = vmatpush1.bf16.msra.mxu0 %v8230
        %8285 = vmatprep.subr.bf16.mxu0 0
        %8286 = vmatpush1.bf16.msra.mxu0 0
        %8287 = vmatprep.subr.bf16.mxu0 0
        %8288 = vmatpush1.bf16.msra.mxu0 0
        %8289 = vmatprep.subr.bf16.mxu0 0
        %8290 = vmatpush1.bf16.msra.mxu0 0
        %8291 = vmatprep.subr.bf16.mxu0 0
        %8292 = vmatpush1.bf16.msra.mxu0 0
        %8293 = vmatprep.subr.bf16.mxu0 0
        %8294 = vmatpush1.bf16.msra.mxu0 0
        %8295 = vmatprep.subr.bf16.mxu0 0
        %8296 = vmatpush1.bf16.msra.mxu0 0
        %8297 = vmatprep.subr.bf16.mxu0 0
        %8298 = vmatpush1.bf16.msra.mxu0 0
        %8299 = vmatprep.subr.bf16.mxu0 0
        %8300 = vmatpush1.bf16.msra.mxu0 0
        %8301 = vmatprep.subr.bf16.mxu0 0
        %8302 = vmatpush1.bf16.msra.mxu0 0
        %8303 = vmatprep.subr.bf16.mxu0 0
        %8304 = vmatpush1.bf16.msra.mxu0 0
        %8305 = vmatprep.subr.bf16.mxu0 0
        %8306 = vmatpush1.bf16.msra.mxu0 0
        %8307 = vmatprep.subr.bf16.mxu0 0
        %8308 = vmatpush1.bf16.msra.mxu0 0
        %8309 = vmatprep.subr.bf16.mxu0 0
        %8310 = vmatpush1.bf16.msra.mxu0 0
        %8311 = vmatprep.subr.bf16.mxu0 0
        %8312 = vmatpush1.bf16.msra.mxu0 0
        %8313 = vmatprep.mubr.bf16.mxu0 0
        %8314 = vmatmul.mubr.bf16.gmra.mrb[0].mxu0 %v8234
        %v8315 = vpop.f32.mrb[0].mxu0
        %v8316 = vadd.f32 0.0, %v8315
        %v8317 = vpop.f32.mrb[0].mxu0
        %v8318 = vpop.f32.mrb[0].mxu0
        %v8319 = vadd.f32 0.0, %v8318
        %v8320 = vpop.f32.mrb[0].mxu0
        %8321 = vmatprep.mubr.bf16.mxu0 0
        %8322 = vmatmul.mubr.bf16.gmra.mrb[0].mxu0 %v8237
        %v8323 = vpop.f32.mrb[0].mxu0
        %v8324 = vadd.f32 0.0, %v8323
        %v8325 = vpop.f32.mrb[0].mxu0
        %v8326 = vpop.f32.mrb[0].mxu0
        %v8327 = vadd.f32 0.0, %v8326
        %v8328 = vpop.f32.mrb[0].mxu0
        %8329 = vmatprep.mubr.bf16.mxu0 0
        %8330 = vmatmul.mubr.bf16.gmra.mrb[0].mxu0 %v8240
        %v8331 = vpop.f32.mrb[0].mxu0
        %v8332 = vadd.f32 0.0, %v8331
        %v8333 = vpop.f32.mrb[0].mxu0
        %v8334 = vpop.f32.mrb[0].mxu0
        %v8335 = vadd.f32 0.0, %v8334
        %v8336 = vpop.f32.mrb[0].mxu0
        %8337 = vmatprep.mubr.bf16.mxu0 0
        %8338 = vmatmul.mubr.bf16.gmra.mrb[0].mxu0 %v8243
        %v8339 = vpop.f32.mrb[0].mxu0
        %v8340 = vadd.f32 0.0, %v8339
        %v8341 = vpop.f32.mrb[0].mxu0
        %v8342 = vpop.f32.mrb[0].mxu0
        %v8343 = vadd.f32 0.0, %v8342
        %v8344 = vpop.f32.mrb[0].mxu0
        %8345 = vmatprep.mubr.bf16.mxu0 0
        %8346 = vmatmul.mubr.bf16.gmra.mrb[0].mxu0 %v8246
        %v8347 = vpop.f32.mrb[0].mxu0
        %v8348 = vadd.f32 0.0, %v8347
        %v8349 = vpop.f32.mrb[0].mxu0
        %v8350 = vpop.f32.mrb[0].mxu0
        %v8351 = vadd.f32 0.0, %v8350
        %v8352 = vpop.f32.mrb[0].mxu0
        %8353 = vmatprep.mubr.bf16.mxu0 0
        %8354 = vmatmul.mubr.bf16.gmra.mrb[0].mxu0 %v8249
        %v8355 = vpop.f32.mrb[0].mxu0
        %v8356 = vadd.f32 0.0, %v8355
        %v8357 = vpop.f32.mrb[0].mxu0
        %v8358 = vpop.f32.mrb[0].mxu0
        %v8359 = vadd.f32 0.0, %v8358
        %v8360 = vpop.f32.mrb[0].mxu0
        %8361 = vmatprep.mubr.bf16.mxu0 0
        %8362 = vmatmul.mubr.bf16.gmra.mrb[0].mxu0 %v8252
        %v8363 = vpop.f32.mrb[0].mxu0
        %v8364 = vadd.f32 0.0, %v8363
        %v8365 = vpop.f32.mrb[0].mxu0
        %v8366 = vpop.f32.mrb[0].mxu0
        %v8367 = vadd.f32 0.0, %v8366
        %v8368 = vpop.f32.mrb[0].mxu0
        %8369 = vmatprep.mubr.bf16.mxu0 0
        %8370 = vmatmul.mubr.bf16.gmra.mrb[0].mxu0 %v8255
        %v8371 = vpop.f32.mrb[0].mxu0
        %v8372 = vadd.f32 0.0, %v8371
        %v8373 = vpop.f32.mrb[0].mxu0
        %v8374 = vpop.f32.mrb[0].mxu0
        %v8375 = vadd.f32 0.0, %v8374
        %v8376 = vpop.f32.mrb[0].mxu0
        %8377 = vmatprep.mubr.bf16.mxu0 0
        %8378 = vmatmul.mubr.bf16.gmra.mrb[0].mxu0 %v8258
        %v8379 = vpop.f32.mrb[0].mxu0
        %v8380 = vadd.f32 0.0, %v8379
        %v8381 = vpop.f32.mrb[0].mxu0
        %v8382 = vpop.f32.mrb[0].mxu0
        %v8383 = vadd.f32 0.0, %v8382
        %v8384 = vpop.f32.mrb[0].mxu0
        %8385 = vmatprep.mubr.bf16.mxu0 0
        %8386 = vmatmul.mubr.bf16.gmra.mrb[0].mxu0 %v8261
        %v8387 = vpop.f32.mrb[0].mxu0
        %v8388 = vadd.f32 0.0, %v8387
        %v8389 = vpop.f32.mrb[0].mxu0
        %v8390 = vpop.f32.mrb[0].mxu0
        %v8391 = vadd.f32 0.0, %v8390
        %v8392 = vpop.f32.mrb[0].mxu0
        %8393 = vmatprep.mubr.bf16.mxu0 0
        %8394 = vmatmul.mubr.bf16.gmra.mrb[0].mxu0 %v8264
        %v8395 = vpop.f32.mrb[0].mxu0
        %v8396 = vadd.f32 0.0, %v8395
        %v8397 = vpop.f32.mrb[0].mxu0
        %v8398 = vpop.f32.mrb[0].mxu0
        %v8399 = vadd.f32 0.0, %v8398
        %v8400 = vpop.f32.mrb[0].mxu0
        %8401 = vmatprep.mubr.bf16.mxu0 0
        %8402 = vmatmul.mubr.bf16.gmra.mrb[0].mxu0 %v8267
        %v8403 = vpop.f32.mrb[0].mxu0
        %v8404 = vadd.f32 0.0, %v8403
        %v8405 = vpop.f32.mrb[0].mxu0
        %v8406 = vpop.f32.mrb[0].mxu0
        %v8407 = vadd.f32 0.0, %v8406
        %v8408 = vpop.f32.mrb[0].mxu0
        %8409 = vmatprep.mubr.bf16.mxu0 0
        %8410 = vmatmul.mubr.bf16.gmra.mrb[0].mxu0 %v8270
        %v8411 = vpop.f32.mrb[0].mxu0
        %v8412 = vadd.f32 0.0, %v8411
        %v8413 = vpop.f32.mrb[0].mxu0
        %v8414 = vpop.f32.mrb[0].mxu0
        %v8415 = vadd.f32 0.0, %v8414
        %v8416 = vpop.f32.mrb[0].mxu0
        %8417 = vmatprep.mubr.bf16.mxu0 0
        %8418 = vmatmul.mubr.bf16.gmra.mrb[0].mxu0 %v8273
        %v8419 = vpop.f32.mrb[0].mxu0
        %v8420 = vadd.f32 0.0, %v8419
        %v8421 = vpop.f32.mrb[0].mxu0
        %v8422 = vpop.f32.mrb[0].mxu0
        %v8423 = vadd.f32 0.0, %v8422
        %v8424 = vpop.f32.mrb[0].mxu0
        %8425 = vmatprep.mubr.bf16.mxu0 0
        %8426 = vmatmul.mubr.bf16.gmra.mrb[0].mxu0 %v8276
        %v8427 = vpop.f32.mrb[0].mxu0
        %v8428 = vadd.f32 0.0, %v8427
        %v8429 = vpop.f32.mrb[0].mxu0
        %v8430 = vpop.f32.mrb[0].mxu0
        %v8431 = vadd.f32 0.0, %v8430
        %v8432 = vpop.f32.mrb[0].mxu0
        %8433 = vmatprep.mubr.bf16.mxu0 0
        %8434 = vmatmul.mubr.bf16.gmra.mrb[0].mxu0 %v8279
        %v8435 = vpop.f32.mrb[0].mxu0
        %v8436 = vadd.f32 0.0, %v8435
        %v8437 = vpop.f32.mrb[0].mxu0
        %v8438 = vpop.f32.mrb[0].mxu0
        %v8439 = vadd.f32 0.0, %v8438
        %v8440 = vpop.f32.mrb[0].mxu0
        %8441 = vdwg.mxu0
        %v8446 = vunpack.c.l.b16 %v8117
        %v8447 = vunpack.c.l.b16 %v8118
        %v8448 = vunpack.c.l.b16 %v8119
        %v8449 = vunpack.c.l.b16 %v8120
        %v8450 = vpack.c.b16 %v8447, %v8446
        %v8451 = vpack.c.b16 %v8449, %v8448
        %v8455 = vsel %vm358, %v7861, 0
        %v8458 = vsel %vm358, %v7878, 0
        %v8461 = vsel %vm358, %v7895, 0
        %v8464 = vsel %vm358, %v7912, 0
        %v8467 = vsel %vm358, %v7929, 0
        %v8470 = vsel %vm358, %v7946, 0
        %v8473 = vsel %vm358, %v7963, 0
        %v8476 = vsel %vm358, %v7980, 0
        %v8479 = vsel %vm358, %v7997, 0
        %v8482 = vsel %vm358, %v8014, 0
        %v8485 = vsel %vm358, %v8031, 0
        %v8488 = vsel %vm358, %v8048, 0
        %v8491 = vsel %vm358, %v8065, 0
        %v8494 = vsel %vm358, %v8082, 0
        %v8497 = vsel %vm358, %v8099, 0
        %v8500 = vsel %vm358, %v8116, 0
        %8502 = vmatprep.subr.bf16.mxu0 0
        %8503 = vmatpush1.bf16.msra.mxu0 %v8450
        %8504 = vmatprep.subr.bf16.mxu0 0
        %8505 = vmatpush1.bf16.msra.mxu0 %v8451
        %8506 = vmatprep.subr.bf16.mxu0 0
        %8507 = vmatpush1.bf16.msra.mxu0 0
        %8508 = vmatprep.subr.bf16.mxu0 0
        %8509 = vmatpush1.bf16.msra.mxu0 0
        %8510 = vmatprep.subr.bf16.mxu0 0
        %8511 = vmatpush1.bf16.msra.mxu0 0
        %8512 = vmatprep.subr.bf16.mxu0 0
        %8513 = vmatpush1.bf16.msra.mxu0 0
        %8514 = vmatprep.subr.bf16.mxu0 0
        %8515 = vmatpush1.bf16.msra.mxu0 0
        %8516 = vmatprep.subr.bf16.mxu0 0
        %8517 = vmatpush1.bf16.msra.mxu0 0
        %8518 = vmatprep.subr.bf16.mxu0 0
        %8519 = vmatpush1.bf16.msra.mxu0 0
        %8520 = vmatprep.subr.bf16.mxu0 0
        %8521 = vmatpush1.bf16.msra.mxu0 0
        %8522 = vmatprep.subr.bf16.mxu0 0
        %8523 = vmatpush1.bf16.msra.mxu0 0
        %8524 = vmatprep.subr.bf16.mxu0 0
        %8525 = vmatpush1.bf16.msra.mxu0 0
        %8526 = vmatprep.subr.bf16.mxu0 0
        %8527 = vmatpush1.bf16.msra.mxu0 0
        %8528 = vmatprep.subr.bf16.mxu0 0
        %8529 = vmatpush1.bf16.msra.mxu0 0
        %8530 = vmatprep.subr.bf16.mxu0 0
        %8531 = vmatpush1.bf16.msra.mxu0 0
        %8532 = vmatprep.subr.bf16.mxu0 0
        %8533 = vmatpush1.bf16.msra.mxu0 0
        %8534 = vmatprep.mubr.bf16.mxu0 0
        %8535 = vmatmul.mubr.bf16.gmra.mrb[0].mxu0 %v8455
        %v8536 = vpop.f32.mrb[0].mxu0
        %v8537 = vadd.f32 %v8316, %v8536
        %v8538 = vpop.f32.mrb[0].mxu0
        %v8539 = vpop.f32.mrb[0].mxu0
        %v8540 = vadd.f32 %v8319, %v8539
        %v8541 = vpop.f32.mrb[0].mxu0
        %8542 = vmatprep.mubr.bf16.mxu0 0
        %8543 = vmatmul.mubr.bf16.gmra.mrb[0].mxu0 %v8458
        %v8544 = vpop.f32.mrb[0].mxu0
        %v8545 = vadd.f32 %v8324, %v8544
        %v8546 = vpop.f32.mrb[0].mxu0
        %v8547 = vpop.f32.mrb[0].mxu0
        %v8548 = vadd.f32 %v8327, %v8547
        %v8549 = vpop.f32.mrb[0].mxu0
        %8550 = vmatprep.mubr.bf16.mxu0 0
        %8551 = vmatmul.mubr.bf16.gmra.mrb[0].mxu0 %v8461
        %v8552 = vpop.f32.mrb[0].mxu0
        %v8553 = vadd.f32 %v8332, %v8552
        %v8554 = vpop.f32.mrb[0].mxu0
        %v8555 = vpop.f32.mrb[0].mxu0
        %v8556 = vadd.f32 %v8335, %v8555
        %v8557 = vpop.f32.mrb[0].mxu0
        %8558 = vmatprep.mubr.bf16.mxu0 0
        %8559 = vmatmul.mubr.bf16.gmra.mrb[0].mxu0 %v8464
        %v8560 = vpop.f32.mrb[0].mxu0
        %v8561 = vadd.f32 %v8340, %v8560
        %v8562 = vpop.f32.mrb[0].mxu0
        %v8563 = vpop.f32.mrb[0].mxu0
        %v8564 = vadd.f32 %v8343, %v8563
        %v8565 = vpop.f32.mrb[0].mxu0
        %8566 = vmatprep.mubr.bf16.mxu0 0
        %8567 = vmatmul.mubr.bf16.gmra.mrb[0].mxu0 %v8467
        %v8568 = vpop.f32.mrb[0].mxu0
        %v8569 = vadd.f32 %v8348, %v8568
        %v8570 = vpop.f32.mrb[0].mxu0
        %v8571 = vpop.f32.mrb[0].mxu0
        %v8572 = vadd.f32 %v8351, %v8571
        %v8573 = vpop.f32.mrb[0].mxu0
        %8574 = vmatprep.mubr.bf16.mxu0 0
        %8575 = vmatmul.mubr.bf16.gmra.mrb[0].mxu0 %v8470
        %v8576 = vpop.f32.mrb[0].mxu0
        %v8577 = vadd.f32 %v8356, %v8576
        %v8578 = vpop.f32.mrb[0].mxu0
        %v8579 = vpop.f32.mrb[0].mxu0
        %v8580 = vadd.f32 %v8359, %v8579
        %v8581 = vpop.f32.mrb[0].mxu0
        %8582 = vmatprep.mubr.bf16.mxu0 0
        %8583 = vmatmul.mubr.bf16.gmra.mrb[0].mxu0 %v8473
        %v8584 = vpop.f32.mrb[0].mxu0
        %v8585 = vadd.f32 %v8364, %v8584
        %v8586 = vpop.f32.mrb[0].mxu0
        %v8587 = vpop.f32.mrb[0].mxu0
        %v8588 = vadd.f32 %v8367, %v8587
        %v8589 = vpop.f32.mrb[0].mxu0
        %8590 = vmatprep.mubr.bf16.mxu0 0
        %8591 = vmatmul.mubr.bf16.gmra.mrb[0].mxu0 %v8476
        %v8592 = vpop.f32.mrb[0].mxu0
        %v8593 = vadd.f32 %v8372, %v8592
        %v8594 = vpop.f32.mrb[0].mxu0
        %v8595 = vpop.f32.mrb[0].mxu0
        %v8596 = vadd.f32 %v8375, %v8595
        %v8597 = vpop.f32.mrb[0].mxu0
        %8598 = vmatprep.mubr.bf16.mxu0 0
        %8599 = vmatmul.mubr.bf16.gmra.mrb[0].mxu0 %v8479
        %v8600 = vpop.f32.mrb[0].mxu0
        %v8601 = vadd.f32 %v8380, %v8600
        %v8602 = vpop.f32.mrb[0].mxu0
        %v8603 = vpop.f32.mrb[0].mxu0
        %v8604 = vadd.f32 %v8383, %v8603
        %v8605 = vpop.f32.mrb[0].mxu0
        %8606 = vmatprep.mubr.bf16.mxu0 0
        %8607 = vmatmul.mubr.bf16.gmra.mrb[0].mxu0 %v8482
        %v8608 = vpop.f32.mrb[0].mxu0
        %v8609 = vadd.f32 %v8388, %v8608
        %v8610 = vpop.f32.mrb[0].mxu0
        %v8611 = vpop.f32.mrb[0].mxu0
        %v8612 = vadd.f32 %v8391, %v8611
        %v8613 = vpop.f32.mrb[0].mxu0
        %8614 = vmatprep.mubr.bf16.mxu0 0
        %8615 = vmatmul.mubr.bf16.gmra.mrb[0].mxu0 %v8485
        %v8616 = vpop.f32.mrb[0].mxu0
        %v8617 = vadd.f32 %v8396, %v8616
        %v8618 = vpop.f32.mrb[0].mxu0
        %v8619 = vpop.f32.mrb[0].mxu0
        %v8620 = vadd.f32 %v8399, %v8619
        %v8621 = vpop.f32.mrb[0].mxu0
        %8622 = vmatprep.mubr.bf16.mxu0 0
        %8623 = vmatmul.mubr.bf16.gmra.mrb[0].mxu0 %v8488
        %v8624 = vpop.f32.mrb[0].mxu0
        %v8625 = vadd.f32 %v8404, %v8624
        %v8626 = vpop.f32.mrb[0].mxu0
        %v8627 = vpop.f32.mrb[0].mxu0
        %v8628 = vadd.f32 %v8407, %v8627
        %v8629 = vpop.f32.mrb[0].mxu0
        %8630 = vmatprep.mubr.bf16.mxu0 0
        %8631 = vmatmul.mubr.bf16.gmra.mrb[0].mxu0 %v8491
        %v8632 = vpop.f32.mrb[0].mxu0
        %v8633 = vadd.f32 %v8412, %v8632
        %v8634 = vpop.f32.mrb[0].mxu0
        %v8635 = vpop.f32.mrb[0].mxu0
        %v8636 = vadd.f32 %v8415, %v8635
        %v8637 = vpop.f32.mrb[0].mxu0
        %8638 = vmatprep.mubr.bf16.mxu0 0
        %8639 = vmatmul.mubr.bf16.gmra.mrb[0].mxu0 %v8494
        %v8640 = vpop.f32.mrb[0].mxu0
        %v8641 = vadd.f32 %v8420, %v8640
        %v8642 = vpop.f32.mrb[0].mxu0
        %v8643 = vpop.f32.mrb[0].mxu0
        %v8644 = vadd.f32 %v8423, %v8643
        %v8645 = vpop.f32.mrb[0].mxu0
        %8646 = vmatprep.mubr.bf16.mxu0 0
        %8647 = vmatmul.mubr.bf16.gmra.mrb[0].mxu0 %v8497
        %v8648 = vpop.f32.mrb[0].mxu0
        %v8649 = vadd.f32 %v8428, %v8648
        %v8650 = vpop.f32.mrb[0].mxu0
        %v8651 = vpop.f32.mrb[0].mxu0
        %v8652 = vadd.f32 %v8431, %v8651
        %v8653 = vpop.f32.mrb[0].mxu0
        %8654 = vmatprep.mubr.bf16.mxu0 0
        %8655 = vmatmul.mubr.bf16.gmra.mrb[0].mxu0 %v8500
        %v8656 = vpop.f32.mrb[0].mxu0
        %v8657 = vadd.f32 %v8436, %v8656
        %v8658 = vpop.f32.mrb[0].mxu0
        %v8659 = vpop.f32.mrb[0].mxu0
        %v8660 = vadd.f32 %v8439, %v8659
        %v8661 = vpop.f32.mrb[0].mxu0
        %8662 = vdwg.mxu0
        %v8663 = vld [vmem:[%s3369 + $0x8] sm:$0x1f]
        %v8664 = vld [vmem:[%s3369 + $0x18] sm:$0x1f]
        %v8665 = vld [vmem:[%s3369 + $0x28] sm:$0x1f]
        %v8666 = vld [vmem:[%s3369 + $0x38] sm:$0x1f]
        %v8667 = vld [vmem:[%s3369 + $0x48] sm:$0x1f]
        %v8668 = vld [vmem:[%s3369 + $0x58] sm:$0x1f]
        %v8669 = vld [vmem:[%s3369 + $0x68] sm:$0x1f]
        %v8670 = vld [vmem:[%s3369 + $0x78] sm:$0x1f]
        %v8671 = vld [vmem:[%s3369 + $0x88] sm:$0x1f]
        %v8672 = vld [vmem:[%s3369 + $0x98] sm:$0x1f]
        %v8673 = vld [vmem:[%s3369 + $0xa8] sm:$0x1f]
        %v8674 = vld [vmem:[%s3369 + $0xb8] sm:$0x1f]
        %v8675 = vld [vmem:[%s3369 + $0xc8] sm:$0x1f]
        %v8676 = vld [vmem:[%s3369 + $0xd8] sm:$0x1f]
        %v8677 = vld [vmem:[%s3369 + $0xe8] sm:$0x1f]
        %v8678 = vld [vmem:[%s3369 + $0xf8] sm:$0x1f]
        %v8680 = vshrl.u32 %v8121, 16
        %v8682 = vrot.slane %v8680, 4
        %v8683 = vshll.u32 %v8121, 16
        %v8685 = vrot.slane %v8683, 5
        %v8686 = vor.u32 %v8682, %v8685
        %v8688 = vshrl.u32 %v8663, 16
        %v8690 = vrot.slane %v8688, 4
        %v8691 = vshll.u32 %v8663, 16
        %v8693 = vrot.slane %v8691, 5
        %v8694 = vor.u32 %v8690, %v8693
        %v8695 = vsel %vm1444, %v8686, %v8694
        %v8697 = vshrl.u32 %v8122, 16
        %v8699 = vrot.slane %v8697, 4
        %v8700 = vshll.u32 %v8122, 16
        %v8702 = vrot.slane %v8700, 5
        %v8703 = vor.u32 %v8699, %v8702
        %v8705 = vshrl.u32 %v8664, 16
        %v8707 = vrot.slane %v8705, 4
        %v8708 = vshll.u32 %v8664, 16
        %v8710 = vrot.slane %v8708, 5
        %v8711 = vor.u32 %v8707, %v8710
        %v8712 = vsel %vm1444, %v8703, %v8711
        %v8714 = vshrl.u32 %v8123, 16
        %v8716 = vrot.slane %v8714, 4
        %v8717 = vshll.u32 %v8123, 16
        %v8719 = vrot.slane %v8717, 5
        %v8720 = vor.u32 %v8716, %v8719
        %v8722 = vshrl.u32 %v8665, 16
        %v8724 = vrot.slane %v8722, 4
        %v8725 = vshll.u32 %v8665, 16
        %v8727 = vrot.slane %v8725, 5
        %v8728 = vor.u32 %v8724, %v8727
        %v8729 = vsel %vm1444, %v8720, %v8728
        %v8731 = vshrl.u32 %v8124, 16
        %v8733 = vrot.slane %v8731, 4
        %v8734 = vshll.u32 %v8124, 16
        %v8736 = vrot.slane %v8734, 5
        %v8737 = vor.u32 %v8733, %v8736
        %v8739 = vshrl.u32 %v8666, 16
        %v8741 = vrot.slane %v8739, 4
        %v8742 = vshll.u32 %v8666, 16
        %v8744 = vrot.slane %v8742, 5
        %v8745 = vor.u32 %v8741, %v8744
        %v8746 = vsel %vm1444, %v8737, %v8745
        %v8748 = vshrl.u32 %v8125, 16
        %v8750 = vrot.slane %v8748, 4
        %v8751 = vshll.u32 %v8125, 16
        %v8753 = vrot.slane %v8751, 5
        %v8754 = vor.u32 %v8750, %v8753
        %v8756 = vshrl.u32 %v8667, 16
        %v8758 = vrot.slane %v8756, 4
        %v8759 = vshll.u32 %v8667, 16
        %v8761 = vrot.slane %v8759, 5
        %v8762 = vor.u32 %v8758, %v8761
        %v8763 = vsel %vm1444, %v8754, %v8762
        %v8765 = vshrl.u32 %v8126, 16
        %v8767 = vrot.slane %v8765, 4
        %v8768 = vshll.u32 %v8126, 16
        %v8770 = vrot.slane %v8768, 5
        %v8771 = vor.u32 %v8767, %v8770
        %v8773 = vshrl.u32 %v8668, 16
        %v8775 = vrot.slane %v8773, 4
        %v8776 = vshll.u32 %v8668, 16
        %v8778 = vrot.slane %v8776, 5
        %v8779 = vor.u32 %v8775, %v8778
        %v8780 = vsel %vm1444, %v8771, %v8779
        %v8782 = vshrl.u32 %v8127, 16
        %v8784 = vrot.slane %v8782, 4
        %v8785 = vshll.u32 %v8127, 16
        %v8787 = vrot.slane %v8785, 5
        %v8788 = vor.u32 %v8784, %v8787
        %v8790 = vshrl.u32 %v8669, 16
        %v8792 = vrot.slane %v8790, 4
        %v8793 = vshll.u32 %v8669, 16
        %v8795 = vrot.slane %v8793, 5
        %v8796 = vor.u32 %v8792, %v8795
        %v8797 = vsel %vm1444, %v8788, %v8796
        %v8799 = vshrl.u32 %v8128, 16
        %v8801 = vrot.slane %v8799, 4
        %v8802 = vshll.u32 %v8128, 16
        %v8804 = vrot.slane %v8802, 5
        %v8805 = vor.u32 %v8801, %v8804
        %v8807 = vshrl.u32 %v8670, 16
        %v8809 = vrot.slane %v8807, 4
        %v8810 = vshll.u32 %v8670, 16
        %v8812 = vrot.slane %v8810, 5
        %v8813 = vor.u32 %v8809, %v8812
        %v8814 = vsel %vm1444, %v8805, %v8813
        %v8816 = vshrl.u32 %v8129, 16
        %v8818 = vrot.slane %v8816, 4
        %v8819 = vshll.u32 %v8129, 16
        %v8821 = vrot.slane %v8819, 5
        %v8822 = vor.u32 %v8818, %v8821
        %v8824 = vshrl.u32 %v8671, 16
        %v8826 = vrot.slane %v8824, 4
        %v8827 = vshll.u32 %v8671, 16
        %v8829 = vrot.slane %v8827, 5
        %v8830 = vor.u32 %v8826, %v8829
        %v8831 = vsel %vm1444, %v8822, %v8830
        %v8833 = vshrl.u32 %v8130, 16
        %v8835 = vrot.slane %v8833, 4
        %v8836 = vshll.u32 %v8130, 16
        %v8838 = vrot.slane %v8836, 5
        %v8839 = vor.u32 %v8835, %v8838
        %v8841 = vshrl.u32 %v8672, 16
        %v8843 = vrot.slane %v8841, 4
        %v8844 = vshll.u32 %v8672, 16
        %v8846 = vrot.slane %v8844, 5
        %v8847 = vor.u32 %v8843, %v8846
        %v8848 = vsel %vm1444, %v8839, %v8847
        %v8850 = vshrl.u32 %v8131, 16
        %v8852 = vrot.slane %v8850, 4
        %v8853 = vshll.u32 %v8131, 16
        %v8855 = vrot.slane %v8853, 5
        %v8856 = vor.u32 %v8852, %v8855
        %v8858 = vshrl.u32 %v8673, 16
        %v8860 = vrot.slane %v8858, 4
        %v8861 = vshll.u32 %v8673, 16
        %v8863 = vrot.slane %v8861, 5
        %v8864 = vor.u32 %v8860, %v8863
        %v8865 = vsel %vm1444, %v8856, %v8864
        %v8867 = vshrl.u32 %v8132, 16
        %v8869 = vrot.slane %v8867, 4
        %v8870 = vshll.u32 %v8132, 16
        %v8872 = vrot.slane %v8870, 5
        %v8873 = vor.u32 %v8869, %v8872
        %v8875 = vshrl.u32 %v8674, 16
        %v8877 = vrot.slane %v8875, 4
        %v8878 = vshll.u32 %v8674, 16
        %v8880 = vrot.slane %v8878, 5
        %v8881 = vor.u32 %v8877, %v8880
        %v8882 = vsel %vm1444, %v8873, %v8881
        %v8884 = vshrl.u32 %v8133, 16
        %v8886 = vrot.slane %v8884, 4
        %v8887 = vshll.u32 %v8133, 16
        %v8889 = vrot.slane %v8887, 5
        %v8890 = vor.u32 %v8886, %v8889
        %v8892 = vshrl.u32 %v8675, 16
        %v8894 = vrot.slane %v8892, 4
        %v8895 = vshll.u32 %v8675, 16
        %v8897 = vrot.slane %v8895, 5
        %v8898 = vor.u32 %v8894, %v8897
        %v8899 = vsel %vm1444, %v8890, %v8898
        %v8901 = vshrl.u32 %v8134, 16
        %v8903 = vrot.slane %v8901, 4
        %v8904 = vshll.u32 %v8134, 16
        %v8906 = vrot.slane %v8904, 5
        %v8907 = vor.u32 %v8903, %v8906
        %v8909 = vshrl.u32 %v8676, 16
        %v8911 = vrot.slane %v8909, 4
        %v8912 = vshll.u32 %v8676, 16
        %v8914 = vrot.slane %v8912, 5
        %v8915 = vor.u32 %v8911, %v8914
        %v8916 = vsel %vm1444, %v8907, %v8915
        %v8918 = vshrl.u32 %v8135, 16
        %v8920 = vrot.slane %v8918, 4
        %v8921 = vshll.u32 %v8135, 16
        %v8923 = vrot.slane %v8921, 5
        %v8924 = vor.u32 %v8920, %v8923
        %v8926 = vshrl.u32 %v8677, 16
        %v8928 = vrot.slane %v8926, 4
        %v8929 = vshll.u32 %v8677, 16
        %v8931 = vrot.slane %v8929, 5
        %v8932 = vor.u32 %v8928, %v8931
        %v8933 = vsel %vm1444, %v8924, %v8932
        %v8935 = vshrl.u32 %v8136, 16
        %v8937 = vrot.slane %v8935, 4
        %v8938 = vshll.u32 %v8136, 16
        %v8940 = vrot.slane %v8938, 5
        %v8941 = vor.u32 %v8937, %v8940
        %v8943 = vshrl.u32 %v8678, 16
        %v8945 = vrot.slane %v8943, 4
        %v8946 = vshll.u32 %v8678, 16
        %v8948 = vrot.slane %v8946, 5
        %v8949 = vor.u32 %v8945, %v8948
        %v8950 = vsel %vm1444, %v8941, %v8949
        %v8951 = vld [vmem:[%s3 + $0x80] sm:$0xf]
        %v8952 = vld [vmem:[%s3 + $0x84] sm:$0xf]
        %v8953 = vld [vmem:[%s3 + $0x88] sm:$0xf]
        %v8954 = vld [vmem:[%s3 + $0x8c] sm:$0xf]
        %v8959 = vunpack.c.l.b16 %v8951
        %v8960 = vunpack.c.l.b16 %v8952
        %v8961 = vunpack.c.l.b16 %v8953
        %v8962 = vunpack.c.l.b16 %v8954
        %v8963 = vpack.c.b16 %v8960, %v8959
        %v8964 = vpack.c.b16 %v8962, %v8961
        %v8968 = vsel %vm358, %v8695, 0
        %v8971 = vsel %vm358, %v8712, 0
        %v8974 = vsel %vm358, %v8729, 0
        %v8977 = vsel %vm358, %v8746, 0
        %v8980 = vsel %vm358, %v8763, 0
        %v8983 = vsel %vm358, %v8780, 0
        %v8986 = vsel %vm358, %v8797, 0
        %v8989 = vsel %vm358, %v8814, 0
        %v8992 = vsel %vm358, %v8831, 0
        %v8995 = vsel %vm358, %v8848, 0
        %v8998 = vsel %vm358, %v8865, 0
        %v9001 = vsel %vm358, %v8882, 0
        %v9004 = vsel %vm358, %v8899, 0
        %v9007 = vsel %vm358, %v8916, 0
        %v9010 = vsel %vm358, %v8933, 0
        %v9013 = vsel %vm358, %v8950, 0
        %9015 = vmatprep.subr.bf16.mxu0 0
        %9016 = vmatpush1.bf16.msra.mxu0 %v8963
        %9017 = vmatprep.subr.bf16.mxu0 0
        %9018 = vmatpush1.bf16.msra.mxu0 %v8964
        %9019 = vmatprep.subr.bf16.mxu0 0
        %9020 = vmatpush1.bf16.msra.mxu0 0
        %9021 = vmatprep.subr.bf16.mxu0 0
        %9022 = vmatpush1.bf16.msra.mxu0 0
        %9023 = vmatprep.subr.bf16.mxu0 0
        %9024 = vmatpush1.bf16.msra.mxu0 0
        %9025 = vmatprep.subr.bf16.mxu0 0
        %9026 = vmatpush1.bf16.msra.mxu0 0
        %9027 = vmatprep.subr.bf16.mxu0 0
        %9028 = vmatpush1.bf16.msra.mxu0 0
        %9029 = vmatprep.subr.bf16.mxu0 0
        %9030 = vmatpush1.bf16.msra.mxu0 0
        %9031 = vmatprep.subr.bf16.mxu0 0
        %9032 = vmatpush1.bf16.msra.mxu0 0
        %9033 = vmatprep.subr.bf16.mxu0 0
        %9034 = vmatpush1.bf16.msra.mxu0 0
        %9035 = vmatprep.subr.bf16.mxu0 0
        %9036 = vmatpush1.bf16.msra.mxu0 0
        %9037 = vmatprep.subr.bf16.mxu0 0
        %9038 = vmatpush1.bf16.msra.mxu0 0
        %9039 = vmatprep.subr.bf16.mxu0 0
        %9040 = vmatpush1.bf16.msra.mxu0 0
        %9041 = vmatprep.subr.bf16.mxu0 0
        %9042 = vmatpush1.bf16.msra.mxu0 0
        %9043 = vmatprep.subr.bf16.mxu0 0
        %9044 = vmatpush1.bf16.msra.mxu0 0
        %9045 = vmatprep.subr.bf16.mxu0 0
        %9046 = vmatpush1.bf16.msra.mxu0 0
        %9047 = vmatprep.mubr.bf16.mxu0 0
        %9048 = vmatmul.mubr.bf16.gmra.mrb[0].mxu0 %v8968
        %v9049 = vpop.f32.mrb[0].mxu0
        %v9050 = vadd.f32 0.0, %v9049
        %v9051 = vpop.f32.mrb[0].mxu0
        %v9052 = vpop.f32.mrb[0].mxu0
        %v9053 = vadd.f32 0.0, %v9052
        %v9054 = vpop.f32.mrb[0].mxu0
        %9055 = vmatprep.mubr.bf16.mxu0 0
        %9056 = vmatmul.mubr.bf16.gmra.mrb[0].mxu0 %v8971
        %v9057 = vpop.f32.mrb[0].mxu0
        %v9058 = vadd.f32 0.0, %v9057
        %v9059 = vpop.f32.mrb[0].mxu0
        %v9060 = vpop.f32.mrb[0].mxu0
        %v9061 = vadd.f32 0.0, %v9060
        %v9062 = vpop.f32.mrb[0].mxu0
        %9063 = vmatprep.mubr.bf16.mxu0 0
        %9064 = vmatmul.mubr.bf16.gmra.mrb[0].mxu0 %v8974
        %v9065 = vpop.f32.mrb[0].mxu0
        %v9066 = vadd.f32 0.0, %v9065
        %v9067 = vpop.f32.mrb[0].mxu0
        %v9068 = vpop.f32.mrb[0].mxu0
        %v9069 = vadd.f32 0.0, %v9068
        %v9070 = vpop.f32.mrb[0].mxu0
        %9071 = vmatprep.mubr.bf16.mxu0 0
        %9072 = vmatmul.mubr.bf16.gmra.mrb[0].mxu0 %v8977
        %v9073 = vpop.f32.mrb[0].mxu0
        %v9074 = vadd.f32 0.0, %v9073
        %v9075 = vpop.f32.mrb[0].mxu0
        %v9076 = vpop.f32.mrb[0].mxu0
        %v9077 = vadd.f32 0.0, %v9076
        %v9078 = vpop.f32.mrb[0].mxu0
        %9079 = vmatprep.mubr.bf16.mxu0 0
        %9080 = vmatmul.mubr.bf16.gmra.mrb[0].mxu0 %v8980
        %v9081 = vpop.f32.mrb[0].mxu0
        %v9082 = vadd.f32 0.0, %v9081
        %v9083 = vpop.f32.mrb[0].mxu0
        %v9084 = vpop.f32.mrb[0].mxu0
        %v9085 = vadd.f32 0.0, %v9084
        %v9086 = vpop.f32.mrb[0].mxu0
        %9087 = vmatprep.mubr.bf16.mxu0 0
        %9088 = vmatmul.mubr.bf16.gmra.mrb[0].mxu0 %v8983
        %v9089 = vpop.f32.mrb[0].mxu0
        %v9090 = vadd.f32 0.0, %v9089
        %v9091 = vpop.f32.mrb[0].mxu0
        %v9092 = vpop.f32.mrb[0].mxu0
        %v9093 = vadd.f32 0.0, %v9092
        %v9094 = vpop.f32.mrb[0].mxu0
        %9095 = vmatprep.mubr.bf16.mxu0 0
        %9096 = vmatmul.mubr.bf16.gmra.mrb[0].mxu0 %v8986
        %v9097 = vpop.f32.mrb[0].mxu0
        %v9098 = vadd.f32 0.0, %v9097
        %v9099 = vpop.f32.mrb[0].mxu0
        %v9100 = vpop.f32.mrb[0].mxu0
        %v9101 = vadd.f32 0.0, %v9100
        %v9102 = vpop.f32.mrb[0].mxu0
        %9103 = vmatprep.mubr.bf16.mxu0 0
        %9104 = vmatmul.mubr.bf16.gmra.mrb[0].mxu0 %v8989
        %v9105 = vpop.f32.mrb[0].mxu0
        %v9106 = vadd.f32 0.0, %v9105
        %v9107 = vpop.f32.mrb[0].mxu0
        %v9108 = vpop.f32.mrb[0].mxu0
        %v9109 = vadd.f32 0.0, %v9108
        %v9110 = vpop.f32.mrb[0].mxu0
        %9111 = vmatprep.mubr.bf16.mxu0 0
        %9112 = vmatmul.mubr.bf16.gmra.mrb[0].mxu0 %v8992
        %v9113 = vpop.f32.mrb[0].mxu0
        %v9114 = vadd.f32 0.0, %v9113
        %v9115 = vpop.f32.mrb[0].mxu0
        %v9116 = vpop.f32.mrb[0].mxu0
        %v9117 = vadd.f32 0.0, %v9116
        %v9118 = vpop.f32.mrb[0].mxu0
        %9119 = vmatprep.mubr.bf16.mxu0 0
        %9120 = vmatmul.mubr.bf16.gmra.mrb[0].mxu0 %v8995
        %v9121 = vpop.f32.mrb[0].mxu0
        %v9122 = vadd.f32 0.0, %v9121
        %v9123 = vpop.f32.mrb[0].mxu0
        %v9124 = vpop.f32.mrb[0].mxu0
        %v9125 = vadd.f32 0.0, %v9124
        %v9126 = vpop.f32.mrb[0].mxu0
        %9127 = vmatprep.mubr.bf16.mxu0 0
        %9128 = vmatmul.mubr.bf16.gmra.mrb[0].mxu0 %v8998
        %v9129 = vpop.f32.mrb[0].mxu0
        %v9130 = vadd.f32 0.0, %v9129
        %v9131 = vpop.f32.mrb[0].mxu0
        %v9132 = vpop.f32.mrb[0].mxu0
        %v9133 = vadd.f32 0.0, %v9132
        %v9134 = vpop.f32.mrb[0].mxu0
        %9135 = vmatprep.mubr.bf16.mxu0 0
        %9136 = vmatmul.mubr.bf16.gmra.mrb[0].mxu0 %v9001
        %v9137 = vpop.f32.mrb[0].mxu0
        %v9138 = vadd.f32 0.0, %v9137
        %v9139 = vpop.f32.mrb[0].mxu0
        %v9140 = vpop.f32.mrb[0].mxu0
        %v9141 = vadd.f32 0.0, %v9140
        %v9142 = vpop.f32.mrb[0].mxu0
        %9143 = vmatprep.mubr.bf16.mxu0 0
        %9144 = vmatmul.mubr.bf16.gmra.mrb[0].mxu0 %v9004
        %v9145 = vpop.f32.mrb[0].mxu0
        %v9146 = vadd.f32 0.0, %v9145
        %v9147 = vpop.f32.mrb[0].mxu0
        %v9148 = vpop.f32.mrb[0].mxu0
        %v9149 = vadd.f32 0.0, %v9148
        %v9150 = vpop.f32.mrb[0].mxu0
        %9151 = vmatprep.mubr.bf16.mxu0 0
        %9152 = vmatmul.mubr.bf16.gmra.mrb[0].mxu0 %v9007
        %v9153 = vpop.f32.mrb[0].mxu0
        %v9154 = vadd.f32 0.0, %v9153
        %v9155 = vpop.f32.mrb[0].mxu0
        %v9156 = vpop.f32.mrb[0].mxu0
        %v9157 = vadd.f32 0.0, %v9156
        %v9158 = vpop.f32.mrb[0].mxu0
        %9159 = vmatprep.mubr.bf16.mxu0 0
        %9160 = vmatmul.mubr.bf16.gmra.mrb[0].mxu0 %v9010
        %v9161 = vpop.f32.mrb[0].mxu0
        %v9162 = vadd.f32 0.0, %v9161
        %v9163 = vpop.f32.mrb[0].mxu0
        %v9164 = vpop.f32.mrb[0].mxu0
        %v9165 = vadd.f32 0.0, %v9164
        %v9166 = vpop.f32.mrb[0].mxu0
        %9167 = vmatprep.mubr.bf16.mxu0 0
        %9168 = vmatmul.mubr.bf16.gmra.mrb[0].mxu0 %v9013
        %v9169 = vpop.f32.mrb[0].mxu0
        %v9170 = vadd.f32 0.0, %v9169
        %v9171 = vpop.f32.mrb[0].mxu0
        %v9172 = vpop.f32.mrb[0].mxu0
        %v9173 = vadd.f32 0.0, %v9172
        %v9174 = vpop.f32.mrb[0].mxu0
        %9175 = vdwg.mxu0
        %v9176 = vadd.f32 %v8537, %v9050
        %v9177 = vadd.f32 %v8540, %v9053
        %v9178 = vadd.f32 %v8545, %v9058
        %v9179 = vadd.f32 %v8548, %v9061
        %v9180 = vadd.f32 %v8553, %v9066
        %v9181 = vadd.f32 %v8556, %v9069
        %v9182 = vadd.f32 %v8561, %v9074
        %v9183 = vadd.f32 %v8564, %v9077
        %v9184 = vadd.f32 %v8569, %v9082
        %v9185 = vadd.f32 %v8572, %v9085
        %v9186 = vadd.f32 %v8577, %v9090
        %v9187 = vadd.f32 %v8580, %v9093
        %v9188 = vadd.f32 %v8585, %v9098
        %v9189 = vadd.f32 %v8588, %v9101
        %v9190 = vadd.f32 %v8593, %v9106
        %v9191 = vadd.f32 %v8596, %v9109
        %v9192 = vadd.f32 %v8601, %v9114
        %v9193 = vadd.f32 %v8604, %v9117
        %v9194 = vadd.f32 %v8609, %v9122
        %v9195 = vadd.f32 %v8612, %v9125
        %v9196 = vadd.f32 %v8617, %v9130
        %v9197 = vadd.f32 %v8620, %v9133
        %v9198 = vadd.f32 %v8625, %v9138
        %v9199 = vadd.f32 %v8628, %v9141
        %v9200 = vadd.f32 %v8633, %v9146
        %v9201 = vadd.f32 %v8636, %v9149
        %v9202 = vadd.f32 %v8641, %v9154
        %v9203 = vadd.f32 %v8644, %v9157
        %v9204 = vadd.f32 %v8649, %v9162
        %v9205 = vadd.f32 %v8652, %v9165
        %v9206 = vadd.f32 %v8657, %v9170
        %v9207 = vadd.f32 %v8660, %v9173
        %v9208 = vadd.f32 %v6386, %v7781
        %v9209 = vadd.f32 %v6387, %v7782
        %v9210 = vadd.f32 %v6388, %v7783
        %v9211 = vadd.f32 %v6389, %v7784
        %v9212 = vadd.f32 %v6390, %v7785
        %v9213 = vadd.f32 %v6391, %v7786
        %v9214 = vadd.f32 %v6392, %v7787
        %v9215 = vadd.f32 %v6393, %v7788
        %v9216 = vadd.f32 %v6394, %v7789
        %v9217 = vadd.f32 %v6395, %v7790
        %v9218 = vadd.f32 %v6396, %v7791
        %v9219 = vadd.f32 %v6397, %v7792
        %v9220 = vadd.f32 %v6398, %v7793
        %v9221 = vadd.f32 %v6399, %v7794
        %v9222 = vadd.f32 %v6400, %v7795
        %v9223 = vadd.f32 %v6401, %v7796
        %v9224 = vadd.f32 %v6402, %v7797
        %v9225 = vadd.f32 %v6403, %v7798
        %v9226 = vadd.f32 %v6404, %v7799
        %v9227 = vadd.f32 %v6405, %v7800
        %v9228 = vadd.f32 %v6406, %v7801
        %v9229 = vadd.f32 %v6407, %v7802
        %v9230 = vadd.f32 %v6408, %v7803
        %v9231 = vadd.f32 %v6409, %v7804
        %v9232 = vadd.f32 %v6410, %v7805
        %v9233 = vadd.f32 %v6411, %v7806
        %v9234 = vadd.f32 %v6412, %v7807
        %v9235 = vadd.f32 %v6413, %v7808
        %v9236 = vadd.f32 %v6414, %v7809
        %v9237 = vadd.f32 %v6415, %v7810
        %v9238 = vadd.f32 %v6416, %v7811
        %v9239 = vadd.f32 %v6417, %v7812
        %v9240 = vadd.f32 %v9208, %v9176
        %v9241 = vadd.f32 %v9209, %v9177
        %v9242 = vadd.f32 %v9210, %v9178
        %v9243 = vadd.f32 %v9211, %v9179
        %v9244 = vadd.f32 %v9212, %v9180
        %v9245 = vadd.f32 %v9213, %v9181
        %v9246 = vadd.f32 %v9214, %v9182
        %v9247 = vadd.f32 %v9215, %v9183
        %v9248 = vadd.f32 %v9216, %v9184
        %v9249 = vadd.f32 %v9217, %v9185
        %v9250 = vadd.f32 %v9218, %v9186
        %v9251 = vadd.f32 %v9219, %v9187
        %v9252 = vadd.f32 %v9220, %v9188
        %v9253 = vadd.f32 %v9221, %v9189
        %v9254 = vadd.f32 %v9222, %v9190
        %v9255 = vadd.f32 %v9223, %v9191
        %v9256 = vadd.f32 %v9224, %v9192
        %v9257 = vadd.f32 %v9225, %v9193
        %v9258 = vadd.f32 %v9226, %v9194
        %v9259 = vadd.f32 %v9227, %v9195
        %v9260 = vadd.f32 %v9228, %v9196
        %v9261 = vadd.f32 %v9229, %v9197
        %v9262 = vadd.f32 %v9230, %v9198
        %v9263 = vadd.f32 %v9231, %v9199
        %v9264 = vadd.f32 %v9232, %v9200
        %v9265 = vadd.f32 %v9233, %v9201
        %v9266 = vadd.f32 %v9234, %v9202
        %v9267 = vadd.f32 %v9235, %v9203
        %v9268 = vadd.f32 %v9236, %v9204
        %v9269 = vadd.f32 %v9237, %v9205
        %v9270 = vadd.f32 %v9238, %v9206
        %v9271 = vadd.f32 %v9239, %v9207
        %vm9272 = vcmask 326656
        %9273 = vst.msk [vmem:[#allocation3] sm:$0xff] %vm9272, 0.0
        %9274 = vst.msk [vmem:[#allocation3 + $0x8] sm:$0xff] %vm9272, 0.0
        %vm9275 = vcmask 322560
        %9276 = vst.msk [vmem:[#allocation3 + $0x10] sm:$0xf] %vm9275, 0.0
        %v9277 = vsel %vm358, %v9240, -inf
        %9278 = vmax.xlane.f32.xlu0 %v9277
        %v9279 = vpop.xlane.xlu0 %9278
        %v9280 = vsel %vm358, %v9241, -inf
        %9281 = vmax.xlane.f32.xlu0 %v9280
        %v9282 = vpop.xlane.xlu0 %9281
        %v9283 = vsel %vm358, %v9242, -inf
        %9284 = vmax.xlane.f32.xlu0 %v9283
        %v9285 = vpop.xlane.xlu0 %9284
        %v9286 = vsel %vm358, %v9243, -inf
        %9287 = vmax.xlane.f32.xlu0 %v9286
        %v9288 = vpop.xlane.xlu0 %9287
        %v9289 = vsel %vm358, %v9244, -inf
        %9290 = vmax.xlane.f32.xlu0 %v9289
        %v9291 = vpop.xlane.xlu0 %9290
        %v9292 = vsel %vm358, %v9245, -inf
        %9293 = vmax.xlane.f32.xlu0 %v9292
        %v9294 = vpop.xlane.xlu0 %9293
        %v9295 = vsel %vm358, %v9246, -inf
        %9296 = vmax.xlane.f32.xlu0 %v9295
        %v9297 = vpop.xlane.xlu0 %9296
        %v9298 = vsel %vm358, %v9247, -inf
        %9299 = vmax.xlane.f32.xlu0 %v9298
        %v9300 = vpop.xlane.xlu0 %9299
        %v9301 = vsel %vm358, %v9248, -inf
        %9302 = vmax.xlane.f32.xlu0 %v9301
        %v9303 = vpop.xlane.xlu0 %9302
        %v9304 = vsel %vm358, %v9249, -inf
        %9305 = vmax.xlane.f32.xlu0 %v9304
        %v9306 = vpop.xlane.xlu0 %9305
        %v9307 = vsel %vm358, %v9250, -inf
        %9308 = vmax.xlane.f32.xlu0 %v9307
        %v9309 = vpop.xlane.xlu0 %9308
        %v9310 = vsel %vm358, %v9251, -inf
        %9311 = vmax.xlane.f32.xlu0 %v9310
        %v9312 = vpop.xlane.xlu0 %9311
        %v9313 = vsel %vm358, %v9252, -inf
        %9314 = vmax.xlane.f32.xlu0 %v9313
        %v9315 = vpop.xlane.xlu0 %9314
        %v9316 = vsel %vm358, %v9253, -inf
        %9317 = vmax.xlane.f32.xlu0 %v9316
        %v9318 = vpop.xlane.xlu0 %9317
        %v9319 = vsel %vm358, %v9254, -inf
        %9320 = vmax.xlane.f32.xlu0 %v9319
        %v9321 = vpop.xlane.xlu0 %9320
        %v9322 = vsel %vm358, %v9255, -inf
        %9323 = vmax.xlane.f32.xlu0 %v9322
        %v9324 = vpop.xlane.xlu0 %9323
        %v9325 = vsel %vm358, %v9256, -inf
        %9326 = vmax.xlane.f32.xlu0 %v9325
        %v9327 = vpop.xlane.xlu0 %9326
        %v9328 = vsel %vm358, %v9257, -inf
        %9329 = vmax.xlane.f32.xlu0 %v9328
        %v9330 = vpop.xlane.xlu0 %9329
        %v9331 = vsel %vm358, %v9258, -inf
        %9332 = vmax.xlane.f32.xlu0 %v9331
        %v9333 = vpop.xlane.xlu0 %9332
        %v9334 = vsel %vm358, %v9259, -inf
        %9335 = vmax.xlane.f32.xlu0 %v9334
        %v9336 = vpop.xlane.xlu0 %9335
        %v9337 = vsel %vm358, %v9260, -inf
        %9338 = vmax.xlane.f32.xlu0 %v9337
        %v9339 = vpop.xlane.xlu0 %9338
        %v9340 = vsel %vm358, %v9261, -inf
        %9341 = vmax.xlane.f32.xlu0 %v9340
        %v9342 = vpop.xlane.xlu0 %9341
        %v9343 = vsel %vm358, %v9262, -inf
        %9344 = vmax.xlane.f32.xlu0 %v9343
        %v9345 = vpop.xlane.xlu0 %9344
        %v9346 = vsel %vm358, %v9263, -inf
        %9347 = vmax.xlane.f32.xlu0 %v9346
        %v9348 = vpop.xlane.xlu0 %9347
        %v9349 = vsel %vm358, %v9264, -inf
        %9350 = vmax.xlane.f32.xlu0 %v9349
        %v9351 = vpop.xlane.xlu0 %9350
        %v9352 = vsel %vm358, %v9265, -inf
        %9353 = vmax.xlane.f32.xlu0 %v9352
        %v9354 = vpop.xlane.xlu0 %9353
        %v9355 = vsel %vm358, %v9266, -inf
        %9356 = vmax.xlane.f32.xlu0 %v9355
        %v9357 = vpop.xlane.xlu0 %9356
        %v9358 = vsel %vm358, %v9267, -inf
        %9359 = vmax.xlane.f32.xlu0 %v9358
        %v9360 = vpop.xlane.xlu0 %9359
        %v9361 = vsel %vm358, %v9268, -inf
        %9362 = vmax.xlane.f32.xlu0 %v9361
        %v9363 = vpop.xlane.xlu0 %9362
        %v9364 = vsel %vm358, %v9269, -inf
        %9365 = vmax.xlane.f32.xlu0 %v9364
        %v9366 = vpop.xlane.xlu0 %9365
        %v9367 = vsel %vm358, %v9270, -inf
        %9368 = vmax.xlane.f32.xlu0 %v9367
        %v9369 = vpop.xlane.xlu0 %9368
        %v9370 = vsel %vm358, %v9271, -inf
        %9371 = vmax.xlane.f32.xlu0 %v9370
        %v9372 = vpop.xlane.xlu0 %9371
        %v9405 = vlaneseq
        %v9406 = vand.u32 %v9405, 127
        %v9407 = vadd.s32 %v9406, 4294967294
        %v9408 = vlaneseq
        %v9409 = vshrl.u32 %v9408, 7
        %v9410 = vsub.s32 %v9407, %v9409
        %v9411 = vrot.slane %v9279, %v9410
        %v9412 = vadd.s32 %v9406, 4294967286
        %v9413 = vlaneseq
        %v9414 = vshrl.u32 %v9413, 7
        %v9415 = vsub.s32 %v9412, %v9414
        %v9416 = vrot.slane %v9282, %v9415
        %vm9417 = vcmask 146512
        %v9418 = vsel %vm9417, %v9416, %v9411
        %v9419 = vlaneseq
        %v9420 = vshrl.u32 %v9419, 7
        %v9421 = vsub.s32 %v9407, %v9420
        %v9422 = vrot.slane %v9285, %v9421
        %v9423 = vlaneseq
        %v9424 = vshrl.u32 %v9423, 7
        %v9425 = vsub.s32 %v9412, %v9424
        %v9426 = vrot.slane %v9288, %v9425
        %v9427 = vsel %vm9417, %v9426, %v9422
        %v9428 = vlaneseq
        %v9429 = vshrl.u32 %v9428, 7
        %v9430 = vsub.s32 %v9407, %v9429
        %v9431 = vrot.slane %v9291, %v9430
        %v9432 = vlaneseq
        %v9433 = vshrl.u32 %v9432, 7
        %v9434 = vsub.s32 %v9412, %v9433
        %v9435 = vrot.slane %v9294, %v9434
        %v9436 = vsel %vm9417, %v9435, %v9431
        %v9437 = vlaneseq
        %v9438 = vshrl.u32 %v9437, 7
        %v9439 = vsub.s32 %v9407, %v9438
        %v9440 = vrot.slane %v9297, %v9439
        %v9441 = vlaneseq
        %v9442 = vshrl.u32 %v9441, 7
        %v9443 = vsub.s32 %v9412, %v9442
        %v9444 = vrot.slane %v9300, %v9443
        %v9445 = vsel %vm9417, %v9444, %v9440
        %v9446 = vlaneseq
        %v9447 = vshrl.u32 %v9446, 7
        %v9448 = vsub.s32 %v9407, %v9447
        %v9449 = vrot.slane %v9303, %v9448
        %v9450 = vlaneseq
        %v9451 = vshrl.u32 %v9450, 7
        %v9452 = vsub.s32 %v9412, %v9451
        %v9453 = vrot.slane %v9306, %v9452
        %v9454 = vsel %vm9417, %v9453, %v9449
        %v9455 = vlaneseq
        %v9456 = vshrl.u32 %v9455, 7
        %v9457 = vsub.s32 %v9407, %v9456
        %v9458 = vrot.slane %v9309, %v9457
        %v9459 = vlaneseq
        %v9460 = vshrl.u32 %v9459, 7
        %v9461 = vsub.s32 %v9412, %v9460
        %v9462 = vrot.slane %v9312, %v9461
        %v9463 = vsel %vm9417, %v9462, %v9458
        %v9464 = vlaneseq
        %v9465 = vshrl.u32 %v9464, 7
        %v9466 = vsub.s32 %v9407, %v9465
        %v9467 = vrot.slane %v9315, %v9466
        %v9468 = vlaneseq
        %v9469 = vshrl.u32 %v9468, 7
        %v9470 = vsub.s32 %v9412, %v9469
        %v9471 = vrot.slane %v9318, %v9470
        %v9472 = vsel %vm9417, %v9471, %v9467
        %v9473 = vlaneseq
        %v9474 = vshrl.u32 %v9473, 7
        %v9475 = vsub.s32 %v9407, %v9474
        %v9476 = vrot.slane %v9321, %v9475
        %v9477 = vlaneseq
        %v9478 = vshrl.u32 %v9477, 7
        %v9479 = vsub.s32 %v9412, %v9478
        %v9480 = vrot.slane %v9324, %v9479
        %v9481 = vsel %vm9417, %v9480, %v9476
        %v9482 = vlaneseq
        %v9483 = vshrl.u32 %v9482, 7
        %v9484 = vsub.s32 %v9407, %v9483
        %v9485 = vrot.slane %v9327, %v9484
        %v9486 = vlaneseq
        %v9487 = vshrl.u32 %v9486, 7
        %v9488 = vsub.s32 %v9412, %v9487
        %v9489 = vrot.slane %v9330, %v9488
        %v9490 = vsel %vm9417, %v9489, %v9485
        %v9491 = vlaneseq
        %v9492 = vshrl.u32 %v9491, 7
        %v9493 = vsub.s32 %v9407, %v9492
        %v9494 = vrot.slane %v9333, %v9493
        %v9495 = vlaneseq
        %v9496 = vshrl.u32 %v9495, 7
        %v9497 = vsub.s32 %v9412, %v9496
        %v9498 = vrot.slane %v9336, %v9497
        %v9499 = vsel %vm9417, %v9498, %v9494
        %v9500 = vlaneseq
        %v9501 = vshrl.u32 %v9500, 7
        %v9502 = vsub.s32 %v9407, %v9501
        %v9503 = vrot.slane %v9339, %v9502
        %v9504 = vlaneseq
        %v9505 = vshrl.u32 %v9504, 7
        %v9506 = vsub.s32 %v9412, %v9505
        %v9507 = vrot.slane %v9342, %v9506
        %v9508 = vsel %vm9417, %v9507, %v9503
        %v9509 = vlaneseq
        %v9510 = vshrl.u32 %v9509, 7
        %v9511 = vsub.s32 %v9407, %v9510
        %v9512 = vrot.slane %v9345, %v9511
        %v9513 = vlaneseq
        %v9514 = vshrl.u32 %v9513, 7
        %v9515 = vsub.s32 %v9412, %v9514
        %v9516 = vrot.slane %v9348, %v9515
        %v9517 = vsel %vm9417, %v9516, %v9512
        %v9518 = vlaneseq
        %v9519 = vshrl.u32 %v9518, 7
        %v9520 = vsub.s32 %v9407, %v9519
        %v9521 = vrot.slane %v9351, %v9520
        %v9522 = vlaneseq
        %v9523 = vshrl.u32 %v9522, 7
        %v9524 = vsub.s32 %v9412, %v9523
        %v9525 = vrot.slane %v9354, %v9524
        %v9526 = vsel %vm9417, %v9525, %v9521
        %v9527 = vlaneseq
        %v9528 = vshrl.u32 %v9527, 7
        %v9529 = vsub.s32 %v9407, %v9528
        %v9530 = vrot.slane %v9357, %v9529
        %v9531 = vlaneseq
        %v9532 = vshrl.u32 %v9531, 7
        %v9533 = vsub.s32 %v9412, %v9532
        %v9534 = vrot.slane %v9360, %v9533
        %v9535 = vsel %vm9417, %v9534, %v9530
        %v9536 = vlaneseq
        %v9537 = vshrl.u32 %v9536, 7
        %v9538 = vsub.s32 %v9407, %v9537
        %v9539 = vrot.slane %v9363, %v9538
        %v9540 = vlaneseq
        %v9541 = vshrl.u32 %v9540, 7
        %v9542 = vsub.s32 %v9412, %v9541
        %v9543 = vrot.slane %v9366, %v9542
        %v9544 = vsel %vm9417, %v9543, %v9539
        %v9545 = vlaneseq
        %v9546 = vshrl.u32 %v9545, 7
        %v9547 = vsub.s32 %v9407, %v9546
        %v9548 = vrot.slane %v9369, %v9547
        %v9549 = vlaneseq
        %v9550 = vshrl.u32 %v9549, 7
        %v9551 = vsub.s32 %v9412, %v9550
        %v9552 = vrot.slane %v9372, %v9551
        %v9553 = vsel %vm9417, %v9552, %v9548
        %vm9554 = vcmask 1041409
        %v9555 = vsel %vm9554, %v9427, %v9418
        %vm9556 = vcmask 1042434
        %v9557 = vsel %vm9556, %v9436, %v9555
        %vm9558 = vcmask 1043459
        %v9559 = vsel %vm9558, %v9445, %v9557
        %vm9560 = vcmask 1044484
        %v9561 = vsel %vm9560, %v9454, %v9559
        %vm9562 = vcmask 1045509
        %v9563 = vsel %vm9562, %v9463, %v9561
        %vm9564 = vcmask 1046534
        %v9565 = vsel %vm9564, %v9472, %v9563
        %vm9566 = vcmask 1047559
        %v9567 = vsel %vm9566, %v9481, %v9565
        %v9568 = vsel %vm9554, %v9499, %v9490
        %v9569 = vsel %vm9556, %v9508, %v9568
        %v9570 = vsel %vm9558, %v9517, %v9569
        %v9571 = vsel %vm9560, %v9526, %v9570
        %v9572 = vsel %vm9562, %v9535, %v9571
        %v9573 = vsel %vm9564, %v9544, %v9572
        %v9574 = vsel %vm9566, %v9553, %v9573
        %vm9577 = vcmask 146448
        %9578 = vst.msk [vmem:[#allocation3 + $0x2] sm:$0xff] %vm9577, %v9567
        %9579 = vst.msk [vmem:[#allocation3 + $0xa] sm:$0xff] %vm9577, %v9574
        %v9580 = vsel %vm358, %v9240, 0.0
        %9581 = vadd.xlane.f32.xlu0 %v9580
        %v9582 = vpop.xlane.xlu0 %9581
        %v9583 = vsel %vm358, %v9241, 0.0
        %9584 = vadd.xlane.f32.xlu0 %v9583
        %v9585 = vpop.xlane.xlu0 %9584
        %v9586 = vsel %vm358, %v9242, 0.0
        %9587 = vadd.xlane.f32.xlu0 %v9586
        %v9588 = vpop.xlane.xlu0 %9587
        %v9589 = vsel %vm358, %v9243, 0.0
        %9590 = vadd.xlane.f32.xlu0 %v9589
        %v9591 = vpop.xlane.xlu0 %9590
        %v9592 = vsel %vm358, %v9244, 0.0
        %9593 = vadd.xlane.f32.xlu0 %v9592
        %v9594 = vpop.xlane.xlu0 %9593
        %v9595 = vsel %vm358, %v9245, 0.0
        %9596 = vadd.xlane.f32.xlu0 %v9595
        %v9597 = vpop.xlane.xlu0 %9596
        %v9598 = vsel %vm358, %v9246, 0.0
        %9599 = vadd.xlane.f32.xlu0 %v9598
        %v9600 = vpop.xlane.xlu0 %9599
        %v9601 = vsel %vm358, %v9247, 0.0
        %9602 = vadd.xlane.f32.xlu0 %v9601
        %v9603 = vpop.xlane.xlu0 %9602
        %v9604 = vsel %vm358, %v9248, 0.0
        %9605 = vadd.xlane.f32.xlu0 %v9604
        %v9606 = vpop.xlane.xlu0 %9605
        %v9607 = vsel %vm358, %v9249, 0.0
        %9608 = vadd.xlane.f32.xlu0 %v9607
        %v9609 = vpop.xlane.xlu0 %9608
        %v9610 = vsel %vm358, %v9250, 0.0
        %9611 = vadd.xlane.f32.xlu0 %v9610
        %v9612 = vpop.xlane.xlu0 %9611
        %v9613 = vsel %vm358, %v9251, 0.0
        %9614 = vadd.xlane.f32.xlu0 %v9613
        %v9615 = vpop.xlane.xlu0 %9614
        %v9616 = vsel %vm358, %v9252, 0.0
        %9617 = vadd.xlane.f32.xlu0 %v9616
        %v9618 = vpop.xlane.xlu0 %9617
        %v9619 = vsel %vm358, %v9253, 0.0
        %9620 = vadd.xlane.f32.xlu0 %v9619
        %v9621 = vpop.xlane.xlu0 %9620
        %v9622 = vsel %vm358, %v9254, 0.0
        %9623 = vadd.xlane.f32.xlu0 %v9622
        %v9624 = vpop.xlane.xlu0 %9623
        %v9625 = vsel %vm358, %v9255, 0.0
        %9626 = vadd.xlane.f32.xlu0 %v9625
        %v9627 = vpop.xlane.xlu0 %9626
        %v9628 = vsel %vm358, %v9256, 0.0
        %9629 = vadd.xlane.f32.xlu0 %v9628
        %v9630 = vpop.xlane.xlu0 %9629
        %v9631 = vsel %vm358, %v9257, 0.0
        %9632 = vadd.xlane.f32.xlu0 %v9631
        %v9633 = vpop.xlane.xlu0 %9632
        %v9634 = vsel %vm358, %v9258, 0.0
        %9635 = vadd.xlane.f32.xlu0 %v9634
        %v9636 = vpop.xlane.xlu0 %9635
        %v9637 = vsel %vm358, %v9259, 0.0
        %9638 = vadd.xlane.f32.xlu0 %v9637
        %v9639 = vpop.xlane.xlu0 %9638
        %v9640 = vsel %vm358, %v9260, 0.0
        %9641 = vadd.xlane.f32.xlu0 %v9640
        %v9642 = vpop.xlane.xlu0 %9641
        %v9643 = vsel %vm358, %v9261, 0.0
        %9644 = vadd.xlane.f32.xlu0 %v9643
        %v9645 = vpop.xlane.xlu0 %9644
        %v9646 = vsel %vm358, %v9262, 0.0
        %9647 = vadd.xlane.f32.xlu0 %v9646
        %v9648 = vpop.xlane.xlu0 %9647
        %v9649 = vsel %vm358, %v9263, 0.0
        %9650 = vadd.xlane.f32.xlu0 %v9649
        %v9651 = vpop.xlane.xlu0 %9650
        %v9652 = vsel %vm358, %v9264, 0.0
        %9653 = vadd.xlane.f32.xlu0 %v9652
        %v9654 = vpop.xlane.xlu0 %9653
        %v9655 = vsel %vm358, %v9265, 0.0
        %9656 = vadd.xlane.f32.xlu0 %v9655
        %v9657 = vpop.xlane.xlu0 %9656
        %v9658 = vsel %vm358, %v9266, 0.0
        %9659 = vadd.xlane.f32.xlu0 %v9658
        %v9660 = vpop.xlane.xlu0 %9659
        %v9661 = vsel %vm358, %v9267, 0.0
        %9662 = vadd.xlane.f32.xlu0 %v9661
        %v9663 = vpop.xlane.xlu0 %9662
        %v9664 = vsel %vm358, %v9268, 0.0
        %9665 = vadd.xlane.f32.xlu0 %v9664
        %v9666 = vpop.xlane.xlu0 %9665
        %v9667 = vsel %vm358, %v9269, 0.0
        %9668 = vadd.xlane.f32.xlu0 %v9667
        %v9669 = vpop.xlane.xlu0 %9668
        %v9670 = vsel %vm358, %v9270, 0.0
        %9671 = vadd.xlane.f32.xlu0 %v9670
        %v9672 = vpop.xlane.xlu0 %9671
        %v9673 = vsel %vm358, %v9271, 0.0
        %9674 = vadd.xlane.f32.xlu0 %v9673
        %v9675 = vpop.xlane.xlu0 %9674
        %v9676 = vrcp.pop 32.0
        %v9677 = vmul.f32 %v9582, %v9676
        %v9678 = vmul.f32 %v9585, %v9676
        %v9679 = vmul.f32 %v9588, %v9676
        %v9680 = vmul.f32 %v9591, %v9676
        %v9681 = vmul.f32 %v9594, %v9676
        %v9682 = vmul.f32 %v9597, %v9676
        %v9683 = vmul.f32 %v9600, %v9676
        %v9684 = vmul.f32 %v9603, %v9676
        %v9685 = vmul.f32 %v9606, %v9676
        %v9686 = vmul.f32 %v9609, %v9676
        %v9687 = vmul.f32 %v9612, %v9676
        %v9688 = vmul.f32 %v9615, %v9676
        %v9689 = vmul.f32 %v9618, %v9676
        %v9690 = vmul.f32 %v9621, %v9676
        %v9691 = vmul.f32 %v9624, %v9676
        %v9692 = vmul.f32 %v9627, %v9676
        %v9693 = vmul.f32 %v9630, %v9676
        %v9694 = vmul.f32 %v9633, %v9676
        %v9695 = vmul.f32 %v9636, %v9676
        %v9696 = vmul.f32 %v9639, %v9676
        %v9697 = vmul.f32 %v9642, %v9676
        %v9698 = vmul.f32 %v9645, %v9676
        %v9699 = vmul.f32 %v9648, %v9676
        %v9700 = vmul.f32 %v9651, %v9676
        %v9701 = vmul.f32 %v9654, %v9676
        %v9702 = vmul.f32 %v9657, %v9676
        %v9703 = vmul.f32 %v9660, %v9676
        %v9704 = vmul.f32 %v9663, %v9676
        %v9705 = vmul.f32 %v9666, %v9676
        %v9706 = vmul.f32 %v9669, %v9676
        %v9707 = vmul.f32 %v9672, %v9676
        %v9708 = vmul.f32 %v9675, %v9676
        %v9741 = vadd.s32 %v9406, 4294967274
        %v9742 = vlaneseq
        %v9743 = vshrl.u32 %v9742, 7
        %v9744 = vsub.s32 %v9741, %v9743
        %v9745 = vrot.slane %v9677, %v9744
        %v9746 = vadd.s32 %v9406, 4294967266
        %v9747 = vlaneseq
        %v9748 = vshrl.u32 %v9747, 7
        %v9749 = vsub.s32 %v9746, %v9748
        %v9750 = vrot.slane %v9678, %v9749
        %vm9751 = vcmask 310512
        %v9752 = vsel %vm9751, %v9750, %v9745
        %v9753 = vlaneseq
        %v9754 = vshrl.u32 %v9753, 7
        %v9755 = vsub.s32 %v9741, %v9754
        %v9756 = vrot.slane %v9679, %v9755
        %v9757 = vlaneseq
        %v9758 = vshrl.u32 %v9757, 7
        %v9759 = vsub.s32 %v9746, %v9758
        %v9760 = vrot.slane %v9680, %v9759
        %v9761 = vsel %vm9751, %v9760, %v9756
        %v9762 = vlaneseq
        %v9763 = vshrl.u32 %v9762, 7
        %v9764 = vsub.s32 %v9741, %v9763
        %v9765 = vrot.slane %v9681, %v9764
        %v9766 = vlaneseq
        %v9767 = vshrl.u32 %v9766, 7
        %v9768 = vsub.s32 %v9746, %v9767
        %v9769 = vrot.slane %v9682, %v9768
        %v9770 = vsel %vm9751, %v9769, %v9765
        %v9771 = vlaneseq
        %v9772 = vshrl.u32 %v9771, 7
        %v9773 = vsub.s32 %v9741, %v9772
        %v9774 = vrot.slane %v9683, %v9773
        %v9775 = vlaneseq
        %v9776 = vshrl.u32 %v9775, 7
        %v9777 = vsub.s32 %v9746, %v9776
        %v9778 = vrot.slane %v9684, %v9777
        %v9779 = vsel %vm9751, %v9778, %v9774
        %v9780 = vlaneseq
        %v9781 = vshrl.u32 %v9780, 7
        %v9782 = vsub.s32 %v9741, %v9781
        %v9783 = vrot.slane %v9685, %v9782
        %v9784 = vlaneseq
        %v9785 = vshrl.u32 %v9784, 7
        %v9786 = vsub.s32 %v9746, %v9785
        %v9787 = vrot.slane %v9686, %v9786
        %v9788 = vsel %vm9751, %v9787, %v9783
        %v9789 = vlaneseq
        %v9790 = vshrl.u32 %v9789, 7
        %v9791 = vsub.s32 %v9741, %v9790
        %v9792 = vrot.slane %v9687, %v9791
        %v9793 = vlaneseq
        %v9794 = vshrl.u32 %v9793, 7
        %v9795 = vsub.s32 %v9746, %v9794
        %v9796 = vrot.slane %v9688, %v9795
        %v9797 = vsel %vm9751, %v9796, %v9792
        %v9798 = vlaneseq
        %v9799 = vshrl.u32 %v9798, 7
        %v9800 = vsub.s32 %v9741, %v9799
        %v9801 = vrot.slane %v9689, %v9800
        %v9802 = vlaneseq
        %v9803 = vshrl.u32 %v9802, 7
        %v9804 = vsub.s32 %v9746, %v9803
        %v9805 = vrot.slane %v9690, %v9804
        %v9806 = vsel %vm9751, %v9805, %v9801
        %v9807 = vlaneseq
        %v9808 = vshrl.u32 %v9807, 7
        %v9809 = vsub.s32 %v9741, %v9808
        %v9810 = vrot.slane %v9691, %v9809
        %v9811 = vlaneseq
        %v9812 = vshrl.u32 %v9811, 7
        %v9813 = vsub.s32 %v9746, %v9812
        %v9814 = vrot.slane %v9692, %v9813
        %v9815 = vsel %vm9751, %v9814, %v9810
        %v9816 = vlaneseq
        %v9817 = vshrl.u32 %v9816, 7
        %v9818 = vsub.s32 %v9741, %v9817
        %v9819 = vrot.slane %v9693, %v9818
        %v9820 = vlaneseq
        %v9821 = vshrl.u32 %v9820, 7
        %v9822 = vsub.s32 %v9746, %v9821
        %v9823 = vrot.slane %v9694, %v9822
        %v9824 = vsel %vm9751, %v9823, %v9819
        %v9825 = vlaneseq
        %v9826 = vshrl.u32 %v9825, 7
        %v9827 = vsub.s32 %v9741, %v9826
        %v9828 = vrot.slane %v9695, %v9827
        %v9829 = vlaneseq
        %v9830 = vshrl.u32 %v9829, 7
        %v9831 = vsub.s32 %v9746, %v9830
        %v9832 = vrot.slane %v9696, %v9831
        %v9833 = vsel %vm9751, %v9832, %v9828
        %v9834 = vlaneseq
        %v9835 = vshrl.u32 %v9834, 7
        %v9836 = vsub.s32 %v9741, %v9835
        %v9837 = vrot.slane %v9697, %v9836
        %v9838 = vlaneseq
        %v9839 = vshrl.u32 %v9838, 7
        %v9840 = vsub.s32 %v9746, %v9839
        %v9841 = vrot.slane %v9698, %v9840
        %v9842 = vsel %vm9751, %v9841, %v9837
        %v9843 = vlaneseq
        %v9844 = vshrl.u32 %v9843, 7
        %v9845 = vsub.s32 %v9741, %v9844
        %v9846 = vrot.slane %v9699, %v9845
        %v9847 = vlaneseq
        %v9848 = vshrl.u32 %v9847, 7
        %v9849 = vsub.s32 %v9746, %v9848
        %v9850 = vrot.slane %v9700, %v9849
        %v9851 = vsel %vm9751, %v9850, %v9846
        %v9852 = vlaneseq
        %v9853 = vshrl.u32 %v9852, 7
        %v9854 = vsub.s32 %v9741, %v9853
        %v9855 = vrot.slane %v9701, %v9854
        %v9856 = vlaneseq
        %v9857 = vshrl.u32 %v9856, 7
        %v9858 = vsub.s32 %v9746, %v9857
        %v9859 = vrot.slane %v9702, %v9858
        %v9860 = vsel %vm9751, %v9859, %v9855
        %v9861 = vlaneseq
        %v9862 = vshrl.u32 %v9861, 7
        %v9863 = vsub.s32 %v9741, %v9862
        %v9864 = vrot.slane %v9703, %v9863
        %v9865 = vlaneseq
        %v9866 = vshrl.u32 %v9865, 7
        %v9867 = vsub.s32 %v9746, %v9866
        %v9868 = vrot.slane %v9704, %v9867
        %v9869 = vsel %vm9751, %v9868, %v9864
        %v9870 = vlaneseq
        %v9871 = vshrl.u32 %v9870, 7
        %v9872 = vsub.s32 %v9741, %v9871
        %v9873 = vrot.slane %v9705, %v9872
        %v9874 = vlaneseq
        %v9875 = vshrl.u32 %v9874, 7
        %v9876 = vsub.s32 %v9746, %v9875
        %v9877 = vrot.slane %v9706, %v9876
        %v9878 = vsel %vm9751, %v9877, %v9873
        %v9879 = vlaneseq
        %v9880 = vshrl.u32 %v9879, 7
        %v9881 = vsub.s32 %v9741, %v9880
        %v9882 = vrot.slane %v9707, %v9881
        %v9883 = vlaneseq
        %v9884 = vshrl.u32 %v9883, 7
        %v9885 = vsub.s32 %v9746, %v9884
        %v9886 = vrot.slane %v9708, %v9885
        %v9887 = vsel %vm9751, %v9886, %v9882
        %v9888 = vsel %vm9554, %v9761, %v9752
        %v9889 = vsel %vm9556, %v9770, %v9888
        %v9890 = vsel %vm9558, %v9779, %v9889
        %v9891 = vsel %vm9560, %v9788, %v9890
        %v9892 = vsel %vm9562, %v9797, %v9891
        %v9893 = vsel %vm9564, %v9806, %v9892
        %v9894 = vsel %vm9566, %v9815, %v9893
        %v9895 = vsel %vm9554, %v9833, %v9824
        %v9896 = vsel %vm9556, %v9842, %v9895
        %v9897 = vsel %vm9558, %v9851, %v9896
        %v9898 = vsel %vm9560, %v9860, %v9897
        %v9899 = vsel %vm9562, %v9869, %v9898
        %v9900 = vsel %vm9564, %v9878, %v9899
        %v9901 = vsel %vm9566, %v9887, %v9900
        %vm9904 = vcmask 310448
        %9905 = vst.msk [vmem:[#allocation3 + $0x2] sm:$0xff] %vm9904, %v9894
        %9906 = vst.msk [vmem:[#allocation3 + $0xa] sm:$0xff] %vm9904, %v9901
        %v9907 = vld [vmem:[%s4] sm:$0x1]
        %v9908 = vld [vmem:[#allocation3] sm:$0xff]
        %v9909 = vld [vmem:[#allocation3 + $0x8] sm:$0xff]
        %v9910 = vlaneseq
        %v9911 = vshrl.u32 %v9910, 7
        %v9912 = vsub.s32 0, %v9911
        %v9913 = vrot.slane %v9907, %v9912
        %v9914 = vmul.f32 %v9908, %v9913
        %v9915 = vmul.f32 %v9909, %v9913
        %v9916 = vadd.f32 %v9914, 0.0
        %v9917 = vadd.f32 %v9915, 0.0
        %v9918 = vld [vmem:[%s4 + $0x1] sm:$0x1]
        %v9919 = vlaneseq
        %v9920 = vshrl.u32 %v9919, 7
        %v9921 = vsub.s32 0, %v9920
        %v9922 = vrot.slane %v9918, %v9921
        %9924 = vrot.lane.b32.xlu0 %v9922, 1
        %v9925 = vpop.permute.xlu0 %9924
        %v9927 = vmul.f32 %v9908, %v9925
        %v9928 = vmul.f32 %v9909, %v9925
        %v9929 = vadd.f32 %v9927, 0.0
        %v9930 = vadd.f32 %v9928, 0.0
        %v9931 = vld [vmem:[%s4 + $0x2] sm:$0x1]
        %v9932 = vlaneseq
        %v9933 = vshrl.u32 %v9932, 7
        %v9934 = vsub.s32 0, %v9933
        %v9935 = vrot.slane %v9931, %v9934
        %9937 = vrot.lane.b32.xlu0 %v9935, 2
        %v9938 = vpop.permute.xlu0 %9937
        %v9940 = vmul.f32 %v9908, %v9938
        %v9941 = vmul.f32 %v9909, %v9938
        %v9942 = vadd.f32 %v9940, 0.0
        %v9943 = vadd.f32 %v9941, 0.0
        %v9944 = vld [vmem:[%s4 + $0x3] sm:$0x1]
        %v9945 = vlaneseq
        %v9946 = vshrl.u32 %v9945, 7
        %v9947 = vsub.s32 0, %v9946
        %v9948 = vrot.slane %v9944, %v9947
        %9950 = vrot.lane.b32.xlu0 %v9948, 3
        %v9951 = vpop.permute.xlu0 %9950
        %v9953 = vmul.f32 %v9908, %v9951
        %v9954 = vmul.f32 %v9909, %v9951
        %v9955 = vadd.f32 %v9953, 0.0
        %v9956 = vadd.f32 %v9954, 0.0
        %v9957 = vld [vmem:[%s4 + $0x4] sm:$0x1]
        %v9958 = vlaneseq
        %v9959 = vshrl.u32 %v9958, 7
        %v9960 = vsub.s32 0, %v9959
        %v9961 = vrot.slane %v9957, %v9960
        %9963 = vrot.lane.b32.xlu0 %v9961, 4
        %v9964 = vpop.permute.xlu0 %9963
        %v9966 = vmul.f32 %v9908, %v9964
        %v9967 = vmul.f32 %v9909, %v9964
        %v9968 = vadd.f32 %v9966, 0.0
        %v9969 = vadd.f32 %v9967, 0.0
        %v9970 = vld [vmem:[%s4 + $0x5] sm:$0x1]
        %v9971 = vld [vmem:[#allocation3 + $0x1] sm:$0xff]
        %v9972 = vld [vmem:[#allocation3 + $0x9] sm:$0xff]
        %v9973 = vlaneseq
        %v9974 = vshrl.u32 %v9973, 7
        %v9975 = vsub.s32 0, %v9974
        %v9976 = vrot.slane %v9970, %v9975
        %v9977 = vmul.f32 %v9971, %v9976
        %v9978 = vmul.f32 %v9972, %v9976
        %v9979 = vadd.f32 %v9916, %v9977
        %v9980 = vadd.f32 %v9917, %v9978
        %v9981 = vld [vmem:[%s4 + $0x6] sm:$0x1]
        %v9982 = vlaneseq
        %v9983 = vshrl.u32 %v9982, 7
        %v9984 = vsub.s32 0, %v9983
        %v9985 = vrot.slane %v9981, %v9984
        %9987 = vrot.lane.b32.xlu0 %v9985, 1
        %v9988 = vpop.permute.xlu0 %9987
        %v9990 = vmul.f32 %v9971, %v9988
        %v9991 = vmul.f32 %v9972, %v9988
        %v9992 = vadd.f32 %v9929, %v9990
        %v9993 = vadd.f32 %v9930, %v9991
        %v9994 = vld [vmem:[%s4 + $0x7] sm:$0x1]
        %v9995 = vlaneseq
        %v9996 = vshrl.u32 %v9995, 7
        %v9997 = vsub.s32 0, %v9996
        %v9998 = vrot.slane %v9994, %v9997
        %10000 = vrot.lane.b32.xlu0 %v9998, 2
        %v10001 = vpop.permute.xlu0 %10000
        %v10003 = vmul.f32 %v9971, %v10001
        %v10004 = vmul.f32 %v9972, %v10001
        %v10005 = vadd.f32 %v9942, %v10003
        %v10006 = vadd.f32 %v9943, %v10004
        %v10007 = vld [vmem:[%s4 + $0x8] sm:$0x1]
        %v10008 = vlaneseq
        %v10009 = vshrl.u32 %v10008, 7
        %v10010 = vsub.s32 0, %v10009
        %v10011 = vrot.slane %v10007, %v10010
        %10013 = vrot.lane.b32.xlu0 %v10011, 3
        %v10014 = vpop.permute.xlu0 %10013
        %v10016 = vmul.f32 %v9971, %v10014
        %v10017 = vmul.f32 %v9972, %v10014
        %v10018 = vadd.f32 %v9955, %v10016
        %v10019 = vadd.f32 %v9956, %v10017
        %v10020 = vld [vmem:[%s4 + $0x9] sm:$0x1]
        %v10021 = vlaneseq
        %v10022 = vshrl.u32 %v10021, 7
        %v10023 = vsub.s32 0, %v10022
        %v10024 = vrot.slane %v10020, %v10023
        %10026 = vrot.lane.b32.xlu0 %v10024, 4
        %v10027 = vpop.permute.xlu0 %10026
        %v10029 = vmul.f32 %v9971, %v10027
        %v10030 = vmul.f32 %v9972, %v10027
        %v10031 = vadd.f32 %v9968, %v10029
        %v10032 = vadd.f32 %v9969, %v10030
        %v10033 = vld [vmem:[%s4 + $0xa] sm:$0x1]
        %v10034 = vld [vmem:[#allocation3 + $0x2] sm:$0xff]
        %v10035 = vld [vmem:[#allocation3 + $0xa] sm:$0xff]
        %v10036 = vlaneseq
        %v10037 = vshrl.u32 %v10036, 7
        %v10038 = vsub.s32 0, %v10037
        %v10039 = vrot.slane %v10033, %v10038
        %v10040 = vmul.f32 %v10034, %v10039
        %v10041 = vmul.f32 %v10035, %v10039
        %v10042 = vadd.f32 %v9979, %v10040
        %v10043 = vadd.f32 %v9980, %v10041
        %v10044 = vld [vmem:[%s4 + $0xb] sm:$0x1]
        %v10045 = vlaneseq
        %v10046 = vshrl.u32 %v10045, 7
        %v10047 = vsub.s32 0, %v10046
        %v10048 = vrot.slane %v10044, %v10047
        %10050 = vrot.lane.b32.xlu0 %v10048, 1
        %v10051 = vpop.permute.xlu0 %10050
        %v10053 = vmul.f32 %v10034, %v10051
        %v10054 = vmul.f32 %v10035, %v10051
        %v10055 = vadd.f32 %v9992, %v10053
        %v10056 = vadd.f32 %v9993, %v10054
        %v10057 = vld [vmem:[%s4 + $0xc] sm:$0x1]
        %v10058 = vlaneseq
        %v10059 = vshrl.u32 %v10058, 7
        %v10060 = vsub.s32 0, %v10059
        %v10061 = vrot.slane %v10057, %v10060
        %10063 = vrot.lane.b32.xlu0 %v10061, 2
        %v10064 = vpop.permute.xlu0 %10063
        %v10066 = vmul.f32 %v10034, %v10064
        %v10067 = vmul.f32 %v10035, %v10064
        %v10068 = vadd.f32 %v10005, %v10066
        %v10069 = vadd.f32 %v10006, %v10067
        %v10070 = vld [vmem:[%s4 + $0xd] sm:$0x1]
        %v10071 = vlaneseq
        %v10072 = vshrl.u32 %v10071, 7
        %v10073 = vsub.s32 0, %v10072
        %v10074 = vrot.slane %v10070, %v10073
        %10076 = vrot.lane.b32.xlu0 %v10074, 3
        %v10077 = vpop.permute.xlu0 %10076
        %v10079 = vmul.f32 %v10034, %v10077
        %v10080 = vmul.f32 %v10035, %v10077
        %v10081 = vadd.f32 %v10018, %v10079
        %v10082 = vadd.f32 %v10019, %v10080
        %v10083 = vld [vmem:[%s4 + $0xe] sm:$0x1]
        %v10084 = vlaneseq
        %v10085 = vshrl.u32 %v10084, 7
        %v10086 = vsub.s32 0, %v10085
        %v10087 = vrot.slane %v10083, %v10086
        %10089 = vrot.lane.b32.xlu0 %v10087, 4
        %v10090 = vpop.permute.xlu0 %10089
        %v10092 = vmul.f32 %v10034, %v10090
        %v10093 = vmul.f32 %v10035, %v10090
        %v10094 = vadd.f32 %v10031, %v10092
        %v10095 = vadd.f32 %v10032, %v10093
        %v10096 = vld [vmem:[%s4 + $0xf] sm:$0x1]
        %v10097 = vld [vmem:[#allocation3 + $0x3] sm:$0xff]
        %v10098 = vld [vmem:[#allocation3 + $0xb] sm:$0xff]
        %v10099 = vlaneseq
        %v10100 = vshrl.u32 %v10099, 7
        %v10101 = vsub.s32 0, %v10100
        %v10102 = vrot.slane %v10096, %v10101
        %v10103 = vmul.f32 %v10097, %v10102
        %v10104 = vmul.f32 %v10098, %v10102
        %v10105 = vadd.f32 %v10042, %v10103
        %v10106 = vadd.f32 %v10043, %v10104
        %v10107 = vld [vmem:[%s4 + $0x10] sm:$0x1]
        %v10108 = vlaneseq
        %v10109 = vshrl.u32 %v10108, 7
        %v10110 = vsub.s32 0, %v10109
        %v10111 = vrot.slane %v10107, %v10110
        %10113 = vrot.lane.b32.xlu0 %v10111, 1
        %v10114 = vpop.permute.xlu0 %10113
        %v10116 = vmul.f32 %v10097, %v10114
        %v10117 = vmul.f32 %v10098, %v10114
        %v10118 = vadd.f32 %v10055, %v10116
        %v10119 = vadd.f32 %v10056, %v10117
        %v10120 = vld [vmem:[%s4 + $0x11] sm:$0x1]
        %v10121 = vlaneseq
        %v10122 = vshrl.u32 %v10121, 7
        %v10123 = vsub.s32 0, %v10122
        %v10124 = vrot.slane %v10120, %v10123
        %10126 = vrot.lane.b32.xlu0 %v10124, 2
        %v10127 = vpop.permute.xlu0 %10126
        %v10129 = vmul.f32 %v10097, %v10127
        %v10130 = vmul.f32 %v10098, %v10127
        %v10131 = vadd.f32 %v10068, %v10129
        %v10132 = vadd.f32 %v10069, %v10130
        %v10133 = vld [vmem:[%s4 + $0x12] sm:$0x1]
        %v10134 = vlaneseq
        %v10135 = vshrl.u32 %v10134, 7
        %v10136 = vsub.s32 0, %v10135
        %v10137 = vrot.slane %v10133, %v10136
        %10139 = vrot.lane.b32.xlu0 %v10137, 3
        %v10140 = vpop.permute.xlu0 %10139
        %v10142 = vmul.f32 %v10097, %v10140
        %v10143 = vmul.f32 %v10098, %v10140
        %v10144 = vadd.f32 %v10081, %v10142
        %v10145 = vadd.f32 %v10082, %v10143
        %v10146 = vld [vmem:[%s4 + $0x13] sm:$0x1]
        %v10147 = vlaneseq
        %v10148 = vshrl.u32 %v10147, 7
        %v10149 = vsub.s32 0, %v10148
        %v10150 = vrot.slane %v10146, %v10149
        %10152 = vrot.lane.b32.xlu0 %v10150, 4
        %v10153 = vpop.permute.xlu0 %10152
        %v10155 = vmul.f32 %v10097, %v10153
        %v10156 = vmul.f32 %v10098, %v10153
        %v10157 = vadd.f32 %v10094, %v10155
        %v10158 = vadd.f32 %v10095, %v10156
        %v10159 = vld [vmem:[%s4 + $0x14] sm:$0x1]
        %v10160 = vld [vmem:[#allocation3 + $0x4] sm:$0xff]
        %v10161 = vld [vmem:[#allocation3 + $0xc] sm:$0xff]
        %v10162 = vlaneseq
        %v10163 = vshrl.u32 %v10162, 7
        %v10164 = vsub.s32 0, %v10163
        %v10165 = vrot.slane %v10159, %v10164
        %v10166 = vmul.f32 %v10160, %v10165
        %v10167 = vmul.f32 %v10161, %v10165
        %v10168 = vadd.f32 %v10105, %v10166
        %v10169 = vadd.f32 %v10106, %v10167
        %v10170 = vld [vmem:[%s4 + $0x15] sm:$0x1]
        %v10171 = vlaneseq
        %v10172 = vshrl.u32 %v10171, 7
        %v10173 = vsub.s32 0, %v10172
        %v10174 = vrot.slane %v10170, %v10173
        %10176 = vrot.lane.b32.xlu0 %v10174, 1
        %v10177 = vpop.permute.xlu0 %10176
        %v10179 = vmul.f32 %v10160, %v10177
        %v10180 = vmul.f32 %v10161, %v10177
        %v10181 = vadd.f32 %v10118, %v10179
        %v10182 = vadd.f32 %v10119, %v10180
        %v10183 = vld [vmem:[%s4 + $0x16] sm:$0x1]
        %v10184 = vlaneseq
        %v10185 = vshrl.u32 %v10184, 7
        %v10186 = vsub.s32 0, %v10185
        %v10187 = vrot.slane %v10183, %v10186
        %10189 = vrot.lane.b32.xlu0 %v10187, 2
        %v10190 = vpop.permute.xlu0 %10189
        %v10192 = vmul.f32 %v10160, %v10190
        %v10193 = vmul.f32 %v10161, %v10190
        %v10194 = vadd.f32 %v10131, %v10192
        %v10195 = vadd.f32 %v10132, %v10193
        %v10196 = vld [vmem:[%s4 + $0x17] sm:$0x1]
        %v10197 = vlaneseq
        %v10198 = vshrl.u32 %v10197, 7
        %v10199 = vsub.s32 0, %v10198
        %v10200 = vrot.slane %v10196, %v10199
        %10202 = vrot.lane.b32.xlu0 %v10200, 3
        %v10203 = vpop.permute.xlu0 %10202
        %v10205 = vmul.f32 %v10160, %v10203
        %v10206 = vmul.f32 %v10161, %v10203
        %v10207 = vadd.f32 %v10144, %v10205
        %v10208 = vadd.f32 %v10145, %v10206
        %v10209 = vld [vmem:[%s4 + $0x18] sm:$0x1]
        %v10210 = vlaneseq
        %v10211 = vshrl.u32 %v10210, 7
        %v10212 = vsub.s32 0, %v10211
        %v10213 = vrot.slane %v10209, %v10212
        %10215 = vrot.lane.b32.xlu0 %v10213, 4
        %v10216 = vpop.permute.xlu0 %10215
        %v10218 = vmul.f32 %v10160, %v10216
        %v10219 = vmul.f32 %v10161, %v10216
        %v10220 = vadd.f32 %v10157, %v10218
        %v10221 = vadd.f32 %v10158, %v10219
        %10224 = vrot.lane.b32.xlu0 %v10181, 127
        %v10225 = vpop.permute.xlu0 %10224
        %10226 = vrot.lane.b32.xlu0 %v10182, 127
        %v10227 = vpop.permute.xlu0 %10226
        %v10230 = vadd.f32 %v10168, %v10225
        %v10231 = vadd.f32 %v10169, %v10227
        %10234 = vrot.lane.b32.xlu0 %v10207, 127
        %v10235 = vpop.permute.xlu0 %10234
        %10236 = vrot.lane.b32.xlu0 %v10208, 127
        %v10237 = vpop.permute.xlu0 %10236
        %v10240 = vadd.f32 %v10194, %v10235
        %v10241 = vadd.f32 %v10195, %v10237
        %10244 = vrot.lane.b32.xlu0 %v10240, 126
        %v10245 = vpop.permute.xlu0 %10244
        %10246 = vrot.lane.b32.xlu0 %v10241, 126
        %v10247 = vpop.permute.xlu0 %10246
        %v10250 = vadd.f32 %v10230, %v10245
        %v10251 = vadd.f32 %v10231, %v10247
        %10254 = vrot.lane.b32.xlu0 %v10220, 124
        %v10255 = vpop.permute.xlu0 %10254
        %10256 = vrot.lane.b32.xlu0 %v10221, 124
        %v10257 = vpop.permute.xlu0 %10256
        %v10260 = vadd.f32 %v10250, %v10255
        %v10261 = vadd.f32 %v10251, %v10257
        %10264 = vrot.lane.b32.xlu0 %v10260, 108
        %v10265 = vpop.permute.xlu0 %10264
        %10266 = vrot.lane.b32.xlu0 %v10261, 108
        %v10267 = vpop.permute.xlu0 %10266
        %v10270 = vadd.f32 %v10260, %v10265
        %v10271 = vadd.f32 %v10261, %v10267
        %v10272 = vxor.u32 %v10270, 2147483648
        %v10273 = vxor.u32 %v10271, 2147483648
        %v10274 = vmul.f32 %v10272, 1.442695
        %v10275 = vpow.pop %v10274
        %v10276 = vmul.f32 %v10273, 1.442695
        %v10277 = vpow.pop %v10276
        %v10278 = vadd.f32 %v10275, 1.0
        %v10279 = vadd.f32 %v10277, 1.0
        %v10280 = vrcp.pop %v10278
        %v10281 = vmul.f32 1.0, %v10280
        %v10282 = vrcp.pop %v10279
        %v10283 = vmul.f32 1.0, %v10282
        %v10284 = vlaneseq
        %v10285 = vshrl.u32 %v10284, 7
        %v10286 = vsub.s32 0, %v10285
        %v10287 = vrot.slane %v10281, %v10286
        %10289 = vbcast.lane.b32.xlu0 %v10287, 256
        %v10290 = vpop.permute.xlu0 %10289
        %s10292 = sor.u32 256, 8
        %10293 = vbcast.lane.b32.xlu0 %v10287, %s10292
        %v10294 = vpop.permute.xlu0 %10293
        %v10295 = vlaneseq
        %v10296 = vshrl.u32 %v10295, 7
        %v10297 = vsub.s32 1, %v10296
        %v10298 = vrot.slane %v10281, %v10297
        %10300 = vbcast.lane.b32.xlu0 %v10298, 256
        %v10301 = vpop.permute.xlu0 %10300
        %s10303 = sor.u32 256, 8
        %10304 = vbcast.lane.b32.xlu0 %v10298, %s10303
        %v10305 = vpop.permute.xlu0 %10304
        %v10306 = vlaneseq
        %v10307 = vshrl.u32 %v10306, 7
        %v10308 = vsub.s32 2, %v10307
        %v10309 = vrot.slane %v10281, %v10308
        %10311 = vbcast.lane.b32.xlu0 %v10309, 256
        %v10312 = vpop.permute.xlu0 %10311
        %s10314 = sor.u32 256, 8
        %10315 = vbcast.lane.b32.xlu0 %v10309, %s10314
        %v10316 = vpop.permute.xlu0 %10315
        %v10317 = vlaneseq
        %v10318 = vshrl.u32 %v10317, 7
        %v10319 = vsub.s32 3, %v10318
        %v10320 = vrot.slane %v10281, %v10319
        %10322 = vbcast.lane.b32.xlu0 %v10320, 256
        %v10323 = vpop.permute.xlu0 %10322
        %s10325 = sor.u32 256, 8
        %10326 = vbcast.lane.b32.xlu0 %v10320, %s10325
        %v10327 = vpop.permute.xlu0 %10326
        %v10328 = vlaneseq
        %v10329 = vshrl.u32 %v10328, 7
        %v10330 = vsub.s32 4, %v10329
        %v10331 = vrot.slane %v10281, %v10330
        %10333 = vbcast.lane.b32.xlu0 %v10331, 256
        %v10334 = vpop.permute.xlu0 %10333
        %s10336 = sor.u32 256, 8
        %10337 = vbcast.lane.b32.xlu0 %v10331, %s10336
        %v10338 = vpop.permute.xlu0 %10337
        %v10339 = vlaneseq
        %v10340 = vshrl.u32 %v10339, 7
        %v10341 = vsub.s32 5, %v10340
        %v10342 = vrot.slane %v10281, %v10341
        %10344 = vbcast.lane.b32.xlu0 %v10342, 256
        %v10345 = vpop.permute.xlu0 %10344
        %s10347 = sor.u32 256, 8
        %10348 = vbcast.lane.b32.xlu0 %v10342, %s10347
        %v10349 = vpop.permute.xlu0 %10348
        %v10350 = vlaneseq
        %v10351 = vshrl.u32 %v10350, 7
        %v10352 = vsub.s32 6, %v10351
        %v10353 = vrot.slane %v10281, %v10352
        %10355 = vbcast.lane.b32.xlu0 %v10353, 256
        %v10356 = vpop.permute.xlu0 %10355
        %s10358 = sor.u32 256, 8
        %10359 = vbcast.lane.b32.xlu0 %v10353, %s10358
        %v10360 = vpop.permute.xlu0 %10359
        %v10361 = vlaneseq
        %v10362 = vshrl.u32 %v10361, 7
        %v10363 = vsub.s32 7, %v10362
        %v10364 = vrot.slane %v10281, %v10363
        %10366 = vbcast.lane.b32.xlu0 %v10364, 256
        %v10367 = vpop.permute.xlu0 %10366
        %s10369 = sor.u32 256, 8
        %10370 = vbcast.lane.b32.xlu0 %v10364, %s10369
        %v10371 = vpop.permute.xlu0 %10370
        %v10372 = vlaneseq
        %v10373 = vshrl.u32 %v10372, 7
        %v10374 = vsub.s32 0, %v10373
        %v10375 = vrot.slane %v10283, %v10374
        %10377 = vbcast.lane.b32.xlu0 %v10375, 256
        %v10378 = vpop.permute.xlu0 %10377
        %s10380 = sor.u32 256, 8
        %10381 = vbcast.lane.b32.xlu0 %v10375, %s10380
        %v10382 = vpop.permute.xlu0 %10381
        %v10383 = vlaneseq
        %v10384 = vshrl.u32 %v10383, 7
        %v10385 = vsub.s32 1, %v10384
        %v10386 = vrot.slane %v10283, %v10385
        %10388 = vbcast.lane.b32.xlu0 %v10386, 256
        %v10389 = vpop.permute.xlu0 %10388
        %s10391 = sor.u32 256, 8
        %10392 = vbcast.lane.b32.xlu0 %v10386, %s10391
        %v10393 = vpop.permute.xlu0 %10392
        %v10394 = vlaneseq
        %v10395 = vshrl.u32 %v10394, 7
        %v10396 = vsub.s32 2, %v10395
        %v10397 = vrot.slane %v10283, %v10396
        %10399 = vbcast.lane.b32.xlu0 %v10397, 256
        %v10400 = vpop.permute.xlu0 %10399
        %s10402 = sor.u32 256, 8
        %10403 = vbcast.lane.b32.xlu0 %v10397, %s10402
        %v10404 = vpop.permute.xlu0 %10403
        %v10405 = vlaneseq
        %v10406 = vshrl.u32 %v10405, 7
        %v10407 = vsub.s32 3, %v10406
        %v10408 = vrot.slane %v10283, %v10407
        %10410 = vbcast.lane.b32.xlu0 %v10408, 256
        %v10411 = vpop.permute.xlu0 %10410
        %s10413 = sor.u32 256, 8
        %10414 = vbcast.lane.b32.xlu0 %v10408, %s10413
        %v10415 = vpop.permute.xlu0 %10414
        %v10416 = vlaneseq
        %v10417 = vshrl.u32 %v10416, 7
        %v10418 = vsub.s32 4, %v10417
        %v10419 = vrot.slane %v10283, %v10418
        %10421 = vbcast.lane.b32.xlu0 %v10419, 256
        %v10422 = vpop.permute.xlu0 %10421
        %s10424 = sor.u32 256, 8
        %10425 = vbcast.lane.b32.xlu0 %v10419, %s10424
        %v10426 = vpop.permute.xlu0 %10425
        %v10427 = vlaneseq
        %v10428 = vshrl.u32 %v10427, 7
        %v10429 = vsub.s32 5, %v10428
        %v10430 = vrot.slane %v10283, %v10429
        %10432 = vbcast.lane.b32.xlu0 %v10430, 256
        %v10433 = vpop.permute.xlu0 %10432
        %s10435 = sor.u32 256, 8
        %10436 = vbcast.lane.b32.xlu0 %v10430, %s10435
        %v10437 = vpop.permute.xlu0 %10436
        %v10438 = vlaneseq
        %v10439 = vshrl.u32 %v10438, 7
        %v10440 = vsub.s32 6, %v10439
        %v10441 = vrot.slane %v10283, %v10440
        %10443 = vbcast.lane.b32.xlu0 %v10441, 256
        %v10444 = vpop.permute.xlu0 %10443
        %s10446 = sor.u32 256, 8
        %10447 = vbcast.lane.b32.xlu0 %v10441, %s10446
        %v10448 = vpop.permute.xlu0 %10447
        %v10449 = vlaneseq
        %v10450 = vshrl.u32 %v10449, 7
        %v10451 = vsub.s32 7, %v10450
        %v10452 = vrot.slane %v10283, %v10451
        %10454 = vbcast.lane.b32.xlu0 %v10452, 256
        %v10455 = vpop.permute.xlu0 %10454
        %s10457 = sor.u32 256, 8
        %10458 = vbcast.lane.b32.xlu0 %v10452, %s10457
        %v10459 = vpop.permute.xlu0 %10458
        %v10460 = vmul.f32 %v9240, %v10290
        %v10461 = vmul.f32 %v9241, %v10294
        %v10462 = vmul.f32 %v9242, %v10301
        %v10463 = vmul.f32 %v9243, %v10305
        %v10464 = vmul.f32 %v9244, %v10312
        %v10465 = vmul.f32 %v9245, %v10316
        %v10466 = vmul.f32 %v9246, %v10323
        %v10467 = vmul.f32 %v9247, %v10327
        %v10468 = vmul.f32 %v9248, %v10334
        %v10469 = vmul.f32 %v9249, %v10338
        %v10470 = vmul.f32 %v9250, %v10345
        %v10471 = vmul.f32 %v9251, %v10349
        %v10472 = vmul.f32 %v9252, %v10356
        %v10473 = vmul.f32 %v9253, %v10360
        %v10474 = vmul.f32 %v9254, %v10367
        %v10475 = vmul.f32 %v9255, %v10371
        %v10476 = vmul.f32 %v9256, %v10378
        %v10477 = vmul.f32 %v9257, %v10382
        %v10478 = vmul.f32 %v9258, %v10389
        %v10479 = vmul.f32 %v9259, %v10393
        %v10480 = vmul.f32 %v9260, %v10400
        %v10481 = vmul.f32 %v9261, %v10404
        %v10482 = vmul.f32 %v9262, %v10411
        %v10483 = vmul.f32 %v9263, %v10415
        %v10484 = vmul.f32 %v9264, %v10422
        %v10485 = vmul.f32 %v9265, %v10426
        %v10486 = vmul.f32 %v9266, %v10433
        %v10487 = vmul.f32 %v9267, %v10437
        %v10488 = vmul.f32 %v9268, %v10444
        %v10489 = vmul.f32 %v9269, %v10448
        %v10490 = vmul.f32 %v9270, %v10455
        %v10491 = vmul.f32 %v9271, %v10459
        %v10492 = vpack.c.bf16 %v10461, %v10460
        %v10493 = vpack.c.bf16 %v10463, %v10462
        %v10494 = vpack.c.bf16 %v10465, %v10464
        %v10495 = vpack.c.bf16 %v10467, %v10466
        %v10496 = vpack.c.bf16 %v10469, %v10468
        %v10497 = vpack.c.bf16 %v10471, %v10470
        %v10498 = vpack.c.bf16 %v10473, %v10472
        %v10499 = vpack.c.bf16 %v10475, %v10474
        %v10500 = vpack.c.bf16 %v10477, %v10476
        %v10501 = vpack.c.bf16 %v10479, %v10478
        %v10502 = vpack.c.bf16 %v10481, %v10480
        %v10503 = vpack.c.bf16 %v10483, %v10482
        %v10504 = vpack.c.bf16 %v10485, %v10484
        %v10505 = vpack.c.bf16 %v10487, %v10486
        %v10506 = vpack.c.bf16 %v10489, %v10488
        %v10507 = vpack.c.bf16 %v10491, %v10490
        %v10508 = vld [vmem:[%s7] sm:$0xf]
        %v10509 = vld [vmem:[%s7 + $0x4] sm:$0xf]
        %v10510 = vld [vmem:[%s7 + $0x8] sm:$0xf]
        %v10511 = vld [vmem:[%s7 + $0xc] sm:$0xf]
        %v10512 = vadd.f32 %v9580, %v9583
        %v10513 = vadd.f32 %v10512, %v9586
        %v10514 = vadd.f32 %v10513, %v9589
        %v10515 = vadd.f32 %v10514, %v9592
        %v10516 = vadd.f32 %v10515, %v9595
        %v10517 = vadd.f32 %v10516, %v9598
        %v10518 = vadd.f32 %v10517, %v9601
        %v10519 = vadd.f32 %v10518, %v9604
        %v10520 = vadd.f32 %v10519, %v9607
        %v10521 = vadd.f32 %v10520, %v9610
        %v10522 = vadd.f32 %v10521, %v9613
        %v10523 = vadd.f32 %v10522, %v9616
        %v10524 = vadd.f32 %v10523, %v9619
        %v10525 = vadd.f32 %v10524, %v9622
        %v10526 = vadd.f32 %v10525, %v9625
        %v10527 = vadd.f32 %v10526, %v9628
        %v10528 = vadd.f32 %v10527, %v9631
        %v10529 = vadd.f32 %v10528, %v9634
        %v10530 = vadd.f32 %v10529, %v9637
        %v10531 = vadd.f32 %v10530, %v9640
        %v10532 = vadd.f32 %v10531, %v9643
        %v10533 = vadd.f32 %v10532, %v9646
        %v10534 = vadd.f32 %v10533, %v9649
        %v10535 = vadd.f32 %v10534, %v9652
        %v10536 = vadd.f32 %v10535, %v9655
        %v10537 = vadd.f32 %v10536, %v9658
        %v10538 = vadd.f32 %v10537, %v9661
        %v10539 = vadd.f32 %v10538, %v9664
        %v10540 = vadd.f32 %v10539, %v9667
        %v10541 = vadd.f32 %v10540, %v9670
        %v10542 = vadd.f32 %v10541, %v9673
        %v10543 = vrot.slane %v10542, 4
        %v10544 = vadd.f32 %v10542, %v10543
        %v10545 = vrot.slane %v10544, 2
        %v10546 = vadd.f32 %v10544, %v10545
        %v10547 = vrot.slane %v10546, 1
        %v10548 = vadd.f32 %v10546, %v10547
        %v10549 = vrcp.pop 256.0
        %v10550 = vmul.f32 %v10548, %v10549
        %v10551 = vld [vmem:[%s5] sm:$0xf]
        %v10552 = vmul.f32 %v10550, %v10551
        %v10553 = vsel %vm545, %v10552, 0.0
        %10554 = vadd.xlane.f32.xlu0 %v10553
        %v10555 = vpop.xlane.xlu0 %10554
        %v10556 = vmax.f32 %v10555, 0.0
        %v10557 = vld [vmem:[%s6] sm:$0xf]
        %v10558 = vmul.f32 %v10556, %v10557
        %v10559 = vsel %vm545, %v10558, 0.0
        %v10560 = vrot.slane %v10559, 4
        %v10561 = vadd.f32 %v10559, %v10560
        %v10562 = vrot.slane %v10561, 2
        %v10563 = vadd.f32 %v10561, %v10562
        %v10564 = vrot.slane %v10563, 1
        %v10565 = vadd.f32 %v10563, %v10564
        %v10566 = vxor.u32 %v10565, 2147483648
        %v10567 = vmul.f32 %v10566, 1.442695
        %v10568 = vpow.pop %v10567
        %v10569 = vadd.f32 %v10568, 1.0
        %v10570 = vrcp.pop %v10569
        %v10571 = vmul.f32 1.0, %v10570
        %v10572 = vmul.f32 %v9240, %v10571
        %v10573 = vmul.f32 %v9241, %v10571
        %v10574 = vmul.f32 %v9242, %v10571
        %v10575 = vmul.f32 %v9243, %v10571
        %v10576 = vmul.f32 %v9244, %v10571
        %v10577 = vmul.f32 %v9245, %v10571
        %v10578 = vmul.f32 %v9246, %v10571
        %v10579 = vmul.f32 %v9247, %v10571
        %v10580 = vmul.f32 %v9248, %v10571
        %v10581 = vmul.f32 %v9249, %v10571
        %v10582 = vmul.f32 %v9250, %v10571
        %v10583 = vmul.f32 %v9251, %v10571
        %v10584 = vmul.f32 %v9252, %v10571
        %v10585 = vmul.f32 %v9253, %v10571
        %v10586 = vmul.f32 %v9254, %v10571
        %v10587 = vmul.f32 %v9255, %v10571
        %v10588 = vmul.f32 %v9256, %v10571
        %v10589 = vmul.f32 %v9257, %v10571
        %v10590 = vmul.f32 %v9258, %v10571
        %v10591 = vmul.f32 %v9259, %v10571
        %v10592 = vmul.f32 %v9260, %v10571
        %v10593 = vmul.f32 %v9261, %v10571
        %v10594 = vmul.f32 %v9262, %v10571
        %v10595 = vmul.f32 %v9263, %v10571
        %v10596 = vmul.f32 %v9264, %v10571
        %v10597 = vmul.f32 %v9265, %v10571
        %v10598 = vmul.f32 %v9266, %v10571
        %v10599 = vmul.f32 %v9267, %v10571
        %v10600 = vmul.f32 %v9268, %v10571
        %v10601 = vmul.f32 %v9269, %v10571
        %v10602 = vmul.f32 %v9270, %v10571
        %v10603 = vmul.f32 %v9271, %v10571
        %v10604 = vpack.c.bf16 %v10573, %v10572
        %v10605 = vpack.c.bf16 %v10575, %v10574
        %v10606 = vpack.c.bf16 %v10577, %v10576
        %v10607 = vpack.c.bf16 %v10579, %v10578
        %v10608 = vpack.c.bf16 %v10581, %v10580
        %v10609 = vpack.c.bf16 %v10583, %v10582
        %v10610 = vpack.c.bf16 %v10585, %v10584
        %v10611 = vpack.c.bf16 %v10587, %v10586
        %v10612 = vpack.c.bf16 %v10589, %v10588
        %v10613 = vpack.c.bf16 %v10591, %v10590
        %v10614 = vpack.c.bf16 %v10593, %v10592
        %v10615 = vpack.c.bf16 %v10595, %v10594
        %v10616 = vpack.c.bf16 %v10597, %v10596
        %v10617 = vpack.c.bf16 %v10599, %v10598
        %v10618 = vpack.c.bf16 %v10601, %v10600
        %v10619 = vpack.c.bf16 %v10603, %v10602
        %v10620 = vld [vmem:[%s7 + $0x10] sm:$0xf]
        %v10621 = vld [vmem:[%s7 + $0x14] sm:$0xf]
        %v10622 = vld [vmem:[%s7 + $0x18] sm:$0xf]
        %v10623 = vld [vmem:[%s7 + $0x1c] sm:$0xf]
        %v10628 = vunpack.c.l.b16 %v10620
        %v10629 = vunpack.c.l.b16 %v10621
        %v10630 = vunpack.c.l.b16 %v10622
        %v10631 = vunpack.c.l.b16 %v10623
        %v10632 = vpack.c.b16 %v10629, %v10628
        %v10633 = vpack.c.b16 %v10631, %v10630
        %v10637 = vsel %vm358, %v10604, 0
        %v10640 = vsel %vm358, %v10605, 0
        %v10643 = vsel %vm358, %v10606, 0
        %v10646 = vsel %vm358, %v10607, 0
        %v10649 = vsel %vm358, %v10608, 0
        %v10652 = vsel %vm358, %v10609, 0
        %v10655 = vsel %vm358, %v10610, 0
        %v10658 = vsel %vm358, %v10611, 0
        %v10661 = vsel %vm358, %v10612, 0
        %v10664 = vsel %vm358, %v10613, 0
        %v10667 = vsel %vm358, %v10614, 0
        %v10670 = vsel %vm358, %v10615, 0
        %v10673 = vsel %vm358, %v10616, 0
        %v10676 = vsel %vm358, %v10617, 0
        %v10679 = vsel %vm358, %v10618, 0
        %v10682 = vsel %vm358, %v10619, 0
        %10684 = vmatprep.subr.bf16.mxu0 0
        %10685 = vmatpush1.bf16.msra.mxu0 %v10632
        %10686 = vmatprep.subr.bf16.mxu0 0
        %10687 = vmatpush1.bf16.msra.mxu0 %v10633
        %10688 = vmatprep.subr.bf16.mxu0 0
        %10689 = vmatpush1.bf16.msra.mxu0 0
        %10690 = vmatprep.subr.bf16.mxu0 0
        %10691 = vmatpush1.bf16.msra.mxu0 0
        %10692 = vmatprep.subr.bf16.mxu0 0
        %10693 = vmatpush1.bf16.msra.mxu0 0
        %10694 = vmatprep.subr.bf16.mxu0 0
        %10695 = vmatpush1.bf16.msra.mxu0 0
        %10696 = vmatprep.subr.bf16.mxu0 0
        %10697 = vmatpush1.bf16.msra.mxu0 0
        %10698 = vmatprep.subr.bf16.mxu0 0
        %10699 = vmatpush1.bf16.msra.mxu0 0
        %10700 = vmatprep.subr.bf16.mxu0 0
        %10701 = vmatpush1.bf16.msra.mxu0 0
        %10702 = vmatprep.subr.bf16.mxu0 0
        %10703 = vmatpush1.bf16.msra.mxu0 0
        %10704 = vmatprep.subr.bf16.mxu0 0
        %10705 = vmatpush1.bf16.msra.mxu0 0
        %10706 = vmatprep.subr.bf16.mxu0 0
        %10707 = vmatpush1.bf16.msra.mxu0 0
        %10708 = vmatprep.subr.bf16.mxu0 0
        %10709 = vmatpush1.bf16.msra.mxu0 0
        %10710 = vmatprep.subr.bf16.mxu0 0
        %10711 = vmatpush1.bf16.msra.mxu0 0
        %10712 = vmatprep.subr.bf16.mxu0 0
        %10713 = vmatpush1.bf16.msra.mxu0 0
        %10714 = vmatprep.subr.bf16.mxu0 0
        %10715 = vmatpush1.bf16.msra.mxu0 0
        %10716 = vmatprep.mubr.bf16.mxu0 0
        %10717 = vmatmul.mubr.bf16.gmra.mrb[0].mxu0 %v10637
        %v10718 = vpop.f32.mrb[0].mxu0
        %v10719 = vadd.f32 0.0, %v10718
        %v10720 = vpop.f32.mrb[0].mxu0
        %v10721 = vpop.f32.mrb[0].mxu0
        %v10722 = vadd.f32 0.0, %v10721
        %v10723 = vpop.f32.mrb[0].mxu0
        %10724 = vmatprep.mubr.bf16.mxu0 0
        %10725 = vmatmul.mubr.bf16.gmra.mrb[0].mxu0 %v10640
        %v10726 = vpop.f32.mrb[0].mxu0
        %v10727 = vadd.f32 0.0, %v10726
        %v10728 = vpop.f32.mrb[0].mxu0
        %v10729 = vpop.f32.mrb[0].mxu0
        %v10730 = vadd.f32 0.0, %v10729
        %v10731 = vpop.f32.mrb[0].mxu0
        %10732 = vmatprep.mubr.bf16.mxu0 0
        %10733 = vmatmul.mubr.bf16.gmra.mrb[0].mxu0 %v10643
        %v10734 = vpop.f32.mrb[0].mxu0
        %v10735 = vadd.f32 0.0, %v10734
        %v10736 = vpop.f32.mrb[0].mxu0
        %v10737 = vpop.f32.mrb[0].mxu0
        %v10738 = vadd.f32 0.0, %v10737
        %v10739 = vpop.f32.mrb[0].mxu0
        %10740 = vmatprep.mubr.bf16.mxu0 0
        %10741 = vmatmul.mubr.bf16.gmra.mrb[0].mxu0 %v10646
        %v10742 = vpop.f32.mrb[0].mxu0
        %v10743 = vadd.f32 0.0, %v10742
        %v10744 = vpop.f32.mrb[0].mxu0
        %v10745 = vpop.f32.mrb[0].mxu0
        %v10746 = vadd.f32 0.0, %v10745
        %v10747 = vpop.f32.mrb[0].mxu0
        %10748 = vmatprep.mubr.bf16.mxu0 0
        %10749 = vmatmul.mubr.bf16.gmra.mrb[0].mxu0 %v10649
        %v10750 = vpop.f32.mrb[0].mxu0
        %v10751 = vadd.f32 0.0, %v10750
        %v10752 = vpop.f32.mrb[0].mxu0
        %v10753 = vpop.f32.mrb[0].mxu0
        %v10754 = vadd.f32 0.0, %v10753
        %v10755 = vpop.f32.mrb[0].mxu0
        %10756 = vmatprep.mubr.bf16.mxu0 0
        %10757 = vmatmul.mubr.bf16.gmra.mrb[0].mxu0 %v10652
        %v10758 = vpop.f32.mrb[0].mxu0
        %v10759 = vadd.f32 0.0, %v10758
        %v10760 = vpop.f32.mrb[0].mxu0
        %v10761 = vpop.f32.mrb[0].mxu0
        %v10762 = vadd.f32 0.0, %v10761
        %v10763 = vpop.f32.mrb[0].mxu0
        %10764 = vmatprep.mubr.bf16.mxu0 0
        %10765 = vmatmul.mubr.bf16.gmra.mrb[0].mxu0 %v10655
        %v10766 = vpop.f32.mrb[0].mxu0
        %v10767 = vadd.f32 0.0, %v10766
        %v10768 = vpop.f32.mrb[0].mxu0
        %v10769 = vpop.f32.mrb[0].mxu0
        %v10770 = vadd.f32 0.0, %v10769
        %v10771 = vpop.f32.mrb[0].mxu0
        %10772 = vmatprep.mubr.bf16.mxu0 0
        %10773 = vmatmul.mubr.bf16.gmra.mrb[0].mxu0 %v10658
        %v10774 = vpop.f32.mrb[0].mxu0
        %v10775 = vadd.f32 0.0, %v10774
        %v10776 = vpop.f32.mrb[0].mxu0
        %v10777 = vpop.f32.mrb[0].mxu0
        %v10778 = vadd.f32 0.0, %v10777
        %v10779 = vpop.f32.mrb[0].mxu0
        %10780 = vmatprep.mubr.bf16.mxu0 0
        %10781 = vmatmul.mubr.bf16.gmra.mrb[0].mxu0 %v10661
        %v10782 = vpop.f32.mrb[0].mxu0
        %v10783 = vadd.f32 0.0, %v10782
        %v10784 = vpop.f32.mrb[0].mxu0
        %v10785 = vpop.f32.mrb[0].mxu0
        %v10786 = vadd.f32 0.0, %v10785
        %v10787 = vpop.f32.mrb[0].mxu0
        %10788 = vmatprep.mubr.bf16.mxu0 0
        %10789 = vmatmul.mubr.bf16.gmra.mrb[0].mxu0 %v10664
        %v10790 = vpop.f32.mrb[0].mxu0
        %v10791 = vadd.f32 0.0, %v10790
        %v10792 = vpop.f32.mrb[0].mxu0
        %v10793 = vpop.f32.mrb[0].mxu0
        %v10794 = vadd.f32 0.0, %v10793
        %v10795 = vpop.f32.mrb[0].mxu0
        %10796 = vmatprep.mubr.bf16.mxu0 0
        %10797 = vmatmul.mubr.bf16.gmra.mrb[0].mxu0 %v10667
        %v10798 = vpop.f32.mrb[0].mxu0
        %v10799 = vadd.f32 0.0, %v10798
        %v10800 = vpop.f32.mrb[0].mxu0
        %v10801 = vpop.f32.mrb[0].mxu0
        %v10802 = vadd.f32 0.0, %v10801
        %v10803 = vpop.f32.mrb[0].mxu0
        %10804 = vmatprep.mubr.bf16.mxu0 0
        %10805 = vmatmul.mubr.bf16.gmra.mrb[0].mxu0 %v10670
        %v10806 = vpop.f32.mrb[0].mxu0
        %v10807 = vadd.f32 0.0, %v10806
        %v10808 = vpop.f32.mrb[0].mxu0
        %v10809 = vpop.f32.mrb[0].mxu0
        %v10810 = vadd.f32 0.0, %v10809
        %v10811 = vpop.f32.mrb[0].mxu0
        %10812 = vmatprep.mubr.bf16.mxu0 0
        %10813 = vmatmul.mubr.bf16.gmra.mrb[0].mxu0 %v10673
        %v10814 = vpop.f32.mrb[0].mxu0
        %v10815 = vadd.f32 0.0, %v10814
        %v10816 = vpop.f32.mrb[0].mxu0
        %v10817 = vpop.f32.mrb[0].mxu0
        %v10818 = vadd.f32 0.0, %v10817
        %v10819 = vpop.f32.mrb[0].mxu0
        %10820 = vmatprep.mubr.bf16.mxu0 0
        %10821 = vmatmul.mubr.bf16.gmra.mrb[0].mxu0 %v10676
        %v10822 = vpop.f32.mrb[0].mxu0
        %v10823 = vadd.f32 0.0, %v10822
        %v10824 = vpop.f32.mrb[0].mxu0
        %v10825 = vpop.f32.mrb[0].mxu0
        %v10826 = vadd.f32 0.0, %v10825
        %v10827 = vpop.f32.mrb[0].mxu0
        %10828 = vmatprep.mubr.bf16.mxu0 0
        %10829 = vmatmul.mubr.bf16.gmra.mrb[0].mxu0 %v10679
        %v10830 = vpop.f32.mrb[0].mxu0
        %v10831 = vadd.f32 0.0, %v10830
        %v10832 = vpop.f32.mrb[0].mxu0
        %v10833 = vpop.f32.mrb[0].mxu0
        %v10834 = vadd.f32 0.0, %v10833
        %v10835 = vpop.f32.mrb[0].mxu0
        %10836 = vmatprep.mubr.bf16.mxu0 0
        %10837 = vmatmul.mubr.bf16.gmra.mrb[0].mxu0 %v10682
        %v10838 = vpop.f32.mrb[0].mxu0
        %v10839 = vadd.f32 0.0, %v10838
        %v10840 = vpop.f32.mrb[0].mxu0
        %v10841 = vpop.f32.mrb[0].mxu0
        %v10842 = vadd.f32 0.0, %v10841
        %v10843 = vpop.f32.mrb[0].mxu0
        %10844 = vdwg.mxu0
        %v10849 = vunpack.c.l.b16 %v10508
        %v10850 = vunpack.c.l.b16 %v10509
        %v10851 = vunpack.c.l.b16 %v10510
        %v10852 = vunpack.c.l.b16 %v10511
        %v10853 = vpack.c.b16 %v10850, %v10849
        %v10854 = vpack.c.b16 %v10852, %v10851
        %v10858 = vsel %vm358, %v10492, 0
        %v10861 = vsel %vm358, %v10493, 0
        %v10864 = vsel %vm358, %v10494, 0
        %v10867 = vsel %vm358, %v10495, 0
        %v10870 = vsel %vm358, %v10496, 0
        %v10873 = vsel %vm358, %v10497, 0
        %v10876 = vsel %vm358, %v10498, 0
        %v10879 = vsel %vm358, %v10499, 0
        %v10882 = vsel %vm358, %v10500, 0
        %v10885 = vsel %vm358, %v10501, 0
        %v10888 = vsel %vm358, %v10502, 0
        %v10891 = vsel %vm358, %v10503, 0
        %v10894 = vsel %vm358, %v10504, 0
        %v10897 = vsel %vm358, %v10505, 0
        %v10900 = vsel %vm358, %v10506, 0
        %v10903 = vsel %vm358, %v10507, 0
        %10905 = vmatprep.subr.bf16.mxu0 0
        %10906 = vmatpush1.bf16.msra.mxu0 %v10853
        %10907 = vmatprep.subr.bf16.mxu0 0
        %10908 = vmatpush1.bf16.msra.mxu0 %v10854
        %10909 = vmatprep.subr.bf16.mxu0 0
        %10910 = vmatpush1.bf16.msra.mxu0 0
        %10911 = vmatprep.subr.bf16.mxu0 0
        %10912 = vmatpush1.bf16.msra.mxu0 0
        %10913 = vmatprep.subr.bf16.mxu0 0
        %10914 = vmatpush1.bf16.msra.mxu0 0
        %10915 = vmatprep.subr.bf16.mxu0 0
        %10916 = vmatpush1.bf16.msra.mxu0 0
        %10917 = vmatprep.subr.bf16.mxu0 0
        %10918 = vmatpush1.bf16.msra.mxu0 0
        %10919 = vmatprep.subr.bf16.mxu0 0
        %10920 = vmatpush1.bf16.msra.mxu0 0
        %10921 = vmatprep.subr.bf16.mxu0 0
        %10922 = vmatpush1.bf16.msra.mxu0 0
        %10923 = vmatprep.subr.bf16.mxu0 0
        %10924 = vmatpush1.bf16.msra.mxu0 0
        %10925 = vmatprep.subr.bf16.mxu0 0
        %10926 = vmatpush1.bf16.msra.mxu0 0
        %10927 = vmatprep.subr.bf16.mxu0 0
        %10928 = vmatpush1.bf16.msra.mxu0 0
        %10929 = vmatprep.subr.bf16.mxu0 0
        %10930 = vmatpush1.bf16.msra.mxu0 0
        %10931 = vmatprep.subr.bf16.mxu0 0
        %10932 = vmatpush1.bf16.msra.mxu0 0
        %10933 = vmatprep.subr.bf16.mxu0 0
        %10934 = vmatpush1.bf16.msra.mxu0 0
        %10935 = vmatprep.subr.bf16.mxu0 0
        %10936 = vmatpush1.bf16.msra.mxu0 0
        %10937 = vmatprep.mubr.bf16.mxu0 0
        %10938 = vmatmul.mubr.bf16.gmra.mrb[0].mxu0 %v10858
        %v10939 = vpop.f32.mrb[0].mxu0
        %v10940 = vadd.f32 %v10719, %v10939
        %v10941 = vpop.f32.mrb[0].mxu0
        %v10942 = vpop.f32.mrb[0].mxu0
        %v10943 = vadd.f32 %v10722, %v10942
        %v10944 = vpop.f32.mrb[0].mxu0
        %10945 = vmatprep.mubr.bf16.mxu0 0
        %10946 = vmatmul.mubr.bf16.gmra.mrb[0].mxu0 %v10861
        %v10947 = vpop.f32.mrb[0].mxu0
        %v10948 = vadd.f32 %v10727, %v10947
        %v10949 = vpop.f32.mrb[0].mxu0
        %v10950 = vpop.f32.mrb[0].mxu0
        %v10951 = vadd.f32 %v10730, %v10950
        %v10952 = vpop.f32.mrb[0].mxu0
        %10953 = vmatprep.mubr.bf16.mxu0 0
        %10954 = vmatmul.mubr.bf16.gmra.mrb[0].mxu0 %v10864
        %v10955 = vpop.f32.mrb[0].mxu0
        %v10956 = vadd.f32 %v10735, %v10955
        %v10957 = vpop.f32.mrb[0].mxu0
        %v10958 = vpop.f32.mrb[0].mxu0
        %v10959 = vadd.f32 %v10738, %v10958
        %v10960 = vpop.f32.mrb[0].mxu0
        %10961 = vmatprep.mubr.bf16.mxu0 0
        %10962 = vmatmul.mubr.bf16.gmra.mrb[0].mxu0 %v10867
        %v10963 = vpop.f32.mrb[0].mxu0
        %v10964 = vadd.f32 %v10743, %v10963
        %v10965 = vpop.f32.mrb[0].mxu0
        %v10966 = vpop.f32.mrb[0].mxu0
        %v10967 = vadd.f32 %v10746, %v10966
        %v10968 = vpop.f32.mrb[0].mxu0
        %10969 = vmatprep.mubr.bf16.mxu0 0
        %10970 = vmatmul.mubr.bf16.gmra.mrb[0].mxu0 %v10870
        %v10971 = vpop.f32.mrb[0].mxu0
        %v10972 = vadd.f32 %v10751, %v10971
        %v10973 = vpop.f32.mrb[0].mxu0
        %v10974 = vpop.f32.mrb[0].mxu0
        %v10975 = vadd.f32 %v10754, %v10974
        %v10976 = vpop.f32.mrb[0].mxu0
        %10977 = vmatprep.mubr.bf16.mxu0 0
        %10978 = vmatmul.mubr.bf16.gmra.mrb[0].mxu0 %v10873
        %v10979 = vpop.f32.mrb[0].mxu0
        %v10980 = vadd.f32 %v10759, %v10979
        %v10981 = vpop.f32.mrb[0].mxu0
        %v10982 = vpop.f32.mrb[0].mxu0
        %v10983 = vadd.f32 %v10762, %v10982
        %v10984 = vpop.f32.mrb[0].mxu0
        %10985 = vmatprep.mubr.bf16.mxu0 0
        %10986 = vmatmul.mubr.bf16.gmra.mrb[0].mxu0 %v10876
        %v10987 = vpop.f32.mrb[0].mxu0
        %v10988 = vadd.f32 %v10767, %v10987
        %v10989 = vpop.f32.mrb[0].mxu0
        %v10990 = vpop.f32.mrb[0].mxu0
        %v10991 = vadd.f32 %v10770, %v10990
        %v10992 = vpop.f32.mrb[0].mxu0
        %10993 = vmatprep.mubr.bf16.mxu0 0
        %10994 = vmatmul.mubr.bf16.gmra.mrb[0].mxu0 %v10879
        %v10995 = vpop.f32.mrb[0].mxu0
        %v10996 = vadd.f32 %v10775, %v10995
        %v10997 = vpop.f32.mrb[0].mxu0
        %v10998 = vpop.f32.mrb[0].mxu0
        %v10999 = vadd.f32 %v10778, %v10998
        %v11000 = vpop.f32.mrb[0].mxu0
        %11001 = vmatprep.mubr.bf16.mxu0 0
        %11002 = vmatmul.mubr.bf16.gmra.mrb[0].mxu0 %v10882
        %v11003 = vpop.f32.mrb[0].mxu0
        %v11004 = vadd.f32 %v10783, %v11003
        %v11005 = vpop.f32.mrb[0].mxu0
        %v11006 = vpop.f32.mrb[0].mxu0
        %v11007 = vadd.f32 %v10786, %v11006
        %v11008 = vpop.f32.mrb[0].mxu0
        %11009 = vmatprep.mubr.bf16.mxu0 0
        %11010 = vmatmul.mubr.bf16.gmra.mrb[0].mxu0 %v10885
        %v11011 = vpop.f32.mrb[0].mxu0
        %v11012 = vadd.f32 %v10791, %v11011
        %v11013 = vpop.f32.mrb[0].mxu0
        %v11014 = vpop.f32.mrb[0].mxu0
        %v11015 = vadd.f32 %v10794, %v11014
        %v11016 = vpop.f32.mrb[0].mxu0
        %11017 = vmatprep.mubr.bf16.mxu0 0
        %11018 = vmatmul.mubr.bf16.gmra.mrb[0].mxu0 %v10888
        %v11019 = vpop.f32.mrb[0].mxu0
        %v11020 = vadd.f32 %v10799, %v11019
        %v11021 = vpop.f32.mrb[0].mxu0
        %v11022 = vpop.f32.mrb[0].mxu0
        %v11023 = vadd.f32 %v10802, %v11022
        %v11024 = vpop.f32.mrb[0].mxu0
        %11025 = vmatprep.mubr.bf16.mxu0 0
        %11026 = vmatmul.mubr.bf16.gmra.mrb[0].mxu0 %v10891
        %v11027 = vpop.f32.mrb[0].mxu0
        %v11028 = vadd.f32 %v10807, %v11027
        %v11029 = vpop.f32.mrb[0].mxu0
        %v11030 = vpop.f32.mrb[0].mxu0
        %v11031 = vadd.f32 %v10810, %v11030
        %v11032 = vpop.f32.mrb[0].mxu0
        %11033 = vmatprep.mubr.bf16.mxu0 0
        %11034 = vmatmul.mubr.bf16.gmra.mrb[0].mxu0 %v10894
        %v11035 = vpop.f32.mrb[0].mxu0
        %v11036 = vadd.f32 %v10815, %v11035
        %v11037 = vpop.f32.mrb[0].mxu0
        %v11038 = vpop.f32.mrb[0].mxu0
        %v11039 = vadd.f32 %v10818, %v11038
        %v11040 = vpop.f32.mrb[0].mxu0
        %11041 = vmatprep.mubr.bf16.mxu0 0
        %11042 = vmatmul.mubr.bf16.gmra.mrb[0].mxu0 %v10897
        %v11043 = vpop.f32.mrb[0].mxu0
        %v11044 = vadd.f32 %v10823, %v11043
        %v11045 = vpop.f32.mrb[0].mxu0
        %v11046 = vpop.f32.mrb[0].mxu0
        %v11047 = vadd.f32 %v10826, %v11046
        %v11048 = vpop.f32.mrb[0].mxu0
        %11049 = vmatprep.mubr.bf16.mxu0 0
        %11050 = vmatmul.mubr.bf16.gmra.mrb[0].mxu0 %v10900
        %v11051 = vpop.f32.mrb[0].mxu0
        %v11052 = vadd.f32 %v10831, %v11051
        %v11053 = vpop.f32.mrb[0].mxu0
        %v11054 = vpop.f32.mrb[0].mxu0
        %v11055 = vadd.f32 %v10834, %v11054
        %v11056 = vpop.f32.mrb[0].mxu0
        %11057 = vmatprep.mubr.bf16.mxu0 0
        %11058 = vmatmul.mubr.bf16.gmra.mrb[0].mxu0 %v10903
        %v11059 = vpop.f32.mrb[0].mxu0
        %v11060 = vadd.f32 %v10839, %v11059
        %v11061 = vpop.f32.mrb[0].mxu0
        %v11062 = vpop.f32.mrb[0].mxu0
        %v11063 = vadd.f32 %v10842, %v11062
        %v11064 = vpop.f32.mrb[0].mxu0
        %11065 = vdwg.mxu0
        %v11066 = vadd.f32 %v10940, %v326
        %v11067 = vadd.f32 %v10943, %v327
        %v11068 = vadd.f32 %v10948, %v328
        %v11069 = vadd.f32 %v10951, %v329
        %v11070 = vadd.f32 %v10956, %v330
        %v11071 = vadd.f32 %v10959, %v331
        %v11072 = vadd.f32 %v10964, %v332
        %v11073 = vadd.f32 %v10967, %v333
        %v11074 = vadd.f32 %v10972, %v334
        %v11075 = vadd.f32 %v10975, %v335
        %v11076 = vadd.f32 %v10980, %v336
        %v11077 = vadd.f32 %v10983, %v337
        %v11078 = vadd.f32 %v10988, %v338
        %v11079 = vadd.f32 %v10991, %v339
        %v11080 = vadd.f32 %v10996, %v340
        %v11081 = vadd.f32 %v10999, %v341
        %v11082 = vadd.f32 %v11004, %v342
        %v11083 = vadd.f32 %v11007, %v343
        %v11084 = vadd.f32 %v11012, %v344
        %v11085 = vadd.f32 %v11015, %v345
        %v11086 = vadd.f32 %v11020, %v346
        %v11087 = vadd.f32 %v11023, %v347
        %v11088 = vadd.f32 %v11028, %v348
        %v11089 = vadd.f32 %v11031, %v349
        %v11090 = vadd.f32 %v11036, %v350
        %v11091 = vadd.f32 %v11039, %v351
        %v11092 = vadd.f32 %v11044, %v352
        %v11093 = vadd.f32 %v11047, %v353
        %v11094 = vadd.f32 %v11052, %v354
        %v11095 = vadd.f32 %v11055, %v355
        %v11096 = vadd.f32 %v11060, %v356
        %v11097 = vadd.f32 %v11063, %v357
        %11098 = vst.msk [vmem:[%s324] sm:$0xff] %vm358, %v11066
        %11099 = vst.msk [vmem:[%s324 + $0x8] sm:$0xff] %vm358, %v11067
        %11100 = vst.msk [vmem:[%s324 + $0x10] sm:$0xff] %vm358, %v11068
        %11101 = vst.msk [vmem:[%s324 + $0x18] sm:$0xff] %vm358, %v11069
        %11102 = vst.msk [vmem:[%s324 + $0x20] sm:$0xff] %vm358, %v11070
        %11103 = vst.msk [vmem:[%s324 + $0x28] sm:$0xff] %vm358, %v11071
        %11104 = vst.msk [vmem:[%s324 + $0x30] sm:$0xff] %vm358, %v11072
        %11105 = vst.msk [vmem:[%s324 + $0x38] sm:$0xff] %vm358, %v11073
        %11106 = vst.msk [vmem:[%s324 + $0x40] sm:$0xff] %vm358, %v11074
        %11107 = vst.msk [vmem:[%s324 + $0x48] sm:$0xff] %vm358, %v11075
        %11108 = vst.msk [vmem:[%s324 + $0x50] sm:$0xff] %vm358, %v11076
        %11109 = vst.msk [vmem:[%s324 + $0x58] sm:$0xff] %vm358, %v11077
        %11110 = vst.msk [vmem:[%s324 + $0x60] sm:$0xff] %vm358, %v11078
        %11111 = vst.msk [vmem:[%s324 + $0x68] sm:$0xff] %vm358, %v11079
        %11112 = vst.msk [vmem:[%s324 + $0x70] sm:$0xff] %vm358, %v11080
        %11113 = vst.msk [vmem:[%s324 + $0x78] sm:$0xff] %vm358, %v11081
        %11114 = vst.msk [vmem:[%s324 + $0x80] sm:$0xff] %vm358, %v11082
        %11115 = vst.msk [vmem:[%s324 + $0x88] sm:$0xff] %vm358, %v11083
        %11116 = vst.msk [vmem:[%s324 + $0x90] sm:$0xff] %vm358, %v11084
        %11117 = vst.msk [vmem:[%s324 + $0x98] sm:$0xff] %vm358, %v11085
        %11118 = vst.msk [vmem:[%s324 + $0xa0] sm:$0xff] %vm358, %v11086
        %11119 = vst.msk [vmem:[%s324 + $0xa8] sm:$0xff] %vm358, %v11087
        %11120 = vst.msk [vmem:[%s324 + $0xb0] sm:$0xff] %vm358, %v11088
        %11121 = vst.msk [vmem:[%s324 + $0xb8] sm:$0xff] %vm358, %v11089
        %11122 = vst.msk [vmem:[%s324 + $0xc0] sm:$0xff] %vm358, %v11090
        %11123 = vst.msk [vmem:[%s324 + $0xc8] sm:$0xff] %vm358, %v11091
        %11124 = vst.msk [vmem:[%s324 + $0xd0] sm:$0xff] %vm358, %v11092
        %11125 = vst.msk [vmem:[%s324 + $0xd8] sm:$0xff] %vm358, %v11093
        %11126 = vst.msk [vmem:[%s324 + $0xe0] sm:$0xff] %vm358, %v11094
        %11127 = vst.msk [vmem:[%s324 + $0xe8] sm:$0xff] %vm358, %v11095
        %11128 = vst.msk [vmem:[%s324 + $0xf0] sm:$0xff] %vm358, %v11096
        %11129 = vst.msk [vmem:[%s324 + $0xf8] sm:$0xff] %vm358, %v11097
        %s11130 = sand.u32 %s207, 1
        %s11131 = scalar_lea.sflag [#allocation7], %s11130
        %s11132 = sand.u32 %s207, 1
        %s11133 = smul.addr %s11132, 256
        %s11134 = scalar_lea.vmem [#allocation8], %s11133
        // Predicated region
        $region57: #{tpu_custom_call.1} parent=51 // pred_check
          %p11135 = pneg %p217
        $region58: #{tpu_custom_call.1} parent=51 // pred_check_branch
          %11137 = sbr.rel (%p11135) target = $region60
        $region59: #{tpu_custom_call.1} parent=51 // pred_region
          %s11139 = ssub.s32 4096, 4096
          %11140 = vsyncadd %s11131, %s11139
          %s11141 = smul.addr %s26, 32
          %s11142 = smul.addr %s11141, 128
          %s11143 = scalar_lea.hbm %s8, %s11142
          %s11144 = sshll.u32 %s11134, 4
          %s11145 = int_to_ptr.vmem [resolvable:$true] %s11144
          %11150 = dma.vmem_to_hbm [thread:$0]  %s11145, 4096, %s11143, %s11131, 128, 128, 8
        $region60: #{tpu_custom_call.1} parent=51 // pred_fallthru
          _
      $region52: #{tpu_custom_call.1} parent=5 // pred_fallthru
        _
      %p11151 = scmp.le.s32.totalorder 2, %s21
      // Predicated region
      $region61: #{tpu_custom_call.1} parent=5 // pred_check
        %p11152 = pneg %p11151
      $region62: #{tpu_custom_call.1} parent=5 // pred_check_branch
        %11154 = sbr.rel (%p11152) target = $region64
      $region63: #{tpu_custom_call.1} parent=5 // pred_region
        %s11155 = ssub.s32 %s21, 2
        // Predicated region
        $region65: #{tpu_custom_call.1} parent=63 // pred_check
          %p11156 = pneg %p223
        $region66: #{tpu_custom_call.1} parent=63 // pred_check_branch
          %11158 = sbr.rel (%p11156) target = $region68
        $region67: #{tpu_custom_call.1} parent=63 // pred_region
          %s11159 = sand.u32 %s208, 1
          %s11160 = scalar_lea.sflag [#allocation7], %s11159
          %s11161 = sand.u32 %s208, 1
          %s11162 = smul.addr %s11161, 256
          %s11163 = scalar_lea.vmem [#allocation8], %s11162
          %11164 = dma.done %s11160, 4096
        $region68: #{tpu_custom_call.1} parent=63 // pred_fallthru
          _
      $region64: #{tpu_custom_call.1} parent=5 // pred_fallthru
        _
    $region6: #{tpu_custom_call.1} parent=1 // loop_footer
      %s25 = sadd.s32 1, %s21
    $region7: #{tpu_custom_call.1} parent=1 // loop_footer_branch
      %20 = sbr.rel target = $region3
    $region8: #{tpu_custom_call.1} parent=1 // loop_exit
      _
    %11165 = vsyncpa [#allocation6], 1
    %s11166 = scalar_lea.sflag [#allocation6], 1
    %11167 = vsyncpa %s11166, 1
    %11168 = vsyncpa [#allocation7], 1
    %s11169 = scalar_lea.sflag [#allocation7], 1
    %11170 = vsyncpa %s11169, 1

</llo_original>
